<compile_context>
chip_gen: v7x
topology: tpu7x:2x2x1
jax: 0.10.0
libtpu: 0.0.40
codegen_flags: <defaults>
</compile_context>

<pallas_src>
import numpy as np
import jax
import jax.numpy as jnp
from jax.experimental import pallas as pl
from jax.experimental.pallas import tpu as pltpu

KSIZE = 5
PAD = KSIZE // 2
BN_EPS = 1e-5
BIG = 1e30  # additive out-of-image penalty for the morphological max/min

_VMEM = pl.BlockSpec(memory_space=pltpu.MemorySpace.VMEM)


# --------------------------------------------------------------------------
# The single fused network kernel
# --------------------------------------------------------------------------
def _make_network_kernel(*, layer_meta, N, H, W):
    """layer_meta: list of dicts {cin, cout, has_conv, has_dil, has_ero} (static)."""
    HW = H * W
    NS = N * HW                      # lane length of every activation slab
    inv_m = 1.0 / float(NS)          # BatchNorm divisor (N*H*W)

    def kernel(*refs):
        refs = list(refs)
        row_ref = refs.pop(0)        # (1, NS) int32: per-lane image row index
        col_ref = refs.pop(0)        # (1, NS) int32: per-lane image col index
        x_ref = refs.pop(0)          # (C0, NS) f32

        row = row_ref[...]
        col = col_ref[...]

        # Memoized {0,1} float validity masks / additive BIG penalties per 1-D offset.
        _zero, _pen = {}, {}

        def zmask(axis, off):        # multiplicative mask (zero padding)
            if off == 0:
                return None
            key = (axis, off)
            if key not in _zero:
                idx, lim = (row, H) if axis == "r" else (col, W)
                t = idx + off
                _zero[key] = ((t >= 0) & (t < lim)).astype(jnp.float32)
            return _zero[key]

        def pen(axis, off):          # additive penalty (excludes tap from max/min)
            if off == 0:
                return None
            key = (axis, off)
            if key not in _pen:
                _pen[key] = (1.0 - zmask(axis, off)) * BIG
            return _pen[key]

        def rolled(u, dy, dx):
            """u at spatial offset (dy, dx): pure lane rotation (masks applied by caller)."""
            off = dy * W + dx
            if off == 0:
                return u
            return pltpu.roll(u, shift=(-off) % NS, axis=1)

        u = x_ref[...]               # (C0, NS)

        for meta in layer_meta:
            cin, cout = meta["cin"], meta["cout"]

            # --- ConvectionR2: separable bilinear-transport stencil (zero halo) ----
            if meta["has_conv"]:
                wy_ref = refs.pop(0)                 # (cin, 5) VMEM
                wx_ref = refs.pop(0)                 # (cin, 5) VMEM
                t = jnp.zeros_like(u)
                for kx in range(KSIZE):              # row pass (dx)
                    dx = kx - PAD
                    v = rolled(u, 0, dx)
                    m = zmask("c", dx)
                    if m is not None:
                        v = v * m
                    t = t + v * wx_ref[:, kx:kx + 1]
                v2 = jnp.zeros_like(u)
                for ky in range(KSIZE):              # column pass (dy)
                    dy = ky - PAD
                    v = rolled(t, dy, 0)
                    m = zmask("r", dy)
                    if m is not None:
                        v = v * m
                    v2 = v2 + v * wy_ref[:, ky:ky + 1]
                u = v2

            # --- DilationR2: max over 5x5 window of (u - b) ------------------------
            if meta["has_dil"]:
                b_ref = refs.pop(0)                  # (cin, 25) VMEM
                acc = None
                for ky in range(KSIZE):
                    dy = ky - PAD
                    rp = pen("r", dy)
                    for kx in range(KSIZE):
                        dx = kx - PAD
                        cp = pen("c", dx)
                        t = ky * KSIZE + kx
                        v = rolled(u, dy, dx) - b_ref[:, t:t + 1]
                        if rp is not None:
                            v = v - rp
                        if cp is not None:
                            v = v - cp
                        acc = v if acc is None else jnp.maximum(acc, v)
                u = acc

            # --- ErosionR2: min over 5x5 window of (u + b) -------------------------
            if meta["has_ero"]:
                b_ref = refs.pop(0)                  # (cin, 25) VMEM
                acc = None
                for ky in range(KSIZE):
                    dy = ky - PAD
                    rp = pen("r", dy)
                    for kx in range(KSIZE):
                        dx = kx - PAD
                        cp = pen("c", dx)
                        t = ky * KSIZE + kx
                        v = rolled(u, dy, dx) + b_ref[:, t:t + 1]
                        if rp is not None:
                            v = v + rp
                        if cp is not None:
                            v = v + cp
                        acc = v if acc is None else jnp.minimum(acc, v)
                u = acc

            # --- LinearR2 (1x1 channel mix) + BatchNorm2d (batch stats) ------------
            wT_ref = refs.pop(0)                     # (cout, cin) VMEM
            lb_ref = refs.pop(0)                     # (cout, 1)   VMEM
            g_ref = refs.pop(0)                      # (cout, 1)   VMEM
            be_ref = refs.pop(0)                     # (cout, 1)   VMEM

            acc = jnp.zeros((cout, NS), jnp.float32)
            for ci in range(cin):
                acc = acc + (jnp.broadcast_to(u[ci:ci + 1, :], (cout, NS))
                             * wT_ref[:, ci:ci + 1])
            y = acc + lb_ref[...]

            mean = jnp.sum(y, axis=1, keepdims=True) * inv_m        # (cout, 1)
            d = y - mean
            var = jnp.sum(d * d, axis=1, keepdims=True) * inv_m     # biased variance
            u = g_ref[...] * d * jax.lax.rsqrt(var + BN_EPS) + be_ref[...]
            # TODO(synk): Dropout2d(0.1) would apply here in layers 2/3 (train mode only).

        # --- layer6: 1x1 conv (no bias) + Sigmoid, fused ---------------------------
        w6_ref = refs.pop(0)                         # (c, 1) VMEM
        o_ref = refs.pop(0)                          # (1, NS) VMEM output
        z = jnp.sum(u * w6_ref[...], axis=0, keepdims=True)
        o_ref[...] = jax.nn.sigmoid(z)

    return kernel


# --------------------------------------------------------------------------
# Wrapper: layout glue + the single pallas_call
# --------------------------------------------------------------------------
def cde_pde_cnn_forward(x_nchw, layer_params, w6):
    """x_nchw: (N, C0, H, W). Returns (N, 1, H, W) sigmoid output."""
    N, C0, H, W = x_nchw.shape
    HW = H * W
    NS = N * HW

    # Lane-dense channel-major activations: (C0, N*H*W).
    x = x_nchw.astype(jnp.float32).transpose(1, 0, 2, 3).reshape(C0, NS)

    # Per-lane image row/col indices (constants; folded at compile time).
    p_idx = jnp.arange(NS, dtype=jnp.int32)
    row_idx = ((p_idx % HW) // W).reshape(1, NS)
    col_idx = (p_idx % W).reshape(1, NS)

    inputs = [row_idx, col_idx, x]
    layer_meta = []
    cin = C0
    for p in layer_params:
        cout = p["lin_w"].shape[1]
        meta = {"cin": cin, "cout": cout,
                "has_conv": "conv_wy" in p,
                "has_dil": "dil_b" in p,
                "has_ero": "ero_b" in p}
        layer_meta.append(meta)
        if meta["has_conv"]:
            inputs += [p["conv_wy"], p["conv_wx"]]            # (cin,5) each
        if meta["has_dil"]:
            inputs.append(p["dil_b"])                         # (cin,25)
        if meta["has_ero"]:
            inputs.append(p["ero_b"])                         # (cin,25)
        inputs += [p["lin_w"].T,                              # (cout,cin)
                   p["lin_b"].reshape(-1, 1),                 # (cout,1)
                   p["gamma"].reshape(-1, 1),                 # (cout,1)
                   p["beta"].reshape(-1, 1)]                  # (cout,1)
        cin = cout
    inputs.append(w6.reshape(-1, 1).astype(jnp.float32))      # (c,1)

    kernel = _make_network_kernel(layer_meta=layer_meta, N=N, H=H, W=W)

    out = pl.pallas_call(
        kernel,
        in_specs=[_VMEM] * len(inputs),
        out_specs=_VMEM,
        out_shape=jax.ShapeDtypeStruct((1, NS), jnp.float32),
    )(*inputs)

    return out.reshape(N, H, W)[:, None, :, :]


# --------------------------------------------------------------------------
# Deterministic parameter construction (synthetic init, no checkpoint)
# --------------------------------------------------------------------------
def _bilinear_translation_weights_separable(v):
    """Per-channel separable 5x5 translation stencil: returns (wy, wx), each (C, 5)."""
    C = v.shape[0]
    wy = np.zeros((C, KSIZE), np.float32)
    wx = np.zeros((C, KSIZE), np.float32)
    for c in range(C):
        ay, ax = -float(v[c, 0]), -float(v[c, 1])
        fy, fx = int(np.floor(ay)), int(np.floor(ax))
        ty, tx = ay - fy, ax - fx
        wy[c, fy + PAD] += 1.0 - ty
        wy[c, fy + 1 + PAD] += ty
        wx[c, fx + PAD] += 1.0 - tx
        wx[c, fx + 1 + PAD] += tx
    return wy, wx


def _quadratic_structuring(c, alpha, rng):
    """Synthetic init of the learnable morphological structuring element (kernel_size=5)."""
    exponent = alpha / (2.0 * alpha - 1.0)
    dy, dx = np.meshgrid(np.arange(KSIZE) - PAD, np.arange(KSIZE) - PAD, indexing="ij")
    r2 = (dy ** 2 + dx ** 2).astype(np.float32)
    scales = rng.uniform(0.05, 0.3, size=(c, 1, 1)).astype(np.float32)
    b = scales * (r2 / 8.0) ** exponent
    return b.reshape(c, KSIZE * KSIZE).astype(np.float32)


def make_layer_params(rng, c_in, c_out, has_conv, has_dil, has_ero, alpha):
    p = {}
    if has_conv:
        v = rng.uniform(-1.5, 1.5, size=(c_in, 2))
        wy, wx = _bilinear_translation_weights_separable(v)
        p["conv_wy"] = jnp.asarray(wy)
        p["conv_wx"] = jnp.asarray(wx)
    if has_dil:
        p["dil_b"] = jnp.asarray(_quadratic_structuring(c_in, alpha, rng))
    if has_ero:
        p["ero_b"] = jnp.asarray(_quadratic_structuring(c_in, alpha, rng))
    p["lin_w"] = jnp.asarray(
        rng.normal(0.0, 1.0 / np.sqrt(c_in), size=(c_in, c_out)).astype(np.float32))
    p["lin_b"] = jnp.asarray(rng.normal(0.0, 0.1, size=(c_out,)).astype(np.float32))
    p["gamma"] = jnp.asarray((1.0 + 0.1 * rng.normal(size=(c_out,))).astype(np.float32))
    p["beta"] = jnp.asarray((0.1 * rng.normal(size=(c_out,))).astype(np.float32))
    return p


def build_params(conf, rng):
    c = conf["channels"]
    comps = conf["components"]
    conv = conf["convection"]
    alpha = conf["alpha"]
    de = conf["dil-ero"]
    layers = [
        make_layer_params(rng, 3, c, conv, de[0] == "d", de[0] != "d", alpha),  # layer1
        make_layer_params(rng, c, c, conv, comps[0], comps[1], alpha),          # layer2
        make_layer_params(rng, c, c, conv, comps[2], comps[3], alpha),          # layer3
        make_layer_params(rng, c, c, conv, comps[4], comps[5], alpha),          # layer4
        make_layer_params(rng, c, c, conv, de[1] == "d", de[1] != "d", alpha),  # layer5
    ]
    w6 = jnp.asarray(rng.normal(0.0, 1.0 / np.sqrt(c), size=(1, c)).astype(np.float32))
    return layers, w6


# --------------------------------------------------------------------------
if __name__ == "__main__":
    conf = {
        "channels": 8,
        "components": (True, False, False, True, True, False),
        "alpha": 0.65,
        "convection": True,
        "dil-ero": "de",
    }
    rng = np.random.default_rng(0)
    layer_params, w6 = build_params(conf, rng)

    key = jax.random.PRNGKey(0)
    x = jax.random.normal(key, (2, 3, 16, 16), dtype=jnp.float32)  # NCHW

    fwd = jax.jit(cde_pde_cnn_forward)
    out = jax.block_until_ready(fwd(x, layer_params, w6))

    assert out.shape == (2, 1, 16, 16), out.shape
    assert bool(jnp.all(jnp.isfinite(out)))
    assert bool(jnp.all((out >= 0.0) & (out <= 1.0)))  # sigmoid output
    print("KERNEL_OK")
</pallas_src>

<mosaic_0001>
module attributes {stable_mosaic.version = 11 : i64} {
  func.func @kernel(%arg0: memref<1x512xi32, #tpu.memory_space<vmem>>, %arg1: memref<1x512xi32, #tpu.memory_space<vmem>>, %arg2: memref<3x512xf32, #tpu.memory_space<vmem>>, %arg3: memref<3x5xf32, #tpu.memory_space<vmem>>, %arg4: memref<3x5xf32, #tpu.memory_space<vmem>>, %arg5: memref<3x25xf32, #tpu.memory_space<vmem>>, %arg6: memref<8x3xf32, #tpu.memory_space<vmem>>, %arg7: memref<8x1xf32, #tpu.memory_space<vmem>>, %arg8: memref<8x1xf32, #tpu.memory_space<vmem>>, %arg9: memref<8x1xf32, #tpu.memory_space<vmem>>, %arg10: memref<8x5xf32, #tpu.memory_space<vmem>>, %arg11: memref<8x5xf32, #tpu.memory_space<vmem>>, %arg12: memref<8x25xf32, #tpu.memory_space<vmem>>, %arg13: memref<8x8xf32, #tpu.memory_space<vmem>>, %arg14: memref<8x1xf32, #tpu.memory_space<vmem>>, %arg15: memref<8x1xf32, #tpu.memory_space<vmem>>, %arg16: memref<8x1xf32, #tpu.memory_space<vmem>>, %arg17: memref<8x5xf32, #tpu.memory_space<vmem>>, %arg18: memref<8x5xf32, #tpu.memory_space<vmem>>, %arg19: memref<8x25xf32, #tpu.memory_space<vmem>>, %arg20: memref<8x8xf32, #tpu.memory_space<vmem>>, %arg21: memref<8x1xf32, #tpu.memory_space<vmem>>, %arg22: memref<8x1xf32, #tpu.memory_space<vmem>>, %arg23: memref<8x1xf32, #tpu.memory_space<vmem>>, %arg24: memref<8x5xf32, #tpu.memory_space<vmem>>, %arg25: memref<8x5xf32, #tpu.memory_space<vmem>>, %arg26: memref<8x25xf32, #tpu.memory_space<vmem>>, %arg27: memref<8x8xf32, #tpu.memory_space<vmem>>, %arg28: memref<8x1xf32, #tpu.memory_space<vmem>>, %arg29: memref<8x1xf32, #tpu.memory_space<vmem>>, %arg30: memref<8x1xf32, #tpu.memory_space<vmem>>, %arg31: memref<8x5xf32, #tpu.memory_space<vmem>>, %arg32: memref<8x5xf32, #tpu.memory_space<vmem>>, %arg33: memref<8x25xf32, #tpu.memory_space<vmem>>, %arg34: memref<8x8xf32, #tpu.memory_space<vmem>>, %arg35: memref<8x1xf32, #tpu.memory_space<vmem>>, %arg36: memref<8x1xf32, #tpu.memory_space<vmem>>, %arg37: memref<8x1xf32, #tpu.memory_space<vmem>>, %arg38: memref<8x1xf32, #tpu.memory_space<vmem>>, %arg39: memref<1x512xf32, #tpu.memory_space<vmem>>) attributes {dimension_semantics = [], scalar_prefetch = 0 : i64, scratch_operands = 0 : i64, tpu.core_type = #tpu.core_type<tc>} {
    %c0 = arith.constant 0 : index
    %c0_0 = arith.constant 0 : index
    %0 = vector.load %arg0[%c0, %c0_0] : memref<1x512xi32, #tpu.memory_space<vmem>>, vector<1x512xi32>
    %c0_1 = arith.constant 0 : index
    %c0_2 = arith.constant 0 : index
    %1 = vector.load %arg1[%c0_1, %c0_2] : memref<1x512xi32, #tpu.memory_space<vmem>>, vector<1x512xi32>
    %c0_3 = arith.constant 0 : index
    %c0_4 = arith.constant 0 : index
    %2 = vector.load %arg2[%c0_3, %c0_4] : memref<3x512xf32, #tpu.memory_space<vmem>>, vector<3x512xf32>
    %cst = arith.constant 0.000000e+00 : f32
    %3 = vector.broadcast %cst : f32 to vector<3x512xf32>
    %c2_i32 = arith.constant 2 : i32
    %4 = tpu.dynamic_rotate %2 by %c2_i32 dim 1 : vector<3x512xf32>, i32 -> vector<3x512xf32>
    %c-2_i32 = arith.constant -2 : i32
    %5 = vector.broadcast %c-2_i32 : i32 to vector<1x512xi32>
    %6 = arith.addi %1, %5 : vector<1x512xi32>
    %c0_i32 = arith.constant 0 : i32
    %7 = vector.broadcast %c0_i32 : i32 to vector<1x512xi32>
    %8 = arith.cmpi sge, %6, %7 : vector<1x512xi32>
    %c16_i32 = arith.constant 16 : i32
    %9 = vector.broadcast %c16_i32 : i32 to vector<1x512xi32>
    %10 = arith.cmpi slt, %6, %9 : vector<1x512xi32>
    %11 = arith.andi %8, %10 : vector<1x512xi1>
    %12 = arith.extui %11 : vector<1x512xi1> to vector<1x512xi32>
    %13 = arith.sitofp %12 : vector<1x512xi32> to vector<1x512xf32>
    %14 = vector.broadcast %13 : vector<1x512xf32> to vector<3x512xf32>
    %15 = arith.mulf %4, %14 : vector<3x512xf32>
    %c0_5 = arith.constant 0 : index
    %c0_6 = arith.constant 0 : index
    %16 = vector.load %arg4[%c0_5, %c0_6] : memref<3x5xf32, #tpu.memory_space<vmem>>, vector<3x1xf32>
    %17 = vector.broadcast %16 : vector<3x1xf32> to vector<3x512xf32>
    %18 = arith.mulf %15, %17 : vector<3x512xf32>
    %19 = arith.addf %3, %18 : vector<3x512xf32>
    %c1_i32 = arith.constant 1 : i32
    %20 = tpu.dynamic_rotate %2 by %c1_i32 dim 1 : vector<3x512xf32>, i32 -> vector<3x512xf32>
    %c-1_i32 = arith.constant -1 : i32
    %21 = vector.broadcast %c-1_i32 : i32 to vector<1x512xi32>
    %22 = arith.addi %1, %21 : vector<1x512xi32>
    %c0_i32_7 = arith.constant 0 : i32
    %23 = vector.broadcast %c0_i32_7 : i32 to vector<1x512xi32>
    %24 = arith.cmpi sge, %22, %23 : vector<1x512xi32>
    %c16_i32_8 = arith.constant 16 : i32
    %25 = vector.broadcast %c16_i32_8 : i32 to vector<1x512xi32>
    %26 = arith.cmpi slt, %22, %25 : vector<1x512xi32>
    %27 = arith.andi %24, %26 : vector<1x512xi1>
    %28 = arith.extui %27 : vector<1x512xi1> to vector<1x512xi32>
    %29 = arith.sitofp %28 : vector<1x512xi32> to vector<1x512xf32>
    %30 = vector.broadcast %29 : vector<1x512xf32> to vector<3x512xf32>
    %31 = arith.mulf %20, %30 : vector<3x512xf32>
    %c0_9 = arith.constant 0 : index
    %c1 = arith.constant 1 : index
    %32 = vector.load %arg4[%c0_9, %c1] : memref<3x5xf32, #tpu.memory_space<vmem>>, vector<3x1xf32>
    %33 = vector.broadcast %32 : vector<3x1xf32> to vector<3x512xf32>
    %34 = arith.mulf %31, %33 : vector<3x512xf32>
    %35 = arith.addf %19, %34 : vector<3x512xf32>
    %c0_10 = arith.constant 0 : index
    %c2 = arith.constant 2 : index
    %36 = vector.load %arg4[%c0_10, %c2] : memref<3x5xf32, #tpu.memory_space<vmem>>, vector<3x1xf32>
    %37 = vector.broadcast %36 : vector<3x1xf32> to vector<3x512xf32>
    %38 = arith.mulf %2, %37 : vector<3x512xf32>
    %39 = arith.addf %35, %38 : vector<3x512xf32>
    %c511_i32 = arith.constant 511 : i32
    %40 = tpu.dynamic_rotate %2 by %c511_i32 dim 1 : vector<3x512xf32>, i32 -> vector<3x512xf32>
    %c1_i32_11 = arith.constant 1 : i32
    %41 = vector.broadcast %c1_i32_11 : i32 to vector<1x512xi32>
    %42 = arith.addi %1, %41 : vector<1x512xi32>
    %c0_i32_12 = arith.constant 0 : i32
    %43 = vector.broadcast %c0_i32_12 : i32 to vector<1x512xi32>
    %44 = arith.cmpi sge, %42, %43 : vector<1x512xi32>
    %c16_i32_13 = arith.constant 16 : i32
    %45 = vector.broadcast %c16_i32_13 : i32 to vector<1x512xi32>
    %46 = arith.cmpi slt, %42, %45 : vector<1x512xi32>
    %47 = arith.andi %44, %46 : vector<1x512xi1>
    %48 = arith.extui %47 : vector<1x512xi1> to vector<1x512xi32>
    %49 = arith.sitofp %48 : vector<1x512xi32> to vector<1x512xf32>
    %50 = vector.broadcast %49 : vector<1x512xf32> to vector<3x512xf32>
    %51 = arith.mulf %40, %50 : vector<3x512xf32>
    %c0_14 = arith.constant 0 : index
    %c3 = arith.constant 3 : index
    %52 = vector.load %arg4[%c0_14, %c3] : memref<3x5xf32, #tpu.memory_space<vmem>>, vector<3x1xf32>
    %53 = vector.broadcast %52 : vector<3x1xf32> to vector<3x512xf32>
    %54 = arith.mulf %51, %53 : vector<3x512xf32>
    %55 = arith.addf %39, %54 : vector<3x512xf32>
    %c510_i32 = arith.constant 510 : i32
    %56 = tpu.dynamic_rotate %2 by %c510_i32 dim 1 : vector<3x512xf32>, i32 -> vector<3x512xf32>
    %c2_i32_15 = arith.constant 2 : i32
    %57 = vector.broadcast %c2_i32_15 : i32 to vector<1x512xi32>
    %58 = arith.addi %1, %57 : vector<1x512xi32>
    %c0_i32_16 = arith.constant 0 : i32
    %59 = vector.broadcast %c0_i32_16 : i32 to vector<1x512xi32>
    %60 = arith.cmpi sge, %58, %59 : vector<1x512xi32>
    %c16_i32_17 = arith.constant 16 : i32
    %61 = vector.broadcast %c16_i32_17 : i32 to vector<1x512xi32>
    %62 = arith.cmpi slt, %58, %61 : vector<1x512xi32>
    %63 = arith.andi %60, %62 : vector<1x512xi1>
    %64 = arith.extui %63 : vector<1x512xi1> to vector<1x512xi32>
    %65 = arith.sitofp %64 : vector<1x512xi32> to vector<1x512xf32>
    %66 = vector.broadcast %65 : vector<1x512xf32> to vector<3x512xf32>
    %67 = arith.mulf %56, %66 : vector<3x512xf32>
    %c0_18 = arith.constant 0 : index
    %c4 = arith.constant 4 : index
    %68 = vector.load %arg4[%c0_18, %c4] : memref<3x5xf32, #tpu.memory_space<vmem>>, vector<3x1xf32>
    %69 = vector.broadcast %68 : vector<3x1xf32> to vector<3x512xf32>
    %70 = arith.mulf %67, %69 : vector<3x512xf32>
    %71 = arith.addf %55, %70 : vector<3x512xf32>
    %cst_19 = arith.constant 0.000000e+00 : f32
    %72 = vector.broadcast %cst_19 : f32 to vector<3x512xf32>
    %c32_i32 = arith.constant 32 : i32
    %73 = tpu.dynamic_rotate %71 by %c32_i32 dim 1 : vector<3x512xf32>, i32 -> vector<3x512xf32>
    %c-2_i32_20 = arith.constant -2 : i32
    %74 = vector.broadcast %c-2_i32_20 : i32 to vector<1x512xi32>
    %75 = arith.addi %0, %74 : vector<1x512xi32>
    %c0_i32_21 = arith.constant 0 : i32
    %76 = vector.broadcast %c0_i32_21 : i32 to vector<1x512xi32>
    %77 = arith.cmpi sge, %75, %76 : vector<1x512xi32>
    %c16_i32_22 = arith.constant 16 : i32
    %78 = vector.broadcast %c16_i32_22 : i32 to vector<1x512xi32>
    %79 = arith.cmpi slt, %75, %78 : vector<1x512xi32>
    %80 = arith.andi %77, %79 : vector<1x512xi1>
    %81 = arith.extui %80 : vector<1x512xi1> to vector<1x512xi32>
    %82 = arith.sitofp %81 : vector<1x512xi32> to vector<1x512xf32>
    %83 = vector.broadcast %82 : vector<1x512xf32> to vector<3x512xf32>
    %84 = arith.mulf %73, %83 : vector<3x512xf32>
    %c0_23 = arith.constant 0 : index
    %c0_24 = arith.constant 0 : index
    %85 = vector.load %arg3[%c0_23, %c0_24] : memref<3x5xf32, #tpu.memory_space<vmem>>, vector<3x1xf32>
    %86 = vector.broadcast %85 : vector<3x1xf32> to vector<3x512xf32>
    %87 = arith.mulf %84, %86 : vector<3x512xf32>
    %88 = arith.addf %72, %87 : vector<3x512xf32>
    %c16_i32_25 = arith.constant 16 : i32
    %89 = tpu.dynamic_rotate %71 by %c16_i32_25 dim 1 : vector<3x512xf32>, i32 -> vector<3x512xf32>
    %c-1_i32_26 = arith.constant -1 : i32
    %90 = vector.broadcast %c-1_i32_26 : i32 to vector<1x512xi32>
    %91 = arith.addi %0, %90 : vector<1x512xi32>
    %c0_i32_27 = arith.constant 0 : i32
    %92 = vector.broadcast %c0_i32_27 : i32 to vector<1x512xi32>
    %93 = arith.cmpi sge, %91, %92 : vector<1x512xi32>
    %c16_i32_28 = arith.constant 16 : i32
    %94 = vector.broadcast %c16_i32_28 : i32 to vector<1x512xi32>
    %95 = arith.cmpi slt, %91, %94 : vector<1x512xi32>
    %96 = arith.andi %93, %95 : vector<1x512xi1>
    %97 = arith.extui %96 : vector<1x512xi1> to vector<1x512xi32>
    %98 = arith.sitofp %97 : vector<1x512xi32> to vector<1x512xf32>
    %99 = vector.broadcast %98 : vector<1x512xf32> to vector<3x512xf32>
    %100 = arith.mulf %89, %99 : vector<3x512xf32>
    %c0_29 = arith.constant 0 : index
    %c1_30 = arith.constant 1 : index
    %101 = vector.load %arg3[%c0_29, %c1_30] : memref<3x5xf32, #tpu.memory_space<vmem>>, vector<3x1xf32>
    %102 = vector.broadcast %101 : vector<3x1xf32> to vector<3x512xf32>
    %103 = arith.mulf %100, %102 : vector<3x512xf32>
    %104 = arith.addf %88, %103 : vector<3x512xf32>
    %c0_31 = arith.constant 0 : index
    %c2_32 = arith.constant 2 : index
    %105 = vector.load %arg3[%c0_31, %c2_32] : memref<3x5xf32, #tpu.memory_space<vmem>>, vector<3x1xf32>
    %106 = vector.broadcast %105 : vector<3x1xf32> to vector<3x512xf32>
    %107 = arith.mulf %71, %106 : vector<3x512xf32>
    %108 = arith.addf %104, %107 : vector<3x512xf32>
    %c496_i32 = arith.constant 496 : i32
    %109 = tpu.dynamic_rotate %71 by %c496_i32 dim 1 : vector<3x512xf32>, i32 -> vector<3x512xf32>
    %c1_i32_33 = arith.constant 1 : i32
    %110 = vector.broadcast %c1_i32_33 : i32 to vector<1x512xi32>
    %111 = arith.addi %0, %110 : vector<1x512xi32>
    %c0_i32_34 = arith.constant 0 : i32
    %112 = vector.broadcast %c0_i32_34 : i32 to vector<1x512xi32>
    %113 = arith.cmpi sge, %111, %112 : vector<1x512xi32>
    %c16_i32_35 = arith.constant 16 : i32
    %114 = vector.broadcast %c16_i32_35 : i32 to vector<1x512xi32>
    %115 = arith.cmpi slt, %111, %114 : vector<1x512xi32>
    %116 = arith.andi %113, %115 : vector<1x512xi1>
    %117 = arith.extui %116 : vector<1x512xi1> to vector<1x512xi32>
    %118 = arith.sitofp %117 : vector<1x512xi32> to vector<1x512xf32>
    %119 = vector.broadcast %118 : vector<1x512xf32> to vector<3x512xf32>
    %120 = arith.mulf %109, %119 : vector<3x512xf32>
    %c0_36 = arith.constant 0 : index
    %c3_37 = arith.constant 3 : index
    %121 = vector.load %arg3[%c0_36, %c3_37] : memref<3x5xf32, #tpu.memory_space<vmem>>, vector<3x1xf32>
    %122 = vector.broadcast %121 : vector<3x1xf32> to vector<3x512xf32>
    %123 = arith.mulf %120, %122 : vector<3x512xf32>
    %124 = arith.addf %108, %123 : vector<3x512xf32>
    %c480_i32 = arith.constant 480 : i32
    %125 = tpu.dynamic_rotate %71 by %c480_i32 dim 1 : vector<3x512xf32>, i32 -> vector<3x512xf32>
    %c2_i32_38 = arith.constant 2 : i32
    %126 = vector.broadcast %c2_i32_38 : i32 to vector<1x512xi32>
    %127 = arith.addi %0, %126 : vector<1x512xi32>
    %c0_i32_39 = arith.constant 0 : i32
    %128 = vector.broadcast %c0_i32_39 : i32 to vector<1x512xi32>
    %129 = arith.cmpi sge, %127, %128 : vector<1x512xi32>
    %c16_i32_40 = arith.constant 16 : i32
    %130 = vector.broadcast %c16_i32_40 : i32 to vector<1x512xi32>
    %131 = arith.cmpi slt, %127, %130 : vector<1x512xi32>
    %132 = arith.andi %129, %131 : vector<1x512xi1>
    %133 = arith.extui %132 : vector<1x512xi1> to vector<1x512xi32>
    %134 = arith.sitofp %133 : vector<1x512xi32> to vector<1x512xf32>
    %135 = vector.broadcast %134 : vector<1x512xf32> to vector<3x512xf32>
    %136 = arith.mulf %125, %135 : vector<3x512xf32>
    %c0_41 = arith.constant 0 : index
    %c4_42 = arith.constant 4 : index
    %137 = vector.load %arg3[%c0_41, %c4_42] : memref<3x5xf32, #tpu.memory_space<vmem>>, vector<3x1xf32>
    %138 = vector.broadcast %137 : vector<3x1xf32> to vector<3x512xf32>
    %139 = arith.mulf %136, %138 : vector<3x512xf32>
    %140 = arith.addf %124, %139 : vector<3x512xf32>
    %cst_43 = arith.constant 1.000000e+00 : f32
    %141 = vector.broadcast %cst_43 : f32 to vector<1x512xf32>
    %142 = arith.subf %141, %82 : vector<1x512xf32>
    %cst_44 = arith.constant 1.000000e+30 : f32
    %143 = vector.broadcast %cst_44 : f32 to vector<1x512xf32>
    %144 = arith.mulf %142, %143 : vector<1x512xf32>
    %cst_45 = arith.constant 1.000000e+00 : f32
    %145 = vector.broadcast %cst_45 : f32 to vector<1x512xf32>
    %146 = arith.subf %145, %13 : vector<1x512xf32>
    %cst_46 = arith.constant 1.000000e+30 : f32
    %147 = vector.broadcast %cst_46 : f32 to vector<1x512xf32>
    %148 = arith.mulf %146, %147 : vector<1x512xf32>
    %c34_i32 = arith.constant 34 : i32
    %149 = tpu.dynamic_rotate %140 by %c34_i32 dim 1 : vector<3x512xf32>, i32 -> vector<3x512xf32>
    %c0_47 = arith.constant 0 : index
    %c0_48 = arith.constant 0 : index
    %150 = vector.load %arg5[%c0_47, %c0_48] : memref<3x25xf32, #tpu.memory_space<vmem>>, vector<3x1xf32>
    %151 = vector.broadcast %150 : vector<3x1xf32> to vector<3x512xf32>
    %152 = arith.subf %149, %151 : vector<3x512xf32>
    %153 = vector.broadcast %144 : vector<1x512xf32> to vector<3x512xf32>
    %154 = arith.subf %152, %153 : vector<3x512xf32>
    %155 = vector.broadcast %148 : vector<1x512xf32> to vector<3x512xf32>
    %156 = arith.subf %154, %155 : vector<3x512xf32>
    %cst_49 = arith.constant 1.000000e+00 : f32
    %157 = vector.broadcast %cst_49 : f32 to vector<1x512xf32>
    %158 = arith.subf %157, %29 : vector<1x512xf32>
    %cst_50 = arith.constant 1.000000e+30 : f32
    %159 = vector.broadcast %cst_50 : f32 to vector<1x512xf32>
    %160 = arith.mulf %158, %159 : vector<1x512xf32>
    %c33_i32 = arith.constant 33 : i32
    %161 = tpu.dynamic_rotate %140 by %c33_i32 dim 1 : vector<3x512xf32>, i32 -> vector<3x512xf32>
    %c0_51 = arith.constant 0 : index
    %c1_52 = arith.constant 1 : index
    %162 = vector.load %arg5[%c0_51, %c1_52] : memref<3x25xf32, #tpu.memory_space<vmem>>, vector<3x1xf32>
    %163 = vector.broadcast %162 : vector<3x1xf32> to vector<3x512xf32>
    %164 = arith.subf %161, %163 : vector<3x512xf32>
    %165 = vector.broadcast %144 : vector<1x512xf32> to vector<3x512xf32>
    %166 = arith.subf %164, %165 : vector<3x512xf32>
    %167 = vector.broadcast %160 : vector<1x512xf32> to vector<3x512xf32>
    %168 = arith.subf %166, %167 : vector<3x512xf32>
    %169 = arith.maximumf %156, %168 : vector<3x512xf32>
    %c32_i32_53 = arith.constant 32 : i32
    %170 = tpu.dynamic_rotate %140 by %c32_i32_53 dim 1 : vector<3x512xf32>, i32 -> vector<3x512xf32>
    %c0_54 = arith.constant 0 : index
    %c2_55 = arith.constant 2 : index
    %171 = vector.load %arg5[%c0_54, %c2_55] : memref<3x25xf32, #tpu.memory_space<vmem>>, vector<3x1xf32>
    %172 = vector.broadcast %171 : vector<3x1xf32> to vector<3x512xf32>
    %173 = arith.subf %170, %172 : vector<3x512xf32>
    %174 = vector.broadcast %144 : vector<1x512xf32> to vector<3x512xf32>
    %175 = arith.subf %173, %174 : vector<3x512xf32>
    %176 = arith.maximumf %169, %175 : vector<3x512xf32>
    %cst_56 = arith.constant 1.000000e+00 : f32
    %177 = vector.broadcast %cst_56 : f32 to vector<1x512xf32>
    %178 = arith.subf %177, %49 : vector<1x512xf32>
    %cst_57 = arith.constant 1.000000e+30 : f32
    %179 = vector.broadcast %cst_57 : f32 to vector<1x512xf32>
    %180 = arith.mulf %178, %179 : vector<1x512xf32>
    %c31_i32 = arith.constant 31 : i32
    %181 = tpu.dynamic_rotate %140 by %c31_i32 dim 1 : vector<3x512xf32>, i32 -> vector<3x512xf32>
    %c0_58 = arith.constant 0 : index
    %c3_59 = arith.constant 3 : index
    %182 = vector.load %arg5[%c0_58, %c3_59] : memref<3x25xf32, #tpu.memory_space<vmem>>, vector<3x1xf32>
    %183 = vector.broadcast %182 : vector<3x1xf32> to vector<3x512xf32>
    %184 = arith.subf %181, %183 : vector<3x512xf32>
    %185 = vector.broadcast %144 : vector<1x512xf32> to vector<3x512xf32>
    %186 = arith.subf %184, %185 : vector<3x512xf32>
    %187 = vector.broadcast %180 : vector<1x512xf32> to vector<3x512xf32>
    %188 = arith.subf %186, %187 : vector<3x512xf32>
    %189 = arith.maximumf %176, %188 : vector<3x512xf32>
    %cst_60 = arith.constant 1.000000e+00 : f32
    %190 = vector.broadcast %cst_60 : f32 to vector<1x512xf32>
    %191 = arith.subf %190, %65 : vector<1x512xf32>
    %cst_61 = arith.constant 1.000000e+30 : f32
    %192 = vector.broadcast %cst_61 : f32 to vector<1x512xf32>
    %193 = arith.mulf %191, %192 : vector<1x512xf32>
    %c30_i32 = arith.constant 30 : i32
    %194 = tpu.dynamic_rotate %140 by %c30_i32 dim 1 : vector<3x512xf32>, i32 -> vector<3x512xf32>
    %c0_62 = arith.constant 0 : index
    %c4_63 = arith.constant 4 : index
    %195 = vector.load %arg5[%c0_62, %c4_63] : memref<3x25xf32, #tpu.memory_space<vmem>>, vector<3x1xf32>
    %196 = vector.broadcast %195 : vector<3x1xf32> to vector<3x512xf32>
    %197 = arith.subf %194, %196 : vector<3x512xf32>
    %198 = vector.broadcast %144 : vector<1x512xf32> to vector<3x512xf32>
    %199 = arith.subf %197, %198 : vector<3x512xf32>
    %200 = vector.broadcast %193 : vector<1x512xf32> to vector<3x512xf32>
    %201 = arith.subf %199, %200 : vector<3x512xf32>
    %202 = arith.maximumf %189, %201 : vector<3x512xf32>
    %cst_64 = arith.constant 1.000000e+00 : f32
    %203 = vector.broadcast %cst_64 : f32 to vector<1x512xf32>
    %204 = arith.subf %203, %98 : vector<1x512xf32>
    %cst_65 = arith.constant 1.000000e+30 : f32
    %205 = vector.broadcast %cst_65 : f32 to vector<1x512xf32>
    %206 = arith.mulf %204, %205 : vector<1x512xf32>
    %c18_i32 = arith.constant 18 : i32
    %207 = tpu.dynamic_rotate %140 by %c18_i32 dim 1 : vector<3x512xf32>, i32 -> vector<3x512xf32>
    %c0_66 = arith.constant 0 : index
    %c5 = arith.constant 5 : index
    %208 = vector.load %arg5[%c0_66, %c5] : memref<3x25xf32, #tpu.memory_space<vmem>>, vector<3x1xf32>
    %209 = vector.broadcast %208 : vector<3x1xf32> to vector<3x512xf32>
    %210 = arith.subf %207, %209 : vector<3x512xf32>
    %211 = vector.broadcast %206 : vector<1x512xf32> to vector<3x512xf32>
    %212 = arith.subf %210, %211 : vector<3x512xf32>
    %213 = vector.broadcast %148 : vector<1x512xf32> to vector<3x512xf32>
    %214 = arith.subf %212, %213 : vector<3x512xf32>
    %215 = arith.maximumf %202, %214 : vector<3x512xf32>
    %c17_i32 = arith.constant 17 : i32
    %216 = tpu.dynamic_rotate %140 by %c17_i32 dim 1 : vector<3x512xf32>, i32 -> vector<3x512xf32>
    %c0_67 = arith.constant 0 : index
    %c6 = arith.constant 6 : index
    %217 = vector.load %arg5[%c0_67, %c6] : memref<3x25xf32, #tpu.memory_space<vmem>>, vector<3x1xf32>
    %218 = vector.broadcast %217 : vector<3x1xf32> to vector<3x512xf32>
    %219 = arith.subf %216, %218 : vector<3x512xf32>
    %220 = vector.broadcast %206 : vector<1x512xf32> to vector<3x512xf32>
    %221 = arith.subf %219, %220 : vector<3x512xf32>
    %222 = vector.broadcast %160 : vector<1x512xf32> to vector<3x512xf32>
    %223 = arith.subf %221, %222 : vector<3x512xf32>
    %224 = arith.maximumf %215, %223 : vector<3x512xf32>
    %c16_i32_68 = arith.constant 16 : i32
    %225 = tpu.dynamic_rotate %140 by %c16_i32_68 dim 1 : vector<3x512xf32>, i32 -> vector<3x512xf32>
    %c0_69 = arith.constant 0 : index
    %c7 = arith.constant 7 : index
    %226 = vector.load %arg5[%c0_69, %c7] : memref<3x25xf32, #tpu.memory_space<vmem>>, vector<3x1xf32>
    %227 = vector.broadcast %226 : vector<3x1xf32> to vector<3x512xf32>
    %228 = arith.subf %225, %227 : vector<3x512xf32>
    %229 = vector.broadcast %206 : vector<1x512xf32> to vector<3x512xf32>
    %230 = arith.subf %228, %229 : vector<3x512xf32>
    %231 = arith.maximumf %224, %230 : vector<3x512xf32>
    %c15_i32 = arith.constant 15 : i32
    %232 = tpu.dynamic_rotate %140 by %c15_i32 dim 1 : vector<3x512xf32>, i32 -> vector<3x512xf32>
    %c0_70 = arith.constant 0 : index
    %c8 = arith.constant 8 : index
    %233 = vector.load %arg5[%c0_70, %c8] : memref<3x25xf32, #tpu.memory_space<vmem>>, vector<3x1xf32>
    %234 = vector.broadcast %233 : vector<3x1xf32> to vector<3x512xf32>
    %235 = arith.subf %232, %234 : vector<3x512xf32>
    %236 = vector.broadcast %206 : vector<1x512xf32> to vector<3x512xf32>
    %237 = arith.subf %235, %236 : vector<3x512xf32>
    %238 = vector.broadcast %180 : vector<1x512xf32> to vector<3x512xf32>
    %239 = arith.subf %237, %238 : vector<3x512xf32>
    %240 = arith.maximumf %231, %239 : vector<3x512xf32>
    %c14_i32 = arith.constant 14 : i32
    %241 = tpu.dynamic_rotate %140 by %c14_i32 dim 1 : vector<3x512xf32>, i32 -> vector<3x512xf32>
    %c0_71 = arith.constant 0 : index
    %c9 = arith.constant 9 : index
    %242 = vector.load %arg5[%c0_71, %c9] : memref<3x25xf32, #tpu.memory_space<vmem>>, vector<3x1xf32>
    %243 = vector.broadcast %242 : vector<3x1xf32> to vector<3x512xf32>
    %244 = arith.subf %241, %243 : vector<3x512xf32>
    %245 = vector.broadcast %206 : vector<1x512xf32> to vector<3x512xf32>
    %246 = arith.subf %244, %245 : vector<3x512xf32>
    %247 = vector.broadcast %193 : vector<1x512xf32> to vector<3x512xf32>
    %248 = arith.subf %246, %247 : vector<3x512xf32>
    %249 = arith.maximumf %240, %248 : vector<3x512xf32>
    %c2_i32_72 = arith.constant 2 : i32
    %250 = tpu.dynamic_rotate %140 by %c2_i32_72 dim 1 : vector<3x512xf32>, i32 -> vector<3x512xf32>
    %c0_73 = arith.constant 0 : index
    %c10 = arith.constant 10 : index
    %251 = vector.load %arg5[%c0_73, %c10] : memref<3x25xf32, #tpu.memory_space<vmem>>, vector<3x1xf32>
    %252 = vector.broadcast %251 : vector<3x1xf32> to vector<3x512xf32>
    %253 = arith.subf %250, %252 : vector<3x512xf32>
    %254 = vector.broadcast %148 : vector<1x512xf32> to vector<3x512xf32>
    %255 = arith.subf %253, %254 : vector<3x512xf32>
    %256 = arith.maximumf %249, %255 : vector<3x512xf32>
    %c1_i32_74 = arith.constant 1 : i32
    %257 = tpu.dynamic_rotate %140 by %c1_i32_74 dim 1 : vector<3x512xf32>, i32 -> vector<3x512xf32>
    %c0_75 = arith.constant 0 : index
    %c11 = arith.constant 11 : index
    %258 = vector.load %arg5[%c0_75, %c11] : memref<3x25xf32, #tpu.memory_space<vmem>>, vector<3x1xf32>
    %259 = vector.broadcast %258 : vector<3x1xf32> to vector<3x512xf32>
    %260 = arith.subf %257, %259 : vector<3x512xf32>
    %261 = vector.broadcast %160 : vector<1x512xf32> to vector<3x512xf32>
    %262 = arith.subf %260, %261 : vector<3x512xf32>
    %263 = arith.maximumf %256, %262 : vector<3x512xf32>
    %c0_76 = arith.constant 0 : index
    %c12 = arith.constant 12 : index
    %264 = vector.load %arg5[%c0_76, %c12] : memref<3x25xf32, #tpu.memory_space<vmem>>, vector<3x1xf32>
    %265 = vector.broadcast %264 : vector<3x1xf32> to vector<3x512xf32>
    %266 = arith.subf %140, %265 : vector<3x512xf32>
    %267 = arith.maximumf %263, %266 : vector<3x512xf32>
    %c511_i32_77 = arith.constant 511 : i32
    %268 = tpu.dynamic_rotate %140 by %c511_i32_77 dim 1 : vector<3x512xf32>, i32 -> vector<3x512xf32>
    %c0_78 = arith.constant 0 : index
    %c13 = arith.constant 13 : index
    %269 = vector.load %arg5[%c0_78, %c13] : memref<3x25xf32, #tpu.memory_space<vmem>>, vector<3x1xf32>
    %270 = vector.broadcast %269 : vector<3x1xf32> to vector<3x512xf32>
    %271 = arith.subf %268, %270 : vector<3x512xf32>
    %272 = vector.broadcast %180 : vector<1x512xf32> to vector<3x512xf32>
    %273 = arith.subf %271, %272 : vector<3x512xf32>
    %274 = arith.maximumf %267, %273 : vector<3x512xf32>
    %c510_i32_79 = arith.constant 510 : i32
    %275 = tpu.dynamic_rotate %140 by %c510_i32_79 dim 1 : vector<3x512xf32>, i32 -> vector<3x512xf32>
    %c0_80 = arith.constant 0 : index
    %c14 = arith.constant 14 : index
    %276 = vector.load %arg5[%c0_80, %c14] : memref<3x25xf32, #tpu.memory_space<vmem>>, vector<3x1xf32>
    %277 = vector.broadcast %276 : vector<3x1xf32> to vector<3x512xf32>
    %278 = arith.subf %275, %277 : vector<3x512xf32>
    %279 = vector.broadcast %193 : vector<1x512xf32> to vector<3x512xf32>
    %280 = arith.subf %278, %279 : vector<3x512xf32>
    %281 = arith.maximumf %274, %280 : vector<3x512xf32>
    %cst_81 = arith.constant 1.000000e+00 : f32
    %282 = vector.broadcast %cst_81 : f32 to vector<1x512xf32>
    %283 = arith.subf %282, %118 : vector<1x512xf32>
    %cst_82 = arith.constant 1.000000e+30 : f32
    %284 = vector.broadcast %cst_82 : f32 to vector<1x512xf32>
    %285 = arith.mulf %283, %284 : vector<1x512xf32>
    %c498_i32 = arith.constant 498 : i32
    %286 = tpu.dynamic_rotate %140 by %c498_i32 dim 1 : vector<3x512xf32>, i32 -> vector<3x512xf32>
    %c0_83 = arith.constant 0 : index
    %c15 = arith.constant 15 : index
    %287 = vector.load %arg5[%c0_83, %c15] : memref<3x25xf32, #tpu.memory_space<vmem>>, vector<3x1xf32>
    %288 = vector.broadcast %287 : vector<3x1xf32> to vector<3x512xf32>
    %289 = arith.subf %286, %288 : vector<3x512xf32>
    %290 = vector.broadcast %285 : vector<1x512xf32> to vector<3x512xf32>
    %291 = arith.subf %289, %290 : vector<3x512xf32>
    %292 = vector.broadcast %148 : vector<1x512xf32> to vector<3x512xf32>
    %293 = arith.subf %291, %292 : vector<3x512xf32>
    %294 = arith.maximumf %281, %293 : vector<3x512xf32>
    %c497_i32 = arith.constant 497 : i32
    %295 = tpu.dynamic_rotate %140 by %c497_i32 dim 1 : vector<3x512xf32>, i32 -> vector<3x512xf32>
    %c0_84 = arith.constant 0 : index
    %c16 = arith.constant 16 : index
    %296 = vector.load %arg5[%c0_84, %c16] : memref<3x25xf32, #tpu.memory_space<vmem>>, vector<3x1xf32>
    %297 = vector.broadcast %296 : vector<3x1xf32> to vector<3x512xf32>
    %298 = arith.subf %295, %297 : vector<3x512xf32>
    %299 = vector.broadcast %285 : vector<1x512xf32> to vector<3x512xf32>
    %300 = arith.subf %298, %299 : vector<3x512xf32>
    %301 = vector.broadcast %160 : vector<1x512xf32> to vector<3x512xf32>
    %302 = arith.subf %300, %301 : vector<3x512xf32>
    %303 = arith.maximumf %294, %302 : vector<3x512xf32>
    %c496_i32_85 = arith.constant 496 : i32
    %304 = tpu.dynamic_rotate %140 by %c496_i32_85 dim 1 : vector<3x512xf32>, i32 -> vector<3x512xf32>
    %c0_86 = arith.constant 0 : index
    %c17 = arith.constant 17 : index
    %305 = vector.load %arg5[%c0_86, %c17] : memref<3x25xf32, #tpu.memory_space<vmem>>, vector<3x1xf32>
    %306 = vector.broadcast %305 : vector<3x1xf32> to vector<3x512xf32>
    %307 = arith.subf %304, %306 : vector<3x512xf32>
    %308 = vector.broadcast %285 : vector<1x512xf32> to vector<3x512xf32>
    %309 = arith.subf %307, %308 : vector<3x512xf32>
    %310 = arith.maximumf %303, %309 : vector<3x512xf32>
    %c495_i32 = arith.constant 495 : i32
    %311 = tpu.dynamic_rotate %140 by %c495_i32 dim 1 : vector<3x512xf32>, i32 -> vector<3x512xf32>
    %c0_87 = arith.constant 0 : index
    %c18 = arith.constant 18 : index
    %312 = vector.load %arg5[%c0_87, %c18] : memref<3x25xf32, #tpu.memory_space<vmem>>, vector<3x1xf32>
    %313 = vector.broadcast %312 : vector<3x1xf32> to vector<3x512xf32>
    %314 = arith.subf %311, %313 : vector<3x512xf32>
    %315 = vector.broadcast %285 : vector<1x512xf32> to vector<3x512xf32>
    %316 = arith.subf %314, %315 : vector<3x512xf32>
    %317 = vector.broadcast %180 : vector<1x512xf32> to vector<3x512xf32>
    %318 = arith.subf %316, %317 : vector<3x512xf32>
    %319 = arith.maximumf %310, %318 : vector<3x512xf32>
    %c494_i32 = arith.constant 494 : i32
    %320 = tpu.dynamic_rotate %140 by %c494_i32 dim 1 : vector<3x512xf32>, i32 -> vector<3x512xf32>
    %c0_88 = arith.constant 0 : index
    %c19 = arith.constant 19 : index
    %321 = vector.load %arg5[%c0_88, %c19] : memref<3x25xf32, #tpu.memory_space<vmem>>, vector<3x1xf32>
    %322 = vector.broadcast %321 : vector<3x1xf32> to vector<3x512xf32>
    %323 = arith.subf %320, %322 : vector<3x512xf32>
    %324 = vector.broadcast %285 : vector<1x512xf32> to vector<3x512xf32>
    %325 = arith.subf %323, %324 : vector<3x512xf32>
    %326 = vector.broadcast %193 : vector<1x512xf32> to vector<3x512xf32>
    %327 = arith.subf %325, %326 : vector<3x512xf32>
    %328 = arith.maximumf %319, %327 : vector<3x512xf32>
    %cst_89 = arith.constant 1.000000e+00 : f32
    %329 = vector.broadcast %cst_89 : f32 to vector<1x512xf32>
    %330 = arith.subf %329, %134 : vector<1x512xf32>
    %cst_90 = arith.constant 1.000000e+30 : f32
    %331 = vector.broadcast %cst_90 : f32 to vector<1x512xf32>
    %332 = arith.mulf %330, %331 : vector<1x512xf32>
    %c482_i32 = arith.constant 482 : i32
    %333 = tpu.dynamic_rotate %140 by %c482_i32 dim 1 : vector<3x512xf32>, i32 -> vector<3x512xf32>
    %c0_91 = arith.constant 0 : index
    %c20 = arith.constant 20 : index
    %334 = vector.load %arg5[%c0_91, %c20] : memref<3x25xf32, #tpu.memory_space<vmem>>, vector<3x1xf32>
    %335 = vector.broadcast %334 : vector<3x1xf32> to vector<3x512xf32>
    %336 = arith.subf %333, %335 : vector<3x512xf32>
    %337 = vector.broadcast %332 : vector<1x512xf32> to vector<3x512xf32>
    %338 = arith.subf %336, %337 : vector<3x512xf32>
    %339 = vector.broadcast %148 : vector<1x512xf32> to vector<3x512xf32>
    %340 = arith.subf %338, %339 : vector<3x512xf32>
    %341 = arith.maximumf %328, %340 : vector<3x512xf32>
    %c481_i32 = arith.constant 481 : i32
    %342 = tpu.dynamic_rotate %140 by %c481_i32 dim 1 : vector<3x512xf32>, i32 -> vector<3x512xf32>
    %c0_92 = arith.constant 0 : index
    %c21 = arith.constant 21 : index
    %343 = vector.load %arg5[%c0_92, %c21] : memref<3x25xf32, #tpu.memory_space<vmem>>, vector<3x1xf32>
    %344 = vector.broadcast %343 : vector<3x1xf32> to vector<3x512xf32>
    %345 = arith.subf %342, %344 : vector<3x512xf32>
    %346 = vector.broadcast %332 : vector<1x512xf32> to vector<3x512xf32>
    %347 = arith.subf %345, %346 : vector<3x512xf32>
    %348 = vector.broadcast %160 : vector<1x512xf32> to vector<3x512xf32>
    %349 = arith.subf %347, %348 : vector<3x512xf32>
    %350 = arith.maximumf %341, %349 : vector<3x512xf32>
    %c480_i32_93 = arith.constant 480 : i32
    %351 = tpu.dynamic_rotate %140 by %c480_i32_93 dim 1 : vector<3x512xf32>, i32 -> vector<3x512xf32>
    %c0_94 = arith.constant 0 : index
    %c22 = arith.constant 22 : index
    %352 = vector.load %arg5[%c0_94, %c22] : memref<3x25xf32, #tpu.memory_space<vmem>>, vector<3x1xf32>
    %353 = vector.broadcast %352 : vector<3x1xf32> to vector<3x512xf32>
    %354 = arith.subf %351, %353 : vector<3x512xf32>
    %355 = vector.broadcast %332 : vector<1x512xf32> to vector<3x512xf32>
    %356 = arith.subf %354, %355 : vector<3x512xf32>
    %357 = arith.maximumf %350, %356 : vector<3x512xf32>
    %c479_i32 = arith.constant 479 : i32
    %358 = tpu.dynamic_rotate %140 by %c479_i32 dim 1 : vector<3x512xf32>, i32 -> vector<3x512xf32>
    %c0_95 = arith.constant 0 : index
    %c23 = arith.constant 23 : index
    %359 = vector.load %arg5[%c0_95, %c23] : memref<3x25xf32, #tpu.memory_space<vmem>>, vector<3x1xf32>
    %360 = vector.broadcast %359 : vector<3x1xf32> to vector<3x512xf32>
    %361 = arith.subf %358, %360 : vector<3x512xf32>
    %362 = vector.broadcast %332 : vector<1x512xf32> to vector<3x512xf32>
    %363 = arith.subf %361, %362 : vector<3x512xf32>
    %364 = vector.broadcast %180 : vector<1x512xf32> to vector<3x512xf32>
    %365 = arith.subf %363, %364 : vector<3x512xf32>
    %366 = arith.maximumf %357, %365 : vector<3x512xf32>
    %c478_i32 = arith.constant 478 : i32
    %367 = tpu.dynamic_rotate %140 by %c478_i32 dim 1 : vector<3x512xf32>, i32 -> vector<3x512xf32>
    %c0_96 = arith.constant 0 : index
    %c24 = arith.constant 24 : index
    %368 = vector.load %arg5[%c0_96, %c24] : memref<3x25xf32, #tpu.memory_space<vmem>>, vector<3x1xf32>
    %369 = vector.broadcast %368 : vector<3x1xf32> to vector<3x512xf32>
    %370 = arith.subf %367, %369 : vector<3x512xf32>
    %371 = vector.broadcast %332 : vector<1x512xf32> to vector<3x512xf32>
    %372 = arith.subf %370, %371 : vector<3x512xf32>
    %373 = vector.broadcast %193 : vector<1x512xf32> to vector<3x512xf32>
    %374 = arith.subf %372, %373 : vector<3x512xf32>
    %375 = arith.maximumf %366, %374 : vector<3x512xf32>
    %cst_97 = arith.constant 0.000000e+00 : f32
    %376 = vector.broadcast %cst_97 : f32 to vector<8x512xf32>
    %377 = vector.extract_strided_slice %375 {offsets = [0, 0], sizes = [1, 512], strides = [1, 1]} : vector<3x512xf32> to vector<1x512xf32>
    %378 = vector.shape_cast %377 : vector<1x512xf32> to vector<1x512xf32>
    %379 = vector.broadcast %378 : vector<1x512xf32> to vector<8x512xf32>
    %c0_98 = arith.constant 0 : index
    %c0_99 = arith.constant 0 : index
    %380 = vector.load %arg6[%c0_98, %c0_99] : memref<8x3xf32, #tpu.memory_space<vmem>>, vector<8x1xf32>
    %381 = vector.broadcast %380 : vector<8x1xf32> to vector<8x512xf32>
    %382 = arith.mulf %379, %381 : vector<8x512xf32>
    %383 = arith.addf %376, %382 : vector<8x512xf32>
    %384 = vector.extract_strided_slice %375 {offsets = [1, 0], sizes = [1, 512], strides = [1, 1]} : vector<3x512xf32> to vector<1x512xf32>
    %385 = vector.shape_cast %384 : vector<1x512xf32> to vector<1x512xf32>
    %386 = vector.broadcast %385 : vector<1x512xf32> to vector<8x512xf32>
    %c0_100 = arith.constant 0 : index
    %c1_101 = arith.constant 1 : index
    %387 = vector.load %arg6[%c0_100, %c1_101] : memref<8x3xf32, #tpu.memory_space<vmem>>, vector<8x1xf32>
    %388 = vector.broadcast %387 : vector<8x1xf32> to vector<8x512xf32>
    %389 = arith.mulf %386, %388 : vector<8x512xf32>
    %390 = arith.addf %383, %389 : vector<8x512xf32>
    %391 = vector.extract_strided_slice %375 {offsets = [2, 0], sizes = [1, 512], strides = [1, 1]} : vector<3x512xf32> to vector<1x512xf32>
    %392 = vector.shape_cast %391 : vector<1x512xf32> to vector<1x512xf32>
    %393 = vector.broadcast %392 : vector<1x512xf32> to vector<8x512xf32>
    %c0_102 = arith.constant 0 : index
    %c2_103 = arith.constant 2 : index
    %394 = vector.load %arg6[%c0_102, %c2_103] : memref<8x3xf32, #tpu.memory_space<vmem>>, vector<8x1xf32>
    %395 = vector.broadcast %394 : vector<8x1xf32> to vector<8x512xf32>
    %396 = arith.mulf %393, %395 : vector<8x512xf32>
    %397 = arith.addf %390, %396 : vector<8x512xf32>
    %c0_104 = arith.constant 0 : index
    %c0_105 = arith.constant 0 : index
    %398 = vector.load %arg7[%c0_104, %c0_105] : memref<8x1xf32, #tpu.memory_space<vmem>>, vector<8x1xf32>
    %399 = vector.broadcast %398 : vector<8x1xf32> to vector<8x512xf32>
    %400 = arith.addf %397, %399 : vector<8x512xf32>
    %cst_106 = arith.constant dense<0.000000e+00> : vector<8xf32>
    %401 = vector.multi_reduction <add>, %400, %cst_106 [1] : vector<8x512xf32> to vector<8xf32>
    %402 = vector.shape_cast %401 : vector<8xf32> to vector<8x1xf32>
    %cst_107 = arith.constant 0.001953125 : f32
    %403 = vector.broadcast %cst_107 : f32 to vector<8x1xf32>
    %404 = arith.mulf %402, %403 : vector<8x1xf32>
    %405 = vector.broadcast %404 : vector<8x1xf32> to vector<8x512xf32>
    %406 = arith.subf %400, %405 : vector<8x512xf32>
    %407 = arith.mulf %406, %406 : vector<8x512xf32>
    %cst_108 = arith.constant dense<0.000000e+00> : vector<8xf32>
    %408 = vector.multi_reduction <add>, %407, %cst_108 [1] : vector<8x512xf32> to vector<8xf32>
    %409 = vector.shape_cast %408 : vector<8xf32> to vector<8x1xf32>
    %cst_109 = arith.constant 0.001953125 : f32
    %410 = vector.broadcast %cst_109 : f32 to vector<8x1xf32>
    %411 = arith.mulf %409, %410 : vector<8x1xf32>
    %c0_110 = arith.constant 0 : index
    %c0_111 = arith.constant 0 : index
    %412 = vector.load %arg8[%c0_110, %c0_111] : memref<8x1xf32, #tpu.memory_space<vmem>>, vector<8x1xf32>
    %413 = vector.broadcast %412 : vector<8x1xf32> to vector<8x512xf32>
    %414 = arith.mulf %413, %406 : vector<8x512xf32>
    %cst_112 = arith.constant 9.99999974E-6 : f32
    %415 = vector.broadcast %cst_112 : f32 to vector<8x1xf32>
    %416 = arith.addf %411, %415 : vector<8x1xf32>
    %417 = math.rsqrt %416 : vector<8x1xf32>
    %418 = vector.broadcast %417 : vector<8x1xf32> to vector<8x512xf32>
    %419 = arith.mulf %414, %418 : vector<8x512xf32>
    %c0_113 = arith.constant 0 : index
    %c0_114 = arith.constant 0 : index
    %420 = vector.load %arg9[%c0_113, %c0_114] : memref<8x1xf32, #tpu.memory_space<vmem>>, vector<8x1xf32>
    %421 = vector.broadcast %420 : vector<8x1xf32> to vector<8x512xf32>
    %422 = arith.addf %419, %421 : vector<8x512xf32>
    %cst_115 = arith.constant 0.000000e+00 : f32
    %423 = vector.broadcast %cst_115 : f32 to vector<8x512xf32>
    %c2_i32_116 = arith.constant 2 : i32
    %424 = tpu.dynamic_rotate %422 by %c2_i32_116 dim 1 : vector<8x512xf32>, i32 -> vector<8x512xf32>
    %425 = vector.broadcast %13 : vector<1x512xf32> to vector<8x512xf32>
    %426 = arith.mulf %424, %425 : vector<8x512xf32>
    %c0_117 = arith.constant 0 : index
    %c0_118 = arith.constant 0 : index
    %427 = vector.load %arg11[%c0_117, %c0_118] : memref<8x5xf32, #tpu.memory_space<vmem>>, vector<8x1xf32>
    %428 = vector.broadcast %427 : vector<8x1xf32> to vector<8x512xf32>
    %429 = arith.mulf %426, %428 : vector<8x512xf32>
    %430 = arith.addf %423, %429 : vector<8x512xf32>
    %c1_i32_119 = arith.constant 1 : i32
    %431 = tpu.dynamic_rotate %422 by %c1_i32_119 dim 1 : vector<8x512xf32>, i32 -> vector<8x512xf32>
    %432 = vector.broadcast %29 : vector<1x512xf32> to vector<8x512xf32>
    %433 = arith.mulf %431, %432 : vector<8x512xf32>
    %c0_120 = arith.constant 0 : index
    %c1_121 = arith.constant 1 : index
    %434 = vector.load %arg11[%c0_120, %c1_121] : memref<8x5xf32, #tpu.memory_space<vmem>>, vector<8x1xf32>
    %435 = vector.broadcast %434 : vector<8x1xf32> to vector<8x512xf32>
    %436 = arith.mulf %433, %435 : vector<8x512xf32>
    %437 = arith.addf %430, %436 : vector<8x512xf32>
    %c0_122 = arith.constant 0 : index
    %c2_123 = arith.constant 2 : index
    %438 = vector.load %arg11[%c0_122, %c2_123] : memref<8x5xf32, #tpu.memory_space<vmem>>, vector<8x1xf32>
    %439 = vector.broadcast %438 : vector<8x1xf32> to vector<8x512xf32>
    %440 = arith.mulf %422, %439 : vector<8x512xf32>
    %441 = arith.addf %437, %440 : vector<8x512xf32>
    %c511_i32_124 = arith.constant 511 : i32
    %442 = tpu.dynamic_rotate %422 by %c511_i32_124 dim 1 : vector<8x512xf32>, i32 -> vector<8x512xf32>
    %443 = vector.broadcast %49 : vector<1x512xf32> to vector<8x512xf32>
    %444 = arith.mulf %442, %443 : vector<8x512xf32>
    %c0_125 = arith.constant 0 : index
    %c3_126 = arith.constant 3 : index
    %445 = vector.load %arg11[%c0_125, %c3_126] : memref<8x5xf32, #tpu.memory_space<vmem>>, vector<8x1xf32>
    %446 = vector.broadcast %445 : vector<8x1xf32> to vector<8x512xf32>
    %447 = arith.mulf %444, %446 : vector<8x512xf32>
    %448 = arith.addf %441, %447 : vector<8x512xf32>
    %c510_i32_127 = arith.constant 510 : i32
    %449 = tpu.dynamic_rotate %422 by %c510_i32_127 dim 1 : vector<8x512xf32>, i32 -> vector<8x512xf32>
    %450 = vector.broadcast %65 : vector<1x512xf32> to vector<8x512xf32>
    %451 = arith.mulf %449, %450 : vector<8x512xf32>
    %c0_128 = arith.constant 0 : index
    %c4_129 = arith.constant 4 : index
    %452 = vector.load %arg11[%c0_128, %c4_129] : memref<8x5xf32, #tpu.memory_space<vmem>>, vector<8x1xf32>
    %453 = vector.broadcast %452 : vector<8x1xf32> to vector<8x512xf32>
    %454 = arith.mulf %451, %453 : vector<8x512xf32>
    %455 = arith.addf %448, %454 : vector<8x512xf32>
    %cst_130 = arith.constant 0.000000e+00 : f32
    %456 = vector.broadcast %cst_130 : f32 to vector<8x512xf32>
    %c32_i32_131 = arith.constant 32 : i32
    %457 = tpu.dynamic_rotate %455 by %c32_i32_131 dim 1 : vector<8x512xf32>, i32 -> vector<8x512xf32>
    %458 = vector.broadcast %82 : vector<1x512xf32> to vector<8x512xf32>
    %459 = arith.mulf %457, %458 : vector<8x512xf32>
    %c0_132 = arith.constant 0 : index
    %c0_133 = arith.constant 0 : index
    %460 = vector.load %arg10[%c0_132, %c0_133] : memref<8x5xf32, #tpu.memory_space<vmem>>, vector<8x1xf32>
    %461 = vector.broadcast %460 : vector<8x1xf32> to vector<8x512xf32>
    %462 = arith.mulf %459, %461 : vector<8x512xf32>
    %463 = arith.addf %456, %462 : vector<8x512xf32>
    %c16_i32_134 = arith.constant 16 : i32
    %464 = tpu.dynamic_rotate %455 by %c16_i32_134 dim 1 : vector<8x512xf32>, i32 -> vector<8x512xf32>
    %465 = vector.broadcast %98 : vector<1x512xf32> to vector<8x512xf32>
    %466 = arith.mulf %464, %465 : vector<8x512xf32>
    %c0_135 = arith.constant 0 : index
    %c1_136 = arith.constant 1 : index
    %467 = vector.load %arg10[%c0_135, %c1_136] : memref<8x5xf32, #tpu.memory_space<vmem>>, vector<8x1xf32>
    %468 = vector.broadcast %467 : vector<8x1xf32> to vector<8x512xf32>
    %469 = arith.mulf %466, %468 : vector<8x512xf32>
    %470 = arith.addf %463, %469 : vector<8x512xf32>
    %c0_137 = arith.constant 0 : index
    %c2_138 = arith.constant 2 : index
    %471 = vector.load %arg10[%c0_137, %c2_138] : memref<8x5xf32, #tpu.memory_space<vmem>>, vector<8x1xf32>
    %472 = vector.broadcast %471 : vector<8x1xf32> to vector<8x512xf32>
    %473 = arith.mulf %455, %472 : vector<8x512xf32>
    %474 = arith.addf %470, %473 : vector<8x512xf32>
    %c496_i32_139 = arith.constant 496 : i32
    %475 = tpu.dynamic_rotate %455 by %c496_i32_139 dim 1 : vector<8x512xf32>, i32 -> vector<8x512xf32>
    %476 = vector.broadcast %118 : vector<1x512xf32> to vector<8x512xf32>
    %477 = arith.mulf %475, %476 : vector<8x512xf32>
    %c0_140 = arith.constant 0 : index
    %c3_141 = arith.constant 3 : index
    %478 = vector.load %arg10[%c0_140, %c3_141] : memref<8x5xf32, #tpu.memory_space<vmem>>, vector<8x1xf32>
    %479 = vector.broadcast %478 : vector<8x1xf32> to vector<8x512xf32>
    %480 = arith.mulf %477, %479 : vector<8x512xf32>
    %481 = arith.addf %474, %480 : vector<8x512xf32>
    %c480_i32_142 = arith.constant 480 : i32
    %482 = tpu.dynamic_rotate %455 by %c480_i32_142 dim 1 : vector<8x512xf32>, i32 -> vector<8x512xf32>
    %483 = vector.broadcast %134 : vector<1x512xf32> to vector<8x512xf32>
    %484 = arith.mulf %482, %483 : vector<8x512xf32>
    %c0_143 = arith.constant 0 : index
    %c4_144 = arith.constant 4 : index
    %485 = vector.load %arg10[%c0_143, %c4_144] : memref<8x5xf32, #tpu.memory_space<vmem>>, vector<8x1xf32>
    %486 = vector.broadcast %485 : vector<8x1xf32> to vector<8x512xf32>
    %487 = arith.mulf %484, %486 : vector<8x512xf32>
    %488 = arith.addf %481, %487 : vector<8x512xf32>
    %c34_i32_145 = arith.constant 34 : i32
    %489 = tpu.dynamic_rotate %488 by %c34_i32_145 dim 1 : vector<8x512xf32>, i32 -> vector<8x512xf32>
    %c0_146 = arith.constant 0 : index
    %c0_147 = arith.constant 0 : index
    %490 = vector.load %arg12[%c0_146, %c0_147] : memref<8x25xf32, #tpu.memory_space<vmem>>, vector<8x1xf32>
    %491 = vector.broadcast %490 : vector<8x1xf32> to vector<8x512xf32>
    %492 = arith.subf %489, %491 : vector<8x512xf32>
    %493 = vector.broadcast %144 : vector<1x512xf32> to vector<8x512xf32>
    %494 = arith.subf %492, %493 : vector<8x512xf32>
    %495 = vector.broadcast %148 : vector<1x512xf32> to vector<8x512xf32>
    %496 = arith.subf %494, %495 : vector<8x512xf32>
    %c33_i32_148 = arith.constant 33 : i32
    %497 = tpu.dynamic_rotate %488 by %c33_i32_148 dim 1 : vector<8x512xf32>, i32 -> vector<8x512xf32>
    %c0_149 = arith.constant 0 : index
    %c1_150 = arith.constant 1 : index
    %498 = vector.load %arg12[%c0_149, %c1_150] : memref<8x25xf32, #tpu.memory_space<vmem>>, vector<8x1xf32>
    %499 = vector.broadcast %498 : vector<8x1xf32> to vector<8x512xf32>
    %500 = arith.subf %497, %499 : vector<8x512xf32>
    %501 = vector.broadcast %144 : vector<1x512xf32> to vector<8x512xf32>
    %502 = arith.subf %500, %501 : vector<8x512xf32>
    %503 = vector.broadcast %160 : vector<1x512xf32> to vector<8x512xf32>
    %504 = arith.subf %502, %503 : vector<8x512xf32>
    %505 = arith.maximumf %496, %504 : vector<8x512xf32>
    %c32_i32_151 = arith.constant 32 : i32
    %506 = tpu.dynamic_rotate %488 by %c32_i32_151 dim 1 : vector<8x512xf32>, i32 -> vector<8x512xf32>
    %c0_152 = arith.constant 0 : index
    %c2_153 = arith.constant 2 : index
    %507 = vector.load %arg12[%c0_152, %c2_153] : memref<8x25xf32, #tpu.memory_space<vmem>>, vector<8x1xf32>
    %508 = vector.broadcast %507 : vector<8x1xf32> to vector<8x512xf32>
    %509 = arith.subf %506, %508 : vector<8x512xf32>
    %510 = vector.broadcast %144 : vector<1x512xf32> to vector<8x512xf32>
    %511 = arith.subf %509, %510 : vector<8x512xf32>
    %512 = arith.maximumf %505, %511 : vector<8x512xf32>
    %c31_i32_154 = arith.constant 31 : i32
    %513 = tpu.dynamic_rotate %488 by %c31_i32_154 dim 1 : vector<8x512xf32>, i32 -> vector<8x512xf32>
    %c0_155 = arith.constant 0 : index
    %c3_156 = arith.constant 3 : index
    %514 = vector.load %arg12[%c0_155, %c3_156] : memref<8x25xf32, #tpu.memory_space<vmem>>, vector<8x1xf32>
    %515 = vector.broadcast %514 : vector<8x1xf32> to vector<8x512xf32>
    %516 = arith.subf %513, %515 : vector<8x512xf32>
    %517 = vector.broadcast %144 : vector<1x512xf32> to vector<8x512xf32>
    %518 = arith.subf %516, %517 : vector<8x512xf32>
    %519 = vector.broadcast %180 : vector<1x512xf32> to vector<8x512xf32>
    %520 = arith.subf %518, %519 : vector<8x512xf32>
    %521 = arith.maximumf %512, %520 : vector<8x512xf32>
    %c30_i32_157 = arith.constant 30 : i32
    %522 = tpu.dynamic_rotate %488 by %c30_i32_157 dim 1 : vector<8x512xf32>, i32 -> vector<8x512xf32>
    %c0_158 = arith.constant 0 : index
    %c4_159 = arith.constant 4 : index
    %523 = vector.load %arg12[%c0_158, %c4_159] : memref<8x25xf32, #tpu.memory_space<vmem>>, vector<8x1xf32>
    %524 = vector.broadcast %523 : vector<8x1xf32> to vector<8x512xf32>
    %525 = arith.subf %522, %524 : vector<8x512xf32>
    %526 = vector.broadcast %144 : vector<1x512xf32> to vector<8x512xf32>
    %527 = arith.subf %525, %526 : vector<8x512xf32>
    %528 = vector.broadcast %193 : vector<1x512xf32> to vector<8x512xf32>
    %529 = arith.subf %527, %528 : vector<8x512xf32>
    %530 = arith.maximumf %521, %529 : vector<8x512xf32>
    %c18_i32_160 = arith.constant 18 : i32
    %531 = tpu.dynamic_rotate %488 by %c18_i32_160 dim 1 : vector<8x512xf32>, i32 -> vector<8x512xf32>
    %c0_161 = arith.constant 0 : index
    %c5_162 = arith.constant 5 : index
    %532 = vector.load %arg12[%c0_161, %c5_162] : memref<8x25xf32, #tpu.memory_space<vmem>>, vector<8x1xf32>
    %533 = vector.broadcast %532 : vector<8x1xf32> to vector<8x512xf32>
    %534 = arith.subf %531, %533 : vector<8x512xf32>
    %535 = vector.broadcast %206 : vector<1x512xf32> to vector<8x512xf32>
    %536 = arith.subf %534, %535 : vector<8x512xf32>
    %537 = vector.broadcast %148 : vector<1x512xf32> to vector<8x512xf32>
    %538 = arith.subf %536, %537 : vector<8x512xf32>
    %539 = arith.maximumf %530, %538 : vector<8x512xf32>
    %c17_i32_163 = arith.constant 17 : i32
    %540 = tpu.dynamic_rotate %488 by %c17_i32_163 dim 1 : vector<8x512xf32>, i32 -> vector<8x512xf32>
    %c0_164 = arith.constant 0 : index
    %c6_165 = arith.constant 6 : index
    %541 = vector.load %arg12[%c0_164, %c6_165] : memref<8x25xf32, #tpu.memory_space<vmem>>, vector<8x1xf32>
    %542 = vector.broadcast %541 : vector<8x1xf32> to vector<8x512xf32>
    %543 = arith.subf %540, %542 : vector<8x512xf32>
    %544 = vector.broadcast %206 : vector<1x512xf32> to vector<8x512xf32>
    %545 = arith.subf %543, %544 : vector<8x512xf32>
    %546 = vector.broadcast %160 : vector<1x512xf32> to vector<8x512xf32>
    %547 = arith.subf %545, %546 : vector<8x512xf32>
    %548 = arith.maximumf %539, %547 : vector<8x512xf32>
    %c16_i32_166 = arith.constant 16 : i32
    %549 = tpu.dynamic_rotate %488 by %c16_i32_166 dim 1 : vector<8x512xf32>, i32 -> vector<8x512xf32>
    %c0_167 = arith.constant 0 : index
    %c7_168 = arith.constant 7 : index
    %550 = vector.load %arg12[%c0_167, %c7_168] : memref<8x25xf32, #tpu.memory_space<vmem>>, vector<8x1xf32>
    %551 = vector.broadcast %550 : vector<8x1xf32> to vector<8x512xf32>
    %552 = arith.subf %549, %551 : vector<8x512xf32>
    %553 = vector.broadcast %206 : vector<1x512xf32> to vector<8x512xf32>
    %554 = arith.subf %552, %553 : vector<8x512xf32>
    %555 = arith.maximumf %548, %554 : vector<8x512xf32>
    %c15_i32_169 = arith.constant 15 : i32
    %556 = tpu.dynamic_rotate %488 by %c15_i32_169 dim 1 : vector<8x512xf32>, i32 -> vector<8x512xf32>
    %c0_170 = arith.constant 0 : index
    %c8_171 = arith.constant 8 : index
    %557 = vector.load %arg12[%c0_170, %c8_171] : memref<8x25xf32, #tpu.memory_space<vmem>>, vector<8x1xf32>
    %558 = vector.broadcast %557 : vector<8x1xf32> to vector<8x512xf32>
    %559 = arith.subf %556, %558 : vector<8x512xf32>
    %560 = vector.broadcast %206 : vector<1x512xf32> to vector<8x512xf32>
    %561 = arith.subf %559, %560 : vector<8x512xf32>
    %562 = vector.broadcast %180 : vector<1x512xf32> to vector<8x512xf32>
    %563 = arith.subf %561, %562 : vector<8x512xf32>
    %564 = arith.maximumf %555, %563 : vector<8x512xf32>
    %c14_i32_172 = arith.constant 14 : i32
    %565 = tpu.dynamic_rotate %488 by %c14_i32_172 dim 1 : vector<8x512xf32>, i32 -> vector<8x512xf32>
    %c0_173 = arith.constant 0 : index
    %c9_174 = arith.constant 9 : index
    %566 = vector.load %arg12[%c0_173, %c9_174] : memref<8x25xf32, #tpu.memory_space<vmem>>, vector<8x1xf32>
    %567 = vector.broadcast %566 : vector<8x1xf32> to vector<8x512xf32>
    %568 = arith.subf %565, %567 : vector<8x512xf32>
    %569 = vector.broadcast %206 : vector<1x512xf32> to vector<8x512xf32>
    %570 = arith.subf %568, %569 : vector<8x512xf32>
    %571 = vector.broadcast %193 : vector<1x512xf32> to vector<8x512xf32>
    %572 = arith.subf %570, %571 : vector<8x512xf32>
    %573 = arith.maximumf %564, %572 : vector<8x512xf32>
    %c2_i32_175 = arith.constant 2 : i32
    %574 = tpu.dynamic_rotate %488 by %c2_i32_175 dim 1 : vector<8x512xf32>, i32 -> vector<8x512xf32>
    %c0_176 = arith.constant 0 : index
    %c10_177 = arith.constant 10 : index
    %575 = vector.load %arg12[%c0_176, %c10_177] : memref<8x25xf32, #tpu.memory_space<vmem>>, vector<8x1xf32>
    %576 = vector.broadcast %575 : vector<8x1xf32> to vector<8x512xf32>
    %577 = arith.subf %574, %576 : vector<8x512xf32>
    %578 = vector.broadcast %148 : vector<1x512xf32> to vector<8x512xf32>
    %579 = arith.subf %577, %578 : vector<8x512xf32>
    %580 = arith.maximumf %573, %579 : vector<8x512xf32>
    %c1_i32_178 = arith.constant 1 : i32
    %581 = tpu.dynamic_rotate %488 by %c1_i32_178 dim 1 : vector<8x512xf32>, i32 -> vector<8x512xf32>
    %c0_179 = arith.constant 0 : index
    %c11_180 = arith.constant 11 : index
    %582 = vector.load %arg12[%c0_179, %c11_180] : memref<8x25xf32, #tpu.memory_space<vmem>>, vector<8x1xf32>
    %583 = vector.broadcast %582 : vector<8x1xf32> to vector<8x512xf32>
    %584 = arith.subf %581, %583 : vector<8x512xf32>
    %585 = vector.broadcast %160 : vector<1x512xf32> to vector<8x512xf32>
    %586 = arith.subf %584, %585 : vector<8x512xf32>
    %587 = arith.maximumf %580, %586 : vector<8x512xf32>
    %c0_181 = arith.constant 0 : index
    %c12_182 = arith.constant 12 : index
    %588 = vector.load %arg12[%c0_181, %c12_182] : memref<8x25xf32, #tpu.memory_space<vmem>>, vector<8x1xf32>
    %589 = vector.broadcast %588 : vector<8x1xf32> to vector<8x512xf32>
    %590 = arith.subf %488, %589 : vector<8x512xf32>
    %591 = arith.maximumf %587, %590 : vector<8x512xf32>
    %c511_i32_183 = arith.constant 511 : i32
    %592 = tpu.dynamic_rotate %488 by %c511_i32_183 dim 1 : vector<8x512xf32>, i32 -> vector<8x512xf32>
    %c0_184 = arith.constant 0 : index
    %c13_185 = arith.constant 13 : index
    %593 = vector.load %arg12[%c0_184, %c13_185] : memref<8x25xf32, #tpu.memory_space<vmem>>, vector<8x1xf32>
    %594 = vector.broadcast %593 : vector<8x1xf32> to vector<8x512xf32>
    %595 = arith.subf %592, %594 : vector<8x512xf32>
    %596 = vector.broadcast %180 : vector<1x512xf32> to vector<8x512xf32>
    %597 = arith.subf %595, %596 : vector<8x512xf32>
    %598 = arith.maximumf %591, %597 : vector<8x512xf32>
    %c510_i32_186 = arith.constant 510 : i32
    %599 = tpu.dynamic_rotate %488 by %c510_i32_186 dim 1 : vector<8x512xf32>, i32 -> vector<8x512xf32>
    %c0_187 = arith.constant 0 : index
    %c14_188 = arith.constant 14 : index
    %600 = vector.load %arg12[%c0_187, %c14_188] : memref<8x25xf32, #tpu.memory_space<vmem>>, vector<8x1xf32>
    %601 = vector.broadcast %600 : vector<8x1xf32> to vector<8x512xf32>
    %602 = arith.subf %599, %601 : vector<8x512xf32>
    %603 = vector.broadcast %193 : vector<1x512xf32> to vector<8x512xf32>
    %604 = arith.subf %602, %603 : vector<8x512xf32>
    %605 = arith.maximumf %598, %604 : vector<8x512xf32>
    %c498_i32_189 = arith.constant 498 : i32
    %606 = tpu.dynamic_rotate %488 by %c498_i32_189 dim 1 : vector<8x512xf32>, i32 -> vector<8x512xf32>
    %c0_190 = arith.constant 0 : index
    %c15_191 = arith.constant 15 : index
    %607 = vector.load %arg12[%c0_190, %c15_191] : memref<8x25xf32, #tpu.memory_space<vmem>>, vector<8x1xf32>
    %608 = vector.broadcast %607 : vector<8x1xf32> to vector<8x512xf32>
    %609 = arith.subf %606, %608 : vector<8x512xf32>
    %610 = vector.broadcast %285 : vector<1x512xf32> to vector<8x512xf32>
    %611 = arith.subf %609, %610 : vector<8x512xf32>
    %612 = vector.broadcast %148 : vector<1x512xf32> to vector<8x512xf32>
    %613 = arith.subf %611, %612 : vector<8x512xf32>
    %614 = arith.maximumf %605, %613 : vector<8x512xf32>
    %c497_i32_192 = arith.constant 497 : i32
    %615 = tpu.dynamic_rotate %488 by %c497_i32_192 dim 1 : vector<8x512xf32>, i32 -> vector<8x512xf32>
    %c0_193 = arith.constant 0 : index
    %c16_194 = arith.constant 16 : index
    %616 = vector.load %arg12[%c0_193, %c16_194] : memref<8x25xf32, #tpu.memory_space<vmem>>, vector<8x1xf32>
    %617 = vector.broadcast %616 : vector<8x1xf32> to vector<8x512xf32>
    %618 = arith.subf %615, %617 : vector<8x512xf32>
    %619 = vector.broadcast %285 : vector<1x512xf32> to vector<8x512xf32>
    %620 = arith.subf %618, %619 : vector<8x512xf32>
    %621 = vector.broadcast %160 : vector<1x512xf32> to vector<8x512xf32>
    %622 = arith.subf %620, %621 : vector<8x512xf32>
    %623 = arith.maximumf %614, %622 : vector<8x512xf32>
    %c496_i32_195 = arith.constant 496 : i32
    %624 = tpu.dynamic_rotate %488 by %c496_i32_195 dim 1 : vector<8x512xf32>, i32 -> vector<8x512xf32>
    %c0_196 = arith.constant 0 : index
    %c17_197 = arith.constant 17 : index
    %625 = vector.load %arg12[%c0_196, %c17_197] : memref<8x25xf32, #tpu.memory_space<vmem>>, vector<8x1xf32>
    %626 = vector.broadcast %625 : vector<8x1xf32> to vector<8x512xf32>
    %627 = arith.subf %624, %626 : vector<8x512xf32>
    %628 = vector.broadcast %285 : vector<1x512xf32> to vector<8x512xf32>
    %629 = arith.subf %627, %628 : vector<8x512xf32>
    %630 = arith.maximumf %623, %629 : vector<8x512xf32>
    %c495_i32_198 = arith.constant 495 : i32
    %631 = tpu.dynamic_rotate %488 by %c495_i32_198 dim 1 : vector<8x512xf32>, i32 -> vector<8x512xf32>
    %c0_199 = arith.constant 0 : index
    %c18_200 = arith.constant 18 : index
    %632 = vector.load %arg12[%c0_199, %c18_200] : memref<8x25xf32, #tpu.memory_space<vmem>>, vector<8x1xf32>
    %633 = vector.broadcast %632 : vector<8x1xf32> to vector<8x512xf32>
    %634 = arith.subf %631, %633 : vector<8x512xf32>
    %635 = vector.broadcast %285 : vector<1x512xf32> to vector<8x512xf32>
    %636 = arith.subf %634, %635 : vector<8x512xf32>
    %637 = vector.broadcast %180 : vector<1x512xf32> to vector<8x512xf32>
    %638 = arith.subf %636, %637 : vector<8x512xf32>
    %639 = arith.maximumf %630, %638 : vector<8x512xf32>
    %c494_i32_201 = arith.constant 494 : i32
    %640 = tpu.dynamic_rotate %488 by %c494_i32_201 dim 1 : vector<8x512xf32>, i32 -> vector<8x512xf32>
    %c0_202 = arith.constant 0 : index
    %c19_203 = arith.constant 19 : index
    %641 = vector.load %arg12[%c0_202, %c19_203] : memref<8x25xf32, #tpu.memory_space<vmem>>, vector<8x1xf32>
    %642 = vector.broadcast %641 : vector<8x1xf32> to vector<8x512xf32>
    %643 = arith.subf %640, %642 : vector<8x512xf32>
    %644 = vector.broadcast %285 : vector<1x512xf32> to vector<8x512xf32>
    %645 = arith.subf %643, %644 : vector<8x512xf32>
    %646 = vector.broadcast %193 : vector<1x512xf32> to vector<8x512xf32>
    %647 = arith.subf %645, %646 : vector<8x512xf32>
    %648 = arith.maximumf %639, %647 : vector<8x512xf32>
    %c482_i32_204 = arith.constant 482 : i32
    %649 = tpu.dynamic_rotate %488 by %c482_i32_204 dim 1 : vector<8x512xf32>, i32 -> vector<8x512xf32>
    %c0_205 = arith.constant 0 : index
    %c20_206 = arith.constant 20 : index
    %650 = vector.load %arg12[%c0_205, %c20_206] : memref<8x25xf32, #tpu.memory_space<vmem>>, vector<8x1xf32>
    %651 = vector.broadcast %650 : vector<8x1xf32> to vector<8x512xf32>
    %652 = arith.subf %649, %651 : vector<8x512xf32>
    %653 = vector.broadcast %332 : vector<1x512xf32> to vector<8x512xf32>
    %654 = arith.subf %652, %653 : vector<8x512xf32>
    %655 = vector.broadcast %148 : vector<1x512xf32> to vector<8x512xf32>
    %656 = arith.subf %654, %655 : vector<8x512xf32>
    %657 = arith.maximumf %648, %656 : vector<8x512xf32>
    %c481_i32_207 = arith.constant 481 : i32
    %658 = tpu.dynamic_rotate %488 by %c481_i32_207 dim 1 : vector<8x512xf32>, i32 -> vector<8x512xf32>
    %c0_208 = arith.constant 0 : index
    %c21_209 = arith.constant 21 : index
    %659 = vector.load %arg12[%c0_208, %c21_209] : memref<8x25xf32, #tpu.memory_space<vmem>>, vector<8x1xf32>
    %660 = vector.broadcast %659 : vector<8x1xf32> to vector<8x512xf32>
    %661 = arith.subf %658, %660 : vector<8x512xf32>
    %662 = vector.broadcast %332 : vector<1x512xf32> to vector<8x512xf32>
    %663 = arith.subf %661, %662 : vector<8x512xf32>
    %664 = vector.broadcast %160 : vector<1x512xf32> to vector<8x512xf32>
    %665 = arith.subf %663, %664 : vector<8x512xf32>
    %666 = arith.maximumf %657, %665 : vector<8x512xf32>
    %c480_i32_210 = arith.constant 480 : i32
    %667 = tpu.dynamic_rotate %488 by %c480_i32_210 dim 1 : vector<8x512xf32>, i32 -> vector<8x512xf32>
    %c0_211 = arith.constant 0 : index
    %c22_212 = arith.constant 22 : index
    %668 = vector.load %arg12[%c0_211, %c22_212] : memref<8x25xf32, #tpu.memory_space<vmem>>, vector<8x1xf32>
    %669 = vector.broadcast %668 : vector<8x1xf32> to vector<8x512xf32>
    %670 = arith.subf %667, %669 : vector<8x512xf32>
    %671 = vector.broadcast %332 : vector<1x512xf32> to vector<8x512xf32>
    %672 = arith.subf %670, %671 : vector<8x512xf32>
    %673 = arith.maximumf %666, %672 : vector<8x512xf32>
    %c479_i32_213 = arith.constant 479 : i32
    %674 = tpu.dynamic_rotate %488 by %c479_i32_213 dim 1 : vector<8x512xf32>, i32 -> vector<8x512xf32>
    %c0_214 = arith.constant 0 : index
    %c23_215 = arith.constant 23 : index
    %675 = vector.load %arg12[%c0_214, %c23_215] : memref<8x25xf32, #tpu.memory_space<vmem>>, vector<8x1xf32>
    %676 = vector.broadcast %675 : vector<8x1xf32> to vector<8x512xf32>
    %677 = arith.subf %674, %676 : vector<8x512xf32>
    %678 = vector.broadcast %332 : vector<1x512xf32> to vector<8x512xf32>
    %679 = arith.subf %677, %678 : vector<8x512xf32>
    %680 = vector.broadcast %180 : vector<1x512xf32> to vector<8x512xf32>
    %681 = arith.subf %679, %680 : vector<8x512xf32>
    %682 = arith.maximumf %673, %681 : vector<8x512xf32>
    %c478_i32_216 = arith.constant 478 : i32
    %683 = tpu.dynamic_rotate %488 by %c478_i32_216 dim 1 : vector<8x512xf32>, i32 -> vector<8x512xf32>
    %c0_217 = arith.constant 0 : index
    %c24_218 = arith.constant 24 : index
    %684 = vector.load %arg12[%c0_217, %c24_218] : memref<8x25xf32, #tpu.memory_space<vmem>>, vector<8x1xf32>
    %685 = vector.broadcast %684 : vector<8x1xf32> to vector<8x512xf32>
    %686 = arith.subf %683, %685 : vector<8x512xf32>
    %687 = vector.broadcast %332 : vector<1x512xf32> to vector<8x512xf32>
    %688 = arith.subf %686, %687 : vector<8x512xf32>
    %689 = vector.broadcast %193 : vector<1x512xf32> to vector<8x512xf32>
    %690 = arith.subf %688, %689 : vector<8x512xf32>
    %691 = arith.maximumf %682, %690 : vector<8x512xf32>
    %cst_219 = arith.constant 0.000000e+00 : f32
    %692 = vector.broadcast %cst_219 : f32 to vector<8x512xf32>
    %693 = vector.extract_strided_slice %691 {offsets = [0, 0], sizes = [1, 512], strides = [1, 1]} : vector<8x512xf32> to vector<1x512xf32>
    %694 = vector.shape_cast %693 : vector<1x512xf32> to vector<1x512xf32>
    %695 = vector.broadcast %694 : vector<1x512xf32> to vector<8x512xf32>
    %c0_220 = arith.constant 0 : index
    %c0_221 = arith.constant 0 : index
    %696 = vector.load %arg13[%c0_220, %c0_221] : memref<8x8xf32, #tpu.memory_space<vmem>>, vector<8x1xf32>
    %697 = vector.broadcast %696 : vector<8x1xf32> to vector<8x512xf32>
    %698 = arith.mulf %695, %697 : vector<8x512xf32>
    %699 = arith.addf %692, %698 : vector<8x512xf32>
    %700 = vector.extract_strided_slice %691 {offsets = [1, 0], sizes = [1, 512], strides = [1, 1]} : vector<8x512xf32> to vector<1x512xf32>
    %701 = vector.shape_cast %700 : vector<1x512xf32> to vector<1x512xf32>
    %702 = vector.broadcast %701 : vector<1x512xf32> to vector<8x512xf32>
    %c0_222 = arith.constant 0 : index
    %c1_223 = arith.constant 1 : index
    %703 = vector.load %arg13[%c0_222, %c1_223] : memref<8x8xf32, #tpu.memory_space<vmem>>, vector<8x1xf32>
    %704 = vector.broadcast %703 : vector<8x1xf32> to vector<8x512xf32>
    %705 = arith.mulf %702, %704 : vector<8x512xf32>
    %706 = arith.addf %699, %705 : vector<8x512xf32>
    %707 = vector.extract_strided_slice %691 {offsets = [2, 0], sizes = [1, 512], strides = [1, 1]} : vector<8x512xf32> to vector<1x512xf32>
    %708 = vector.shape_cast %707 : vector<1x512xf32> to vector<1x512xf32>
    %709 = vector.broadcast %708 : vector<1x512xf32> to vector<8x512xf32>
    %c0_224 = arith.constant 0 : index
    %c2_225 = arith.constant 2 : index
    %710 = vector.load %arg13[%c0_224, %c2_225] : memref<8x8xf32, #tpu.memory_space<vmem>>, vector<8x1xf32>
    %711 = vector.broadcast %710 : vector<8x1xf32> to vector<8x512xf32>
    %712 = arith.mulf %709, %711 : vector<8x512xf32>
    %713 = arith.addf %706, %712 : vector<8x512xf32>
    %714 = vector.extract_strided_slice %691 {offsets = [3, 0], sizes = [1, 512], strides = [1, 1]} : vector<8x512xf32> to vector<1x512xf32>
    %715 = vector.shape_cast %714 : vector<1x512xf32> to vector<1x512xf32>
    %716 = vector.broadcast %715 : vector<1x512xf32> to vector<8x512xf32>
    %c0_226 = arith.constant 0 : index
    %c3_227 = arith.constant 3 : index
    %717 = vector.load %arg13[%c0_226, %c3_227] : memref<8x8xf32, #tpu.memory_space<vmem>>, vector<8x1xf32>
    %718 = vector.broadcast %717 : vector<8x1xf32> to vector<8x512xf32>
    %719 = arith.mulf %716, %718 : vector<8x512xf32>
    %720 = arith.addf %713, %719 : vector<8x512xf32>
    %721 = vector.extract_strided_slice %691 {offsets = [4, 0], sizes = [1, 512], strides = [1, 1]} : vector<8x512xf32> to vector<1x512xf32>
    %722 = vector.shape_cast %721 : vector<1x512xf32> to vector<1x512xf32>
    %723 = vector.broadcast %722 : vector<1x512xf32> to vector<8x512xf32>
    %c0_228 = arith.constant 0 : index
    %c4_229 = arith.constant 4 : index
    %724 = vector.load %arg13[%c0_228, %c4_229] : memref<8x8xf32, #tpu.memory_space<vmem>>, vector<8x1xf32>
    %725 = vector.broadcast %724 : vector<8x1xf32> to vector<8x512xf32>
    %726 = arith.mulf %723, %725 : vector<8x512xf32>
    %727 = arith.addf %720, %726 : vector<8x512xf32>
    %728 = vector.extract_strided_slice %691 {offsets = [5, 0], sizes = [1, 512], strides = [1, 1]} : vector<8x512xf32> to vector<1x512xf32>
    %729 = vector.shape_cast %728 : vector<1x512xf32> to vector<1x512xf32>
    %730 = vector.broadcast %729 : vector<1x512xf32> to vector<8x512xf32>
    %c0_230 = arith.constant 0 : index
    %c5_231 = arith.constant 5 : index
    %731 = vector.load %arg13[%c0_230, %c5_231] : memref<8x8xf32, #tpu.memory_space<vmem>>, vector<8x1xf32>
    %732 = vector.broadcast %731 : vector<8x1xf32> to vector<8x512xf32>
    %733 = arith.mulf %730, %732 : vector<8x512xf32>
    %734 = arith.addf %727, %733 : vector<8x512xf32>
    %735 = vector.extract_strided_slice %691 {offsets = [6, 0], sizes = [1, 512], strides = [1, 1]} : vector<8x512xf32> to vector<1x512xf32>
    %736 = vector.shape_cast %735 : vector<1x512xf32> to vector<1x512xf32>
    %737 = vector.broadcast %736 : vector<1x512xf32> to vector<8x512xf32>
    %c0_232 = arith.constant 0 : index
    %c6_233 = arith.constant 6 : index
    %738 = vector.load %arg13[%c0_232, %c6_233] : memref<8x8xf32, #tpu.memory_space<vmem>>, vector<8x1xf32>
    %739 = vector.broadcast %738 : vector<8x1xf32> to vector<8x512xf32>
    %740 = arith.mulf %737, %739 : vector<8x512xf32>
    %741 = arith.addf %734, %740 : vector<8x512xf32>
    %742 = vector.extract_strided_slice %691 {offsets = [7, 0], sizes = [1, 512], strides = [1, 1]} : vector<8x512xf32> to vector<1x512xf32>
    %743 = vector.shape_cast %742 : vector<1x512xf32> to vector<1x512xf32>
    %744 = vector.broadcast %743 : vector<1x512xf32> to vector<8x512xf32>
    %c0_234 = arith.constant 0 : index
    %c7_235 = arith.constant 7 : index
    %745 = vector.load %arg13[%c0_234, %c7_235] : memref<8x8xf32, #tpu.memory_space<vmem>>, vector<8x1xf32>
    %746 = vector.broadcast %745 : vector<8x1xf32> to vector<8x512xf32>
    %747 = arith.mulf %744, %746 : vector<8x512xf32>
    %748 = arith.addf %741, %747 : vector<8x512xf32>
    %c0_236 = arith.constant 0 : index
    %c0_237 = arith.constant 0 : index
    %749 = vector.load %arg14[%c0_236, %c0_237] : memref<8x1xf32, #tpu.memory_space<vmem>>, vector<8x1xf32>
    %750 = vector.broadcast %749 : vector<8x1xf32> to vector<8x512xf32>
    %751 = arith.addf %748, %750 : vector<8x512xf32>
    %cst_238 = arith.constant dense<0.000000e+00> : vector<8xf32>
    %752 = vector.multi_reduction <add>, %751, %cst_238 [1] : vector<8x512xf32> to vector<8xf32>
    %753 = vector.shape_cast %752 : vector<8xf32> to vector<8x1xf32>
    %cst_239 = arith.constant 0.001953125 : f32
    %754 = vector.broadcast %cst_239 : f32 to vector<8x1xf32>
    %755 = arith.mulf %753, %754 : vector<8x1xf32>
    %756 = vector.broadcast %755 : vector<8x1xf32> to vector<8x512xf32>
    %757 = arith.subf %751, %756 : vector<8x512xf32>
    %758 = arith.mulf %757, %757 : vector<8x512xf32>
    %cst_240 = arith.constant dense<0.000000e+00> : vector<8xf32>
    %759 = vector.multi_reduction <add>, %758, %cst_240 [1] : vector<8x512xf32> to vector<8xf32>
    %760 = vector.shape_cast %759 : vector<8xf32> to vector<8x1xf32>
    %cst_241 = arith.constant 0.001953125 : f32
    %761 = vector.broadcast %cst_241 : f32 to vector<8x1xf32>
    %762 = arith.mulf %760, %761 : vector<8x1xf32>
    %c0_242 = arith.constant 0 : index
    %c0_243 = arith.constant 0 : index
    %763 = vector.load %arg15[%c0_242, %c0_243] : memref<8x1xf32, #tpu.memory_space<vmem>>, vector<8x1xf32>
    %764 = vector.broadcast %763 : vector<8x1xf32> to vector<8x512xf32>
    %765 = arith.mulf %764, %757 : vector<8x512xf32>
    %cst_244 = arith.constant 9.99999974E-6 : f32
    %766 = vector.broadcast %cst_244 : f32 to vector<8x1xf32>
    %767 = arith.addf %762, %766 : vector<8x1xf32>
    %768 = math.rsqrt %767 : vector<8x1xf32>
    %769 = vector.broadcast %768 : vector<8x1xf32> to vector<8x512xf32>
    %770 = arith.mulf %765, %769 : vector<8x512xf32>
    %c0_245 = arith.constant 0 : index
    %c0_246 = arith.constant 0 : index
    %771 = vector.load %arg16[%c0_245, %c0_246] : memref<8x1xf32, #tpu.memory_space<vmem>>, vector<8x1xf32>
    %772 = vector.broadcast %771 : vector<8x1xf32> to vector<8x512xf32>
    %773 = arith.addf %770, %772 : vector<8x512xf32>
    %cst_247 = arith.constant 0.000000e+00 : f32
    %774 = vector.broadcast %cst_247 : f32 to vector<8x512xf32>
    %c2_i32_248 = arith.constant 2 : i32
    %775 = tpu.dynamic_rotate %773 by %c2_i32_248 dim 1 : vector<8x512xf32>, i32 -> vector<8x512xf32>
    %776 = vector.broadcast %13 : vector<1x512xf32> to vector<8x512xf32>
    %777 = arith.mulf %775, %776 : vector<8x512xf32>
    %c0_249 = arith.constant 0 : index
    %c0_250 = arith.constant 0 : index
    %778 = vector.load %arg18[%c0_249, %c0_250] : memref<8x5xf32, #tpu.memory_space<vmem>>, vector<8x1xf32>
    %779 = vector.broadcast %778 : vector<8x1xf32> to vector<8x512xf32>
    %780 = arith.mulf %777, %779 : vector<8x512xf32>
    %781 = arith.addf %774, %780 : vector<8x512xf32>
    %c1_i32_251 = arith.constant 1 : i32
    %782 = tpu.dynamic_rotate %773 by %c1_i32_251 dim 1 : vector<8x512xf32>, i32 -> vector<8x512xf32>
    %783 = vector.broadcast %29 : vector<1x512xf32> to vector<8x512xf32>
    %784 = arith.mulf %782, %783 : vector<8x512xf32>
    %c0_252 = arith.constant 0 : index
    %c1_253 = arith.constant 1 : index
    %785 = vector.load %arg18[%c0_252, %c1_253] : memref<8x5xf32, #tpu.memory_space<vmem>>, vector<8x1xf32>
    %786 = vector.broadcast %785 : vector<8x1xf32> to vector<8x512xf32>
    %787 = arith.mulf %784, %786 : vector<8x512xf32>
    %788 = arith.addf %781, %787 : vector<8x512xf32>
    %c0_254 = arith.constant 0 : index
    %c2_255 = arith.constant 2 : index
    %789 = vector.load %arg18[%c0_254, %c2_255] : memref<8x5xf32, #tpu.memory_space<vmem>>, vector<8x1xf32>
    %790 = vector.broadcast %789 : vector<8x1xf32> to vector<8x512xf32>
    %791 = arith.mulf %773, %790 : vector<8x512xf32>
    %792 = arith.addf %788, %791 : vector<8x512xf32>
    %c511_i32_256 = arith.constant 511 : i32
    %793 = tpu.dynamic_rotate %773 by %c511_i32_256 dim 1 : vector<8x512xf32>, i32 -> vector<8x512xf32>
    %794 = vector.broadcast %49 : vector<1x512xf32> to vector<8x512xf32>
    %795 = arith.mulf %793, %794 : vector<8x512xf32>
    %c0_257 = arith.constant 0 : index
    %c3_258 = arith.constant 3 : index
    %796 = vector.load %arg18[%c0_257, %c3_258] : memref<8x5xf32, #tpu.memory_space<vmem>>, vector<8x1xf32>
    %797 = vector.broadcast %796 : vector<8x1xf32> to vector<8x512xf32>
    %798 = arith.mulf %795, %797 : vector<8x512xf32>
    %799 = arith.addf %792, %798 : vector<8x512xf32>
    %c510_i32_259 = arith.constant 510 : i32
    %800 = tpu.dynamic_rotate %773 by %c510_i32_259 dim 1 : vector<8x512xf32>, i32 -> vector<8x512xf32>
    %801 = vector.broadcast %65 : vector<1x512xf32> to vector<8x512xf32>
    %802 = arith.mulf %800, %801 : vector<8x512xf32>
    %c0_260 = arith.constant 0 : index
    %c4_261 = arith.constant 4 : index
    %803 = vector.load %arg18[%c0_260, %c4_261] : memref<8x5xf32, #tpu.memory_space<vmem>>, vector<8x1xf32>
    %804 = vector.broadcast %803 : vector<8x1xf32> to vector<8x512xf32>
    %805 = arith.mulf %802, %804 : vector<8x512xf32>
    %806 = arith.addf %799, %805 : vector<8x512xf32>
    %cst_262 = arith.constant 0.000000e+00 : f32
    %807 = vector.broadcast %cst_262 : f32 to vector<8x512xf32>
    %c32_i32_263 = arith.constant 32 : i32
    %808 = tpu.dynamic_rotate %806 by %c32_i32_263 dim 1 : vector<8x512xf32>, i32 -> vector<8x512xf32>
    %809 = vector.broadcast %82 : vector<1x512xf32> to vector<8x512xf32>
    %810 = arith.mulf %808, %809 : vector<8x512xf32>
    %c0_264 = arith.constant 0 : index
    %c0_265 = arith.constant 0 : index
    %811 = vector.load %arg17[%c0_264, %c0_265] : memref<8x5xf32, #tpu.memory_space<vmem>>, vector<8x1xf32>
    %812 = vector.broadcast %811 : vector<8x1xf32> to vector<8x512xf32>
    %813 = arith.mulf %810, %812 : vector<8x512xf32>
    %814 = arith.addf %807, %813 : vector<8x512xf32>
    %c16_i32_266 = arith.constant 16 : i32
    %815 = tpu.dynamic_rotate %806 by %c16_i32_266 dim 1 : vector<8x512xf32>, i32 -> vector<8x512xf32>
    %816 = vector.broadcast %98 : vector<1x512xf32> to vector<8x512xf32>
    %817 = arith.mulf %815, %816 : vector<8x512xf32>
    %c0_267 = arith.constant 0 : index
    %c1_268 = arith.constant 1 : index
    %818 = vector.load %arg17[%c0_267, %c1_268] : memref<8x5xf32, #tpu.memory_space<vmem>>, vector<8x1xf32>
    %819 = vector.broadcast %818 : vector<8x1xf32> to vector<8x512xf32>
    %820 = arith.mulf %817, %819 : vector<8x512xf32>
    %821 = arith.addf %814, %820 : vector<8x512xf32>
    %c0_269 = arith.constant 0 : index
    %c2_270 = arith.constant 2 : index
    %822 = vector.load %arg17[%c0_269, %c2_270] : memref<8x5xf32, #tpu.memory_space<vmem>>, vector<8x1xf32>
    %823 = vector.broadcast %822 : vector<8x1xf32> to vector<8x512xf32>
    %824 = arith.mulf %806, %823 : vector<8x512xf32>
    %825 = arith.addf %821, %824 : vector<8x512xf32>
    %c496_i32_271 = arith.constant 496 : i32
    %826 = tpu.dynamic_rotate %806 by %c496_i32_271 dim 1 : vector<8x512xf32>, i32 -> vector<8x512xf32>
    %827 = vector.broadcast %118 : vector<1x512xf32> to vector<8x512xf32>
    %828 = arith.mulf %826, %827 : vector<8x512xf32>
    %c0_272 = arith.constant 0 : index
    %c3_273 = arith.constant 3 : index
    %829 = vector.load %arg17[%c0_272, %c3_273] : memref<8x5xf32, #tpu.memory_space<vmem>>, vector<8x1xf32>
    %830 = vector.broadcast %829 : vector<8x1xf32> to vector<8x512xf32>
    %831 = arith.mulf %828, %830 : vector<8x512xf32>
    %832 = arith.addf %825, %831 : vector<8x512xf32>
    %c480_i32_274 = arith.constant 480 : i32
    %833 = tpu.dynamic_rotate %806 by %c480_i32_274 dim 1 : vector<8x512xf32>, i32 -> vector<8x512xf32>
    %834 = vector.broadcast %134 : vector<1x512xf32> to vector<8x512xf32>
    %835 = arith.mulf %833, %834 : vector<8x512xf32>
    %c0_275 = arith.constant 0 : index
    %c4_276 = arith.constant 4 : index
    %836 = vector.load %arg17[%c0_275, %c4_276] : memref<8x5xf32, #tpu.memory_space<vmem>>, vector<8x1xf32>
    %837 = vector.broadcast %836 : vector<8x1xf32> to vector<8x512xf32>
    %838 = arith.mulf %835, %837 : vector<8x512xf32>
    %839 = arith.addf %832, %838 : vector<8x512xf32>
    %c34_i32_277 = arith.constant 34 : i32
    %840 = tpu.dynamic_rotate %839 by %c34_i32_277 dim 1 : vector<8x512xf32>, i32 -> vector<8x512xf32>
    %c0_278 = arith.constant 0 : index
    %c0_279 = arith.constant 0 : index
    %841 = vector.load %arg19[%c0_278, %c0_279] : memref<8x25xf32, #tpu.memory_space<vmem>>, vector<8x1xf32>
    %842 = vector.broadcast %841 : vector<8x1xf32> to vector<8x512xf32>
    %843 = arith.addf %840, %842 : vector<8x512xf32>
    %844 = vector.broadcast %144 : vector<1x512xf32> to vector<8x512xf32>
    %845 = arith.addf %843, %844 : vector<8x512xf32>
    %846 = vector.broadcast %148 : vector<1x512xf32> to vector<8x512xf32>
    %847 = arith.addf %845, %846 : vector<8x512xf32>
    %c33_i32_280 = arith.constant 33 : i32
    %848 = tpu.dynamic_rotate %839 by %c33_i32_280 dim 1 : vector<8x512xf32>, i32 -> vector<8x512xf32>
    %c0_281 = arith.constant 0 : index
    %c1_282 = arith.constant 1 : index
    %849 = vector.load %arg19[%c0_281, %c1_282] : memref<8x25xf32, #tpu.memory_space<vmem>>, vector<8x1xf32>
    %850 = vector.broadcast %849 : vector<8x1xf32> to vector<8x512xf32>
    %851 = arith.addf %848, %850 : vector<8x512xf32>
    %852 = vector.broadcast %144 : vector<1x512xf32> to vector<8x512xf32>
    %853 = arith.addf %851, %852 : vector<8x512xf32>
    %854 = vector.broadcast %160 : vector<1x512xf32> to vector<8x512xf32>
    %855 = arith.addf %853, %854 : vector<8x512xf32>
    %856 = arith.minimumf %847, %855 : vector<8x512xf32>
    %c32_i32_283 = arith.constant 32 : i32
    %857 = tpu.dynamic_rotate %839 by %c32_i32_283 dim 1 : vector<8x512xf32>, i32 -> vector<8x512xf32>
    %c0_284 = arith.constant 0 : index
    %c2_285 = arith.constant 2 : index
    %858 = vector.load %arg19[%c0_284, %c2_285] : memref<8x25xf32, #tpu.memory_space<vmem>>, vector<8x1xf32>
    %859 = vector.broadcast %858 : vector<8x1xf32> to vector<8x512xf32>
    %860 = arith.addf %857, %859 : vector<8x512xf32>
    %861 = vector.broadcast %144 : vector<1x512xf32> to vector<8x512xf32>
    %862 = arith.addf %860, %861 : vector<8x512xf32>
    %863 = arith.minimumf %856, %862 : vector<8x512xf32>
    %c31_i32_286 = arith.constant 31 : i32
    %864 = tpu.dynamic_rotate %839 by %c31_i32_286 dim 1 : vector<8x512xf32>, i32 -> vector<8x512xf32>
    %c0_287 = arith.constant 0 : index
    %c3_288 = arith.constant 3 : index
    %865 = vector.load %arg19[%c0_287, %c3_288] : memref<8x25xf32, #tpu.memory_space<vmem>>, vector<8x1xf32>
    %866 = vector.broadcast %865 : vector<8x1xf32> to vector<8x512xf32>
    %867 = arith.addf %864, %866 : vector<8x512xf32>
    %868 = vector.broadcast %144 : vector<1x512xf32> to vector<8x512xf32>
    %869 = arith.addf %867, %868 : vector<8x512xf32>
    %870 = vector.broadcast %180 : vector<1x512xf32> to vector<8x512xf32>
    %871 = arith.addf %869, %870 : vector<8x512xf32>
    %872 = arith.minimumf %863, %871 : vector<8x512xf32>
    %c30_i32_289 = arith.constant 30 : i32
    %873 = tpu.dynamic_rotate %839 by %c30_i32_289 dim 1 : vector<8x512xf32>, i32 -> vector<8x512xf32>
    %c0_290 = arith.constant 0 : index
    %c4_291 = arith.constant 4 : index
    %874 = vector.load %arg19[%c0_290, %c4_291] : memref<8x25xf32, #tpu.memory_space<vmem>>, vector<8x1xf32>
    %875 = vector.broadcast %874 : vector<8x1xf32> to vector<8x512xf32>
    %876 = arith.addf %873, %875 : vector<8x512xf32>
    %877 = vector.broadcast %144 : vector<1x512xf32> to vector<8x512xf32>
    %878 = arith.addf %876, %877 : vector<8x512xf32>
    %879 = vector.broadcast %193 : vector<1x512xf32> to vector<8x512xf32>
    %880 = arith.addf %878, %879 : vector<8x512xf32>
    %881 = arith.minimumf %872, %880 : vector<8x512xf32>
    %c18_i32_292 = arith.constant 18 : i32
    %882 = tpu.dynamic_rotate %839 by %c18_i32_292 dim 1 : vector<8x512xf32>, i32 -> vector<8x512xf32>
    %c0_293 = arith.constant 0 : index
    %c5_294 = arith.constant 5 : index
    %883 = vector.load %arg19[%c0_293, %c5_294] : memref<8x25xf32, #tpu.memory_space<vmem>>, vector<8x1xf32>
    %884 = vector.broadcast %883 : vector<8x1xf32> to vector<8x512xf32>
    %885 = arith.addf %882, %884 : vector<8x512xf32>
    %886 = vector.broadcast %206 : vector<1x512xf32> to vector<8x512xf32>
    %887 = arith.addf %885, %886 : vector<8x512xf32>
    %888 = vector.broadcast %148 : vector<1x512xf32> to vector<8x512xf32>
    %889 = arith.addf %887, %888 : vector<8x512xf32>
    %890 = arith.minimumf %881, %889 : vector<8x512xf32>
    %c17_i32_295 = arith.constant 17 : i32
    %891 = tpu.dynamic_rotate %839 by %c17_i32_295 dim 1 : vector<8x512xf32>, i32 -> vector<8x512xf32>
    %c0_296 = arith.constant 0 : index
    %c6_297 = arith.constant 6 : index
    %892 = vector.load %arg19[%c0_296, %c6_297] : memref<8x25xf32, #tpu.memory_space<vmem>>, vector<8x1xf32>
    %893 = vector.broadcast %892 : vector<8x1xf32> to vector<8x512xf32>
    %894 = arith.addf %891, %893 : vector<8x512xf32>
    %895 = vector.broadcast %206 : vector<1x512xf32> to vector<8x512xf32>
    %896 = arith.addf %894, %895 : vector<8x512xf32>
    %897 = vector.broadcast %160 : vector<1x512xf32> to vector<8x512xf32>
    %898 = arith.addf %896, %897 : vector<8x512xf32>
    %899 = arith.minimumf %890, %898 : vector<8x512xf32>
    %c16_i32_298 = arith.constant 16 : i32
    %900 = tpu.dynamic_rotate %839 by %c16_i32_298 dim 1 : vector<8x512xf32>, i32 -> vector<8x512xf32>
    %c0_299 = arith.constant 0 : index
    %c7_300 = arith.constant 7 : index
    %901 = vector.load %arg19[%c0_299, %c7_300] : memref<8x25xf32, #tpu.memory_space<vmem>>, vector<8x1xf32>
    %902 = vector.broadcast %901 : vector<8x1xf32> to vector<8x512xf32>
    %903 = arith.addf %900, %902 : vector<8x512xf32>
    %904 = vector.broadcast %206 : vector<1x512xf32> to vector<8x512xf32>
    %905 = arith.addf %903, %904 : vector<8x512xf32>
    %906 = arith.minimumf %899, %905 : vector<8x512xf32>
    %c15_i32_301 = arith.constant 15 : i32
    %907 = tpu.dynamic_rotate %839 by %c15_i32_301 dim 1 : vector<8x512xf32>, i32 -> vector<8x512xf32>
    %c0_302 = arith.constant 0 : index
    %c8_303 = arith.constant 8 : index
    %908 = vector.load %arg19[%c0_302, %c8_303] : memref<8x25xf32, #tpu.memory_space<vmem>>, vector<8x1xf32>
    %909 = vector.broadcast %908 : vector<8x1xf32> to vector<8x512xf32>
    %910 = arith.addf %907, %909 : vector<8x512xf32>
    %911 = vector.broadcast %206 : vector<1x512xf32> to vector<8x512xf32>
    %912 = arith.addf %910, %911 : vector<8x512xf32>
    %913 = vector.broadcast %180 : vector<1x512xf32> to vector<8x512xf32>
    %914 = arith.addf %912, %913 : vector<8x512xf32>
    %915 = arith.minimumf %906, %914 : vector<8x512xf32>
    %c14_i32_304 = arith.constant 14 : i32
    %916 = tpu.dynamic_rotate %839 by %c14_i32_304 dim 1 : vector<8x512xf32>, i32 -> vector<8x512xf32>
    %c0_305 = arith.constant 0 : index
    %c9_306 = arith.constant 9 : index
    %917 = vector.load %arg19[%c0_305, %c9_306] : memref<8x25xf32, #tpu.memory_space<vmem>>, vector<8x1xf32>
    %918 = vector.broadcast %917 : vector<8x1xf32> to vector<8x512xf32>
    %919 = arith.addf %916, %918 : vector<8x512xf32>
    %920 = vector.broadcast %206 : vector<1x512xf32> to vector<8x512xf32>
    %921 = arith.addf %919, %920 : vector<8x512xf32>
    %922 = vector.broadcast %193 : vector<1x512xf32> to vector<8x512xf32>
    %923 = arith.addf %921, %922 : vector<8x512xf32>
    %924 = arith.minimumf %915, %923 : vector<8x512xf32>
    %c2_i32_307 = arith.constant 2 : i32
    %925 = tpu.dynamic_rotate %839 by %c2_i32_307 dim 1 : vector<8x512xf32>, i32 -> vector<8x512xf32>
    %c0_308 = arith.constant 0 : index
    %c10_309 = arith.constant 10 : index
    %926 = vector.load %arg19[%c0_308, %c10_309] : memref<8x25xf32, #tpu.memory_space<vmem>>, vector<8x1xf32>
    %927 = vector.broadcast %926 : vector<8x1xf32> to vector<8x512xf32>
    %928 = arith.addf %925, %927 : vector<8x512xf32>
    %929 = vector.broadcast %148 : vector<1x512xf32> to vector<8x512xf32>
    %930 = arith.addf %928, %929 : vector<8x512xf32>
    %931 = arith.minimumf %924, %930 : vector<8x512xf32>
    %c1_i32_310 = arith.constant 1 : i32
    %932 = tpu.dynamic_rotate %839 by %c1_i32_310 dim 1 : vector<8x512xf32>, i32 -> vector<8x512xf32>
    %c0_311 = arith.constant 0 : index
    %c11_312 = arith.constant 11 : index
    %933 = vector.load %arg19[%c0_311, %c11_312] : memref<8x25xf32, #tpu.memory_space<vmem>>, vector<8x1xf32>
    %934 = vector.broadcast %933 : vector<8x1xf32> to vector<8x512xf32>
    %935 = arith.addf %932, %934 : vector<8x512xf32>
    %936 = vector.broadcast %160 : vector<1x512xf32> to vector<8x512xf32>
    %937 = arith.addf %935, %936 : vector<8x512xf32>
    %938 = arith.minimumf %931, %937 : vector<8x512xf32>
    %c0_313 = arith.constant 0 : index
    %c12_314 = arith.constant 12 : index
    %939 = vector.load %arg19[%c0_313, %c12_314] : memref<8x25xf32, #tpu.memory_space<vmem>>, vector<8x1xf32>
    %940 = vector.broadcast %939 : vector<8x1xf32> to vector<8x512xf32>
    %941 = arith.addf %839, %940 : vector<8x512xf32>
    %942 = arith.minimumf %938, %941 : vector<8x512xf32>
    %c511_i32_315 = arith.constant 511 : i32
    %943 = tpu.dynamic_rotate %839 by %c511_i32_315 dim 1 : vector<8x512xf32>, i32 -> vector<8x512xf32>
    %c0_316 = arith.constant 0 : index
    %c13_317 = arith.constant 13 : index
    %944 = vector.load %arg19[%c0_316, %c13_317] : memref<8x25xf32, #tpu.memory_space<vmem>>, vector<8x1xf32>
    %945 = vector.broadcast %944 : vector<8x1xf32> to vector<8x512xf32>
    %946 = arith.addf %943, %945 : vector<8x512xf32>
    %947 = vector.broadcast %180 : vector<1x512xf32> to vector<8x512xf32>
    %948 = arith.addf %946, %947 : vector<8x512xf32>
    %949 = arith.minimumf %942, %948 : vector<8x512xf32>
    %c510_i32_318 = arith.constant 510 : i32
    %950 = tpu.dynamic_rotate %839 by %c510_i32_318 dim 1 : vector<8x512xf32>, i32 -> vector<8x512xf32>
    %c0_319 = arith.constant 0 : index
    %c14_320 = arith.constant 14 : index
    %951 = vector.load %arg19[%c0_319, %c14_320] : memref<8x25xf32, #tpu.memory_space<vmem>>, vector<8x1xf32>
    %952 = vector.broadcast %951 : vector<8x1xf32> to vector<8x512xf32>
    %953 = arith.addf %950, %952 : vector<8x512xf32>
    %954 = vector.broadcast %193 : vector<1x512xf32> to vector<8x512xf32>
    %955 = arith.addf %953, %954 : vector<8x512xf32>
    %956 = arith.minimumf %949, %955 : vector<8x512xf32>
    %c498_i32_321 = arith.constant 498 : i32
    %957 = tpu.dynamic_rotate %839 by %c498_i32_321 dim 1 : vector<8x512xf32>, i32 -> vector<8x512xf32>
    %c0_322 = arith.constant 0 : index
    %c15_323 = arith.constant 15 : index
    %958 = vector.load %arg19[%c0_322, %c15_323] : memref<8x25xf32, #tpu.memory_space<vmem>>, vector<8x1xf32>
    %959 = vector.broadcast %958 : vector<8x1xf32> to vector<8x512xf32>
    %960 = arith.addf %957, %959 : vector<8x512xf32>
    %961 = vector.broadcast %285 : vector<1x512xf32> to vector<8x512xf32>
    %962 = arith.addf %960, %961 : vector<8x512xf32>
    %963 = vector.broadcast %148 : vector<1x512xf32> to vector<8x512xf32>
    %964 = arith.addf %962, %963 : vector<8x512xf32>
    %965 = arith.minimumf %956, %964 : vector<8x512xf32>
    %c497_i32_324 = arith.constant 497 : i32
    %966 = tpu.dynamic_rotate %839 by %c497_i32_324 dim 1 : vector<8x512xf32>, i32 -> vector<8x512xf32>
    %c0_325 = arith.constant 0 : index
    %c16_326 = arith.constant 16 : index
    %967 = vector.load %arg19[%c0_325, %c16_326] : memref<8x25xf32, #tpu.memory_space<vmem>>, vector<8x1xf32>
    %968 = vector.broadcast %967 : vector<8x1xf32> to vector<8x512xf32>
    %969 = arith.addf %966, %968 : vector<8x512xf32>
    %970 = vector.broadcast %285 : vector<1x512xf32> to vector<8x512xf32>
    %971 = arith.addf %969, %970 : vector<8x512xf32>
    %972 = vector.broadcast %160 : vector<1x512xf32> to vector<8x512xf32>
    %973 = arith.addf %971, %972 : vector<8x512xf32>
    %974 = arith.minimumf %965, %973 : vector<8x512xf32>
    %c496_i32_327 = arith.constant 496 : i32
    %975 = tpu.dynamic_rotate %839 by %c496_i32_327 dim 1 : vector<8x512xf32>, i32 -> vector<8x512xf32>
    %c0_328 = arith.constant 0 : index
    %c17_329 = arith.constant 17 : index
    %976 = vector.load %arg19[%c0_328, %c17_329] : memref<8x25xf32, #tpu.memory_space<vmem>>, vector<8x1xf32>
    %977 = vector.broadcast %976 : vector<8x1xf32> to vector<8x512xf32>
    %978 = arith.addf %975, %977 : vector<8x512xf32>
    %979 = vector.broadcast %285 : vector<1x512xf32> to vector<8x512xf32>
    %980 = arith.addf %978, %979 : vector<8x512xf32>
    %981 = arith.minimumf %974, %980 : vector<8x512xf32>
    %c495_i32_330 = arith.constant 495 : i32
    %982 = tpu.dynamic_rotate %839 by %c495_i32_330 dim 1 : vector<8x512xf32>, i32 -> vector<8x512xf32>
    %c0_331 = arith.constant 0 : index
    %c18_332 = arith.constant 18 : index
    %983 = vector.load %arg19[%c0_331, %c18_332] : memref<8x25xf32, #tpu.memory_space<vmem>>, vector<8x1xf32>
    %984 = vector.broadcast %983 : vector<8x1xf32> to vector<8x512xf32>
    %985 = arith.addf %982, %984 : vector<8x512xf32>
    %986 = vector.broadcast %285 : vector<1x512xf32> to vector<8x512xf32>
    %987 = arith.addf %985, %986 : vector<8x512xf32>
    %988 = vector.broadcast %180 : vector<1x512xf32> to vector<8x512xf32>
    %989 = arith.addf %987, %988 : vector<8x512xf32>
    %990 = arith.minimumf %981, %989 : vector<8x512xf32>
    %c494_i32_333 = arith.constant 494 : i32
    %991 = tpu.dynamic_rotate %839 by %c494_i32_333 dim 1 : vector<8x512xf32>, i32 -> vector<8x512xf32>
    %c0_334 = arith.constant 0 : index
    %c19_335 = arith.constant 19 : index
    %992 = vector.load %arg19[%c0_334, %c19_335] : memref<8x25xf32, #tpu.memory_space<vmem>>, vector<8x1xf32>
    %993 = vector.broadcast %992 : vector<8x1xf32> to vector<8x512xf32>
    %994 = arith.addf %991, %993 : vector<8x512xf32>
    %995 = vector.broadcast %285 : vector<1x512xf32> to vector<8x512xf32>
    %996 = arith.addf %994, %995 : vector<8x512xf32>
    %997 = vector.broadcast %193 : vector<1x512xf32> to vector<8x512xf32>
    %998 = arith.addf %996, %997 : vector<8x512xf32>
    %999 = arith.minimumf %990, %998 : vector<8x512xf32>
    %c482_i32_336 = arith.constant 482 : i32
    %1000 = tpu.dynamic_rotate %839 by %c482_i32_336 dim 1 : vector<8x512xf32>, i32 -> vector<8x512xf32>
    %c0_337 = arith.constant 0 : index
    %c20_338 = arith.constant 20 : index
    %1001 = vector.load %arg19[%c0_337, %c20_338] : memref<8x25xf32, #tpu.memory_space<vmem>>, vector<8x1xf32>
    %1002 = vector.broadcast %1001 : vector<8x1xf32> to vector<8x512xf32>
    %1003 = arith.addf %1000, %1002 : vector<8x512xf32>
    %1004 = vector.broadcast %332 : vector<1x512xf32> to vector<8x512xf32>
    %1005 = arith.addf %1003, %1004 : vector<8x512xf32>
    %1006 = vector.broadcast %148 : vector<1x512xf32> to vector<8x512xf32>
    %1007 = arith.addf %1005, %1006 : vector<8x512xf32>
    %1008 = arith.minimumf %999, %1007 : vector<8x512xf32>
    %c481_i32_339 = arith.constant 481 : i32
    %1009 = tpu.dynamic_rotate %839 by %c481_i32_339 dim 1 : vector<8x512xf32>, i32 -> vector<8x512xf32>
    %c0_340 = arith.constant 0 : index
    %c21_341 = arith.constant 21 : index
    %1010 = vector.load %arg19[%c0_340, %c21_341] : memref<8x25xf32, #tpu.memory_space<vmem>>, vector<8x1xf32>
    %1011 = vector.broadcast %1010 : vector<8x1xf32> to vector<8x512xf32>
    %1012 = arith.addf %1009, %1011 : vector<8x512xf32>
    %1013 = vector.broadcast %332 : vector<1x512xf32> to vector<8x512xf32>
    %1014 = arith.addf %1012, %1013 : vector<8x512xf32>
    %1015 = vector.broadcast %160 : vector<1x512xf32> to vector<8x512xf32>
    %1016 = arith.addf %1014, %1015 : vector<8x512xf32>
    %1017 = arith.minimumf %1008, %1016 : vector<8x512xf32>
    %c480_i32_342 = arith.constant 480 : i32
    %1018 = tpu.dynamic_rotate %839 by %c480_i32_342 dim 1 : vector<8x512xf32>, i32 -> vector<8x512xf32>
    %c0_343 = arith.constant 0 : index
    %c22_344 = arith.constant 22 : index
    %1019 = vector.load %arg19[%c0_343, %c22_344] : memref<8x25xf32, #tpu.memory_space<vmem>>, vector<8x1xf32>
    %1020 = vector.broadcast %1019 : vector<8x1xf32> to vector<8x512xf32>
    %1021 = arith.addf %1018, %1020 : vector<8x512xf32>
    %1022 = vector.broadcast %332 : vector<1x512xf32> to vector<8x512xf32>
    %1023 = arith.addf %1021, %1022 : vector<8x512xf32>
    %1024 = arith.minimumf %1017, %1023 : vector<8x512xf32>
    %c479_i32_345 = arith.constant 479 : i32
    %1025 = tpu.dynamic_rotate %839 by %c479_i32_345 dim 1 : vector<8x512xf32>, i32 -> vector<8x512xf32>
    %c0_346 = arith.constant 0 : index
    %c23_347 = arith.constant 23 : index
    %1026 = vector.load %arg19[%c0_346, %c23_347] : memref<8x25xf32, #tpu.memory_space<vmem>>, vector<8x1xf32>
    %1027 = vector.broadcast %1026 : vector<8x1xf32> to vector<8x512xf32>
    %1028 = arith.addf %1025, %1027 : vector<8x512xf32>
    %1029 = vector.broadcast %332 : vector<1x512xf32> to vector<8x512xf32>
    %1030 = arith.addf %1028, %1029 : vector<8x512xf32>
    %1031 = vector.broadcast %180 : vector<1x512xf32> to vector<8x512xf32>
    %1032 = arith.addf %1030, %1031 : vector<8x512xf32>
    %1033 = arith.minimumf %1024, %1032 : vector<8x512xf32>
    %c478_i32_348 = arith.constant 478 : i32
    %1034 = tpu.dynamic_rotate %839 by %c478_i32_348 dim 1 : vector<8x512xf32>, i32 -> vector<8x512xf32>
    %c0_349 = arith.constant 0 : index
    %c24_350 = arith.constant 24 : index
    %1035 = vector.load %arg19[%c0_349, %c24_350] : memref<8x25xf32, #tpu.memory_space<vmem>>, vector<8x1xf32>
    %1036 = vector.broadcast %1035 : vector<8x1xf32> to vector<8x512xf32>
    %1037 = arith.addf %1034, %1036 : vector<8x512xf32>
    %1038 = vector.broadcast %332 : vector<1x512xf32> to vector<8x512xf32>
    %1039 = arith.addf %1037, %1038 : vector<8x512xf32>
    %1040 = vector.broadcast %193 : vector<1x512xf32> to vector<8x512xf32>
    %1041 = arith.addf %1039, %1040 : vector<8x512xf32>
    %1042 = arith.minimumf %1033, %1041 : vector<8x512xf32>
    %cst_351 = arith.constant 0.000000e+00 : f32
    %1043 = vector.broadcast %cst_351 : f32 to vector<8x512xf32>
    %1044 = vector.extract_strided_slice %1042 {offsets = [0, 0], sizes = [1, 512], strides = [1, 1]} : vector<8x512xf32> to vector<1x512xf32>
    %1045 = vector.shape_cast %1044 : vector<1x512xf32> to vector<1x512xf32>
    %1046 = vector.broadcast %1045 : vector<1x512xf32> to vector<8x512xf32>
    %c0_352 = arith.constant 0 : index
    %c0_353 = arith.constant 0 : index
    %1047 = vector.load %arg20[%c0_352, %c0_353] : memref<8x8xf32, #tpu.memory_space<vmem>>, vector<8x1xf32>
    %1048 = vector.broadcast %1047 : vector<8x1xf32> to vector<8x512xf32>
    %1049 = arith.mulf %1046, %1048 : vector<8x512xf32>
    %1050 = arith.addf %1043, %1049 : vector<8x512xf32>
    %1051 = vector.extract_strided_slice %1042 {offsets = [1, 0], sizes = [1, 512], strides = [1, 1]} : vector<8x512xf32> to vector<1x512xf32>
    %1052 = vector.shape_cast %1051 : vector<1x512xf32> to vector<1x512xf32>
    %1053 = vector.broadcast %1052 : vector<1x512xf32> to vector<8x512xf32>
    %c0_354 = arith.constant 0 : index
    %c1_355 = arith.constant 1 : index
    %1054 = vector.load %arg20[%c0_354, %c1_355] : memref<8x8xf32, #tpu.memory_space<vmem>>, vector<8x1xf32>
    %1055 = vector.broadcast %1054 : vector<8x1xf32> to vector<8x512xf32>
    %1056 = arith.mulf %1053, %1055 : vector<8x512xf32>
    %1057 = arith.addf %1050, %1056 : vector<8x512xf32>
    %1058 = vector.extract_strided_slice %1042 {offsets = [2, 0], sizes = [1, 512], strides = [1, 1]} : vector<8x512xf32> to vector<1x512xf32>
    %1059 = vector.shape_cast %1058 : vector<1x512xf32> to vector<1x512xf32>
    %1060 = vector.broadcast %1059 : vector<1x512xf32> to vector<8x512xf32>
    %c0_356 = arith.constant 0 : index
    %c2_357 = arith.constant 2 : index
    %1061 = vector.load %arg20[%c0_356, %c2_357] : memref<8x8xf32, #tpu.memory_space<vmem>>, vector<8x1xf32>
    %1062 = vector.broadcast %1061 : vector<8x1xf32> to vector<8x512xf32>
    %1063 = arith.mulf %1060, %1062 : vector<8x512xf32>
    %1064 = arith.addf %1057, %1063 : vector<8x512xf32>
    %1065 = vector.extract_strided_slice %1042 {offsets = [3, 0], sizes = [1, 512], strides = [1, 1]} : vector<8x512xf32> to vector<1x512xf32>
    %1066 = vector.shape_cast %1065 : vector<1x512xf32> to vector<1x512xf32>
    %1067 = vector.broadcast %1066 : vector<1x512xf32> to vector<8x512xf32>
    %c0_358 = arith.constant 0 : index
    %c3_359 = arith.constant 3 : index
    %1068 = vector.load %arg20[%c0_358, %c3_359] : memref<8x8xf32, #tpu.memory_space<vmem>>, vector<8x1xf32>
    %1069 = vector.broadcast %1068 : vector<8x1xf32> to vector<8x512xf32>
    %1070 = arith.mulf %1067, %1069 : vector<8x512xf32>
    %1071 = arith.addf %1064, %1070 : vector<8x512xf32>
    %1072 = vector.extract_strided_slice %1042 {offsets = [4, 0], sizes = [1, 512], strides = [1, 1]} : vector<8x512xf32> to vector<1x512xf32>
    %1073 = vector.shape_cast %1072 : vector<1x512xf32> to vector<1x512xf32>
    %1074 = vector.broadcast %1073 : vector<1x512xf32> to vector<8x512xf32>
    %c0_360 = arith.constant 0 : index
    %c4_361 = arith.constant 4 : index
    %1075 = vector.load %arg20[%c0_360, %c4_361] : memref<8x8xf32, #tpu.memory_space<vmem>>, vector<8x1xf32>
    %1076 = vector.broadcast %1075 : vector<8x1xf32> to vector<8x512xf32>
    %1077 = arith.mulf %1074, %1076 : vector<8x512xf32>
    %1078 = arith.addf %1071, %1077 : vector<8x512xf32>
    %1079 = vector.extract_strided_slice %1042 {offsets = [5, 0], sizes = [1, 512], strides = [1, 1]} : vector<8x512xf32> to vector<1x512xf32>
    %1080 = vector.shape_cast %1079 : vector<1x512xf32> to vector<1x512xf32>
    %1081 = vector.broadcast %1080 : vector<1x512xf32> to vector<8x512xf32>
    %c0_362 = arith.constant 0 : index
    %c5_363 = arith.constant 5 : index
    %1082 = vector.load %arg20[%c0_362, %c5_363] : memref<8x8xf32, #tpu.memory_space<vmem>>, vector<8x1xf32>
    %1083 = vector.broadcast %1082 : vector<8x1xf32> to vector<8x512xf32>
    %1084 = arith.mulf %1081, %1083 : vector<8x512xf32>
    %1085 = arith.addf %1078, %1084 : vector<8x512xf32>
    %1086 = vector.extract_strided_slice %1042 {offsets = [6, 0], sizes = [1, 512], strides = [1, 1]} : vector<8x512xf32> to vector<1x512xf32>
    %1087 = vector.shape_cast %1086 : vector<1x512xf32> to vector<1x512xf32>
    %1088 = vector.broadcast %1087 : vector<1x512xf32> to vector<8x512xf32>
    %c0_364 = arith.constant 0 : index
    %c6_365 = arith.constant 6 : index
    %1089 = vector.load %arg20[%c0_364, %c6_365] : memref<8x8xf32, #tpu.memory_space<vmem>>, vector<8x1xf32>
    %1090 = vector.broadcast %1089 : vector<8x1xf32> to vector<8x512xf32>
    %1091 = arith.mulf %1088, %1090 : vector<8x512xf32>
    %1092 = arith.addf %1085, %1091 : vector<8x512xf32>
    %1093 = vector.extract_strided_slice %1042 {offsets = [7, 0], sizes = [1, 512], strides = [1, 1]} : vector<8x512xf32> to vector<1x512xf32>
    %1094 = vector.shape_cast %1093 : vector<1x512xf32> to vector<1x512xf32>
    %1095 = vector.broadcast %1094 : vector<1x512xf32> to vector<8x512xf32>
    %c0_366 = arith.constant 0 : index
    %c7_367 = arith.constant 7 : index
    %1096 = vector.load %arg20[%c0_366, %c7_367] : memref<8x8xf32, #tpu.memory_space<vmem>>, vector<8x1xf32>
    %1097 = vector.broadcast %1096 : vector<8x1xf32> to vector<8x512xf32>
    %1098 = arith.mulf %1095, %1097 : vector<8x512xf32>
    %1099 = arith.addf %1092, %1098 : vector<8x512xf32>
    %c0_368 = arith.constant 0 : index
    %c0_369 = arith.constant 0 : index
    %1100 = vector.load %arg21[%c0_368, %c0_369] : memref<8x1xf32, #tpu.memory_space<vmem>>, vector<8x1xf32>
    %1101 = vector.broadcast %1100 : vector<8x1xf32> to vector<8x512xf32>
    %1102 = arith.addf %1099, %1101 : vector<8x512xf32>
    %cst_370 = arith.constant dense<0.000000e+00> : vector<8xf32>
    %1103 = vector.multi_reduction <add>, %1102, %cst_370 [1] : vector<8x512xf32> to vector<8xf32>
    %1104 = vector.shape_cast %1103 : vector<8xf32> to vector<8x1xf32>
    %cst_371 = arith.constant 0.001953125 : f32
    %1105 = vector.broadcast %cst_371 : f32 to vector<8x1xf32>
    %1106 = arith.mulf %1104, %1105 : vector<8x1xf32>
    %1107 = vector.broadcast %1106 : vector<8x1xf32> to vector<8x512xf32>
    %1108 = arith.subf %1102, %1107 : vector<8x512xf32>
    %1109 = arith.mulf %1108, %1108 : vector<8x512xf32>
    %cst_372 = arith.constant dense<0.000000e+00> : vector<8xf32>
    %1110 = vector.multi_reduction <add>, %1109, %cst_372 [1] : vector<8x512xf32> to vector<8xf32>
    %1111 = vector.shape_cast %1110 : vector<8xf32> to vector<8x1xf32>
    %cst_373 = arith.constant 0.001953125 : f32
    %1112 = vector.broadcast %cst_373 : f32 to vector<8x1xf32>
    %1113 = arith.mulf %1111, %1112 : vector<8x1xf32>
    %c0_374 = arith.constant 0 : index
    %c0_375 = arith.constant 0 : index
    %1114 = vector.load %arg22[%c0_374, %c0_375] : memref<8x1xf32, #tpu.memory_space<vmem>>, vector<8x1xf32>
    %1115 = vector.broadcast %1114 : vector<8x1xf32> to vector<8x512xf32>
    %1116 = arith.mulf %1115, %1108 : vector<8x512xf32>
    %cst_376 = arith.constant 9.99999974E-6 : f32
    %1117 = vector.broadcast %cst_376 : f32 to vector<8x1xf32>
    %1118 = arith.addf %1113, %1117 : vector<8x1xf32>
    %1119 = math.rsqrt %1118 : vector<8x1xf32>
    %1120 = vector.broadcast %1119 : vector<8x1xf32> to vector<8x512xf32>
    %1121 = arith.mulf %1116, %1120 : vector<8x512xf32>
    %c0_377 = arith.constant 0 : index
    %c0_378 = arith.constant 0 : index
    %1122 = vector.load %arg23[%c0_377, %c0_378] : memref<8x1xf32, #tpu.memory_space<vmem>>, vector<8x1xf32>
    %1123 = vector.broadcast %1122 : vector<8x1xf32> to vector<8x512xf32>
    %1124 = arith.addf %1121, %1123 : vector<8x512xf32>
    %cst_379 = arith.constant 0.000000e+00 : f32
    %1125 = vector.broadcast %cst_379 : f32 to vector<8x512xf32>
    %c2_i32_380 = arith.constant 2 : i32
    %1126 = tpu.dynamic_rotate %1124 by %c2_i32_380 dim 1 : vector<8x512xf32>, i32 -> vector<8x512xf32>
    %1127 = vector.broadcast %13 : vector<1x512xf32> to vector<8x512xf32>
    %1128 = arith.mulf %1126, %1127 : vector<8x512xf32>
    %c0_381 = arith.constant 0 : index
    %c0_382 = arith.constant 0 : index
    %1129 = vector.load %arg25[%c0_381, %c0_382] : memref<8x5xf32, #tpu.memory_space<vmem>>, vector<8x1xf32>
    %1130 = vector.broadcast %1129 : vector<8x1xf32> to vector<8x512xf32>
    %1131 = arith.mulf %1128, %1130 : vector<8x512xf32>
    %1132 = arith.addf %1125, %1131 : vector<8x512xf32>
    %c1_i32_383 = arith.constant 1 : i32
    %1133 = tpu.dynamic_rotate %1124 by %c1_i32_383 dim 1 : vector<8x512xf32>, i32 -> vector<8x512xf32>
    %1134 = vector.broadcast %29 : vector<1x512xf32> to vector<8x512xf32>
    %1135 = arith.mulf %1133, %1134 : vector<8x512xf32>
    %c0_384 = arith.constant 0 : index
    %c1_385 = arith.constant 1 : index
    %1136 = vector.load %arg25[%c0_384, %c1_385] : memref<8x5xf32, #tpu.memory_space<vmem>>, vector<8x1xf32>
    %1137 = vector.broadcast %1136 : vector<8x1xf32> to vector<8x512xf32>
    %1138 = arith.mulf %1135, %1137 : vector<8x512xf32>
    %1139 = arith.addf %1132, %1138 : vector<8x512xf32>
    %c0_386 = arith.constant 0 : index
    %c2_387 = arith.constant 2 : index
    %1140 = vector.load %arg25[%c0_386, %c2_387] : memref<8x5xf32, #tpu.memory_space<vmem>>, vector<8x1xf32>
    %1141 = vector.broadcast %1140 : vector<8x1xf32> to vector<8x512xf32>
    %1142 = arith.mulf %1124, %1141 : vector<8x512xf32>
    %1143 = arith.addf %1139, %1142 : vector<8x512xf32>
    %c511_i32_388 = arith.constant 511 : i32
    %1144 = tpu.dynamic_rotate %1124 by %c511_i32_388 dim 1 : vector<8x512xf32>, i32 -> vector<8x512xf32>
    %1145 = vector.broadcast %49 : vector<1x512xf32> to vector<8x512xf32>
    %1146 = arith.mulf %1144, %1145 : vector<8x512xf32>
    %c0_389 = arith.constant 0 : index
    %c3_390 = arith.constant 3 : index
    %1147 = vector.load %arg25[%c0_389, %c3_390] : memref<8x5xf32, #tpu.memory_space<vmem>>, vector<8x1xf32>
    %1148 = vector.broadcast %1147 : vector<8x1xf32> to vector<8x512xf32>
    %1149 = arith.mulf %1146, %1148 : vector<8x512xf32>
    %1150 = arith.addf %1143, %1149 : vector<8x512xf32>
    %c510_i32_391 = arith.constant 510 : i32
    %1151 = tpu.dynamic_rotate %1124 by %c510_i32_391 dim 1 : vector<8x512xf32>, i32 -> vector<8x512xf32>
    %1152 = vector.broadcast %65 : vector<1x512xf32> to vector<8x512xf32>
    %1153 = arith.mulf %1151, %1152 : vector<8x512xf32>
    %c0_392 = arith.constant 0 : index
    %c4_393 = arith.constant 4 : index
    %1154 = vector.load %arg25[%c0_392, %c4_393] : memref<8x5xf32, #tpu.memory_space<vmem>>, vector<8x1xf32>
    %1155 = vector.broadcast %1154 : vector<8x1xf32> to vector<8x512xf32>
    %1156 = arith.mulf %1153, %1155 : vector<8x512xf32>
    %1157 = arith.addf %1150, %1156 : vector<8x512xf32>
    %cst_394 = arith.constant 0.000000e+00 : f32
    %1158 = vector.broadcast %cst_394 : f32 to vector<8x512xf32>
    %c32_i32_395 = arith.constant 32 : i32
    %1159 = tpu.dynamic_rotate %1157 by %c32_i32_395 dim 1 : vector<8x512xf32>, i32 -> vector<8x512xf32>
    %1160 = vector.broadcast %82 : vector<1x512xf32> to vector<8x512xf32>
    %1161 = arith.mulf %1159, %1160 : vector<8x512xf32>
    %c0_396 = arith.constant 0 : index
    %c0_397 = arith.constant 0 : index
    %1162 = vector.load %arg24[%c0_396, %c0_397] : memref<8x5xf32, #tpu.memory_space<vmem>>, vector<8x1xf32>
    %1163 = vector.broadcast %1162 : vector<8x1xf32> to vector<8x512xf32>
    %1164 = arith.mulf %1161, %1163 : vector<8x512xf32>
    %1165 = arith.addf %1158, %1164 : vector<8x512xf32>
    %c16_i32_398 = arith.constant 16 : i32
    %1166 = tpu.dynamic_rotate %1157 by %c16_i32_398 dim 1 : vector<8x512xf32>, i32 -> vector<8x512xf32>
    %1167 = vector.broadcast %98 : vector<1x512xf32> to vector<8x512xf32>
    %1168 = arith.mulf %1166, %1167 : vector<8x512xf32>
    %c0_399 = arith.constant 0 : index
    %c1_400 = arith.constant 1 : index
    %1169 = vector.load %arg24[%c0_399, %c1_400] : memref<8x5xf32, #tpu.memory_space<vmem>>, vector<8x1xf32>
    %1170 = vector.broadcast %1169 : vector<8x1xf32> to vector<8x512xf32>
    %1171 = arith.mulf %1168, %1170 : vector<8x512xf32>
    %1172 = arith.addf %1165, %1171 : vector<8x512xf32>
    %c0_401 = arith.constant 0 : index
    %c2_402 = arith.constant 2 : index
    %1173 = vector.load %arg24[%c0_401, %c2_402] : memref<8x5xf32, #tpu.memory_space<vmem>>, vector<8x1xf32>
    %1174 = vector.broadcast %1173 : vector<8x1xf32> to vector<8x512xf32>
    %1175 = arith.mulf %1157, %1174 : vector<8x512xf32>
    %1176 = arith.addf %1172, %1175 : vector<8x512xf32>
    %c496_i32_403 = arith.constant 496 : i32
    %1177 = tpu.dynamic_rotate %1157 by %c496_i32_403 dim 1 : vector<8x512xf32>, i32 -> vector<8x512xf32>
    %1178 = vector.broadcast %118 : vector<1x512xf32> to vector<8x512xf32>
    %1179 = arith.mulf %1177, %1178 : vector<8x512xf32>
    %c0_404 = arith.constant 0 : index
    %c3_405 = arith.constant 3 : index
    %1180 = vector.load %arg24[%c0_404, %c3_405] : memref<8x5xf32, #tpu.memory_space<vmem>>, vector<8x1xf32>
    %1181 = vector.broadcast %1180 : vector<8x1xf32> to vector<8x512xf32>
    %1182 = arith.mulf %1179, %1181 : vector<8x512xf32>
    %1183 = arith.addf %1176, %1182 : vector<8x512xf32>
    %c480_i32_406 = arith.constant 480 : i32
    %1184 = tpu.dynamic_rotate %1157 by %c480_i32_406 dim 1 : vector<8x512xf32>, i32 -> vector<8x512xf32>
    %1185 = vector.broadcast %134 : vector<1x512xf32> to vector<8x512xf32>
    %1186 = arith.mulf %1184, %1185 : vector<8x512xf32>
    %c0_407 = arith.constant 0 : index
    %c4_408 = arith.constant 4 : index
    %1187 = vector.load %arg24[%c0_407, %c4_408] : memref<8x5xf32, #tpu.memory_space<vmem>>, vector<8x1xf32>
    %1188 = vector.broadcast %1187 : vector<8x1xf32> to vector<8x512xf32>
    %1189 = arith.mulf %1186, %1188 : vector<8x512xf32>
    %1190 = arith.addf %1183, %1189 : vector<8x512xf32>
    %c34_i32_409 = arith.constant 34 : i32
    %1191 = tpu.dynamic_rotate %1190 by %c34_i32_409 dim 1 : vector<8x512xf32>, i32 -> vector<8x512xf32>
    %c0_410 = arith.constant 0 : index
    %c0_411 = arith.constant 0 : index
    %1192 = vector.load %arg26[%c0_410, %c0_411] : memref<8x25xf32, #tpu.memory_space<vmem>>, vector<8x1xf32>
    %1193 = vector.broadcast %1192 : vector<8x1xf32> to vector<8x512xf32>
    %1194 = arith.subf %1191, %1193 : vector<8x512xf32>
    %1195 = vector.broadcast %144 : vector<1x512xf32> to vector<8x512xf32>
    %1196 = arith.subf %1194, %1195 : vector<8x512xf32>
    %1197 = vector.broadcast %148 : vector<1x512xf32> to vector<8x512xf32>
    %1198 = arith.subf %1196, %1197 : vector<8x512xf32>
    %c33_i32_412 = arith.constant 33 : i32
    %1199 = tpu.dynamic_rotate %1190 by %c33_i32_412 dim 1 : vector<8x512xf32>, i32 -> vector<8x512xf32>
    %c0_413 = arith.constant 0 : index
    %c1_414 = arith.constant 1 : index
    %1200 = vector.load %arg26[%c0_413, %c1_414] : memref<8x25xf32, #tpu.memory_space<vmem>>, vector<8x1xf32>
    %1201 = vector.broadcast %1200 : vector<8x1xf32> to vector<8x512xf32>
    %1202 = arith.subf %1199, %1201 : vector<8x512xf32>
    %1203 = vector.broadcast %144 : vector<1x512xf32> to vector<8x512xf32>
    %1204 = arith.subf %1202, %1203 : vector<8x512xf32>
    %1205 = vector.broadcast %160 : vector<1x512xf32> to vector<8x512xf32>
    %1206 = arith.subf %1204, %1205 : vector<8x512xf32>
    %1207 = arith.maximumf %1198, %1206 : vector<8x512xf32>
    %c32_i32_415 = arith.constant 32 : i32
    %1208 = tpu.dynamic_rotate %1190 by %c32_i32_415 dim 1 : vector<8x512xf32>, i32 -> vector<8x512xf32>
    %c0_416 = arith.constant 0 : index
    %c2_417 = arith.constant 2 : index
    %1209 = vector.load %arg26[%c0_416, %c2_417] : memref<8x25xf32, #tpu.memory_space<vmem>>, vector<8x1xf32>
    %1210 = vector.broadcast %1209 : vector<8x1xf32> to vector<8x512xf32>
    %1211 = arith.subf %1208, %1210 : vector<8x512xf32>
    %1212 = vector.broadcast %144 : vector<1x512xf32> to vector<8x512xf32>
    %1213 = arith.subf %1211, %1212 : vector<8x512xf32>
    %1214 = arith.maximumf %1207, %1213 : vector<8x512xf32>
    %c31_i32_418 = arith.constant 31 : i32
    %1215 = tpu.dynamic_rotate %1190 by %c31_i32_418 dim 1 : vector<8x512xf32>, i32 -> vector<8x512xf32>
    %c0_419 = arith.constant 0 : index
    %c3_420 = arith.constant 3 : index
    %1216 = vector.load %arg26[%c0_419, %c3_420] : memref<8x25xf32, #tpu.memory_space<vmem>>, vector<8x1xf32>
    %1217 = vector.broadcast %1216 : vector<8x1xf32> to vector<8x512xf32>
    %1218 = arith.subf %1215, %1217 : vector<8x512xf32>
    %1219 = vector.broadcast %144 : vector<1x512xf32> to vector<8x512xf32>
    %1220 = arith.subf %1218, %1219 : vector<8x512xf32>
    %1221 = vector.broadcast %180 : vector<1x512xf32> to vector<8x512xf32>
    %1222 = arith.subf %1220, %1221 : vector<8x512xf32>
    %1223 = arith.maximumf %1214, %1222 : vector<8x512xf32>
    %c30_i32_421 = arith.constant 30 : i32
    %1224 = tpu.dynamic_rotate %1190 by %c30_i32_421 dim 1 : vector<8x512xf32>, i32 -> vector<8x512xf32>
    %c0_422 = arith.constant 0 : index
    %c4_423 = arith.constant 4 : index
    %1225 = vector.load %arg26[%c0_422, %c4_423] : memref<8x25xf32, #tpu.memory_space<vmem>>, vector<8x1xf32>
    %1226 = vector.broadcast %1225 : vector<8x1xf32> to vector<8x512xf32>
    %1227 = arith.subf %1224, %1226 : vector<8x512xf32>
    %1228 = vector.broadcast %144 : vector<1x512xf32> to vector<8x512xf32>
    %1229 = arith.subf %1227, %1228 : vector<8x512xf32>
    %1230 = vector.broadcast %193 : vector<1x512xf32> to vector<8x512xf32>
    %1231 = arith.subf %1229, %1230 : vector<8x512xf32>
    %1232 = arith.maximumf %1223, %1231 : vector<8x512xf32>
    %c18_i32_424 = arith.constant 18 : i32
    %1233 = tpu.dynamic_rotate %1190 by %c18_i32_424 dim 1 : vector<8x512xf32>, i32 -> vector<8x512xf32>
    %c0_425 = arith.constant 0 : index
    %c5_426 = arith.constant 5 : index
    %1234 = vector.load %arg26[%c0_425, %c5_426] : memref<8x25xf32, #tpu.memory_space<vmem>>, vector<8x1xf32>
    %1235 = vector.broadcast %1234 : vector<8x1xf32> to vector<8x512xf32>
    %1236 = arith.subf %1233, %1235 : vector<8x512xf32>
    %1237 = vector.broadcast %206 : vector<1x512xf32> to vector<8x512xf32>
    %1238 = arith.subf %1236, %1237 : vector<8x512xf32>
    %1239 = vector.broadcast %148 : vector<1x512xf32> to vector<8x512xf32>
    %1240 = arith.subf %1238, %1239 : vector<8x512xf32>
    %1241 = arith.maximumf %1232, %1240 : vector<8x512xf32>
    %c17_i32_427 = arith.constant 17 : i32
    %1242 = tpu.dynamic_rotate %1190 by %c17_i32_427 dim 1 : vector<8x512xf32>, i32 -> vector<8x512xf32>
    %c0_428 = arith.constant 0 : index
    %c6_429 = arith.constant 6 : index
    %1243 = vector.load %arg26[%c0_428, %c6_429] : memref<8x25xf32, #tpu.memory_space<vmem>>, vector<8x1xf32>
    %1244 = vector.broadcast %1243 : vector<8x1xf32> to vector<8x512xf32>
    %1245 = arith.subf %1242, %1244 : vector<8x512xf32>
    %1246 = vector.broadcast %206 : vector<1x512xf32> to vector<8x512xf32>
    %1247 = arith.subf %1245, %1246 : vector<8x512xf32>
    %1248 = vector.broadcast %160 : vector<1x512xf32> to vector<8x512xf32>
    %1249 = arith.subf %1247, %1248 : vector<8x512xf32>
    %1250 = arith.maximumf %1241, %1249 : vector<8x512xf32>
    %c16_i32_430 = arith.constant 16 : i32
    %1251 = tpu.dynamic_rotate %1190 by %c16_i32_430 dim 1 : vector<8x512xf32>, i32 -> vector<8x512xf32>
    %c0_431 = arith.constant 0 : index
    %c7_432 = arith.constant 7 : index
    %1252 = vector.load %arg26[%c0_431, %c7_432] : memref<8x25xf32, #tpu.memory_space<vmem>>, vector<8x1xf32>
    %1253 = vector.broadcast %1252 : vector<8x1xf32> to vector<8x512xf32>
    %1254 = arith.subf %1251, %1253 : vector<8x512xf32>
    %1255 = vector.broadcast %206 : vector<1x512xf32> to vector<8x512xf32>
    %1256 = arith.subf %1254, %1255 : vector<8x512xf32>
    %1257 = arith.maximumf %1250, %1256 : vector<8x512xf32>
    %c15_i32_433 = arith.constant 15 : i32
    %1258 = tpu.dynamic_rotate %1190 by %c15_i32_433 dim 1 : vector<8x512xf32>, i32 -> vector<8x512xf32>
    %c0_434 = arith.constant 0 : index
    %c8_435 = arith.constant 8 : index
    %1259 = vector.load %arg26[%c0_434, %c8_435] : memref<8x25xf32, #tpu.memory_space<vmem>>, vector<8x1xf32>
    %1260 = vector.broadcast %1259 : vector<8x1xf32> to vector<8x512xf32>
    %1261 = arith.subf %1258, %1260 : vector<8x512xf32>
    %1262 = vector.broadcast %206 : vector<1x512xf32> to vector<8x512xf32>
    %1263 = arith.subf %1261, %1262 : vector<8x512xf32>
    %1264 = vector.broadcast %180 : vector<1x512xf32> to vector<8x512xf32>
    %1265 = arith.subf %1263, %1264 : vector<8x512xf32>
    %1266 = arith.maximumf %1257, %1265 : vector<8x512xf32>
    %c14_i32_436 = arith.constant 14 : i32
    %1267 = tpu.dynamic_rotate %1190 by %c14_i32_436 dim 1 : vector<8x512xf32>, i32 -> vector<8x512xf32>
    %c0_437 = arith.constant 0 : index
    %c9_438 = arith.constant 9 : index
    %1268 = vector.load %arg26[%c0_437, %c9_438] : memref<8x25xf32, #tpu.memory_space<vmem>>, vector<8x1xf32>
    %1269 = vector.broadcast %1268 : vector<8x1xf32> to vector<8x512xf32>
    %1270 = arith.subf %1267, %1269 : vector<8x512xf32>
    %1271 = vector.broadcast %206 : vector<1x512xf32> to vector<8x512xf32>
    %1272 = arith.subf %1270, %1271 : vector<8x512xf32>
    %1273 = vector.broadcast %193 : vector<1x512xf32> to vector<8x512xf32>
    %1274 = arith.subf %1272, %1273 : vector<8x512xf32>
    %1275 = arith.maximumf %1266, %1274 : vector<8x512xf32>
    %c2_i32_439 = arith.constant 2 : i32
    %1276 = tpu.dynamic_rotate %1190 by %c2_i32_439 dim 1 : vector<8x512xf32>, i32 -> vector<8x512xf32>
    %c0_440 = arith.constant 0 : index
    %c10_441 = arith.constant 10 : index
    %1277 = vector.load %arg26[%c0_440, %c10_441] : memref<8x25xf32, #tpu.memory_space<vmem>>, vector<8x1xf32>
    %1278 = vector.broadcast %1277 : vector<8x1xf32> to vector<8x512xf32>
    %1279 = arith.subf %1276, %1278 : vector<8x512xf32>
    %1280 = vector.broadcast %148 : vector<1x512xf32> to vector<8x512xf32>
    %1281 = arith.subf %1279, %1280 : vector<8x512xf32>
    %1282 = arith.maximumf %1275, %1281 : vector<8x512xf32>
    %c1_i32_442 = arith.constant 1 : i32
    %1283 = tpu.dynamic_rotate %1190 by %c1_i32_442 dim 1 : vector<8x512xf32>, i32 -> vector<8x512xf32>
    %c0_443 = arith.constant 0 : index
    %c11_444 = arith.constant 11 : index
    %1284 = vector.load %arg26[%c0_443, %c11_444] : memref<8x25xf32, #tpu.memory_space<vmem>>, vector<8x1xf32>
    %1285 = vector.broadcast %1284 : vector<8x1xf32> to vector<8x512xf32>
    %1286 = arith.subf %1283, %1285 : vector<8x512xf32>
    %1287 = vector.broadcast %160 : vector<1x512xf32> to vector<8x512xf32>
    %1288 = arith.subf %1286, %1287 : vector<8x512xf32>
    %1289 = arith.maximumf %1282, %1288 : vector<8x512xf32>
    %c0_445 = arith.constant 0 : index
    %c12_446 = arith.constant 12 : index
    %1290 = vector.load %arg26[%c0_445, %c12_446] : memref<8x25xf32, #tpu.memory_space<vmem>>, vector<8x1xf32>
    %1291 = vector.broadcast %1290 : vector<8x1xf32> to vector<8x512xf32>
    %1292 = arith.subf %1190, %1291 : vector<8x512xf32>
    %1293 = arith.maximumf %1289, %1292 : vector<8x512xf32>
    %c511_i32_447 = arith.constant 511 : i32
    %1294 = tpu.dynamic_rotate %1190 by %c511_i32_447 dim 1 : vector<8x512xf32>, i32 -> vector<8x512xf32>
    %c0_448 = arith.constant 0 : index
    %c13_449 = arith.constant 13 : index
    %1295 = vector.load %arg26[%c0_448, %c13_449] : memref<8x25xf32, #tpu.memory_space<vmem>>, vector<8x1xf32>
    %1296 = vector.broadcast %1295 : vector<8x1xf32> to vector<8x512xf32>
    %1297 = arith.subf %1294, %1296 : vector<8x512xf32>
    %1298 = vector.broadcast %180 : vector<1x512xf32> to vector<8x512xf32>
    %1299 = arith.subf %1297, %1298 : vector<8x512xf32>
    %1300 = arith.maximumf %1293, %1299 : vector<8x512xf32>
    %c510_i32_450 = arith.constant 510 : i32
    %1301 = tpu.dynamic_rotate %1190 by %c510_i32_450 dim 1 : vector<8x512xf32>, i32 -> vector<8x512xf32>
    %c0_451 = arith.constant 0 : index
    %c14_452 = arith.constant 14 : index
    %1302 = vector.load %arg26[%c0_451, %c14_452] : memref<8x25xf32, #tpu.memory_space<vmem>>, vector<8x1xf32>
    %1303 = vector.broadcast %1302 : vector<8x1xf32> to vector<8x512xf32>
    %1304 = arith.subf %1301, %1303 : vector<8x512xf32>
    %1305 = vector.broadcast %193 : vector<1x512xf32> to vector<8x512xf32>
    %1306 = arith.subf %1304, %1305 : vector<8x512xf32>
    %1307 = arith.maximumf %1300, %1306 : vector<8x512xf32>
    %c498_i32_453 = arith.constant 498 : i32
    %1308 = tpu.dynamic_rotate %1190 by %c498_i32_453 dim 1 : vector<8x512xf32>, i32 -> vector<8x512xf32>
    %c0_454 = arith.constant 0 : index
    %c15_455 = arith.constant 15 : index
    %1309 = vector.load %arg26[%c0_454, %c15_455] : memref<8x25xf32, #tpu.memory_space<vmem>>, vector<8x1xf32>
    %1310 = vector.broadcast %1309 : vector<8x1xf32> to vector<8x512xf32>
    %1311 = arith.subf %1308, %1310 : vector<8x512xf32>
    %1312 = vector.broadcast %285 : vector<1x512xf32> to vector<8x512xf32>
    %1313 = arith.subf %1311, %1312 : vector<8x512xf32>
    %1314 = vector.broadcast %148 : vector<1x512xf32> to vector<8x512xf32>
    %1315 = arith.subf %1313, %1314 : vector<8x512xf32>
    %1316 = arith.maximumf %1307, %1315 : vector<8x512xf32>
    %c497_i32_456 = arith.constant 497 : i32
    %1317 = tpu.dynamic_rotate %1190 by %c497_i32_456 dim 1 : vector<8x512xf32>, i32 -> vector<8x512xf32>
    %c0_457 = arith.constant 0 : index
    %c16_458 = arith.constant 16 : index
    %1318 = vector.load %arg26[%c0_457, %c16_458] : memref<8x25xf32, #tpu.memory_space<vmem>>, vector<8x1xf32>
    %1319 = vector.broadcast %1318 : vector<8x1xf32> to vector<8x512xf32>
    %1320 = arith.subf %1317, %1319 : vector<8x512xf32>
    %1321 = vector.broadcast %285 : vector<1x512xf32> to vector<8x512xf32>
    %1322 = arith.subf %1320, %1321 : vector<8x512xf32>
    %1323 = vector.broadcast %160 : vector<1x512xf32> to vector<8x512xf32>
    %1324 = arith.subf %1322, %1323 : vector<8x512xf32>
    %1325 = arith.maximumf %1316, %1324 : vector<8x512xf32>
    %c496_i32_459 = arith.constant 496 : i32
    %1326 = tpu.dynamic_rotate %1190 by %c496_i32_459 dim 1 : vector<8x512xf32>, i32 -> vector<8x512xf32>
    %c0_460 = arith.constant 0 : index
    %c17_461 = arith.constant 17 : index
    %1327 = vector.load %arg26[%c0_460, %c17_461] : memref<8x25xf32, #tpu.memory_space<vmem>>, vector<8x1xf32>
    %1328 = vector.broadcast %1327 : vector<8x1xf32> to vector<8x512xf32>
    %1329 = arith.subf %1326, %1328 : vector<8x512xf32>
    %1330 = vector.broadcast %285 : vector<1x512xf32> to vector<8x512xf32>
    %1331 = arith.subf %1329, %1330 : vector<8x512xf32>
    %1332 = arith.maximumf %1325, %1331 : vector<8x512xf32>
    %c495_i32_462 = arith.constant 495 : i32
    %1333 = tpu.dynamic_rotate %1190 by %c495_i32_462 dim 1 : vector<8x512xf32>, i32 -> vector<8x512xf32>
    %c0_463 = arith.constant 0 : index
    %c18_464 = arith.constant 18 : index
    %1334 = vector.load %arg26[%c0_463, %c18_464] : memref<8x25xf32, #tpu.memory_space<vmem>>, vector<8x1xf32>
    %1335 = vector.broadcast %1334 : vector<8x1xf32> to vector<8x512xf32>
    %1336 = arith.subf %1333, %1335 : vector<8x512xf32>
    %1337 = vector.broadcast %285 : vector<1x512xf32> to vector<8x512xf32>
    %1338 = arith.subf %1336, %1337 : vector<8x512xf32>
    %1339 = vector.broadcast %180 : vector<1x512xf32> to vector<8x512xf32>
    %1340 = arith.subf %1338, %1339 : vector<8x512xf32>
    %1341 = arith.maximumf %1332, %1340 : vector<8x512xf32>
    %c494_i32_465 = arith.constant 494 : i32
    %1342 = tpu.dynamic_rotate %1190 by %c494_i32_465 dim 1 : vector<8x512xf32>, i32 -> vector<8x512xf32>
    %c0_466 = arith.constant 0 : index
    %c19_467 = arith.constant 19 : index
    %1343 = vector.load %arg26[%c0_466, %c19_467] : memref<8x25xf32, #tpu.memory_space<vmem>>, vector<8x1xf32>
    %1344 = vector.broadcast %1343 : vector<8x1xf32> to vector<8x512xf32>
    %1345 = arith.subf %1342, %1344 : vector<8x512xf32>
    %1346 = vector.broadcast %285 : vector<1x512xf32> to vector<8x512xf32>
    %1347 = arith.subf %1345, %1346 : vector<8x512xf32>
    %1348 = vector.broadcast %193 : vector<1x512xf32> to vector<8x512xf32>
    %1349 = arith.subf %1347, %1348 : vector<8x512xf32>
    %1350 = arith.maximumf %1341, %1349 : vector<8x512xf32>
    %c482_i32_468 = arith.constant 482 : i32
    %1351 = tpu.dynamic_rotate %1190 by %c482_i32_468 dim 1 : vector<8x512xf32>, i32 -> vector<8x512xf32>
    %c0_469 = arith.constant 0 : index
    %c20_470 = arith.constant 20 : index
    %1352 = vector.load %arg26[%c0_469, %c20_470] : memref<8x25xf32, #tpu.memory_space<vmem>>, vector<8x1xf32>
    %1353 = vector.broadcast %1352 : vector<8x1xf32> to vector<8x512xf32>
    %1354 = arith.subf %1351, %1353 : vector<8x512xf32>
    %1355 = vector.broadcast %332 : vector<1x512xf32> to vector<8x512xf32>
    %1356 = arith.subf %1354, %1355 : vector<8x512xf32>
    %1357 = vector.broadcast %148 : vector<1x512xf32> to vector<8x512xf32>
    %1358 = arith.subf %1356, %1357 : vector<8x512xf32>
    %1359 = arith.maximumf %1350, %1358 : vector<8x512xf32>
    %c481_i32_471 = arith.constant 481 : i32
    %1360 = tpu.dynamic_rotate %1190 by %c481_i32_471 dim 1 : vector<8x512xf32>, i32 -> vector<8x512xf32>
    %c0_472 = arith.constant 0 : index
    %c21_473 = arith.constant 21 : index
    %1361 = vector.load %arg26[%c0_472, %c21_473] : memref<8x25xf32, #tpu.memory_space<vmem>>, vector<8x1xf32>
    %1362 = vector.broadcast %1361 : vector<8x1xf32> to vector<8x512xf32>
    %1363 = arith.subf %1360, %1362 : vector<8x512xf32>
    %1364 = vector.broadcast %332 : vector<1x512xf32> to vector<8x512xf32>
    %1365 = arith.subf %1363, %1364 : vector<8x512xf32>
    %1366 = vector.broadcast %160 : vector<1x512xf32> to vector<8x512xf32>
    %1367 = arith.subf %1365, %1366 : vector<8x512xf32>
    %1368 = arith.maximumf %1359, %1367 : vector<8x512xf32>
    %c480_i32_474 = arith.constant 480 : i32
    %1369 = tpu.dynamic_rotate %1190 by %c480_i32_474 dim 1 : vector<8x512xf32>, i32 -> vector<8x512xf32>
    %c0_475 = arith.constant 0 : index
    %c22_476 = arith.constant 22 : index
    %1370 = vector.load %arg26[%c0_475, %c22_476] : memref<8x25xf32, #tpu.memory_space<vmem>>, vector<8x1xf32>
    %1371 = vector.broadcast %1370 : vector<8x1xf32> to vector<8x512xf32>
    %1372 = arith.subf %1369, %1371 : vector<8x512xf32>
    %1373 = vector.broadcast %332 : vector<1x512xf32> to vector<8x512xf32>
    %1374 = arith.subf %1372, %1373 : vector<8x512xf32>
    %1375 = arith.maximumf %1368, %1374 : vector<8x512xf32>
    %c479_i32_477 = arith.constant 479 : i32
    %1376 = tpu.dynamic_rotate %1190 by %c479_i32_477 dim 1 : vector<8x512xf32>, i32 -> vector<8x512xf32>
    %c0_478 = arith.constant 0 : index
    %c23_479 = arith.constant 23 : index
    %1377 = vector.load %arg26[%c0_478, %c23_479] : memref<8x25xf32, #tpu.memory_space<vmem>>, vector<8x1xf32>
    %1378 = vector.broadcast %1377 : vector<8x1xf32> to vector<8x512xf32>
    %1379 = arith.subf %1376, %1378 : vector<8x512xf32>
    %1380 = vector.broadcast %332 : vector<1x512xf32> to vector<8x512xf32>
    %1381 = arith.subf %1379, %1380 : vector<8x512xf32>
    %1382 = vector.broadcast %180 : vector<1x512xf32> to vector<8x512xf32>
    %1383 = arith.subf %1381, %1382 : vector<8x512xf32>
    %1384 = arith.maximumf %1375, %1383 : vector<8x512xf32>
    %c478_i32_480 = arith.constant 478 : i32
    %1385 = tpu.dynamic_rotate %1190 by %c478_i32_480 dim 1 : vector<8x512xf32>, i32 -> vector<8x512xf32>
    %c0_481 = arith.constant 0 : index
    %c24_482 = arith.constant 24 : index
    %1386 = vector.load %arg26[%c0_481, %c24_482] : memref<8x25xf32, #tpu.memory_space<vmem>>, vector<8x1xf32>
    %1387 = vector.broadcast %1386 : vector<8x1xf32> to vector<8x512xf32>
    %1388 = arith.subf %1385, %1387 : vector<8x512xf32>
    %1389 = vector.broadcast %332 : vector<1x512xf32> to vector<8x512xf32>
    %1390 = arith.subf %1388, %1389 : vector<8x512xf32>
    %1391 = vector.broadcast %193 : vector<1x512xf32> to vector<8x512xf32>
    %1392 = arith.subf %1390, %1391 : vector<8x512xf32>
    %1393 = arith.maximumf %1384, %1392 : vector<8x512xf32>
    %cst_483 = arith.constant 0.000000e+00 : f32
    %1394 = vector.broadcast %cst_483 : f32 to vector<8x512xf32>
    %1395 = vector.extract_strided_slice %1393 {offsets = [0, 0], sizes = [1, 512], strides = [1, 1]} : vector<8x512xf32> to vector<1x512xf32>
    %1396 = vector.shape_cast %1395 : vector<1x512xf32> to vector<1x512xf32>
    %1397 = vector.broadcast %1396 : vector<1x512xf32> to vector<8x512xf32>
    %c0_484 = arith.constant 0 : index
    %c0_485 = arith.constant 0 : index
    %1398 = vector.load %arg27[%c0_484, %c0_485] : memref<8x8xf32, #tpu.memory_space<vmem>>, vector<8x1xf32>
    %1399 = vector.broadcast %1398 : vector<8x1xf32> to vector<8x512xf32>
    %1400 = arith.mulf %1397, %1399 : vector<8x512xf32>
    %1401 = arith.addf %1394, %1400 : vector<8x512xf32>
    %1402 = vector.extract_strided_slice %1393 {offsets = [1, 0], sizes = [1, 512], strides = [1, 1]} : vector<8x512xf32> to vector<1x512xf32>
    %1403 = vector.shape_cast %1402 : vector<1x512xf32> to vector<1x512xf32>
    %1404 = vector.broadcast %1403 : vector<1x512xf32> to vector<8x512xf32>
    %c0_486 = arith.constant 0 : index
    %c1_487 = arith.constant 1 : index
    %1405 = vector.load %arg27[%c0_486, %c1_487] : memref<8x8xf32, #tpu.memory_space<vmem>>, vector<8x1xf32>
    %1406 = vector.broadcast %1405 : vector<8x1xf32> to vector<8x512xf32>
    %1407 = arith.mulf %1404, %1406 : vector<8x512xf32>
    %1408 = arith.addf %1401, %1407 : vector<8x512xf32>
    %1409 = vector.extract_strided_slice %1393 {offsets = [2, 0], sizes = [1, 512], strides = [1, 1]} : vector<8x512xf32> to vector<1x512xf32>
    %1410 = vector.shape_cast %1409 : vector<1x512xf32> to vector<1x512xf32>
    %1411 = vector.broadcast %1410 : vector<1x512xf32> to vector<8x512xf32>
    %c0_488 = arith.constant 0 : index
    %c2_489 = arith.constant 2 : index
    %1412 = vector.load %arg27[%c0_488, %c2_489] : memref<8x8xf32, #tpu.memory_space<vmem>>, vector<8x1xf32>
    %1413 = vector.broadcast %1412 : vector<8x1xf32> to vector<8x512xf32>
    %1414 = arith.mulf %1411, %1413 : vector<8x512xf32>
    %1415 = arith.addf %1408, %1414 : vector<8x512xf32>
    %1416 = vector.extract_strided_slice %1393 {offsets = [3, 0], sizes = [1, 512], strides = [1, 1]} : vector<8x512xf32> to vector<1x512xf32>
    %1417 = vector.shape_cast %1416 : vector<1x512xf32> to vector<1x512xf32>
    %1418 = vector.broadcast %1417 : vector<1x512xf32> to vector<8x512xf32>
    %c0_490 = arith.constant 0 : index
    %c3_491 = arith.constant 3 : index
    %1419 = vector.load %arg27[%c0_490, %c3_491] : memref<8x8xf32, #tpu.memory_space<vmem>>, vector<8x1xf32>
    %1420 = vector.broadcast %1419 : vector<8x1xf32> to vector<8x512xf32>
    %1421 = arith.mulf %1418, %1420 : vector<8x512xf32>
    %1422 = arith.addf %1415, %1421 : vector<8x512xf32>
    %1423 = vector.extract_strided_slice %1393 {offsets = [4, 0], sizes = [1, 512], strides = [1, 1]} : vector<8x512xf32> to vector<1x512xf32>
    %1424 = vector.shape_cast %1423 : vector<1x512xf32> to vector<1x512xf32>
    %1425 = vector.broadcast %1424 : vector<1x512xf32> to vector<8x512xf32>
    %c0_492 = arith.constant 0 : index
    %c4_493 = arith.constant 4 : index
    %1426 = vector.load %arg27[%c0_492, %c4_493] : memref<8x8xf32, #tpu.memory_space<vmem>>, vector<8x1xf32>
    %1427 = vector.broadcast %1426 : vector<8x1xf32> to vector<8x512xf32>
    %1428 = arith.mulf %1425, %1427 : vector<8x512xf32>
    %1429 = arith.addf %1422, %1428 : vector<8x512xf32>
    %1430 = vector.extract_strided_slice %1393 {offsets = [5, 0], sizes = [1, 512], strides = [1, 1]} : vector<8x512xf32> to vector<1x512xf32>
    %1431 = vector.shape_cast %1430 : vector<1x512xf32> to vector<1x512xf32>
    %1432 = vector.broadcast %1431 : vector<1x512xf32> to vector<8x512xf32>
    %c0_494 = arith.constant 0 : index
    %c5_495 = arith.constant 5 : index
    %1433 = vector.load %arg27[%c0_494, %c5_495] : memref<8x8xf32, #tpu.memory_space<vmem>>, vector<8x1xf32>
    %1434 = vector.broadcast %1433 : vector<8x1xf32> to vector<8x512xf32>
    %1435 = arith.mulf %1432, %1434 : vector<8x512xf32>
    %1436 = arith.addf %1429, %1435 : vector<8x512xf32>
    %1437 = vector.extract_strided_slice %1393 {offsets = [6, 0], sizes = [1, 512], strides = [1, 1]} : vector<8x512xf32> to vector<1x512xf32>
    %1438 = vector.shape_cast %1437 : vector<1x512xf32> to vector<1x512xf32>
    %1439 = vector.broadcast %1438 : vector<1x512xf32> to vector<8x512xf32>
    %c0_496 = arith.constant 0 : index
    %c6_497 = arith.constant 6 : index
    %1440 = vector.load %arg27[%c0_496, %c6_497] : memref<8x8xf32, #tpu.memory_space<vmem>>, vector<8x1xf32>
    %1441 = vector.broadcast %1440 : vector<8x1xf32> to vector<8x512xf32>
    %1442 = arith.mulf %1439, %1441 : vector<8x512xf32>
    %1443 = arith.addf %1436, %1442 : vector<8x512xf32>
    %1444 = vector.extract_strided_slice %1393 {offsets = [7, 0], sizes = [1, 512], strides = [1, 1]} : vector<8x512xf32> to vector<1x512xf32>
    %1445 = vector.shape_cast %1444 : vector<1x512xf32> to vector<1x512xf32>
    %1446 = vector.broadcast %1445 : vector<1x512xf32> to vector<8x512xf32>
    %c0_498 = arith.constant 0 : index
    %c7_499 = arith.constant 7 : index
    %1447 = vector.load %arg27[%c0_498, %c7_499] : memref<8x8xf32, #tpu.memory_space<vmem>>, vector<8x1xf32>
    %1448 = vector.broadcast %1447 : vector<8x1xf32> to vector<8x512xf32>
    %1449 = arith.mulf %1446, %1448 : vector<8x512xf32>
    %1450 = arith.addf %1443, %1449 : vector<8x512xf32>
    %c0_500 = arith.constant 0 : index
    %c0_501 = arith.constant 0 : index
    %1451 = vector.load %arg28[%c0_500, %c0_501] : memref<8x1xf32, #tpu.memory_space<vmem>>, vector<8x1xf32>
    %1452 = vector.broadcast %1451 : vector<8x1xf32> to vector<8x512xf32>
    %1453 = arith.addf %1450, %1452 : vector<8x512xf32>
    %cst_502 = arith.constant dense<0.000000e+00> : vector<8xf32>
    %1454 = vector.multi_reduction <add>, %1453, %cst_502 [1] : vector<8x512xf32> to vector<8xf32>
    %1455 = vector.shape_cast %1454 : vector<8xf32> to vector<8x1xf32>
    %cst_503 = arith.constant 0.001953125 : f32
    %1456 = vector.broadcast %cst_503 : f32 to vector<8x1xf32>
    %1457 = arith.mulf %1455, %1456 : vector<8x1xf32>
    %1458 = vector.broadcast %1457 : vector<8x1xf32> to vector<8x512xf32>
    %1459 = arith.subf %1453, %1458 : vector<8x512xf32>
    %1460 = arith.mulf %1459, %1459 : vector<8x512xf32>
    %cst_504 = arith.constant dense<0.000000e+00> : vector<8xf32>
    %1461 = vector.multi_reduction <add>, %1460, %cst_504 [1] : vector<8x512xf32> to vector<8xf32>
    %1462 = vector.shape_cast %1461 : vector<8xf32> to vector<8x1xf32>
    %cst_505 = arith.constant 0.001953125 : f32
    %1463 = vector.broadcast %cst_505 : f32 to vector<8x1xf32>
    %1464 = arith.mulf %1462, %1463 : vector<8x1xf32>
    %c0_506 = arith.constant 0 : index
    %c0_507 = arith.constant 0 : index
    %1465 = vector.load %arg29[%c0_506, %c0_507] : memref<8x1xf32, #tpu.memory_space<vmem>>, vector<8x1xf32>
    %1466 = vector.broadcast %1465 : vector<8x1xf32> to vector<8x512xf32>
    %1467 = arith.mulf %1466, %1459 : vector<8x512xf32>
    %cst_508 = arith.constant 9.99999974E-6 : f32
    %1468 = vector.broadcast %cst_508 : f32 to vector<8x1xf32>
    %1469 = arith.addf %1464, %1468 : vector<8x1xf32>
    %1470 = math.rsqrt %1469 : vector<8x1xf32>
    %1471 = vector.broadcast %1470 : vector<8x1xf32> to vector<8x512xf32>
    %1472 = arith.mulf %1467, %1471 : vector<8x512xf32>
    %c0_509 = arith.constant 0 : index
    %c0_510 = arith.constant 0 : index
    %1473 = vector.load %arg30[%c0_509, %c0_510] : memref<8x1xf32, #tpu.memory_space<vmem>>, vector<8x1xf32>
    %1474 = vector.broadcast %1473 : vector<8x1xf32> to vector<8x512xf32>
    %1475 = arith.addf %1472, %1474 : vector<8x512xf32>
    %cst_511 = arith.constant 0.000000e+00 : f32
    %1476 = vector.broadcast %cst_511 : f32 to vector<8x512xf32>
    %c2_i32_512 = arith.constant 2 : i32
    %1477 = tpu.dynamic_rotate %1475 by %c2_i32_512 dim 1 : vector<8x512xf32>, i32 -> vector<8x512xf32>
    %1478 = vector.broadcast %13 : vector<1x512xf32> to vector<8x512xf32>
    %1479 = arith.mulf %1477, %1478 : vector<8x512xf32>
    %c0_513 = arith.constant 0 : index
    %c0_514 = arith.constant 0 : index
    %1480 = vector.load %arg32[%c0_513, %c0_514] : memref<8x5xf32, #tpu.memory_space<vmem>>, vector<8x1xf32>
    %1481 = vector.broadcast %1480 : vector<8x1xf32> to vector<8x512xf32>
    %1482 = arith.mulf %1479, %1481 : vector<8x512xf32>
    %1483 = arith.addf %1476, %1482 : vector<8x512xf32>
    %c1_i32_515 = arith.constant 1 : i32
    %1484 = tpu.dynamic_rotate %1475 by %c1_i32_515 dim 1 : vector<8x512xf32>, i32 -> vector<8x512xf32>
    %1485 = vector.broadcast %29 : vector<1x512xf32> to vector<8x512xf32>
    %1486 = arith.mulf %1484, %1485 : vector<8x512xf32>
    %c0_516 = arith.constant 0 : index
    %c1_517 = arith.constant 1 : index
    %1487 = vector.load %arg32[%c0_516, %c1_517] : memref<8x5xf32, #tpu.memory_space<vmem>>, vector<8x1xf32>
    %1488 = vector.broadcast %1487 : vector<8x1xf32> to vector<8x512xf32>
    %1489 = arith.mulf %1486, %1488 : vector<8x512xf32>
    %1490 = arith.addf %1483, %1489 : vector<8x512xf32>
    %c0_518 = arith.constant 0 : index
    %c2_519 = arith.constant 2 : index
    %1491 = vector.load %arg32[%c0_518, %c2_519] : memref<8x5xf32, #tpu.memory_space<vmem>>, vector<8x1xf32>
    %1492 = vector.broadcast %1491 : vector<8x1xf32> to vector<8x512xf32>
    %1493 = arith.mulf %1475, %1492 : vector<8x512xf32>
    %1494 = arith.addf %1490, %1493 : vector<8x512xf32>
    %c511_i32_520 = arith.constant 511 : i32
    %1495 = tpu.dynamic_rotate %1475 by %c511_i32_520 dim 1 : vector<8x512xf32>, i32 -> vector<8x512xf32>
    %1496 = vector.broadcast %49 : vector<1x512xf32> to vector<8x512xf32>
    %1497 = arith.mulf %1495, %1496 : vector<8x512xf32>
    %c0_521 = arith.constant 0 : index
    %c3_522 = arith.constant 3 : index
    %1498 = vector.load %arg32[%c0_521, %c3_522] : memref<8x5xf32, #tpu.memory_space<vmem>>, vector<8x1xf32>
    %1499 = vector.broadcast %1498 : vector<8x1xf32> to vector<8x512xf32>
    %1500 = arith.mulf %1497, %1499 : vector<8x512xf32>
    %1501 = arith.addf %1494, %1500 : vector<8x512xf32>
    %c510_i32_523 = arith.constant 510 : i32
    %1502 = tpu.dynamic_rotate %1475 by %c510_i32_523 dim 1 : vector<8x512xf32>, i32 -> vector<8x512xf32>
    %1503 = vector.broadcast %65 : vector<1x512xf32> to vector<8x512xf32>
    %1504 = arith.mulf %1502, %1503 : vector<8x512xf32>
    %c0_524 = arith.constant 0 : index
    %c4_525 = arith.constant 4 : index
    %1505 = vector.load %arg32[%c0_524, %c4_525] : memref<8x5xf32, #tpu.memory_space<vmem>>, vector<8x1xf32>
    %1506 = vector.broadcast %1505 : vector<8x1xf32> to vector<8x512xf32>
    %1507 = arith.mulf %1504, %1506 : vector<8x512xf32>
    %1508 = arith.addf %1501, %1507 : vector<8x512xf32>
    %cst_526 = arith.constant 0.000000e+00 : f32
    %1509 = vector.broadcast %cst_526 : f32 to vector<8x512xf32>
    %c32_i32_527 = arith.constant 32 : i32
    %1510 = tpu.dynamic_rotate %1508 by %c32_i32_527 dim 1 : vector<8x512xf32>, i32 -> vector<8x512xf32>
    %1511 = vector.broadcast %82 : vector<1x512xf32> to vector<8x512xf32>
    %1512 = arith.mulf %1510, %1511 : vector<8x512xf32>
    %c0_528 = arith.constant 0 : index
    %c0_529 = arith.constant 0 : index
    %1513 = vector.load %arg31[%c0_528, %c0_529] : memref<8x5xf32, #tpu.memory_space<vmem>>, vector<8x1xf32>
    %1514 = vector.broadcast %1513 : vector<8x1xf32> to vector<8x512xf32>
    %1515 = arith.mulf %1512, %1514 : vector<8x512xf32>
    %1516 = arith.addf %1509, %1515 : vector<8x512xf32>
    %c16_i32_530 = arith.constant 16 : i32
    %1517 = tpu.dynamic_rotate %1508 by %c16_i32_530 dim 1 : vector<8x512xf32>, i32 -> vector<8x512xf32>
    %1518 = vector.broadcast %98 : vector<1x512xf32> to vector<8x512xf32>
    %1519 = arith.mulf %1517, %1518 : vector<8x512xf32>
    %c0_531 = arith.constant 0 : index
    %c1_532 = arith.constant 1 : index
    %1520 = vector.load %arg31[%c0_531, %c1_532] : memref<8x5xf32, #tpu.memory_space<vmem>>, vector<8x1xf32>
    %1521 = vector.broadcast %1520 : vector<8x1xf32> to vector<8x512xf32>
    %1522 = arith.mulf %1519, %1521 : vector<8x512xf32>
    %1523 = arith.addf %1516, %1522 : vector<8x512xf32>
    %c0_533 = arith.constant 0 : index
    %c2_534 = arith.constant 2 : index
    %1524 = vector.load %arg31[%c0_533, %c2_534] : memref<8x5xf32, #tpu.memory_space<vmem>>, vector<8x1xf32>
    %1525 = vector.broadcast %1524 : vector<8x1xf32> to vector<8x512xf32>
    %1526 = arith.mulf %1508, %1525 : vector<8x512xf32>
    %1527 = arith.addf %1523, %1526 : vector<8x512xf32>
    %c496_i32_535 = arith.constant 496 : i32
    %1528 = tpu.dynamic_rotate %1508 by %c496_i32_535 dim 1 : vector<8x512xf32>, i32 -> vector<8x512xf32>
    %1529 = vector.broadcast %118 : vector<1x512xf32> to vector<8x512xf32>
    %1530 = arith.mulf %1528, %1529 : vector<8x512xf32>
    %c0_536 = arith.constant 0 : index
    %c3_537 = arith.constant 3 : index
    %1531 = vector.load %arg31[%c0_536, %c3_537] : memref<8x5xf32, #tpu.memory_space<vmem>>, vector<8x1xf32>
    %1532 = vector.broadcast %1531 : vector<8x1xf32> to vector<8x512xf32>
    %1533 = arith.mulf %1530, %1532 : vector<8x512xf32>
    %1534 = arith.addf %1527, %1533 : vector<8x512xf32>
    %c480_i32_538 = arith.constant 480 : i32
    %1535 = tpu.dynamic_rotate %1508 by %c480_i32_538 dim 1 : vector<8x512xf32>, i32 -> vector<8x512xf32>
    %1536 = vector.broadcast %134 : vector<1x512xf32> to vector<8x512xf32>
    %1537 = arith.mulf %1535, %1536 : vector<8x512xf32>
    %c0_539 = arith.constant 0 : index
    %c4_540 = arith.constant 4 : index
    %1538 = vector.load %arg31[%c0_539, %c4_540] : memref<8x5xf32, #tpu.memory_space<vmem>>, vector<8x1xf32>
    %1539 = vector.broadcast %1538 : vector<8x1xf32> to vector<8x512xf32>
    %1540 = arith.mulf %1537, %1539 : vector<8x512xf32>
    %1541 = arith.addf %1534, %1540 : vector<8x512xf32>
    %c34_i32_541 = arith.constant 34 : i32
    %1542 = tpu.dynamic_rotate %1541 by %c34_i32_541 dim 1 : vector<8x512xf32>, i32 -> vector<8x512xf32>
    %c0_542 = arith.constant 0 : index
    %c0_543 = arith.constant 0 : index
    %1543 = vector.load %arg33[%c0_542, %c0_543] : memref<8x25xf32, #tpu.memory_space<vmem>>, vector<8x1xf32>
    %1544 = vector.broadcast %1543 : vector<8x1xf32> to vector<8x512xf32>
    %1545 = arith.addf %1542, %1544 : vector<8x512xf32>
    %1546 = vector.broadcast %144 : vector<1x512xf32> to vector<8x512xf32>
    %1547 = arith.addf %1545, %1546 : vector<8x512xf32>
    %1548 = vector.broadcast %148 : vector<1x512xf32> to vector<8x512xf32>
    %1549 = arith.addf %1547, %1548 : vector<8x512xf32>
    %c33_i32_544 = arith.constant 33 : i32
    %1550 = tpu.dynamic_rotate %1541 by %c33_i32_544 dim 1 : vector<8x512xf32>, i32 -> vector<8x512xf32>
    %c0_545 = arith.constant 0 : index
    %c1_546 = arith.constant 1 : index
    %1551 = vector.load %arg33[%c0_545, %c1_546] : memref<8x25xf32, #tpu.memory_space<vmem>>, vector<8x1xf32>
    %1552 = vector.broadcast %1551 : vector<8x1xf32> to vector<8x512xf32>
    %1553 = arith.addf %1550, %1552 : vector<8x512xf32>
    %1554 = vector.broadcast %144 : vector<1x512xf32> to vector<8x512xf32>
    %1555 = arith.addf %1553, %1554 : vector<8x512xf32>
    %1556 = vector.broadcast %160 : vector<1x512xf32> to vector<8x512xf32>
    %1557 = arith.addf %1555, %1556 : vector<8x512xf32>
    %1558 = arith.minimumf %1549, %1557 : vector<8x512xf32>
    %c32_i32_547 = arith.constant 32 : i32
    %1559 = tpu.dynamic_rotate %1541 by %c32_i32_547 dim 1 : vector<8x512xf32>, i32 -> vector<8x512xf32>
    %c0_548 = arith.constant 0 : index
    %c2_549 = arith.constant 2 : index
    %1560 = vector.load %arg33[%c0_548, %c2_549] : memref<8x25xf32, #tpu.memory_space<vmem>>, vector<8x1xf32>
    %1561 = vector.broadcast %1560 : vector<8x1xf32> to vector<8x512xf32>
    %1562 = arith.addf %1559, %1561 : vector<8x512xf32>
    %1563 = vector.broadcast %144 : vector<1x512xf32> to vector<8x512xf32>
    %1564 = arith.addf %1562, %1563 : vector<8x512xf32>
    %1565 = arith.minimumf %1558, %1564 : vector<8x512xf32>
    %c31_i32_550 = arith.constant 31 : i32
    %1566 = tpu.dynamic_rotate %1541 by %c31_i32_550 dim 1 : vector<8x512xf32>, i32 -> vector<8x512xf32>
    %c0_551 = arith.constant 0 : index
    %c3_552 = arith.constant 3 : index
    %1567 = vector.load %arg33[%c0_551, %c3_552] : memref<8x25xf32, #tpu.memory_space<vmem>>, vector<8x1xf32>
    %1568 = vector.broadcast %1567 : vector<8x1xf32> to vector<8x512xf32>
    %1569 = arith.addf %1566, %1568 : vector<8x512xf32>
    %1570 = vector.broadcast %144 : vector<1x512xf32> to vector<8x512xf32>
    %1571 = arith.addf %1569, %1570 : vector<8x512xf32>
    %1572 = vector.broadcast %180 : vector<1x512xf32> to vector<8x512xf32>
    %1573 = arith.addf %1571, %1572 : vector<8x512xf32>
    %1574 = arith.minimumf %1565, %1573 : vector<8x512xf32>
    %c30_i32_553 = arith.constant 30 : i32
    %1575 = tpu.dynamic_rotate %1541 by %c30_i32_553 dim 1 : vector<8x512xf32>, i32 -> vector<8x512xf32>
    %c0_554 = arith.constant 0 : index
    %c4_555 = arith.constant 4 : index
    %1576 = vector.load %arg33[%c0_554, %c4_555] : memref<8x25xf32, #tpu.memory_space<vmem>>, vector<8x1xf32>
    %1577 = vector.broadcast %1576 : vector<8x1xf32> to vector<8x512xf32>
    %1578 = arith.addf %1575, %1577 : vector<8x512xf32>
    %1579 = vector.broadcast %144 : vector<1x512xf32> to vector<8x512xf32>
    %1580 = arith.addf %1578, %1579 : vector<8x512xf32>
    %1581 = vector.broadcast %193 : vector<1x512xf32> to vector<8x512xf32>
    %1582 = arith.addf %1580, %1581 : vector<8x512xf32>
    %1583 = arith.minimumf %1574, %1582 : vector<8x512xf32>
    %c18_i32_556 = arith.constant 18 : i32
    %1584 = tpu.dynamic_rotate %1541 by %c18_i32_556 dim 1 : vector<8x512xf32>, i32 -> vector<8x512xf32>
    %c0_557 = arith.constant 0 : index
    %c5_558 = arith.constant 5 : index
    %1585 = vector.load %arg33[%c0_557, %c5_558] : memref<8x25xf32, #tpu.memory_space<vmem>>, vector<8x1xf32>
    %1586 = vector.broadcast %1585 : vector<8x1xf32> to vector<8x512xf32>
    %1587 = arith.addf %1584, %1586 : vector<8x512xf32>
    %1588 = vector.broadcast %206 : vector<1x512xf32> to vector<8x512xf32>
    %1589 = arith.addf %1587, %1588 : vector<8x512xf32>
    %1590 = vector.broadcast %148 : vector<1x512xf32> to vector<8x512xf32>
    %1591 = arith.addf %1589, %1590 : vector<8x512xf32>
    %1592 = arith.minimumf %1583, %1591 : vector<8x512xf32>
    %c17_i32_559 = arith.constant 17 : i32
    %1593 = tpu.dynamic_rotate %1541 by %c17_i32_559 dim 1 : vector<8x512xf32>, i32 -> vector<8x512xf32>
    %c0_560 = arith.constant 0 : index
    %c6_561 = arith.constant 6 : index
    %1594 = vector.load %arg33[%c0_560, %c6_561] : memref<8x25xf32, #tpu.memory_space<vmem>>, vector<8x1xf32>
    %1595 = vector.broadcast %1594 : vector<8x1xf32> to vector<8x512xf32>
    %1596 = arith.addf %1593, %1595 : vector<8x512xf32>
    %1597 = vector.broadcast %206 : vector<1x512xf32> to vector<8x512xf32>
    %1598 = arith.addf %1596, %1597 : vector<8x512xf32>
    %1599 = vector.broadcast %160 : vector<1x512xf32> to vector<8x512xf32>
    %1600 = arith.addf %1598, %1599 : vector<8x512xf32>
    %1601 = arith.minimumf %1592, %1600 : vector<8x512xf32>
    %c16_i32_562 = arith.constant 16 : i32
    %1602 = tpu.dynamic_rotate %1541 by %c16_i32_562 dim 1 : vector<8x512xf32>, i32 -> vector<8x512xf32>
    %c0_563 = arith.constant 0 : index
    %c7_564 = arith.constant 7 : index
    %1603 = vector.load %arg33[%c0_563, %c7_564] : memref<8x25xf32, #tpu.memory_space<vmem>>, vector<8x1xf32>
    %1604 = vector.broadcast %1603 : vector<8x1xf32> to vector<8x512xf32>
    %1605 = arith.addf %1602, %1604 : vector<8x512xf32>
    %1606 = vector.broadcast %206 : vector<1x512xf32> to vector<8x512xf32>
    %1607 = arith.addf %1605, %1606 : vector<8x512xf32>
    %1608 = arith.minimumf %1601, %1607 : vector<8x512xf32>
    %c15_i32_565 = arith.constant 15 : i32
    %1609 = tpu.dynamic_rotate %1541 by %c15_i32_565 dim 1 : vector<8x512xf32>, i32 -> vector<8x512xf32>
    %c0_566 = arith.constant 0 : index
    %c8_567 = arith.constant 8 : index
    %1610 = vector.load %arg33[%c0_566, %c8_567] : memref<8x25xf32, #tpu.memory_space<vmem>>, vector<8x1xf32>
    %1611 = vector.broadcast %1610 : vector<8x1xf32> to vector<8x512xf32>
    %1612 = arith.addf %1609, %1611 : vector<8x512xf32>
    %1613 = vector.broadcast %206 : vector<1x512xf32> to vector<8x512xf32>
    %1614 = arith.addf %1612, %1613 : vector<8x512xf32>
    %1615 = vector.broadcast %180 : vector<1x512xf32> to vector<8x512xf32>
    %1616 = arith.addf %1614, %1615 : vector<8x512xf32>
    %1617 = arith.minimumf %1608, %1616 : vector<8x512xf32>
    %c14_i32_568 = arith.constant 14 : i32
    %1618 = tpu.dynamic_rotate %1541 by %c14_i32_568 dim 1 : vector<8x512xf32>, i32 -> vector<8x512xf32>
    %c0_569 = arith.constant 0 : index
    %c9_570 = arith.constant 9 : index
    %1619 = vector.load %arg33[%c0_569, %c9_570] : memref<8x25xf32, #tpu.memory_space<vmem>>, vector<8x1xf32>
    %1620 = vector.broadcast %1619 : vector<8x1xf32> to vector<8x512xf32>
    %1621 = arith.addf %1618, %1620 : vector<8x512xf32>
    %1622 = vector.broadcast %206 : vector<1x512xf32> to vector<8x512xf32>
    %1623 = arith.addf %1621, %1622 : vector<8x512xf32>
    %1624 = vector.broadcast %193 : vector<1x512xf32> to vector<8x512xf32>
    %1625 = arith.addf %1623, %1624 : vector<8x512xf32>
    %1626 = arith.minimumf %1617, %1625 : vector<8x512xf32>
    %c2_i32_571 = arith.constant 2 : i32
    %1627 = tpu.dynamic_rotate %1541 by %c2_i32_571 dim 1 : vector<8x512xf32>, i32 -> vector<8x512xf32>
    %c0_572 = arith.constant 0 : index
    %c10_573 = arith.constant 10 : index
    %1628 = vector.load %arg33[%c0_572, %c10_573] : memref<8x25xf32, #tpu.memory_space<vmem>>, vector<8x1xf32>
    %1629 = vector.broadcast %1628 : vector<8x1xf32> to vector<8x512xf32>
    %1630 = arith.addf %1627, %1629 : vector<8x512xf32>
    %1631 = vector.broadcast %148 : vector<1x512xf32> to vector<8x512xf32>
    %1632 = arith.addf %1630, %1631 : vector<8x512xf32>
    %1633 = arith.minimumf %1626, %1632 : vector<8x512xf32>
    %c1_i32_574 = arith.constant 1 : i32
    %1634 = tpu.dynamic_rotate %1541 by %c1_i32_574 dim 1 : vector<8x512xf32>, i32 -> vector<8x512xf32>
    %c0_575 = arith.constant 0 : index
    %c11_576 = arith.constant 11 : index
    %1635 = vector.load %arg33[%c0_575, %c11_576] : memref<8x25xf32, #tpu.memory_space<vmem>>, vector<8x1xf32>
    %1636 = vector.broadcast %1635 : vector<8x1xf32> to vector<8x512xf32>
    %1637 = arith.addf %1634, %1636 : vector<8x512xf32>
    %1638 = vector.broadcast %160 : vector<1x512xf32> to vector<8x512xf32>
    %1639 = arith.addf %1637, %1638 : vector<8x512xf32>
    %1640 = arith.minimumf %1633, %1639 : vector<8x512xf32>
    %c0_577 = arith.constant 0 : index
    %c12_578 = arith.constant 12 : index
    %1641 = vector.load %arg33[%c0_577, %c12_578] : memref<8x25xf32, #tpu.memory_space<vmem>>, vector<8x1xf32>
    %1642 = vector.broadcast %1641 : vector<8x1xf32> to vector<8x512xf32>
    %1643 = arith.addf %1541, %1642 : vector<8x512xf32>
    %1644 = arith.minimumf %1640, %1643 : vector<8x512xf32>
    %c511_i32_579 = arith.constant 511 : i32
    %1645 = tpu.dynamic_rotate %1541 by %c511_i32_579 dim 1 : vector<8x512xf32>, i32 -> vector<8x512xf32>
    %c0_580 = arith.constant 0 : index
    %c13_581 = arith.constant 13 : index
    %1646 = vector.load %arg33[%c0_580, %c13_581] : memref<8x25xf32, #tpu.memory_space<vmem>>, vector<8x1xf32>
    %1647 = vector.broadcast %1646 : vector<8x1xf32> to vector<8x512xf32>
    %1648 = arith.addf %1645, %1647 : vector<8x512xf32>
    %1649 = vector.broadcast %180 : vector<1x512xf32> to vector<8x512xf32>
    %1650 = arith.addf %1648, %1649 : vector<8x512xf32>
    %1651 = arith.minimumf %1644, %1650 : vector<8x512xf32>
    %c510_i32_582 = arith.constant 510 : i32
    %1652 = tpu.dynamic_rotate %1541 by %c510_i32_582 dim 1 : vector<8x512xf32>, i32 -> vector<8x512xf32>
    %c0_583 = arith.constant 0 : index
    %c14_584 = arith.constant 14 : index
    %1653 = vector.load %arg33[%c0_583, %c14_584] : memref<8x25xf32, #tpu.memory_space<vmem>>, vector<8x1xf32>
    %1654 = vector.broadcast %1653 : vector<8x1xf32> to vector<8x512xf32>
    %1655 = arith.addf %1652, %1654 : vector<8x512xf32>
    %1656 = vector.broadcast %193 : vector<1x512xf32> to vector<8x512xf32>
    %1657 = arith.addf %1655, %1656 : vector<8x512xf32>
    %1658 = arith.minimumf %1651, %1657 : vector<8x512xf32>
    %c498_i32_585 = arith.constant 498 : i32
    %1659 = tpu.dynamic_rotate %1541 by %c498_i32_585 dim 1 : vector<8x512xf32>, i32 -> vector<8x512xf32>
    %c0_586 = arith.constant 0 : index
    %c15_587 = arith.constant 15 : index
    %1660 = vector.load %arg33[%c0_586, %c15_587] : memref<8x25xf32, #tpu.memory_space<vmem>>, vector<8x1xf32>
    %1661 = vector.broadcast %1660 : vector<8x1xf32> to vector<8x512xf32>
    %1662 = arith.addf %1659, %1661 : vector<8x512xf32>
    %1663 = vector.broadcast %285 : vector<1x512xf32> to vector<8x512xf32>
    %1664 = arith.addf %1662, %1663 : vector<8x512xf32>
    %1665 = vector.broadcast %148 : vector<1x512xf32> to vector<8x512xf32>
    %1666 = arith.addf %1664, %1665 : vector<8x512xf32>
    %1667 = arith.minimumf %1658, %1666 : vector<8x512xf32>
    %c497_i32_588 = arith.constant 497 : i32
    %1668 = tpu.dynamic_rotate %1541 by %c497_i32_588 dim 1 : vector<8x512xf32>, i32 -> vector<8x512xf32>
    %c0_589 = arith.constant 0 : index
    %c16_590 = arith.constant 16 : index
    %1669 = vector.load %arg33[%c0_589, %c16_590] : memref<8x25xf32, #tpu.memory_space<vmem>>, vector<8x1xf32>
    %1670 = vector.broadcast %1669 : vector<8x1xf32> to vector<8x512xf32>
    %1671 = arith.addf %1668, %1670 : vector<8x512xf32>
    %1672 = vector.broadcast %285 : vector<1x512xf32> to vector<8x512xf32>
    %1673 = arith.addf %1671, %1672 : vector<8x512xf32>
    %1674 = vector.broadcast %160 : vector<1x512xf32> to vector<8x512xf32>
    %1675 = arith.addf %1673, %1674 : vector<8x512xf32>
    %1676 = arith.minimumf %1667, %1675 : vector<8x512xf32>
    %c496_i32_591 = arith.constant 496 : i32
    %1677 = tpu.dynamic_rotate %1541 by %c496_i32_591 dim 1 : vector<8x512xf32>, i32 -> vector<8x512xf32>
    %c0_592 = arith.constant 0 : index
    %c17_593 = arith.constant 17 : index
    %1678 = vector.load %arg33[%c0_592, %c17_593] : memref<8x25xf32, #tpu.memory_space<vmem>>, vector<8x1xf32>
    %1679 = vector.broadcast %1678 : vector<8x1xf32> to vector<8x512xf32>
    %1680 = arith.addf %1677, %1679 : vector<8x512xf32>
    %1681 = vector.broadcast %285 : vector<1x512xf32> to vector<8x512xf32>
    %1682 = arith.addf %1680, %1681 : vector<8x512xf32>
    %1683 = arith.minimumf %1676, %1682 : vector<8x512xf32>
    %c495_i32_594 = arith.constant 495 : i32
    %1684 = tpu.dynamic_rotate %1541 by %c495_i32_594 dim 1 : vector<8x512xf32>, i32 -> vector<8x512xf32>
    %c0_595 = arith.constant 0 : index
    %c18_596 = arith.constant 18 : index
    %1685 = vector.load %arg33[%c0_595, %c18_596] : memref<8x25xf32, #tpu.memory_space<vmem>>, vector<8x1xf32>
    %1686 = vector.broadcast %1685 : vector<8x1xf32> to vector<8x512xf32>
    %1687 = arith.addf %1684, %1686 : vector<8x512xf32>
    %1688 = vector.broadcast %285 : vector<1x512xf32> to vector<8x512xf32>
    %1689 = arith.addf %1687, %1688 : vector<8x512xf32>
    %1690 = vector.broadcast %180 : vector<1x512xf32> to vector<8x512xf32>
    %1691 = arith.addf %1689, %1690 : vector<8x512xf32>
    %1692 = arith.minimumf %1683, %1691 : vector<8x512xf32>
    %c494_i32_597 = arith.constant 494 : i32
    %1693 = tpu.dynamic_rotate %1541 by %c494_i32_597 dim 1 : vector<8x512xf32>, i32 -> vector<8x512xf32>
    %c0_598 = arith.constant 0 : index
    %c19_599 = arith.constant 19 : index
    %1694 = vector.load %arg33[%c0_598, %c19_599] : memref<8x25xf32, #tpu.memory_space<vmem>>, vector<8x1xf32>
    %1695 = vector.broadcast %1694 : vector<8x1xf32> to vector<8x512xf32>
    %1696 = arith.addf %1693, %1695 : vector<8x512xf32>
    %1697 = vector.broadcast %285 : vector<1x512xf32> to vector<8x512xf32>
    %1698 = arith.addf %1696, %1697 : vector<8x512xf32>
    %1699 = vector.broadcast %193 : vector<1x512xf32> to vector<8x512xf32>
    %1700 = arith.addf %1698, %1699 : vector<8x512xf32>
    %1701 = arith.minimumf %1692, %1700 : vector<8x512xf32>
    %c482_i32_600 = arith.constant 482 : i32
    %1702 = tpu.dynamic_rotate %1541 by %c482_i32_600 dim 1 : vector<8x512xf32>, i32 -> vector<8x512xf32>
    %c0_601 = arith.constant 0 : index
    %c20_602 = arith.constant 20 : index
    %1703 = vector.load %arg33[%c0_601, %c20_602] : memref<8x25xf32, #tpu.memory_space<vmem>>, vector<8x1xf32>
    %1704 = vector.broadcast %1703 : vector<8x1xf32> to vector<8x512xf32>
    %1705 = arith.addf %1702, %1704 : vector<8x512xf32>
    %1706 = vector.broadcast %332 : vector<1x512xf32> to vector<8x512xf32>
    %1707 = arith.addf %1705, %1706 : vector<8x512xf32>
    %1708 = vector.broadcast %148 : vector<1x512xf32> to vector<8x512xf32>
    %1709 = arith.addf %1707, %1708 : vector<8x512xf32>
    %1710 = arith.minimumf %1701, %1709 : vector<8x512xf32>
    %c481_i32_603 = arith.constant 481 : i32
    %1711 = tpu.dynamic_rotate %1541 by %c481_i32_603 dim 1 : vector<8x512xf32>, i32 -> vector<8x512xf32>
    %c0_604 = arith.constant 0 : index
    %c21_605 = arith.constant 21 : index
    %1712 = vector.load %arg33[%c0_604, %c21_605] : memref<8x25xf32, #tpu.memory_space<vmem>>, vector<8x1xf32>
    %1713 = vector.broadcast %1712 : vector<8x1xf32> to vector<8x512xf32>
    %1714 = arith.addf %1711, %1713 : vector<8x512xf32>
    %1715 = vector.broadcast %332 : vector<1x512xf32> to vector<8x512xf32>
    %1716 = arith.addf %1714, %1715 : vector<8x512xf32>
    %1717 = vector.broadcast %160 : vector<1x512xf32> to vector<8x512xf32>
    %1718 = arith.addf %1716, %1717 : vector<8x512xf32>
    %1719 = arith.minimumf %1710, %1718 : vector<8x512xf32>
    %c480_i32_606 = arith.constant 480 : i32
    %1720 = tpu.dynamic_rotate %1541 by %c480_i32_606 dim 1 : vector<8x512xf32>, i32 -> vector<8x512xf32>
    %c0_607 = arith.constant 0 : index
    %c22_608 = arith.constant 22 : index
    %1721 = vector.load %arg33[%c0_607, %c22_608] : memref<8x25xf32, #tpu.memory_space<vmem>>, vector<8x1xf32>
    %1722 = vector.broadcast %1721 : vector<8x1xf32> to vector<8x512xf32>
    %1723 = arith.addf %1720, %1722 : vector<8x512xf32>
    %1724 = vector.broadcast %332 : vector<1x512xf32> to vector<8x512xf32>
    %1725 = arith.addf %1723, %1724 : vector<8x512xf32>
    %1726 = arith.minimumf %1719, %1725 : vector<8x512xf32>
    %c479_i32_609 = arith.constant 479 : i32
    %1727 = tpu.dynamic_rotate %1541 by %c479_i32_609 dim 1 : vector<8x512xf32>, i32 -> vector<8x512xf32>
    %c0_610 = arith.constant 0 : index
    %c23_611 = arith.constant 23 : index
    %1728 = vector.load %arg33[%c0_610, %c23_611] : memref<8x25xf32, #tpu.memory_space<vmem>>, vector<8x1xf32>
    %1729 = vector.broadcast %1728 : vector<8x1xf32> to vector<8x512xf32>
    %1730 = arith.addf %1727, %1729 : vector<8x512xf32>
    %1731 = vector.broadcast %332 : vector<1x512xf32> to vector<8x512xf32>
    %1732 = arith.addf %1730, %1731 : vector<8x512xf32>
    %1733 = vector.broadcast %180 : vector<1x512xf32> to vector<8x512xf32>
    %1734 = arith.addf %1732, %1733 : vector<8x512xf32>
    %1735 = arith.minimumf %1726, %1734 : vector<8x512xf32>
    %c478_i32_612 = arith.constant 478 : i32
    %1736 = tpu.dynamic_rotate %1541 by %c478_i32_612 dim 1 : vector<8x512xf32>, i32 -> vector<8x512xf32>
    %c0_613 = arith.constant 0 : index
    %c24_614 = arith.constant 24 : index
    %1737 = vector.load %arg33[%c0_613, %c24_614] : memref<8x25xf32, #tpu.memory_space<vmem>>, vector<8x1xf32>
    %1738 = vector.broadcast %1737 : vector<8x1xf32> to vector<8x512xf32>
    %1739 = arith.addf %1736, %1738 : vector<8x512xf32>
    %1740 = vector.broadcast %332 : vector<1x512xf32> to vector<8x512xf32>
    %1741 = arith.addf %1739, %1740 : vector<8x512xf32>
    %1742 = vector.broadcast %193 : vector<1x512xf32> to vector<8x512xf32>
    %1743 = arith.addf %1741, %1742 : vector<8x512xf32>
    %1744 = arith.minimumf %1735, %1743 : vector<8x512xf32>
    %cst_615 = arith.constant 0.000000e+00 : f32
    %1745 = vector.broadcast %cst_615 : f32 to vector<8x512xf32>
    %1746 = vector.extract_strided_slice %1744 {offsets = [0, 0], sizes = [1, 512], strides = [1, 1]} : vector<8x512xf32> to vector<1x512xf32>
    %1747 = vector.shape_cast %1746 : vector<1x512xf32> to vector<1x512xf32>
    %1748 = vector.broadcast %1747 : vector<1x512xf32> to vector<8x512xf32>
    %c0_616 = arith.constant 0 : index
    %c0_617 = arith.constant 0 : index
    %1749 = vector.load %arg34[%c0_616, %c0_617] : memref<8x8xf32, #tpu.memory_space<vmem>>, vector<8x1xf32>
    %1750 = vector.broadcast %1749 : vector<8x1xf32> to vector<8x512xf32>
    %1751 = arith.mulf %1748, %1750 : vector<8x512xf32>
    %1752 = arith.addf %1745, %1751 : vector<8x512xf32>
    %1753 = vector.extract_strided_slice %1744 {offsets = [1, 0], sizes = [1, 512], strides = [1, 1]} : vector<8x512xf32> to vector<1x512xf32>
    %1754 = vector.shape_cast %1753 : vector<1x512xf32> to vector<1x512xf32>
    %1755 = vector.broadcast %1754 : vector<1x512xf32> to vector<8x512xf32>
    %c0_618 = arith.constant 0 : index
    %c1_619 = arith.constant 1 : index
    %1756 = vector.load %arg34[%c0_618, %c1_619] : memref<8x8xf32, #tpu.memory_space<vmem>>, vector<8x1xf32>
    %1757 = vector.broadcast %1756 : vector<8x1xf32> to vector<8x512xf32>
    %1758 = arith.mulf %1755, %1757 : vector<8x512xf32>
    %1759 = arith.addf %1752, %1758 : vector<8x512xf32>
    %1760 = vector.extract_strided_slice %1744 {offsets = [2, 0], sizes = [1, 512], strides = [1, 1]} : vector<8x512xf32> to vector<1x512xf32>
    %1761 = vector.shape_cast %1760 : vector<1x512xf32> to vector<1x512xf32>
    %1762 = vector.broadcast %1761 : vector<1x512xf32> to vector<8x512xf32>
    %c0_620 = arith.constant 0 : index
    %c2_621 = arith.constant 2 : index
    %1763 = vector.load %arg34[%c0_620, %c2_621] : memref<8x8xf32, #tpu.memory_space<vmem>>, vector<8x1xf32>
    %1764 = vector.broadcast %1763 : vector<8x1xf32> to vector<8x512xf32>
    %1765 = arith.mulf %1762, %1764 : vector<8x512xf32>
    %1766 = arith.addf %1759, %1765 : vector<8x512xf32>
    %1767 = vector.extract_strided_slice %1744 {offsets = [3, 0], sizes = [1, 512], strides = [1, 1]} : vector<8x512xf32> to vector<1x512xf32>
    %1768 = vector.shape_cast %1767 : vector<1x512xf32> to vector<1x512xf32>
    %1769 = vector.broadcast %1768 : vector<1x512xf32> to vector<8x512xf32>
    %c0_622 = arith.constant 0 : index
    %c3_623 = arith.constant 3 : index
    %1770 = vector.load %arg34[%c0_622, %c3_623] : memref<8x8xf32, #tpu.memory_space<vmem>>, vector<8x1xf32>
    %1771 = vector.broadcast %1770 : vector<8x1xf32> to vector<8x512xf32>
    %1772 = arith.mulf %1769, %1771 : vector<8x512xf32>
    %1773 = arith.addf %1766, %1772 : vector<8x512xf32>
    %1774 = vector.extract_strided_slice %1744 {offsets = [4, 0], sizes = [1, 512], strides = [1, 1]} : vector<8x512xf32> to vector<1x512xf32>
    %1775 = vector.shape_cast %1774 : vector<1x512xf32> to vector<1x512xf32>
    %1776 = vector.broadcast %1775 : vector<1x512xf32> to vector<8x512xf32>
    %c0_624 = arith.constant 0 : index
    %c4_625 = arith.constant 4 : index
    %1777 = vector.load %arg34[%c0_624, %c4_625] : memref<8x8xf32, #tpu.memory_space<vmem>>, vector<8x1xf32>
    %1778 = vector.broadcast %1777 : vector<8x1xf32> to vector<8x512xf32>
    %1779 = arith.mulf %1776, %1778 : vector<8x512xf32>
    %1780 = arith.addf %1773, %1779 : vector<8x512xf32>
    %1781 = vector.extract_strided_slice %1744 {offsets = [5, 0], sizes = [1, 512], strides = [1, 1]} : vector<8x512xf32> to vector<1x512xf32>
    %1782 = vector.shape_cast %1781 : vector<1x512xf32> to vector<1x512xf32>
    %1783 = vector.broadcast %1782 : vector<1x512xf32> to vector<8x512xf32>
    %c0_626 = arith.constant 0 : index
    %c5_627 = arith.constant 5 : index
    %1784 = vector.load %arg34[%c0_626, %c5_627] : memref<8x8xf32, #tpu.memory_space<vmem>>, vector<8x1xf32>
    %1785 = vector.broadcast %1784 : vector<8x1xf32> to vector<8x512xf32>
    %1786 = arith.mulf %1783, %1785 : vector<8x512xf32>
    %1787 = arith.addf %1780, %1786 : vector<8x512xf32>
    %1788 = vector.extract_strided_slice %1744 {offsets = [6, 0], sizes = [1, 512], strides = [1, 1]} : vector<8x512xf32> to vector<1x512xf32>
    %1789 = vector.shape_cast %1788 : vector<1x512xf32> to vector<1x512xf32>
    %1790 = vector.broadcast %1789 : vector<1x512xf32> to vector<8x512xf32>
    %c0_628 = arith.constant 0 : index
    %c6_629 = arith.constant 6 : index
    %1791 = vector.load %arg34[%c0_628, %c6_629] : memref<8x8xf32, #tpu.memory_space<vmem>>, vector<8x1xf32>
    %1792 = vector.broadcast %1791 : vector<8x1xf32> to vector<8x512xf32>
    %1793 = arith.mulf %1790, %1792 : vector<8x512xf32>
    %1794 = arith.addf %1787, %1793 : vector<8x512xf32>
    %1795 = vector.extract_strided_slice %1744 {offsets = [7, 0], sizes = [1, 512], strides = [1, 1]} : vector<8x512xf32> to vector<1x512xf32>
    %1796 = vector.shape_cast %1795 : vector<1x512xf32> to vector<1x512xf32>
    %1797 = vector.broadcast %1796 : vector<1x512xf32> to vector<8x512xf32>
    %c0_630 = arith.constant 0 : index
    %c7_631 = arith.constant 7 : index
    %1798 = vector.load %arg34[%c0_630, %c7_631] : memref<8x8xf32, #tpu.memory_space<vmem>>, vector<8x1xf32>
    %1799 = vector.broadcast %1798 : vector<8x1xf32> to vector<8x512xf32>
    %1800 = arith.mulf %1797, %1799 : vector<8x512xf32>
    %1801 = arith.addf %1794, %1800 : vector<8x512xf32>
    %c0_632 = arith.constant 0 : index
    %c0_633 = arith.constant 0 : index
    %1802 = vector.load %arg35[%c0_632, %c0_633] : memref<8x1xf32, #tpu.memory_space<vmem>>, vector<8x1xf32>
    %1803 = vector.broadcast %1802 : vector<8x1xf32> to vector<8x512xf32>
    %1804 = arith.addf %1801, %1803 : vector<8x512xf32>
    %cst_634 = arith.constant dense<0.000000e+00> : vector<8xf32>
    %1805 = vector.multi_reduction <add>, %1804, %cst_634 [1] : vector<8x512xf32> to vector<8xf32>
    %1806 = vector.shape_cast %1805 : vector<8xf32> to vector<8x1xf32>
    %cst_635 = arith.constant 0.001953125 : f32
    %1807 = vector.broadcast %cst_635 : f32 to vector<8x1xf32>
    %1808 = arith.mulf %1806, %1807 : vector<8x1xf32>
    %1809 = vector.broadcast %1808 : vector<8x1xf32> to vector<8x512xf32>
    %1810 = arith.subf %1804, %1809 : vector<8x512xf32>
    %1811 = arith.mulf %1810, %1810 : vector<8x512xf32>
    %cst_636 = arith.constant dense<0.000000e+00> : vector<8xf32>
    %1812 = vector.multi_reduction <add>, %1811, %cst_636 [1] : vector<8x512xf32> to vector<8xf32>
    %1813 = vector.shape_cast %1812 : vector<8xf32> to vector<8x1xf32>
    %cst_637 = arith.constant 0.001953125 : f32
    %1814 = vector.broadcast %cst_637 : f32 to vector<8x1xf32>
    %1815 = arith.mulf %1813, %1814 : vector<8x1xf32>
    %c0_638 = arith.constant 0 : index
    %c0_639 = arith.constant 0 : index
    %1816 = vector.load %arg36[%c0_638, %c0_639] : memref<8x1xf32, #tpu.memory_space<vmem>>, vector<8x1xf32>
    %1817 = vector.broadcast %1816 : vector<8x1xf32> to vector<8x512xf32>
    %1818 = arith.mulf %1817, %1810 : vector<8x512xf32>
    %cst_640 = arith.constant 9.99999974E-6 : f32
    %1819 = vector.broadcast %cst_640 : f32 to vector<8x1xf32>
    %1820 = arith.addf %1815, %1819 : vector<8x1xf32>
    %1821 = math.rsqrt %1820 : vector<8x1xf32>
    %1822 = vector.broadcast %1821 : vector<8x1xf32> to vector<8x512xf32>
    %1823 = arith.mulf %1818, %1822 : vector<8x512xf32>
    %c0_641 = arith.constant 0 : index
    %c0_642 = arith.constant 0 : index
    %1824 = vector.load %arg37[%c0_641, %c0_642] : memref<8x1xf32, #tpu.memory_space<vmem>>, vector<8x1xf32>
    %1825 = vector.broadcast %1824 : vector<8x1xf32> to vector<8x512xf32>
    %1826 = arith.addf %1823, %1825 : vector<8x512xf32>
    %c0_643 = arith.constant 0 : index
    %c0_644 = arith.constant 0 : index
    %1827 = vector.load %arg38[%c0_643, %c0_644] : memref<8x1xf32, #tpu.memory_space<vmem>>, vector<8x1xf32>
    %1828 = vector.broadcast %1827 : vector<8x1xf32> to vector<8x512xf32>
    %1829 = arith.mulf %1826, %1828 : vector<8x512xf32>
    %cst_645 = arith.constant dense<0.000000e+00> : vector<512xf32>
    %1830 = vector.multi_reduction <add>, %1829, %cst_645 [0] : vector<8x512xf32> to vector<512xf32>
    %1831 = vector.shape_cast %1830 : vector<512xf32> to vector<1x512xf32>
    %1832 = arith.negf %1831 : vector<1x512xf32>
    %1833 = math.exp %1832 : vector<1x512xf32>
    %cst_646 = arith.constant 1.000000e+00 : f32
    %1834 = vector.broadcast %cst_646 : f32 to vector<1x512xf32>
    %1835 = arith.addf %1834, %1833 : vector<1x512xf32>
    %1836 = arith.divf %1834, %1835 : vector<1x512xf32>
    %c0_647 = arith.constant 0 : index
    %c0_648 = arith.constant 0 : index
    %1837 = vector.load %arg39[%c0_647, %c0_648] : memref<1x512xf32, #tpu.memory_space<vmem>>, vector<1x512xf32>
    tpu.vector_store %arg39[%c0_647, %c0_648], %1836 {strides = array<i32>} : memref<1x512xf32, #tpu.memory_space<vmem>>, vector<1x512xf32>,
    return
  }
}

</mosaic_0001>

<llo_original>
// kernel: cde_pde_cnn_forward.1
$region0: #{cde_pde_cnn_forward.1}
  #allocation0 [shape = 'u32[]', space=smem, size = 0x4, offset = 0x4, fixed_abs, tag = 'smem constant byte address 0x4 - core index']
  #allocation1 [shape = 'u32[144,128]{1,0:T(1,128)}', space=vmem, size = 0x12000, scoped, tag = 'internal scratch']
  %s0 = inlined_call_operand.smem [shape: u32[40], index: -1, kind: input, shape index: {}]
  %s1 = sld [smem:[%s0]]
  %s2 = scalar_lea.smem %s0, 1
  %s3 = sld [smem:[%s2]]
  %s4 = scalar_lea.smem %s0, 2
  %s5 = sld [smem:[%s4]]
  %s6 = scalar_lea.smem %s0, 3
  %s7 = sld [smem:[%s6]]
  %s8 = scalar_lea.smem %s0, 4
  %s9 = sld [smem:[%s8]]
  %s10 = scalar_lea.smem %s0, 5
  %s11 = sld [smem:[%s10]]
  %s12 = scalar_lea.smem %s0, 6
  %s13 = sld [smem:[%s12]]
  %s14 = scalar_lea.smem %s0, 7
  %s15 = sld [smem:[%s14]]
  %s16 = scalar_lea.smem %s0, 8
  %s17 = sld [smem:[%s16]]
  %s18 = scalar_lea.smem %s0, 9
  %s19 = sld [smem:[%s18]]
  %s20 = scalar_lea.smem %s0, 10
  %s21 = sld [smem:[%s20]]
  %s22 = scalar_lea.smem %s0, 11
  %s23 = sld [smem:[%s22]]
  %s24 = scalar_lea.smem %s0, 12
  %s25 = sld [smem:[%s24]]
  %s26 = scalar_lea.smem %s0, 13
  %s27 = sld [smem:[%s26]]
  %s28 = scalar_lea.smem %s0, 14
  %s29 = sld [smem:[%s28]]
  %s30 = scalar_lea.smem %s0, 15
  %s31 = sld [smem:[%s30]]
  %s32 = scalar_lea.smem %s0, 16
  %s33 = sld [smem:[%s32]]
  %s34 = scalar_lea.smem %s0, 17
  %s35 = sld [smem:[%s34]]
  %s36 = scalar_lea.smem %s0, 18
  %s37 = sld [smem:[%s36]]
  %s38 = scalar_lea.smem %s0, 19
  %s39 = sld [smem:[%s38]]
  %s40 = scalar_lea.smem %s0, 20
  %s41 = sld [smem:[%s40]]
  %s42 = scalar_lea.smem %s0, 21
  %s43 = sld [smem:[%s42]]
  %s44 = scalar_lea.smem %s0, 22
  %s45 = sld [smem:[%s44]]
  %s46 = scalar_lea.smem %s0, 23
  %s47 = sld [smem:[%s46]]
  %s48 = scalar_lea.smem %s0, 24
  %s49 = sld [smem:[%s48]]
  %s50 = scalar_lea.smem %s0, 25
  %s51 = sld [smem:[%s50]]
  %s52 = scalar_lea.smem %s0, 26
  %s53 = sld [smem:[%s52]]
  %s54 = scalar_lea.smem %s0, 27
  %s55 = sld [smem:[%s54]]
  %s56 = scalar_lea.smem %s0, 28
  %s57 = sld [smem:[%s56]]
  %s58 = scalar_lea.smem %s0, 29
  %s59 = sld [smem:[%s58]]
  %s60 = scalar_lea.smem %s0, 30
  %s61 = sld [smem:[%s60]]
  %s62 = scalar_lea.smem %s0, 31
  %s63 = sld [smem:[%s62]]
  %s64 = scalar_lea.smem %s0, 32
  %s65 = sld [smem:[%s64]]
  %s66 = scalar_lea.smem %s0, 33
  %s67 = sld [smem:[%s66]]
  %s68 = scalar_lea.smem %s0, 34
  %s69 = sld [smem:[%s68]]
  %s70 = scalar_lea.smem %s0, 35
  %s71 = sld [smem:[%s70]]
  %s72 = scalar_lea.smem %s0, 36
  %s73 = sld [smem:[%s72]]
  %s74 = scalar_lea.smem %s0, 37
  %s75 = sld [smem:[%s74]]
  %s76 = scalar_lea.smem %s0, 38
  %s77 = sld [smem:[%s76]]
  %s78 = scalar_lea.smem %s0, 39
  %s79 = sld [smem:[%s78]]
  %s80 = sld [smem:[#allocation0]]
  $region166: #{cde_pde_cnn_forward.1} parent=0
    _
  %s82 = ssub.s32 1, %s80
  %s83 = scalar_select 0, %s82, %s80
  // Predicated region
  $region2: #{cde_pde_cnn_forward.1} parent=0 // pred_check
    _
  $region3: #{cde_pde_cnn_forward.1} parent=0 // pred_check_branch
    %85 = sbr.rel (0) target = $region5
  $region4: #{cde_pde_cnn_forward.1} parent=0 // pred_region
    _
  $region5: #{cde_pde_cnn_forward.1} parent=0 // pred_fallthru
    _
  // Predicated region
  $region6: #{cde_pde_cnn_forward.1} parent=0 // pred_check
    _
  $region7: #{cde_pde_cnn_forward.1} parent=0 // pred_check_branch
    %87 = sbr.rel (0) target = $region9
  $region8: #{cde_pde_cnn_forward.1} parent=0 // pred_region
    _
  $region9: #{cde_pde_cnn_forward.1} parent=0 // pred_fallthru
    _
  // Predicated region
  $region10: #{cde_pde_cnn_forward.1} parent=0 // pred_check
    _
  $region11: #{cde_pde_cnn_forward.1} parent=0 // pred_check_branch
    %89 = sbr.rel (0) target = $region13
  $region12: #{cde_pde_cnn_forward.1} parent=0 // pred_region
    _
  $region13: #{cde_pde_cnn_forward.1} parent=0 // pred_fallthru
    _
  // Predicated region
  $region14: #{cde_pde_cnn_forward.1} parent=0 // pred_check
    _
  $region15: #{cde_pde_cnn_forward.1} parent=0 // pred_check_branch
    %91 = sbr.rel (0) target = $region17
  $region16: #{cde_pde_cnn_forward.1} parent=0 // pred_region
    _
  $region17: #{cde_pde_cnn_forward.1} parent=0 // pred_fallthru
    _
  // Predicated region
  $region18: #{cde_pde_cnn_forward.1} parent=0 // pred_check
    _
  $region19: #{cde_pde_cnn_forward.1} parent=0 // pred_check_branch
    %93 = sbr.rel (0) target = $region21
  $region20: #{cde_pde_cnn_forward.1} parent=0 // pred_region
    _
  $region21: #{cde_pde_cnn_forward.1} parent=0 // pred_fallthru
    _
  // Predicated region
  $region22: #{cde_pde_cnn_forward.1} parent=0 // pred_check
    _
  $region23: #{cde_pde_cnn_forward.1} parent=0 // pred_check_branch
    %95 = sbr.rel (0) target = $region25
  $region24: #{cde_pde_cnn_forward.1} parent=0 // pred_region
    _
  $region25: #{cde_pde_cnn_forward.1} parent=0 // pred_fallthru
    _
  // Predicated region
  $region26: #{cde_pde_cnn_forward.1} parent=0 // pred_check
    _
  $region27: #{cde_pde_cnn_forward.1} parent=0 // pred_check_branch
    %97 = sbr.rel (0) target = $region29
  $region28: #{cde_pde_cnn_forward.1} parent=0 // pred_region
    _
  $region29: #{cde_pde_cnn_forward.1} parent=0 // pred_fallthru
    _
  // Predicated region
  $region30: #{cde_pde_cnn_forward.1} parent=0 // pred_check
    _
  $region31: #{cde_pde_cnn_forward.1} parent=0 // pred_check_branch
    %99 = sbr.rel (0) target = $region33
  $region32: #{cde_pde_cnn_forward.1} parent=0 // pred_region
    _
  $region33: #{cde_pde_cnn_forward.1} parent=0 // pred_fallthru
    _
  // Predicated region
  $region34: #{cde_pde_cnn_forward.1} parent=0 // pred_check
    _
  $region35: #{cde_pde_cnn_forward.1} parent=0 // pred_check_branch
    %101 = sbr.rel (0) target = $region37
  $region36: #{cde_pde_cnn_forward.1} parent=0 // pred_region
    _
  $region37: #{cde_pde_cnn_forward.1} parent=0 // pred_fallthru
    _
  // Predicated region
  $region38: #{cde_pde_cnn_forward.1} parent=0 // pred_check
    _
  $region39: #{cde_pde_cnn_forward.1} parent=0 // pred_check_branch
    %103 = sbr.rel (0) target = $region41
  $region40: #{cde_pde_cnn_forward.1} parent=0 // pred_region
    _
  $region41: #{cde_pde_cnn_forward.1} parent=0 // pred_fallthru
    _
  // Predicated region
  $region42: #{cde_pde_cnn_forward.1} parent=0 // pred_check
    _
  $region43: #{cde_pde_cnn_forward.1} parent=0 // pred_check_branch
    %105 = sbr.rel (0) target = $region45
  $region44: #{cde_pde_cnn_forward.1} parent=0 // pred_region
    _
  $region45: #{cde_pde_cnn_forward.1} parent=0 // pred_fallthru
    _
  // Predicated region
  $region46: #{cde_pde_cnn_forward.1} parent=0 // pred_check
    _
  $region47: #{cde_pde_cnn_forward.1} parent=0 // pred_check_branch
    %107 = sbr.rel (0) target = $region49
  $region48: #{cde_pde_cnn_forward.1} parent=0 // pred_region
    _
  $region49: #{cde_pde_cnn_forward.1} parent=0 // pred_fallthru
    _
  // Predicated region
  $region50: #{cde_pde_cnn_forward.1} parent=0 // pred_check
    _
  $region51: #{cde_pde_cnn_forward.1} parent=0 // pred_check_branch
    %109 = sbr.rel (0) target = $region53
  $region52: #{cde_pde_cnn_forward.1} parent=0 // pred_region
    _
  $region53: #{cde_pde_cnn_forward.1} parent=0 // pred_fallthru
    _
  // Predicated region
  $region54: #{cde_pde_cnn_forward.1} parent=0 // pred_check
    _
  $region55: #{cde_pde_cnn_forward.1} parent=0 // pred_check_branch
    %111 = sbr.rel (0) target = $region57
  $region56: #{cde_pde_cnn_forward.1} parent=0 // pred_region
    _
  $region57: #{cde_pde_cnn_forward.1} parent=0 // pred_fallthru
    _
  // Predicated region
  $region58: #{cde_pde_cnn_forward.1} parent=0 // pred_check
    _
  $region59: #{cde_pde_cnn_forward.1} parent=0 // pred_check_branch
    %113 = sbr.rel (0) target = $region61
  $region60: #{cde_pde_cnn_forward.1} parent=0 // pred_region
    _
  $region61: #{cde_pde_cnn_forward.1} parent=0 // pred_fallthru
    _
  // Predicated region
  $region62: #{cde_pde_cnn_forward.1} parent=0 // pred_check
    _
  $region63: #{cde_pde_cnn_forward.1} parent=0 // pred_check_branch
    %115 = sbr.rel (0) target = $region65
  $region64: #{cde_pde_cnn_forward.1} parent=0 // pred_region
    _
  $region65: #{cde_pde_cnn_forward.1} parent=0 // pred_fallthru
    _
  // Predicated region
  $region66: #{cde_pde_cnn_forward.1} parent=0 // pred_check
    _
  $region67: #{cde_pde_cnn_forward.1} parent=0 // pred_check_branch
    %117 = sbr.rel (0) target = $region69
  $region68: #{cde_pde_cnn_forward.1} parent=0 // pred_region
    _
  $region69: #{cde_pde_cnn_forward.1} parent=0 // pred_fallthru
    _
  // Predicated region
  $region70: #{cde_pde_cnn_forward.1} parent=0 // pred_check
    _
  $region71: #{cde_pde_cnn_forward.1} parent=0 // pred_check_branch
    %119 = sbr.rel (0) target = $region73
  $region72: #{cde_pde_cnn_forward.1} parent=0 // pred_region
    _
  $region73: #{cde_pde_cnn_forward.1} parent=0 // pred_fallthru
    _
  // Predicated region
  $region74: #{cde_pde_cnn_forward.1} parent=0 // pred_check
    _
  $region75: #{cde_pde_cnn_forward.1} parent=0 // pred_check_branch
    %121 = sbr.rel (0) target = $region77
  $region76: #{cde_pde_cnn_forward.1} parent=0 // pred_region
    _
  $region77: #{cde_pde_cnn_forward.1} parent=0 // pred_fallthru
    _
  // Predicated region
  $region78: #{cde_pde_cnn_forward.1} parent=0 // pred_check
    _
  $region79: #{cde_pde_cnn_forward.1} parent=0 // pred_check_branch
    %123 = sbr.rel (0) target = $region81
  $region80: #{cde_pde_cnn_forward.1} parent=0 // pred_region
    _
  $region81: #{cde_pde_cnn_forward.1} parent=0 // pred_fallthru
    _
  // Predicated region
  $region82: #{cde_pde_cnn_forward.1} parent=0 // pred_check
    _
  $region83: #{cde_pde_cnn_forward.1} parent=0 // pred_check_branch
    %125 = sbr.rel (0) target = $region85
  $region84: #{cde_pde_cnn_forward.1} parent=0 // pred_region
    _
  $region85: #{cde_pde_cnn_forward.1} parent=0 // pred_fallthru
    _
  // Predicated region
  $region86: #{cde_pde_cnn_forward.1} parent=0 // pred_check
    _
  $region87: #{cde_pde_cnn_forward.1} parent=0 // pred_check_branch
    %127 = sbr.rel (0) target = $region89
  $region88: #{cde_pde_cnn_forward.1} parent=0 // pred_region
    _
  $region89: #{cde_pde_cnn_forward.1} parent=0 // pred_fallthru
    _
  // Predicated region
  $region90: #{cde_pde_cnn_forward.1} parent=0 // pred_check
    _
  $region91: #{cde_pde_cnn_forward.1} parent=0 // pred_check_branch
    %129 = sbr.rel (0) target = $region93
  $region92: #{cde_pde_cnn_forward.1} parent=0 // pred_region
    _
  $region93: #{cde_pde_cnn_forward.1} parent=0 // pred_fallthru
    _
  // Predicated region
  $region94: #{cde_pde_cnn_forward.1} parent=0 // pred_check
    _
  $region95: #{cde_pde_cnn_forward.1} parent=0 // pred_check_branch
    %131 = sbr.rel (0) target = $region97
  $region96: #{cde_pde_cnn_forward.1} parent=0 // pred_region
    _
  $region97: #{cde_pde_cnn_forward.1} parent=0 // pred_fallthru
    _
  // Predicated region
  $region98: #{cde_pde_cnn_forward.1} parent=0 // pred_check
    _
  $region99: #{cde_pde_cnn_forward.1} parent=0 // pred_check_branch
    %133 = sbr.rel (0) target = $region101
  $region100: #{cde_pde_cnn_forward.1} parent=0 // pred_region
    _
  $region101: #{cde_pde_cnn_forward.1} parent=0 // pred_fallthru
    _
  // Predicated region
  $region102: #{cde_pde_cnn_forward.1} parent=0 // pred_check
    _
  $region103: #{cde_pde_cnn_forward.1} parent=0 // pred_check_branch
    %135 = sbr.rel (0) target = $region105
  $region104: #{cde_pde_cnn_forward.1} parent=0 // pred_region
    _
  $region105: #{cde_pde_cnn_forward.1} parent=0 // pred_fallthru
    _
  // Predicated region
  $region106: #{cde_pde_cnn_forward.1} parent=0 // pred_check
    _
  $region107: #{cde_pde_cnn_forward.1} parent=0 // pred_check_branch
    %137 = sbr.rel (0) target = $region109
  $region108: #{cde_pde_cnn_forward.1} parent=0 // pred_region
    _
  $region109: #{cde_pde_cnn_forward.1} parent=0 // pred_fallthru
    _
  // Predicated region
  $region110: #{cde_pde_cnn_forward.1} parent=0 // pred_check
    _
  $region111: #{cde_pde_cnn_forward.1} parent=0 // pred_check_branch
    %139 = sbr.rel (0) target = $region113
  $region112: #{cde_pde_cnn_forward.1} parent=0 // pred_region
    _
  $region113: #{cde_pde_cnn_forward.1} parent=0 // pred_fallthru
    _
  // Predicated region
  $region114: #{cde_pde_cnn_forward.1} parent=0 // pred_check
    _
  $region115: #{cde_pde_cnn_forward.1} parent=0 // pred_check_branch
    %141 = sbr.rel (0) target = $region117
  $region116: #{cde_pde_cnn_forward.1} parent=0 // pred_region
    _
  $region117: #{cde_pde_cnn_forward.1} parent=0 // pred_fallthru
    _
  // Predicated region
  $region118: #{cde_pde_cnn_forward.1} parent=0 // pred_check
    _
  $region119: #{cde_pde_cnn_forward.1} parent=0 // pred_check_branch
    %143 = sbr.rel (0) target = $region121
  $region120: #{cde_pde_cnn_forward.1} parent=0 // pred_region
    _
  $region121: #{cde_pde_cnn_forward.1} parent=0 // pred_fallthru
    _
  // Predicated region
  $region122: #{cde_pde_cnn_forward.1} parent=0 // pred_check
    _
  $region123: #{cde_pde_cnn_forward.1} parent=0 // pred_check_branch
    %145 = sbr.rel (0) target = $region125
  $region124: #{cde_pde_cnn_forward.1} parent=0 // pred_region
    _
  $region125: #{cde_pde_cnn_forward.1} parent=0 // pred_fallthru
    _
  // Predicated region
  $region126: #{cde_pde_cnn_forward.1} parent=0 // pred_check
    _
  $region127: #{cde_pde_cnn_forward.1} parent=0 // pred_check_branch
    %147 = sbr.rel (0) target = $region129
  $region128: #{cde_pde_cnn_forward.1} parent=0 // pred_region
    _
  $region129: #{cde_pde_cnn_forward.1} parent=0 // pred_fallthru
    _
  // Predicated region
  $region130: #{cde_pde_cnn_forward.1} parent=0 // pred_check
    _
  $region131: #{cde_pde_cnn_forward.1} parent=0 // pred_check_branch
    %149 = sbr.rel (0) target = $region133
  $region132: #{cde_pde_cnn_forward.1} parent=0 // pred_region
    _
  $region133: #{cde_pde_cnn_forward.1} parent=0 // pred_fallthru
    _
  // Predicated region
  $region134: #{cde_pde_cnn_forward.1} parent=0 // pred_check
    _
  $region135: #{cde_pde_cnn_forward.1} parent=0 // pred_check_branch
    %151 = sbr.rel (0) target = $region137
  $region136: #{cde_pde_cnn_forward.1} parent=0 // pred_region
    _
  $region137: #{cde_pde_cnn_forward.1} parent=0 // pred_fallthru
    _
  // Predicated region
  $region138: #{cde_pde_cnn_forward.1} parent=0 // pred_check
    _
  $region139: #{cde_pde_cnn_forward.1} parent=0 // pred_check_branch
    %153 = sbr.rel (0) target = $region141
  $region140: #{cde_pde_cnn_forward.1} parent=0 // pred_region
    _
  $region141: #{cde_pde_cnn_forward.1} parent=0 // pred_fallthru
    _
  // Predicated region
  $region142: #{cde_pde_cnn_forward.1} parent=0 // pred_check
    _
  $region143: #{cde_pde_cnn_forward.1} parent=0 // pred_check_branch
    %155 = sbr.rel (0) target = $region145
  $region144: #{cde_pde_cnn_forward.1} parent=0 // pred_region
    _
  $region145: #{cde_pde_cnn_forward.1} parent=0 // pred_fallthru
    _
  // Predicated region
  $region146: #{cde_pde_cnn_forward.1} parent=0 // pred_check
    _
  $region147: #{cde_pde_cnn_forward.1} parent=0 // pred_check_branch
    %157 = sbr.rel (0) target = $region149
  $region148: #{cde_pde_cnn_forward.1} parent=0 // pred_region
    _
  $region149: #{cde_pde_cnn_forward.1} parent=0 // pred_fallthru
    _
  // Predicated region
  $region150: #{cde_pde_cnn_forward.1} parent=0 // pred_check
    _
  $region151: #{cde_pde_cnn_forward.1} parent=0 // pred_check_branch
    %159 = sbr.rel (0) target = $region153
  $region152: #{cde_pde_cnn_forward.1} parent=0 // pred_region
    _
  $region153: #{cde_pde_cnn_forward.1} parent=0 // pred_fallthru
    _
  // Predicated region
  $region154: #{cde_pde_cnn_forward.1} parent=0 // pred_check
    _
  $region155: #{cde_pde_cnn_forward.1} parent=0 // pred_check_branch
    %161 = sbr.rel (0) target = $region157
  $region156: #{cde_pde_cnn_forward.1} parent=0 // pred_region
    _
  $region157: #{cde_pde_cnn_forward.1} parent=0 // pred_fallthru
    _
  %v162 = vld [vmem:[%s1] sm:$0xf]
  %v163 = vld [vmem:[%s3] sm:$0xf]
  %v164 = vld [vmem:[%s5] sm:$0x77]
  %v165 = vld [vmem:[%s5 + $0x8] sm:$0x77]
  %v168 = vcombine.high %v164, %v164
  %v169 = vcombine.high %v165, %v165
  %172 = vrot.lane.b32.xlu0 %v164, 2
  %v173 = vpop.permute.xlu0 %172
  %174 = vrot.lane.b32.xlu0 %v168, 2
  %v175 = vpop.permute.xlu0 %174
  %176 = vrot.lane.b32.xlu0 %v165, 2
  %v177 = vpop.permute.xlu0 %176
  %178 = vrot.lane.b32.xlu0 %v169, 2
  %v179 = vpop.permute.xlu0 %178
  %v180 = vlaneseq
  %v181 = vand.u32 %v180, 127
  %vm182 = vcmp.lt.s32.totalorder %v181, 2
  %v183 = vsel %vm182, %v177, %v179
  %v184 = vsel %vm182, %v175, %v177
  %v185 = vsel %vm182, %v173, %v175
  %v186 = vsel %vm182, %v179, %v173
  %v187 = vadd.s32 %v163, 4294967294
  %vm188 = vcmp.ge.s32.totalorder %v187, 0
  %vm189 = vcmp.lt.s32.totalorder %v187, 16
  %vm190 = vmand %vm188, %vm189
  %v191 = vsel %vm190, 1, 0
  %v192 = vcvt.s32.f32 %v191
  %v194 = vlaneseq
  %v195 = vshrl.u32 %v194, 7
  %v196 = vsub.s32 0, %v195
  %v197 = vrot.slane %v192, %v196
  %v198 = vlaneseq
  %v199 = vshrl.u32 %v198, 7
  %v200 = vsub.s32 1, %v199
  %v201 = vrot.slane %v192, %v200
  %v202 = vlaneseq
  %v203 = vshrl.u32 %v202, 7
  %v204 = vsub.s32 2, %v203
  %v205 = vrot.slane %v192, %v204
  %v206 = vlaneseq
  %v207 = vshrl.u32 %v206, 7
  %v208 = vsub.s32 3, %v207
  %v209 = vrot.slane %v192, %v208
  %v214 = vmul.f32 %v186, %v197
  %v215 = vmul.f32 %v185, %v201
  %v216 = vmul.f32 %v184, %v205
  %v217 = vmul.f32 %v183, %v209
  %v218 = vld [vmem:[%s9] sm:$0x7]
  %220 = vset.pattern.permute.xlu0 0
  %221 = vperm.xlu0 %220, %v218
  %v222 = vpop.permute.xlu0 %221
  %v224 = vmul.f32 %v214, %v222
  %v225 = vmul.f32 %v215, %v222
  %v226 = vmul.f32 %v216, %v222
  %v227 = vmul.f32 %v217, %v222
  %v228 = vadd.f32 %v224, 0.0
  %v229 = vadd.f32 %v225, 0.0
  %v230 = vadd.f32 %v226, 0.0
  %v231 = vadd.f32 %v227, 0.0
  %232 = vrot.lane.b32.xlu0 %v164, 1
  %v233 = vpop.permute.xlu0 %232
  %234 = vrot.lane.b32.xlu0 %v168, 1
  %v235 = vpop.permute.xlu0 %234
  %236 = vrot.lane.b32.xlu0 %v165, 1
  %v237 = vpop.permute.xlu0 %236
  %238 = vrot.lane.b32.xlu0 %v169, 1
  %v239 = vpop.permute.xlu0 %238
  %vm240 = vcmp.lt.s32.totalorder %v181, 1
  %v241 = vsel %vm240, %v237, %v239
  %v242 = vsel %vm240, %v235, %v237
  %v243 = vsel %vm240, %v233, %v235
  %v244 = vsel %vm240, %v239, %v233
  %v245 = vadd.s32 %v163, 4294967295
  %vm246 = vcmp.ge.s32.totalorder %v245, 0
  %vm247 = vcmp.lt.s32.totalorder %v245, 16
  %vm248 = vmand %vm246, %vm247
  %v249 = vsel %vm248, 1, 0
  %v250 = vcvt.s32.f32 %v249
  %v252 = vlaneseq
  %v253 = vshrl.u32 %v252, 7
  %v254 = vsub.s32 0, %v253
  %v255 = vrot.slane %v250, %v254
  %v256 = vlaneseq
  %v257 = vshrl.u32 %v256, 7
  %v258 = vsub.s32 1, %v257
  %v259 = vrot.slane %v250, %v258
  %v260 = vlaneseq
  %v261 = vshrl.u32 %v260, 7
  %v262 = vsub.s32 2, %v261
  %v263 = vrot.slane %v250, %v262
  %v264 = vlaneseq
  %v265 = vshrl.u32 %v264, 7
  %v266 = vsub.s32 3, %v265
  %v267 = vrot.slane %v250, %v266
  %v272 = vmul.f32 %v244, %v255
  %v273 = vmul.f32 %v243, %v259
  %v274 = vmul.f32 %v242, %v263
  %v275 = vmul.f32 %v241, %v267
  %v276 = vld [vmem:[%s9] sm:$0x7]
  %278 = vset.pattern.permute.xlu0 1
  %279 = vperm.xlu0 %278, %v276
  %v280 = vpop.permute.xlu0 %279
  %v282 = vmul.f32 %v272, %v280
  %v283 = vmul.f32 %v273, %v280
  %v284 = vmul.f32 %v274, %v280
  %v285 = vmul.f32 %v275, %v280
  %v286 = vadd.f32 %v228, %v282
  %v287 = vadd.f32 %v229, %v283
  %v288 = vadd.f32 %v230, %v284
  %v289 = vadd.f32 %v231, %v285
  %290 = vset.pattern.permute.xlu0 2
  %291 = vperm.xlu0 %290, %v276
  %v292 = vpop.permute.xlu0 %291
  %v294 = vunpack.c.l.s4 839922192
  %v295 = vunpack.c.0.s8 %v294
  %v296 = vlaneseq
  %v297 = vshrl.u32 %v296, 7
  %v298 = vsub.s32 %v295, %v297
  %v299 = vrot.slane %v292, %v298
  %v301 = vmul.f32 %v164, %v299
  %v302 = vmul.f32 %v165, %v299
  %v305 = vcombine.high %v301, %v301
  %v306 = vcombine.high %v302, %v302
  %v309 = vadd.f32 %v286, %v301
  %v310 = vadd.f32 %v287, %v305
  %v311 = vadd.f32 %v288, %v302
  %v312 = vadd.f32 %v289, %v306
  %313 = vrot.lane.b32.xlu0 %v164, 127
  %v314 = vpop.permute.xlu0 %313
  %315 = vrot.lane.b32.xlu0 %v168, 127
  %v316 = vpop.permute.xlu0 %315
  %317 = vrot.lane.b32.xlu0 %v165, 127
  %v318 = vpop.permute.xlu0 %317
  %319 = vrot.lane.b32.xlu0 %v169, 127
  %v320 = vpop.permute.xlu0 %319
  %vm321 = vcmp.lt.s32.totalorder %v181, 127
  %v322 = vsel %vm321, %v318, %v320
  %v323 = vsel %vm321, %v316, %v318
  %v324 = vsel %vm321, %v314, %v316
  %v325 = vsel %vm321, %v320, %v314
  %v326 = vadd.s32 %v163, 1
  %vm327 = vcmp.ge.s32.totalorder %v326, 0
  %vm328 = vcmp.lt.s32.totalorder %v326, 16
  %vm329 = vmand %vm327, %vm328
  %v330 = vsel %vm329, 1, 0
  %v331 = vcvt.s32.f32 %v330
  %v333 = vlaneseq
  %v334 = vshrl.u32 %v333, 7
  %v335 = vsub.s32 0, %v334
  %v336 = vrot.slane %v331, %v335
  %v337 = vlaneseq
  %v338 = vshrl.u32 %v337, 7
  %v339 = vsub.s32 1, %v338
  %v340 = vrot.slane %v331, %v339
  %v341 = vlaneseq
  %v342 = vshrl.u32 %v341, 7
  %v343 = vsub.s32 2, %v342
  %v344 = vrot.slane %v331, %v343
  %v345 = vlaneseq
  %v346 = vshrl.u32 %v345, 7
  %v347 = vsub.s32 3, %v346
  %v348 = vrot.slane %v331, %v347
  %v353 = vmul.f32 %v324, %v336
  %v354 = vmul.f32 %v323, %v340
  %v355 = vmul.f32 %v322, %v344
  %v356 = vmul.f32 %v325, %v348
  %v357 = vld [vmem:[%s9] sm:$0x7]
  %359 = vset.pattern.permute.xlu0 3
  %360 = vperm.xlu0 %359, %v357
  %v361 = vpop.permute.xlu0 %360
  %v363 = vmul.f32 %v353, %v361
  %v364 = vmul.f32 %v354, %v361
  %v365 = vmul.f32 %v355, %v361
  %v366 = vmul.f32 %v356, %v361
  %v367 = vadd.f32 %v309, %v363
  %v368 = vadd.f32 %v310, %v364
  %v369 = vadd.f32 %v311, %v365
  %v370 = vadd.f32 %v312, %v366
  %371 = vrot.lane.b32.xlu0 %v164, 126
  %v372 = vpop.permute.xlu0 %371
  %373 = vrot.lane.b32.xlu0 %v168, 126
  %v374 = vpop.permute.xlu0 %373
  %375 = vrot.lane.b32.xlu0 %v165, 126
  %v376 = vpop.permute.xlu0 %375
  %377 = vrot.lane.b32.xlu0 %v169, 126
  %v378 = vpop.permute.xlu0 %377
  %vm379 = vcmp.lt.s32.totalorder %v181, 126
  %v380 = vsel %vm379, %v376, %v378
  %v381 = vsel %vm379, %v374, %v376
  %v382 = vsel %vm379, %v372, %v374
  %v383 = vsel %vm379, %v378, %v372
  %v384 = vadd.s32 %v163, 2
  %vm385 = vcmp.ge.s32.totalorder %v384, 0
  %vm386 = vcmp.lt.s32.totalorder %v384, 16
  %vm387 = vmand %vm385, %vm386
  %v388 = vsel %vm387, 1, 0
  %v389 = vcvt.s32.f32 %v388
  %v391 = vlaneseq
  %v392 = vshrl.u32 %v391, 7
  %v393 = vsub.s32 0, %v392
  %v394 = vrot.slane %v389, %v393
  %v395 = vlaneseq
  %v396 = vshrl.u32 %v395, 7
  %v397 = vsub.s32 1, %v396
  %v398 = vrot.slane %v389, %v397
  %v399 = vlaneseq
  %v400 = vshrl.u32 %v399, 7
  %v401 = vsub.s32 2, %v400
  %v402 = vrot.slane %v389, %v401
  %v403 = vlaneseq
  %v404 = vshrl.u32 %v403, 7
  %v405 = vsub.s32 3, %v404
  %v406 = vrot.slane %v389, %v405
  %v411 = vmul.f32 %v382, %v394
  %v412 = vmul.f32 %v381, %v398
  %v413 = vmul.f32 %v380, %v402
  %v414 = vmul.f32 %v383, %v406
  %v415 = vld [vmem:[%s9] sm:$0x7]
  %417 = vset.pattern.permute.xlu0 4
  %418 = vperm.xlu0 %417, %v415
  %v419 = vpop.permute.xlu0 %418
  %v421 = vmul.f32 %v411, %v419
  %v422 = vmul.f32 %v412, %v419
  %v423 = vmul.f32 %v413, %v419
  %v424 = vmul.f32 %v414, %v419
  %v425 = vadd.f32 %v367, %v421
  %v426 = vadd.f32 %v368, %v422
  %v427 = vadd.f32 %v369, %v423
  %v428 = vadd.f32 %v370, %v424
  %429 = vrot.lane.b32.xlu0 %v425, 32
  %v430 = vpop.permute.xlu0 %429
  %431 = vrot.lane.b32.xlu0 %v426, 32
  %v432 = vpop.permute.xlu0 %431
  %433 = vrot.lane.b32.xlu0 %v427, 32
  %v434 = vpop.permute.xlu0 %433
  %435 = vrot.lane.b32.xlu0 %v428, 32
  %v436 = vpop.permute.xlu0 %435
  %vm437 = vcmp.lt.s32.totalorder %v181, 32
  %v438 = vsel %vm437, %v434, %v436
  %v439 = vsel %vm437, %v432, %v434
  %v440 = vsel %vm437, %v430, %v432
  %v441 = vsel %vm437, %v436, %v430
  %v442 = vadd.s32 %v162, 4294967294
  %vm443 = vcmp.ge.s32.totalorder %v442, 0
  %vm444 = vcmp.lt.s32.totalorder %v442, 16
  %vm445 = vmand %vm443, %vm444
  %v446 = vsel %vm445, 1, 0
  %v447 = vcvt.s32.f32 %v446
  %v449 = vlaneseq
  %v450 = vshrl.u32 %v449, 7
  %v451 = vsub.s32 0, %v450
  %v452 = vrot.slane %v447, %v451
  %v453 = vlaneseq
  %v454 = vshrl.u32 %v453, 7
  %v455 = vsub.s32 1, %v454
  %v456 = vrot.slane %v447, %v455
  %v457 = vlaneseq
  %v458 = vshrl.u32 %v457, 7
  %v459 = vsub.s32 2, %v458
  %v460 = vrot.slane %v447, %v459
  %v461 = vlaneseq
  %v462 = vshrl.u32 %v461, 7
  %v463 = vsub.s32 3, %v462
  %v464 = vrot.slane %v447, %v463
  %v469 = vmul.f32 %v441, %v452
  %v470 = vmul.f32 %v440, %v456
  %v471 = vmul.f32 %v439, %v460
  %v472 = vmul.f32 %v438, %v464
  %v473 = vld [vmem:[%s7] sm:$0x7]
  %475 = vset.pattern.permute.xlu0 0
  %476 = vperm.xlu0 %475, %v473
  %v477 = vpop.permute.xlu0 %476
  %v479 = vmul.f32 %v469, %v477
  %v480 = vmul.f32 %v470, %v477
  %v481 = vmul.f32 %v471, %v477
  %v482 = vmul.f32 %v472, %v477
  %v483 = vadd.f32 %v479, 0.0
  %v484 = vadd.f32 %v480, 0.0
  %v485 = vadd.f32 %v481, 0.0
  %v486 = vadd.f32 %v482, 0.0
  %487 = vrot.lane.b32.xlu0 %v425, 16
  %v488 = vpop.permute.xlu0 %487
  %489 = vrot.lane.b32.xlu0 %v426, 16
  %v490 = vpop.permute.xlu0 %489
  %491 = vrot.lane.b32.xlu0 %v427, 16
  %v492 = vpop.permute.xlu0 %491
  %493 = vrot.lane.b32.xlu0 %v428, 16
  %v494 = vpop.permute.xlu0 %493
  %vm495 = vcmp.lt.s32.totalorder %v181, 16
  %v496 = vsel %vm495, %v492, %v494
  %v497 = vsel %vm495, %v490, %v492
  %v498 = vsel %vm495, %v488, %v490
  %v499 = vsel %vm495, %v494, %v488
  %v500 = vadd.s32 %v162, 4294967295
  %vm501 = vcmp.ge.s32.totalorder %v500, 0
  %vm502 = vcmp.lt.s32.totalorder %v500, 16
  %vm503 = vmand %vm501, %vm502
  %v504 = vsel %vm503, 1, 0
  %v505 = vcvt.s32.f32 %v504
  %v507 = vlaneseq
  %v508 = vshrl.u32 %v507, 7
  %v509 = vsub.s32 0, %v508
  %v510 = vrot.slane %v505, %v509
  %v511 = vlaneseq
  %v512 = vshrl.u32 %v511, 7
  %v513 = vsub.s32 1, %v512
  %v514 = vrot.slane %v505, %v513
  %v515 = vlaneseq
  %v516 = vshrl.u32 %v515, 7
  %v517 = vsub.s32 2, %v516
  %v518 = vrot.slane %v505, %v517
  %v519 = vlaneseq
  %v520 = vshrl.u32 %v519, 7
  %v521 = vsub.s32 3, %v520
  %v522 = vrot.slane %v505, %v521
  %v527 = vmul.f32 %v499, %v510
  %v528 = vmul.f32 %v498, %v514
  %v529 = vmul.f32 %v497, %v518
  %v530 = vmul.f32 %v496, %v522
  %531 = vset.pattern.permute.xlu0 1
  %532 = vperm.xlu0 %531, %v473
  %v533 = vpop.permute.xlu0 %532
  %v535 = vmul.f32 %v527, %v533
  %v536 = vmul.f32 %v528, %v533
  %v537 = vmul.f32 %v529, %v533
  %v538 = vmul.f32 %v530, %v533
  %v539 = vadd.f32 %v483, %v535
  %v540 = vadd.f32 %v484, %v536
  %v541 = vadd.f32 %v485, %v537
  %v542 = vadd.f32 %v486, %v538
  %543 = vset.pattern.permute.xlu0 2
  %544 = vperm.xlu0 %543, %v473
  %v545 = vpop.permute.xlu0 %544
  %v547 = vmul.f32 %v425, %v545
  %v548 = vmul.f32 %v426, %v545
  %v549 = vmul.f32 %v427, %v545
  %v550 = vmul.f32 %v428, %v545
  %v551 = vadd.f32 %v539, %v547
  %v552 = vadd.f32 %v540, %v548
  %v553 = vadd.f32 %v541, %v549
  %v554 = vadd.f32 %v542, %v550
  %555 = vrot.lane.b32.xlu0 %v425, 112
  %v556 = vpop.permute.xlu0 %555
  %557 = vrot.lane.b32.xlu0 %v426, 112
  %v558 = vpop.permute.xlu0 %557
  %559 = vrot.lane.b32.xlu0 %v427, 112
  %v560 = vpop.permute.xlu0 %559
  %561 = vrot.lane.b32.xlu0 %v428, 112
  %v562 = vpop.permute.xlu0 %561
  %vm563 = vcmp.lt.s32.totalorder %v181, 112
  %v564 = vsel %vm563, %v560, %v562
  %v565 = vsel %vm563, %v558, %v560
  %v566 = vsel %vm563, %v556, %v558
  %v567 = vsel %vm563, %v562, %v556
  %v568 = vadd.s32 %v162, 1
  %vm569 = vcmp.ge.s32.totalorder %v568, 0
  %vm570 = vcmp.lt.s32.totalorder %v568, 16
  %vm571 = vmand %vm569, %vm570
  %v572 = vsel %vm571, 1, 0
  %v573 = vcvt.s32.f32 %v572
  %v575 = vlaneseq
  %v576 = vshrl.u32 %v575, 7
  %v577 = vsub.s32 0, %v576
  %v578 = vrot.slane %v573, %v577
  %v579 = vlaneseq
  %v580 = vshrl.u32 %v579, 7
  %v581 = vsub.s32 1, %v580
  %v582 = vrot.slane %v573, %v581
  %v583 = vlaneseq
  %v584 = vshrl.u32 %v583, 7
  %v585 = vsub.s32 2, %v584
  %v586 = vrot.slane %v573, %v585
  %v587 = vlaneseq
  %v588 = vshrl.u32 %v587, 7
  %v589 = vsub.s32 3, %v588
  %v590 = vrot.slane %v573, %v589
  %v595 = vmul.f32 %v566, %v578
  %v596 = vmul.f32 %v565, %v582
  %v597 = vmul.f32 %v564, %v586
  %v598 = vmul.f32 %v567, %v590
  %599 = vset.pattern.permute.xlu0 3
  %600 = vperm.xlu0 %599, %v473
  %v601 = vpop.permute.xlu0 %600
  %v603 = vmul.f32 %v595, %v601
  %v604 = vmul.f32 %v596, %v601
  %v605 = vmul.f32 %v597, %v601
  %v606 = vmul.f32 %v598, %v601
  %v607 = vadd.f32 %v551, %v603
  %v608 = vadd.f32 %v552, %v604
  %v609 = vadd.f32 %v553, %v605
  %v610 = vadd.f32 %v554, %v606
  %611 = vrot.lane.b32.xlu0 %v425, 96
  %v612 = vpop.permute.xlu0 %611
  %613 = vrot.lane.b32.xlu0 %v426, 96
  %v614 = vpop.permute.xlu0 %613
  %615 = vrot.lane.b32.xlu0 %v427, 96
  %v616 = vpop.permute.xlu0 %615
  %617 = vrot.lane.b32.xlu0 %v428, 96
  %v618 = vpop.permute.xlu0 %617
  %vm619 = vcmp.lt.s32.totalorder %v181, 96
  %v620 = vsel %vm619, %v616, %v618
  %v621 = vsel %vm619, %v614, %v616
  %v622 = vsel %vm619, %v612, %v614
  %v623 = vsel %vm619, %v618, %v612
  %v624 = vadd.s32 %v162, 2
  %vm625 = vcmp.ge.s32.totalorder %v624, 0
  %vm626 = vcmp.lt.s32.totalorder %v624, 16
  %vm627 = vmand %vm625, %vm626
  %v628 = vsel %vm627, 1, 0
  %v629 = vcvt.s32.f32 %v628
  %v631 = vlaneseq
  %v632 = vshrl.u32 %v631, 7
  %v633 = vsub.s32 0, %v632
  %v634 = vrot.slane %v629, %v633
  %v635 = vlaneseq
  %v636 = vshrl.u32 %v635, 7
  %v637 = vsub.s32 1, %v636
  %v638 = vrot.slane %v629, %v637
  %v639 = vlaneseq
  %v640 = vshrl.u32 %v639, 7
  %v641 = vsub.s32 2, %v640
  %v642 = vrot.slane %v629, %v641
  %v643 = vlaneseq
  %v644 = vshrl.u32 %v643, 7
  %v645 = vsub.s32 3, %v644
  %v646 = vrot.slane %v629, %v645
  %v651 = vmul.f32 %v622, %v634
  %v652 = vmul.f32 %v621, %v638
  %v653 = vmul.f32 %v620, %v642
  %v654 = vmul.f32 %v623, %v646
  %655 = vset.pattern.permute.xlu0 4
  %656 = vperm.xlu0 %655, %v473
  %v657 = vpop.permute.xlu0 %656
  %v659 = vmul.f32 %v651, %v657
  %v660 = vmul.f32 %v652, %v657
  %v661 = vmul.f32 %v653, %v657
  %v662 = vmul.f32 %v654, %v657
  %v663 = vadd.f32 %v607, %v659
  %v664 = vadd.f32 %v608, %v660
  %v665 = vadd.f32 %v609, %v661
  %v666 = vadd.f32 %v610, %v662
  %v667 = vsub.f32 1.0, %v447
  %v668 = vmul.f32 %v667, 1e+30
  %v669 = vsub.f32 1.0, %v192
  %v670 = vmul.f32 %v669, 1e+30
  %671 = vrot.lane.b32.xlu0 %v663, 34
  %v672 = vpop.permute.xlu0 %671
  %673 = vrot.lane.b32.xlu0 %v664, 34
  %v674 = vpop.permute.xlu0 %673
  %675 = vrot.lane.b32.xlu0 %v665, 34
  %v676 = vpop.permute.xlu0 %675
  %677 = vrot.lane.b32.xlu0 %v666, 34
  %v678 = vpop.permute.xlu0 %677
  %vm679 = vcmp.lt.s32.totalorder %v181, 34
  %v680 = vsel %vm679, %v676, %v678
  %v681 = vsel %vm679, %v674, %v676
  %v682 = vsel %vm679, %v672, %v674
  %v683 = vsel %vm679, %v678, %v672
  %v684 = vld [vmem:[%s11] sm:$0x7]
  %686 = vset.pattern.permute.xlu0 0
  %687 = vperm.xlu0 %686, %v684
  %v688 = vpop.permute.xlu0 %687
  %v690 = vsub.f32 %v683, %v688
  %v691 = vsub.f32 %v682, %v688
  %v692 = vsub.f32 %v681, %v688
  %v693 = vsub.f32 %v680, %v688
  %v695 = vlaneseq
  %v696 = vshrl.u32 %v695, 7
  %v697 = vsub.s32 0, %v696
  %v698 = vrot.slane %v668, %v697
  %v699 = vlaneseq
  %v700 = vshrl.u32 %v699, 7
  %v701 = vsub.s32 1, %v700
  %v702 = vrot.slane %v668, %v701
  %v703 = vlaneseq
  %v704 = vshrl.u32 %v703, 7
  %v705 = vsub.s32 2, %v704
  %v706 = vrot.slane %v668, %v705
  %v707 = vlaneseq
  %v708 = vshrl.u32 %v707, 7
  %v709 = vsub.s32 3, %v708
  %v710 = vrot.slane %v668, %v709
  %v715 = vsub.f32 %v690, %v698
  %v716 = vsub.f32 %v691, %v702
  %v717 = vsub.f32 %v692, %v706
  %v718 = vsub.f32 %v693, %v710
  %v720 = vlaneseq
  %v721 = vshrl.u32 %v720, 7
  %v722 = vsub.s32 0, %v721
  %v723 = vrot.slane %v670, %v722
  %v724 = vlaneseq
  %v725 = vshrl.u32 %v724, 7
  %v726 = vsub.s32 1, %v725
  %v727 = vrot.slane %v670, %v726
  %v728 = vlaneseq
  %v729 = vshrl.u32 %v728, 7
  %v730 = vsub.s32 2, %v729
  %v731 = vrot.slane %v670, %v730
  %v732 = vlaneseq
  %v733 = vshrl.u32 %v732, 7
  %v734 = vsub.s32 3, %v733
  %v735 = vrot.slane %v670, %v734
  %v740 = vsub.f32 %v715, %v723
  %v741 = vsub.f32 %v716, %v727
  %v742 = vsub.f32 %v717, %v731
  %v743 = vsub.f32 %v718, %v735
  %v744 = vsub.f32 1.0, %v250
  %v745 = vmul.f32 %v744, 1e+30
  %746 = vrot.lane.b32.xlu0 %v663, 33
  %v747 = vpop.permute.xlu0 %746
  %748 = vrot.lane.b32.xlu0 %v664, 33
  %v749 = vpop.permute.xlu0 %748
  %750 = vrot.lane.b32.xlu0 %v665, 33
  %v751 = vpop.permute.xlu0 %750
  %752 = vrot.lane.b32.xlu0 %v666, 33
  %v753 = vpop.permute.xlu0 %752
  %vm754 = vcmp.lt.s32.totalorder %v181, 33
  %v755 = vsel %vm754, %v751, %v753
  %v756 = vsel %vm754, %v749, %v751
  %v757 = vsel %vm754, %v747, %v749
  %v758 = vsel %vm754, %v753, %v747
  %759 = vset.pattern.permute.xlu0 1
  %760 = vperm.xlu0 %759, %v684
  %v761 = vpop.permute.xlu0 %760
  %v763 = vsub.f32 %v758, %v761
  %v764 = vsub.f32 %v757, %v761
  %v765 = vsub.f32 %v756, %v761
  %v766 = vsub.f32 %v755, %v761
  %v767 = vsub.f32 %v763, %v698
  %v768 = vsub.f32 %v764, %v702
  %v769 = vsub.f32 %v765, %v706
  %v770 = vsub.f32 %v766, %v710
  %v772 = vlaneseq
  %v773 = vshrl.u32 %v772, 7
  %v774 = vsub.s32 0, %v773
  %v775 = vrot.slane %v745, %v774
  %v776 = vlaneseq
  %v777 = vshrl.u32 %v776, 7
  %v778 = vsub.s32 1, %v777
  %v779 = vrot.slane %v745, %v778
  %v780 = vlaneseq
  %v781 = vshrl.u32 %v780, 7
  %v782 = vsub.s32 2, %v781
  %v783 = vrot.slane %v745, %v782
  %v784 = vlaneseq
  %v785 = vshrl.u32 %v784, 7
  %v786 = vsub.s32 3, %v785
  %v787 = vrot.slane %v745, %v786
  %v792 = vsub.f32 %v767, %v775
  %v793 = vsub.f32 %v768, %v779
  %v794 = vsub.f32 %v769, %v783
  %v795 = vsub.f32 %v770, %v787
  %v796 = vmax.f32 %v740, %v792
  %v797 = vmax.f32 %v741, %v793
  %v798 = vmax.f32 %v742, %v794
  %v799 = vmax.f32 %v743, %v795
  %800 = vrot.lane.b32.xlu0 %v663, 32
  %v801 = vpop.permute.xlu0 %800
  %802 = vrot.lane.b32.xlu0 %v664, 32
  %v803 = vpop.permute.xlu0 %802
  %804 = vrot.lane.b32.xlu0 %v665, 32
  %v805 = vpop.permute.xlu0 %804
  %806 = vrot.lane.b32.xlu0 %v666, 32
  %v807 = vpop.permute.xlu0 %806
  %v808 = vsel %vm437, %v805, %v807
  %v809 = vsel %vm437, %v803, %v805
  %v810 = vsel %vm437, %v801, %v803
  %v811 = vsel %vm437, %v807, %v801
  %812 = vset.pattern.permute.xlu0 2
  %813 = vperm.xlu0 %812, %v684
  %v814 = vpop.permute.xlu0 %813
  %v816 = vsub.f32 %v811, %v814
  %v817 = vsub.f32 %v810, %v814
  %v818 = vsub.f32 %v809, %v814
  %v819 = vsub.f32 %v808, %v814
  %v820 = vsub.f32 %v816, %v698
  %v821 = vsub.f32 %v817, %v702
  %v822 = vsub.f32 %v818, %v706
  %v823 = vsub.f32 %v819, %v710
  %v824 = vmax.f32 %v796, %v820
  %v825 = vmax.f32 %v797, %v821
  %v826 = vmax.f32 %v798, %v822
  %v827 = vmax.f32 %v799, %v823
  %v828 = vsub.f32 1.0, %v331
  %v829 = vmul.f32 %v828, 1e+30
  %830 = vrot.lane.b32.xlu0 %v663, 31
  %v831 = vpop.permute.xlu0 %830
  %832 = vrot.lane.b32.xlu0 %v664, 31
  %v833 = vpop.permute.xlu0 %832
  %834 = vrot.lane.b32.xlu0 %v665, 31
  %v835 = vpop.permute.xlu0 %834
  %836 = vrot.lane.b32.xlu0 %v666, 31
  %v837 = vpop.permute.xlu0 %836
  %vm838 = vcmp.lt.s32.totalorder %v181, 31
  %v839 = vsel %vm838, %v835, %v837
  %v840 = vsel %vm838, %v833, %v835
  %v841 = vsel %vm838, %v831, %v833
  %v842 = vsel %vm838, %v837, %v831
  %843 = vset.pattern.permute.xlu0 3
  %844 = vperm.xlu0 %843, %v684
  %v845 = vpop.permute.xlu0 %844
  %v847 = vsub.f32 %v842, %v845
  %v848 = vsub.f32 %v841, %v845
  %v849 = vsub.f32 %v840, %v845
  %v850 = vsub.f32 %v839, %v845
  %v851 = vsub.f32 %v847, %v698
  %v852 = vsub.f32 %v848, %v702
  %v853 = vsub.f32 %v849, %v706
  %v854 = vsub.f32 %v850, %v710
  %v856 = vlaneseq
  %v857 = vshrl.u32 %v856, 7
  %v858 = vsub.s32 0, %v857
  %v859 = vrot.slane %v829, %v858
  %v860 = vlaneseq
  %v861 = vshrl.u32 %v860, 7
  %v862 = vsub.s32 1, %v861
  %v863 = vrot.slane %v829, %v862
  %v864 = vlaneseq
  %v865 = vshrl.u32 %v864, 7
  %v866 = vsub.s32 2, %v865
  %v867 = vrot.slane %v829, %v866
  %v868 = vlaneseq
  %v869 = vshrl.u32 %v868, 7
  %v870 = vsub.s32 3, %v869
  %v871 = vrot.slane %v829, %v870
  %v876 = vsub.f32 %v851, %v859
  %v877 = vsub.f32 %v852, %v863
  %v878 = vsub.f32 %v853, %v867
  %v879 = vsub.f32 %v854, %v871
  %v880 = vmax.f32 %v824, %v876
  %v881 = vmax.f32 %v825, %v877
  %v882 = vmax.f32 %v826, %v878
  %v883 = vmax.f32 %v827, %v879
  %v884 = vsub.f32 1.0, %v389
  %v885 = vmul.f32 %v884, 1e+30
  %886 = vrot.lane.b32.xlu0 %v663, 30
  %v887 = vpop.permute.xlu0 %886
  %888 = vrot.lane.b32.xlu0 %v664, 30
  %v889 = vpop.permute.xlu0 %888
  %890 = vrot.lane.b32.xlu0 %v665, 30
  %v891 = vpop.permute.xlu0 %890
  %892 = vrot.lane.b32.xlu0 %v666, 30
  %v893 = vpop.permute.xlu0 %892
  %vm894 = vcmp.lt.s32.totalorder %v181, 30
  %v895 = vsel %vm894, %v891, %v893
  %v896 = vsel %vm894, %v889, %v891
  %v897 = vsel %vm894, %v887, %v889
  %v898 = vsel %vm894, %v893, %v887
  %899 = vset.pattern.permute.xlu0 4
  %900 = vperm.xlu0 %899, %v684
  %v901 = vpop.permute.xlu0 %900
  %v903 = vsub.f32 %v898, %v901
  %v904 = vsub.f32 %v897, %v901
  %v905 = vsub.f32 %v896, %v901
  %v906 = vsub.f32 %v895, %v901
  %v907 = vsub.f32 %v903, %v698
  %v908 = vsub.f32 %v904, %v702
  %v909 = vsub.f32 %v905, %v706
  %v910 = vsub.f32 %v906, %v710
  %v912 = vlaneseq
  %v913 = vshrl.u32 %v912, 7
  %v914 = vsub.s32 0, %v913
  %v915 = vrot.slane %v885, %v914
  %v916 = vlaneseq
  %v917 = vshrl.u32 %v916, 7
  %v918 = vsub.s32 1, %v917
  %v919 = vrot.slane %v885, %v918
  %v920 = vlaneseq
  %v921 = vshrl.u32 %v920, 7
  %v922 = vsub.s32 2, %v921
  %v923 = vrot.slane %v885, %v922
  %v924 = vlaneseq
  %v925 = vshrl.u32 %v924, 7
  %v926 = vsub.s32 3, %v925
  %v927 = vrot.slane %v885, %v926
  %v932 = vsub.f32 %v907, %v915
  %v933 = vsub.f32 %v908, %v919
  %v934 = vsub.f32 %v909, %v923
  %v935 = vsub.f32 %v910, %v927
  %v936 = vmax.f32 %v880, %v932
  %v937 = vmax.f32 %v881, %v933
  %v938 = vmax.f32 %v882, %v934
  %v939 = vmax.f32 %v883, %v935
  %v940 = vsub.f32 1.0, %v505
  %v941 = vmul.f32 %v940, 1e+30
  %942 = vrot.lane.b32.xlu0 %v663, 18
  %v943 = vpop.permute.xlu0 %942
  %944 = vrot.lane.b32.xlu0 %v664, 18
  %v945 = vpop.permute.xlu0 %944
  %946 = vrot.lane.b32.xlu0 %v665, 18
  %v947 = vpop.permute.xlu0 %946
  %948 = vrot.lane.b32.xlu0 %v666, 18
  %v949 = vpop.permute.xlu0 %948
  %vm950 = vcmp.lt.s32.totalorder %v181, 18
  %v951 = vsel %vm950, %v947, %v949
  %v952 = vsel %vm950, %v945, %v947
  %v953 = vsel %vm950, %v943, %v945
  %v954 = vsel %vm950, %v949, %v943
  %955 = vset.pattern.permute.xlu0 5
  %956 = vperm.xlu0 %955, %v684
  %v957 = vpop.permute.xlu0 %956
  %v959 = vsub.f32 %v954, %v957
  %v960 = vsub.f32 %v953, %v957
  %v961 = vsub.f32 %v952, %v957
  %v962 = vsub.f32 %v951, %v957
  %v964 = vlaneseq
  %v965 = vshrl.u32 %v964, 7
  %v966 = vsub.s32 0, %v965
  %v967 = vrot.slane %v941, %v966
  %v968 = vlaneseq
  %v969 = vshrl.u32 %v968, 7
  %v970 = vsub.s32 1, %v969
  %v971 = vrot.slane %v941, %v970
  %v972 = vlaneseq
  %v973 = vshrl.u32 %v972, 7
  %v974 = vsub.s32 2, %v973
  %v975 = vrot.slane %v941, %v974
  %v976 = vlaneseq
  %v977 = vshrl.u32 %v976, 7
  %v978 = vsub.s32 3, %v977
  %v979 = vrot.slane %v941, %v978
  %v984 = vsub.f32 %v959, %v967
  %v985 = vsub.f32 %v960, %v971
  %v986 = vsub.f32 %v961, %v975
  %v987 = vsub.f32 %v962, %v979
  %v988 = vsub.f32 %v984, %v723
  %v989 = vsub.f32 %v985, %v727
  %v990 = vsub.f32 %v986, %v731
  %v991 = vsub.f32 %v987, %v735
  %v992 = vmax.f32 %v936, %v988
  %v993 = vmax.f32 %v937, %v989
  %v994 = vmax.f32 %v938, %v990
  %v995 = vmax.f32 %v939, %v991
  %996 = vrot.lane.b32.xlu0 %v663, 17
  %v997 = vpop.permute.xlu0 %996
  %998 = vrot.lane.b32.xlu0 %v664, 17
  %v999 = vpop.permute.xlu0 %998
  %1000 = vrot.lane.b32.xlu0 %v665, 17
  %v1001 = vpop.permute.xlu0 %1000
  %1002 = vrot.lane.b32.xlu0 %v666, 17
  %v1003 = vpop.permute.xlu0 %1002
  %vm1004 = vcmp.lt.s32.totalorder %v181, 17
  %v1005 = vsel %vm1004, %v1001, %v1003
  %v1006 = vsel %vm1004, %v999, %v1001
  %v1007 = vsel %vm1004, %v997, %v999
  %v1008 = vsel %vm1004, %v1003, %v997
  %1009 = vset.pattern.permute.xlu0 6
  %1010 = vperm.xlu0 %1009, %v684
  %v1011 = vpop.permute.xlu0 %1010
  %v1013 = vsub.f32 %v1008, %v1011
  %v1014 = vsub.f32 %v1007, %v1011
  %v1015 = vsub.f32 %v1006, %v1011
  %v1016 = vsub.f32 %v1005, %v1011
  %v1017 = vsub.f32 %v1013, %v967
  %v1018 = vsub.f32 %v1014, %v971
  %v1019 = vsub.f32 %v1015, %v975
  %v1020 = vsub.f32 %v1016, %v979
  %v1021 = vsub.f32 %v1017, %v775
  %v1022 = vsub.f32 %v1018, %v779
  %v1023 = vsub.f32 %v1019, %v783
  %v1024 = vsub.f32 %v1020, %v787
  %v1025 = vmax.f32 %v992, %v1021
  %v1026 = vmax.f32 %v993, %v1022
  %v1027 = vmax.f32 %v994, %v1023
  %v1028 = vmax.f32 %v995, %v1024
  %1029 = vrot.lane.b32.xlu0 %v663, 16
  %v1030 = vpop.permute.xlu0 %1029
  %1031 = vrot.lane.b32.xlu0 %v664, 16
  %v1032 = vpop.permute.xlu0 %1031
  %1033 = vrot.lane.b32.xlu0 %v665, 16
  %v1034 = vpop.permute.xlu0 %1033
  %1035 = vrot.lane.b32.xlu0 %v666, 16
  %v1036 = vpop.permute.xlu0 %1035
  %v1037 = vsel %vm495, %v1034, %v1036
  %v1038 = vsel %vm495, %v1032, %v1034
  %v1039 = vsel %vm495, %v1030, %v1032
  %v1040 = vsel %vm495, %v1036, %v1030
  %1041 = vset.pattern.permute.xlu0 7
  %1042 = vperm.xlu0 %1041, %v684
  %v1043 = vpop.permute.xlu0 %1042
  %v1045 = vsub.f32 %v1040, %v1043
  %v1046 = vsub.f32 %v1039, %v1043
  %v1047 = vsub.f32 %v1038, %v1043
  %v1048 = vsub.f32 %v1037, %v1043
  %v1049 = vsub.f32 %v1045, %v967
  %v1050 = vsub.f32 %v1046, %v971
  %v1051 = vsub.f32 %v1047, %v975
  %v1052 = vsub.f32 %v1048, %v979
  %v1053 = vmax.f32 %v1025, %v1049
  %v1054 = vmax.f32 %v1026, %v1050
  %v1055 = vmax.f32 %v1027, %v1051
  %v1056 = vmax.f32 %v1028, %v1052
  %1057 = vrot.lane.b32.xlu0 %v663, 15
  %v1058 = vpop.permute.xlu0 %1057
  %1059 = vrot.lane.b32.xlu0 %v664, 15
  %v1060 = vpop.permute.xlu0 %1059
  %1061 = vrot.lane.b32.xlu0 %v665, 15
  %v1062 = vpop.permute.xlu0 %1061
  %1063 = vrot.lane.b32.xlu0 %v666, 15
  %v1064 = vpop.permute.xlu0 %1063
  %vm1065 = vcmp.lt.s32.totalorder %v181, 15
  %v1066 = vsel %vm1065, %v1062, %v1064
  %v1067 = vsel %vm1065, %v1060, %v1062
  %v1068 = vsel %vm1065, %v1058, %v1060
  %v1069 = vsel %vm1065, %v1064, %v1058
  %1070 = vset.pattern.permute.xlu0 8
  %1071 = vperm.xlu0 %1070, %v684
  %v1072 = vpop.permute.xlu0 %1071
  %v1074 = vsub.f32 %v1069, %v1072
  %v1075 = vsub.f32 %v1068, %v1072
  %v1076 = vsub.f32 %v1067, %v1072
  %v1077 = vsub.f32 %v1066, %v1072
  %v1078 = vsub.f32 %v1074, %v967
  %v1079 = vsub.f32 %v1075, %v971
  %v1080 = vsub.f32 %v1076, %v975
  %v1081 = vsub.f32 %v1077, %v979
  %v1082 = vsub.f32 %v1078, %v859
  %v1083 = vsub.f32 %v1079, %v863
  %v1084 = vsub.f32 %v1080, %v867
  %v1085 = vsub.f32 %v1081, %v871
  %v1086 = vmax.f32 %v1053, %v1082
  %v1087 = vmax.f32 %v1054, %v1083
  %v1088 = vmax.f32 %v1055, %v1084
  %v1089 = vmax.f32 %v1056, %v1085
  %1090 = vrot.lane.b32.xlu0 %v663, 14
  %v1091 = vpop.permute.xlu0 %1090
  %1092 = vrot.lane.b32.xlu0 %v664, 14
  %v1093 = vpop.permute.xlu0 %1092
  %1094 = vrot.lane.b32.xlu0 %v665, 14
  %v1095 = vpop.permute.xlu0 %1094
  %1096 = vrot.lane.b32.xlu0 %v666, 14
  %v1097 = vpop.permute.xlu0 %1096
  %vm1098 = vcmp.lt.s32.totalorder %v181, 14
  %v1099 = vsel %vm1098, %v1095, %v1097
  %v1100 = vsel %vm1098, %v1093, %v1095
  %v1101 = vsel %vm1098, %v1091, %v1093
  %v1102 = vsel %vm1098, %v1097, %v1091
  %1103 = vset.pattern.permute.xlu0 9
  %1104 = vperm.xlu0 %1103, %v684
  %v1105 = vpop.permute.xlu0 %1104
  %v1107 = vsub.f32 %v1102, %v1105
  %v1108 = vsub.f32 %v1101, %v1105
  %v1109 = vsub.f32 %v1100, %v1105
  %v1110 = vsub.f32 %v1099, %v1105
  %v1111 = vsub.f32 %v1107, %v967
  %v1112 = vsub.f32 %v1108, %v971
  %v1113 = vsub.f32 %v1109, %v975
  %v1114 = vsub.f32 %v1110, %v979
  %v1115 = vsub.f32 %v1111, %v915
  %v1116 = vsub.f32 %v1112, %v919
  %v1117 = vsub.f32 %v1113, %v923
  %v1118 = vsub.f32 %v1114, %v927
  %v1119 = vmax.f32 %v1086, %v1115
  %v1120 = vmax.f32 %v1087, %v1116
  %v1121 = vmax.f32 %v1088, %v1117
  %v1122 = vmax.f32 %v1089, %v1118
  %1123 = vrot.lane.b32.xlu0 %v663, 2
  %v1124 = vpop.permute.xlu0 %1123
  %1125 = vrot.lane.b32.xlu0 %v664, 2
  %v1126 = vpop.permute.xlu0 %1125
  %1127 = vrot.lane.b32.xlu0 %v665, 2
  %v1128 = vpop.permute.xlu0 %1127
  %1129 = vrot.lane.b32.xlu0 %v666, 2
  %v1130 = vpop.permute.xlu0 %1129
  %v1131 = vsel %vm182, %v1128, %v1130
  %v1132 = vsel %vm182, %v1126, %v1128
  %v1133 = vsel %vm182, %v1124, %v1126
  %v1134 = vsel %vm182, %v1130, %v1124
  %1135 = vset.pattern.permute.xlu0 10
  %1136 = vperm.xlu0 %1135, %v684
  %v1137 = vpop.permute.xlu0 %1136
  %v1139 = vsub.f32 %v1134, %v1137
  %v1140 = vsub.f32 %v1133, %v1137
  %v1141 = vsub.f32 %v1132, %v1137
  %v1142 = vsub.f32 %v1131, %v1137
  %v1143 = vsub.f32 %v1139, %v723
  %v1144 = vsub.f32 %v1140, %v727
  %v1145 = vsub.f32 %v1141, %v731
  %v1146 = vsub.f32 %v1142, %v735
  %v1147 = vmax.f32 %v1119, %v1143
  %v1148 = vmax.f32 %v1120, %v1144
  %v1149 = vmax.f32 %v1121, %v1145
  %v1150 = vmax.f32 %v1122, %v1146
  %1151 = vrot.lane.b32.xlu0 %v663, 1
  %v1152 = vpop.permute.xlu0 %1151
  %1153 = vrot.lane.b32.xlu0 %v664, 1
  %v1154 = vpop.permute.xlu0 %1153
  %1155 = vrot.lane.b32.xlu0 %v665, 1
  %v1156 = vpop.permute.xlu0 %1155
  %1157 = vrot.lane.b32.xlu0 %v666, 1
  %v1158 = vpop.permute.xlu0 %1157
  %v1159 = vsel %vm240, %v1156, %v1158
  %v1160 = vsel %vm240, %v1154, %v1156
  %v1161 = vsel %vm240, %v1152, %v1154
  %v1162 = vsel %vm240, %v1158, %v1152
  %1163 = vset.pattern.permute.xlu0 11
  %1164 = vperm.xlu0 %1163, %v684
  %v1165 = vpop.permute.xlu0 %1164
  %v1167 = vsub.f32 %v1162, %v1165
  %v1168 = vsub.f32 %v1161, %v1165
  %v1169 = vsub.f32 %v1160, %v1165
  %v1170 = vsub.f32 %v1159, %v1165
  %v1171 = vsub.f32 %v1167, %v775
  %v1172 = vsub.f32 %v1168, %v779
  %v1173 = vsub.f32 %v1169, %v783
  %v1174 = vsub.f32 %v1170, %v787
  %v1175 = vmax.f32 %v1147, %v1171
  %v1176 = vmax.f32 %v1148, %v1172
  %v1177 = vmax.f32 %v1149, %v1173
  %v1178 = vmax.f32 %v1150, %v1174
  %1179 = vset.pattern.permute.xlu0 12
  %1180 = vperm.xlu0 %1179, %v684
  %v1181 = vpop.permute.xlu0 %1180
  %v1183 = vsub.f32 %v663, %v1181
  %v1184 = vsub.f32 %v664, %v1181
  %v1185 = vsub.f32 %v665, %v1181
  %v1186 = vsub.f32 %v666, %v1181
  %v1187 = vmax.f32 %v1175, %v1183
  %v1188 = vmax.f32 %v1176, %v1184
  %v1189 = vmax.f32 %v1177, %v1185
  %v1190 = vmax.f32 %v1178, %v1186
  %1191 = vrot.lane.b32.xlu0 %v663, 127
  %v1192 = vpop.permute.xlu0 %1191
  %1193 = vrot.lane.b32.xlu0 %v664, 127
  %v1194 = vpop.permute.xlu0 %1193
  %1195 = vrot.lane.b32.xlu0 %v665, 127
  %v1196 = vpop.permute.xlu0 %1195
  %1197 = vrot.lane.b32.xlu0 %v666, 127
  %v1198 = vpop.permute.xlu0 %1197
  %v1199 = vsel %vm321, %v1196, %v1198
  %v1200 = vsel %vm321, %v1194, %v1196
  %v1201 = vsel %vm321, %v1192, %v1194
  %v1202 = vsel %vm321, %v1198, %v1192
  %1203 = vset.pattern.permute.xlu0 13
  %1204 = vperm.xlu0 %1203, %v684
  %v1205 = vpop.permute.xlu0 %1204
  %v1207 = vsub.f32 %v1201, %v1205
  %v1208 = vsub.f32 %v1200, %v1205
  %v1209 = vsub.f32 %v1199, %v1205
  %v1210 = vsub.f32 %v1202, %v1205
  %v1211 = vsub.f32 %v1207, %v859
  %v1212 = vsub.f32 %v1208, %v863
  %v1213 = vsub.f32 %v1209, %v867
  %v1214 = vsub.f32 %v1210, %v871
  %v1215 = vmax.f32 %v1187, %v1211
  %v1216 = vmax.f32 %v1188, %v1212
  %v1217 = vmax.f32 %v1189, %v1213
  %v1218 = vmax.f32 %v1190, %v1214
  %1219 = vrot.lane.b32.xlu0 %v663, 126
  %v1220 = vpop.permute.xlu0 %1219
  %1221 = vrot.lane.b32.xlu0 %v664, 126
  %v1222 = vpop.permute.xlu0 %1221
  %1223 = vrot.lane.b32.xlu0 %v665, 126
  %v1224 = vpop.permute.xlu0 %1223
  %1225 = vrot.lane.b32.xlu0 %v666, 126
  %v1226 = vpop.permute.xlu0 %1225
  %v1227 = vsel %vm379, %v1224, %v1226
  %v1228 = vsel %vm379, %v1222, %v1224
  %v1229 = vsel %vm379, %v1220, %v1222
  %v1230 = vsel %vm379, %v1226, %v1220
  %1231 = vset.pattern.permute.xlu0 14
  %1232 = vperm.xlu0 %1231, %v684
  %v1233 = vpop.permute.xlu0 %1232
  %v1235 = vsub.f32 %v1229, %v1233
  %v1236 = vsub.f32 %v1228, %v1233
  %v1237 = vsub.f32 %v1227, %v1233
  %v1238 = vsub.f32 %v1230, %v1233
  %v1239 = vsub.f32 %v1235, %v915
  %v1240 = vsub.f32 %v1236, %v919
  %v1241 = vsub.f32 %v1237, %v923
  %v1242 = vsub.f32 %v1238, %v927
  %v1243 = vmax.f32 %v1215, %v1239
  %v1244 = vmax.f32 %v1216, %v1240
  %v1245 = vmax.f32 %v1217, %v1241
  %v1246 = vmax.f32 %v1218, %v1242
  %v1247 = vsub.f32 1.0, %v573
  %v1248 = vmul.f32 %v1247, 1e+30
  %1249 = vrot.lane.b32.xlu0 %v663, 114
  %v1250 = vpop.permute.xlu0 %1249
  %1251 = vrot.lane.b32.xlu0 %v664, 114
  %v1252 = vpop.permute.xlu0 %1251
  %1253 = vrot.lane.b32.xlu0 %v665, 114
  %v1254 = vpop.permute.xlu0 %1253
  %1255 = vrot.lane.b32.xlu0 %v666, 114
  %v1256 = vpop.permute.xlu0 %1255
  %vm1257 = vcmp.lt.s32.totalorder %v181, 114
  %v1258 = vsel %vm1257, %v1254, %v1256
  %v1259 = vsel %vm1257, %v1252, %v1254
  %v1260 = vsel %vm1257, %v1250, %v1252
  %v1261 = vsel %vm1257, %v1256, %v1250
  %1262 = vset.pattern.permute.xlu0 15
  %1263 = vperm.xlu0 %1262, %v684
  %v1264 = vpop.permute.xlu0 %1263
  %v1266 = vsub.f32 %v1260, %v1264
  %v1267 = vsub.f32 %v1259, %v1264
  %v1268 = vsub.f32 %v1258, %v1264
  %v1269 = vsub.f32 %v1261, %v1264
  %v1271 = vlaneseq
  %v1272 = vshrl.u32 %v1271, 7
  %v1273 = vsub.s32 0, %v1272
  %v1274 = vrot.slane %v1248, %v1273
  %v1275 = vlaneseq
  %v1276 = vshrl.u32 %v1275, 7
  %v1277 = vsub.s32 1, %v1276
  %v1278 = vrot.slane %v1248, %v1277
  %v1279 = vlaneseq
  %v1280 = vshrl.u32 %v1279, 7
  %v1281 = vsub.s32 2, %v1280
  %v1282 = vrot.slane %v1248, %v1281
  %v1283 = vlaneseq
  %v1284 = vshrl.u32 %v1283, 7
  %v1285 = vsub.s32 3, %v1284
  %v1286 = vrot.slane %v1248, %v1285
  %v1291 = vsub.f32 %v1266, %v1274
  %v1292 = vsub.f32 %v1267, %v1278
  %v1293 = vsub.f32 %v1268, %v1282
  %v1294 = vsub.f32 %v1269, %v1286
  %v1295 = vsub.f32 %v1291, %v723
  %v1296 = vsub.f32 %v1292, %v727
  %v1297 = vsub.f32 %v1293, %v731
  %v1298 = vsub.f32 %v1294, %v735
  %v1299 = vmax.f32 %v1243, %v1295
  %v1300 = vmax.f32 %v1244, %v1296
  %v1301 = vmax.f32 %v1245, %v1297
  %v1302 = vmax.f32 %v1246, %v1298
  %1303 = vrot.lane.b32.xlu0 %v663, 113
  %v1304 = vpop.permute.xlu0 %1303
  %1305 = vrot.lane.b32.xlu0 %v664, 113
  %v1306 = vpop.permute.xlu0 %1305
  %1307 = vrot.lane.b32.xlu0 %v665, 113
  %v1308 = vpop.permute.xlu0 %1307
  %1309 = vrot.lane.b32.xlu0 %v666, 113
  %v1310 = vpop.permute.xlu0 %1309
  %vm1311 = vcmp.lt.s32.totalorder %v181, 113
  %v1312 = vsel %vm1311, %v1308, %v1310
  %v1313 = vsel %vm1311, %v1306, %v1308
  %v1314 = vsel %vm1311, %v1304, %v1306
  %v1315 = vsel %vm1311, %v1310, %v1304
  %1316 = vset.pattern.permute.xlu0 16
  %1317 = vperm.xlu0 %1316, %v684
  %v1318 = vpop.permute.xlu0 %1317
  %v1320 = vsub.f32 %v1314, %v1318
  %v1321 = vsub.f32 %v1313, %v1318
  %v1322 = vsub.f32 %v1312, %v1318
  %v1323 = vsub.f32 %v1315, %v1318
  %v1324 = vsub.f32 %v1320, %v1274
  %v1325 = vsub.f32 %v1321, %v1278
  %v1326 = vsub.f32 %v1322, %v1282
  %v1327 = vsub.f32 %v1323, %v1286
  %v1328 = vsub.f32 %v1324, %v775
  %v1329 = vsub.f32 %v1325, %v779
  %v1330 = vsub.f32 %v1326, %v783
  %v1331 = vsub.f32 %v1327, %v787
  %v1332 = vmax.f32 %v1299, %v1328
  %v1333 = vmax.f32 %v1300, %v1329
  %v1334 = vmax.f32 %v1301, %v1330
  %v1335 = vmax.f32 %v1302, %v1331
  %1336 = vrot.lane.b32.xlu0 %v663, 112
  %v1337 = vpop.permute.xlu0 %1336
  %1338 = vrot.lane.b32.xlu0 %v664, 112
  %v1339 = vpop.permute.xlu0 %1338
  %1340 = vrot.lane.b32.xlu0 %v665, 112
  %v1341 = vpop.permute.xlu0 %1340
  %1342 = vrot.lane.b32.xlu0 %v666, 112
  %v1343 = vpop.permute.xlu0 %1342
  %v1344 = vsel %vm563, %v1341, %v1343
  %v1345 = vsel %vm563, %v1339, %v1341
  %v1346 = vsel %vm563, %v1337, %v1339
  %v1347 = vsel %vm563, %v1343, %v1337
  %1348 = vset.pattern.permute.xlu0 17
  %1349 = vperm.xlu0 %1348, %v684
  %v1350 = vpop.permute.xlu0 %1349
  %v1352 = vsub.f32 %v1346, %v1350
  %v1353 = vsub.f32 %v1345, %v1350
  %v1354 = vsub.f32 %v1344, %v1350
  %v1355 = vsub.f32 %v1347, %v1350
  %v1356 = vsub.f32 %v1352, %v1274
  %v1357 = vsub.f32 %v1353, %v1278
  %v1358 = vsub.f32 %v1354, %v1282
  %v1359 = vsub.f32 %v1355, %v1286
  %v1360 = vmax.f32 %v1332, %v1356
  %v1361 = vmax.f32 %v1333, %v1357
  %v1362 = vmax.f32 %v1334, %v1358
  %v1363 = vmax.f32 %v1335, %v1359
  %1364 = vrot.lane.b32.xlu0 %v663, 111
  %v1365 = vpop.permute.xlu0 %1364
  %1366 = vrot.lane.b32.xlu0 %v664, 111
  %v1367 = vpop.permute.xlu0 %1366
  %1368 = vrot.lane.b32.xlu0 %v665, 111
  %v1369 = vpop.permute.xlu0 %1368
  %1370 = vrot.lane.b32.xlu0 %v666, 111
  %v1371 = vpop.permute.xlu0 %1370
  %vm1372 = vcmp.lt.s32.totalorder %v181, 111
  %v1373 = vsel %vm1372, %v1369, %v1371
  %v1374 = vsel %vm1372, %v1367, %v1369
  %v1375 = vsel %vm1372, %v1365, %v1367
  %v1376 = vsel %vm1372, %v1371, %v1365
  %1377 = vset.pattern.permute.xlu0 18
  %1378 = vperm.xlu0 %1377, %v684
  %v1379 = vpop.permute.xlu0 %1378
  %v1381 = vsub.f32 %v1375, %v1379
  %v1382 = vsub.f32 %v1374, %v1379
  %v1383 = vsub.f32 %v1373, %v1379
  %v1384 = vsub.f32 %v1376, %v1379
  %v1385 = vsub.f32 %v1381, %v1274
  %v1386 = vsub.f32 %v1382, %v1278
  %v1387 = vsub.f32 %v1383, %v1282
  %v1388 = vsub.f32 %v1384, %v1286
  %v1389 = vsub.f32 %v1385, %v859
  %v1390 = vsub.f32 %v1386, %v863
  %v1391 = vsub.f32 %v1387, %v867
  %v1392 = vsub.f32 %v1388, %v871
  %v1393 = vmax.f32 %v1360, %v1389
  %v1394 = vmax.f32 %v1361, %v1390
  %v1395 = vmax.f32 %v1362, %v1391
  %v1396 = vmax.f32 %v1363, %v1392
  %1397 = vrot.lane.b32.xlu0 %v663, 110
  %v1398 = vpop.permute.xlu0 %1397
  %1399 = vrot.lane.b32.xlu0 %v664, 110
  %v1400 = vpop.permute.xlu0 %1399
  %1401 = vrot.lane.b32.xlu0 %v665, 110
  %v1402 = vpop.permute.xlu0 %1401
  %1403 = vrot.lane.b32.xlu0 %v666, 110
  %v1404 = vpop.permute.xlu0 %1403
  %vm1405 = vcmp.lt.s32.totalorder %v181, 110
  %v1406 = vsel %vm1405, %v1402, %v1404
  %v1407 = vsel %vm1405, %v1400, %v1402
  %v1408 = vsel %vm1405, %v1398, %v1400
  %v1409 = vsel %vm1405, %v1404, %v1398
  %1410 = vset.pattern.permute.xlu0 19
  %1411 = vperm.xlu0 %1410, %v684
  %v1412 = vpop.permute.xlu0 %1411
  %v1414 = vsub.f32 %v1408, %v1412
  %v1415 = vsub.f32 %v1407, %v1412
  %v1416 = vsub.f32 %v1406, %v1412
  %v1417 = vsub.f32 %v1409, %v1412
  %v1418 = vsub.f32 %v1414, %v1274
  %v1419 = vsub.f32 %v1415, %v1278
  %v1420 = vsub.f32 %v1416, %v1282
  %v1421 = vsub.f32 %v1417, %v1286
  %v1422 = vsub.f32 %v1418, %v915
  %v1423 = vsub.f32 %v1419, %v919
  %v1424 = vsub.f32 %v1420, %v923
  %v1425 = vsub.f32 %v1421, %v927
  %v1426 = vmax.f32 %v1393, %v1422
  %v1427 = vmax.f32 %v1394, %v1423
  %v1428 = vmax.f32 %v1395, %v1424
  %v1429 = vmax.f32 %v1396, %v1425
  %v1430 = vsub.f32 1.0, %v629
  %v1431 = vmul.f32 %v1430, 1e+30
  %1432 = vrot.lane.b32.xlu0 %v663, 98
  %v1433 = vpop.permute.xlu0 %1432
  %1434 = vrot.lane.b32.xlu0 %v664, 98
  %v1435 = vpop.permute.xlu0 %1434
  %1436 = vrot.lane.b32.xlu0 %v665, 98
  %v1437 = vpop.permute.xlu0 %1436
  %1438 = vrot.lane.b32.xlu0 %v666, 98
  %v1439 = vpop.permute.xlu0 %1438
  %vm1440 = vcmp.lt.s32.totalorder %v181, 98
  %v1441 = vsel %vm1440, %v1437, %v1439
  %v1442 = vsel %vm1440, %v1435, %v1437
  %v1443 = vsel %vm1440, %v1433, %v1435
  %v1444 = vsel %vm1440, %v1439, %v1433
  %1445 = vset.pattern.permute.xlu0 20
  %1446 = vperm.xlu0 %1445, %v684
  %v1447 = vpop.permute.xlu0 %1446
  %v1449 = vsub.f32 %v1443, %v1447
  %v1450 = vsub.f32 %v1442, %v1447
  %v1451 = vsub.f32 %v1441, %v1447
  %v1452 = vsub.f32 %v1444, %v1447
  %v1454 = vlaneseq
  %v1455 = vshrl.u32 %v1454, 7
  %v1456 = vsub.s32 0, %v1455
  %v1457 = vrot.slane %v1431, %v1456
  %v1458 = vlaneseq
  %v1459 = vshrl.u32 %v1458, 7
  %v1460 = vsub.s32 1, %v1459
  %v1461 = vrot.slane %v1431, %v1460
  %v1462 = vlaneseq
  %v1463 = vshrl.u32 %v1462, 7
  %v1464 = vsub.s32 2, %v1463
  %v1465 = vrot.slane %v1431, %v1464
  %v1466 = vlaneseq
  %v1467 = vshrl.u32 %v1466, 7
  %v1468 = vsub.s32 3, %v1467
  %v1469 = vrot.slane %v1431, %v1468
  %v1474 = vsub.f32 %v1449, %v1457
  %v1475 = vsub.f32 %v1450, %v1461
  %v1476 = vsub.f32 %v1451, %v1465
  %v1477 = vsub.f32 %v1452, %v1469
  %v1478 = vsub.f32 %v1474, %v723
  %v1479 = vsub.f32 %v1475, %v727
  %v1480 = vsub.f32 %v1476, %v731
  %v1481 = vsub.f32 %v1477, %v735
  %v1482 = vmax.f32 %v1426, %v1478
  %v1483 = vmax.f32 %v1427, %v1479
  %v1484 = vmax.f32 %v1428, %v1480
  %v1485 = vmax.f32 %v1429, %v1481
  %1486 = vrot.lane.b32.xlu0 %v663, 97
  %v1487 = vpop.permute.xlu0 %1486
  %1488 = vrot.lane.b32.xlu0 %v664, 97
  %v1489 = vpop.permute.xlu0 %1488
  %1490 = vrot.lane.b32.xlu0 %v665, 97
  %v1491 = vpop.permute.xlu0 %1490
  %1492 = vrot.lane.b32.xlu0 %v666, 97
  %v1493 = vpop.permute.xlu0 %1492
  %vm1494 = vcmp.lt.s32.totalorder %v181, 97
  %v1495 = vsel %vm1494, %v1491, %v1493
  %v1496 = vsel %vm1494, %v1489, %v1491
  %v1497 = vsel %vm1494, %v1487, %v1489
  %v1498 = vsel %vm1494, %v1493, %v1487
  %1499 = vset.pattern.permute.xlu0 21
  %1500 = vperm.xlu0 %1499, %v684
  %v1501 = vpop.permute.xlu0 %1500
  %v1503 = vsub.f32 %v1497, %v1501
  %v1504 = vsub.f32 %v1496, %v1501
  %v1505 = vsub.f32 %v1495, %v1501
  %v1506 = vsub.f32 %v1498, %v1501
  %v1507 = vsub.f32 %v1503, %v1457
  %v1508 = vsub.f32 %v1504, %v1461
  %v1509 = vsub.f32 %v1505, %v1465
  %v1510 = vsub.f32 %v1506, %v1469
  %v1511 = vsub.f32 %v1507, %v775
  %v1512 = vsub.f32 %v1508, %v779
  %v1513 = vsub.f32 %v1509, %v783
  %v1514 = vsub.f32 %v1510, %v787
  %v1515 = vmax.f32 %v1482, %v1511
  %v1516 = vmax.f32 %v1483, %v1512
  %v1517 = vmax.f32 %v1484, %v1513
  %v1518 = vmax.f32 %v1485, %v1514
  %1519 = vrot.lane.b32.xlu0 %v663, 96
  %v1520 = vpop.permute.xlu0 %1519
  %1521 = vrot.lane.b32.xlu0 %v664, 96
  %v1522 = vpop.permute.xlu0 %1521
  %1523 = vrot.lane.b32.xlu0 %v665, 96
  %v1524 = vpop.permute.xlu0 %1523
  %1525 = vrot.lane.b32.xlu0 %v666, 96
  %v1526 = vpop.permute.xlu0 %1525
  %v1527 = vsel %vm619, %v1524, %v1526
  %v1528 = vsel %vm619, %v1522, %v1524
  %v1529 = vsel %vm619, %v1520, %v1522
  %v1530 = vsel %vm619, %v1526, %v1520
  %1531 = vset.pattern.permute.xlu0 22
  %1532 = vperm.xlu0 %1531, %v684
  %v1533 = vpop.permute.xlu0 %1532
  %v1535 = vsub.f32 %v1529, %v1533
  %v1536 = vsub.f32 %v1528, %v1533
  %v1537 = vsub.f32 %v1527, %v1533
  %v1538 = vsub.f32 %v1530, %v1533
  %v1539 = vsub.f32 %v1535, %v1457
  %v1540 = vsub.f32 %v1536, %v1461
  %v1541 = vsub.f32 %v1537, %v1465
  %v1542 = vsub.f32 %v1538, %v1469
  %v1543 = vmax.f32 %v1515, %v1539
  %v1544 = vmax.f32 %v1516, %v1540
  %v1545 = vmax.f32 %v1517, %v1541
  %v1546 = vmax.f32 %v1518, %v1542
  %1547 = vrot.lane.b32.xlu0 %v663, 95
  %v1548 = vpop.permute.xlu0 %1547
  %1549 = vrot.lane.b32.xlu0 %v664, 95
  %v1550 = vpop.permute.xlu0 %1549
  %1551 = vrot.lane.b32.xlu0 %v665, 95
  %v1552 = vpop.permute.xlu0 %1551
  %1553 = vrot.lane.b32.xlu0 %v666, 95
  %v1554 = vpop.permute.xlu0 %1553
  %vm1555 = vcmp.lt.s32.totalorder %v181, 95
  %v1556 = vsel %vm1555, %v1552, %v1554
  %v1557 = vsel %vm1555, %v1550, %v1552
  %v1558 = vsel %vm1555, %v1548, %v1550
  %v1559 = vsel %vm1555, %v1554, %v1548
  %1560 = vset.pattern.permute.xlu0 23
  %1561 = vperm.xlu0 %1560, %v684
  %v1562 = vpop.permute.xlu0 %1561
  %v1564 = vsub.f32 %v1558, %v1562
  %v1565 = vsub.f32 %v1557, %v1562
  %v1566 = vsub.f32 %v1556, %v1562
  %v1567 = vsub.f32 %v1559, %v1562
  %v1568 = vsub.f32 %v1564, %v1457
  %v1569 = vsub.f32 %v1565, %v1461
  %v1570 = vsub.f32 %v1566, %v1465
  %v1571 = vsub.f32 %v1567, %v1469
  %v1572 = vsub.f32 %v1568, %v859
  %v1573 = vsub.f32 %v1569, %v863
  %v1574 = vsub.f32 %v1570, %v867
  %v1575 = vsub.f32 %v1571, %v871
  %v1576 = vmax.f32 %v1543, %v1572
  %v1577 = vmax.f32 %v1544, %v1573
  %v1578 = vmax.f32 %v1545, %v1574
  %v1579 = vmax.f32 %v1546, %v1575
  %1580 = vrot.lane.b32.xlu0 %v663, 94
  %v1581 = vpop.permute.xlu0 %1580
  %1582 = vrot.lane.b32.xlu0 %v664, 94
  %v1583 = vpop.permute.xlu0 %1582
  %1584 = vrot.lane.b32.xlu0 %v665, 94
  %v1585 = vpop.permute.xlu0 %1584
  %1586 = vrot.lane.b32.xlu0 %v666, 94
  %v1587 = vpop.permute.xlu0 %1586
  %vm1588 = vcmp.lt.s32.totalorder %v181, 94
  %v1589 = vsel %vm1588, %v1585, %v1587
  %v1590 = vsel %vm1588, %v1583, %v1585
  %v1591 = vsel %vm1588, %v1581, %v1583
  %v1592 = vsel %vm1588, %v1587, %v1581
  %1593 = vset.pattern.permute.xlu0 24
  %1594 = vperm.xlu0 %1593, %v684
  %v1595 = vpop.permute.xlu0 %1594
  %v1597 = vsub.f32 %v1591, %v1595
  %v1598 = vsub.f32 %v1590, %v1595
  %v1599 = vsub.f32 %v1589, %v1595
  %v1600 = vsub.f32 %v1592, %v1595
  %v1601 = vsub.f32 %v1597, %v1457
  %v1602 = vsub.f32 %v1598, %v1461
  %v1603 = vsub.f32 %v1599, %v1465
  %v1604 = vsub.f32 %v1600, %v1469
  %v1605 = vsub.f32 %v1601, %v915
  %v1606 = vsub.f32 %v1602, %v919
  %v1607 = vsub.f32 %v1603, %v923
  %v1608 = vsub.f32 %v1604, %v927
  %v1609 = vmax.f32 %v1576, %v1605
  %v1610 = vmax.f32 %v1577, %v1606
  %v1611 = vmax.f32 %v1578, %v1607
  %v1612 = vmax.f32 %v1579, %v1608
  %v1613 = vlaneseq
  %v1614 = vshrl.u32 %v1613, 7
  %v1615 = vsub.s32 0, %v1614
  %v1616 = vrot.slane %v1609, %v1615
  %v1617 = vlaneseq
  %v1618 = vshrl.u32 %v1617, 7
  %v1619 = vsub.s32 0, %v1618
  %v1620 = vrot.slane %v1610, %v1619
  %v1621 = vlaneseq
  %v1622 = vshrl.u32 %v1621, 7
  %v1623 = vsub.s32 0, %v1622
  %v1624 = vrot.slane %v1611, %v1623
  %v1625 = vlaneseq
  %v1626 = vshrl.u32 %v1625, 7
  %v1627 = vsub.s32 0, %v1626
  %v1628 = vrot.slane %v1612, %v1627
  %v1629 = vld [vmem:[%s13] sm:$0xff]
  %1631 = vset.pattern.permute.xlu0 0
  %1632 = vperm.xlu0 %1631, %v1629
  %v1633 = vpop.permute.xlu0 %1632
  %v1635 = vmul.f32 %v1616, %v1633
  %v1636 = vmul.f32 %v1620, %v1633
  %v1637 = vmul.f32 %v1624, %v1633
  %v1638 = vmul.f32 %v1628, %v1633
  %v1639 = vadd.f32 %v1635, 0.0
  %v1640 = vadd.f32 %v1636, 0.0
  %v1641 = vadd.f32 %v1637, 0.0
  %v1642 = vadd.f32 %v1638, 0.0
  %v1643 = vlaneseq
  %v1644 = vshrl.u32 %v1643, 7
  %v1645 = vsub.s32 1, %v1644
  %v1646 = vrot.slane %v1609, %v1645
  %v1647 = vlaneseq
  %v1648 = vshrl.u32 %v1647, 7
  %v1649 = vsub.s32 1, %v1648
  %v1650 = vrot.slane %v1610, %v1649
  %v1651 = vlaneseq
  %v1652 = vshrl.u32 %v1651, 7
  %v1653 = vsub.s32 1, %v1652
  %v1654 = vrot.slane %v1611, %v1653
  %v1655 = vlaneseq
  %v1656 = vshrl.u32 %v1655, 7
  %v1657 = vsub.s32 1, %v1656
  %v1658 = vrot.slane %v1612, %v1657
  %1659 = vset.pattern.permute.xlu0 1
  %1660 = vperm.xlu0 %1659, %v1629
  %v1661 = vpop.permute.xlu0 %1660
  %v1663 = vmul.f32 %v1646, %v1661
  %v1664 = vmul.f32 %v1650, %v1661
  %v1665 = vmul.f32 %v1654, %v1661
  %v1666 = vmul.f32 %v1658, %v1661
  %v1667 = vadd.f32 %v1639, %v1663
  %v1668 = vadd.f32 %v1640, %v1664
  %v1669 = vadd.f32 %v1641, %v1665
  %v1670 = vadd.f32 %v1642, %v1666
  %v1671 = vlaneseq
  %v1672 = vshrl.u32 %v1671, 7
  %v1673 = vsub.s32 2, %v1672
  %v1674 = vrot.slane %v1609, %v1673
  %v1675 = vlaneseq
  %v1676 = vshrl.u32 %v1675, 7
  %v1677 = vsub.s32 2, %v1676
  %v1678 = vrot.slane %v1610, %v1677
  %v1679 = vlaneseq
  %v1680 = vshrl.u32 %v1679, 7
  %v1681 = vsub.s32 2, %v1680
  %v1682 = vrot.slane %v1611, %v1681
  %v1683 = vlaneseq
  %v1684 = vshrl.u32 %v1683, 7
  %v1685 = vsub.s32 2, %v1684
  %v1686 = vrot.slane %v1612, %v1685
  %1687 = vset.pattern.permute.xlu0 2
  %1688 = vperm.xlu0 %1687, %v1629
  %v1689 = vpop.permute.xlu0 %1688
  %v1691 = vmul.f32 %v1674, %v1689
  %v1692 = vmul.f32 %v1678, %v1689
  %v1693 = vmul.f32 %v1682, %v1689
  %v1694 = vmul.f32 %v1686, %v1689
  %v1695 = vadd.f32 %v1667, %v1691
  %v1696 = vadd.f32 %v1668, %v1692
  %v1697 = vadd.f32 %v1669, %v1693
  %v1698 = vadd.f32 %v1670, %v1694
  %v1699 = vld [vmem:[%s15] sm:$0xff]
  %1701 = vset.pattern.permute.xlu0 0
  %1702 = vperm.xlu0 %1701, %v1699
  %v1703 = vpop.permute.xlu0 %1702
  %v1705 = vadd.f32 %v1695, %v1703
  %v1706 = vadd.f32 %v1696, %v1703
  %v1707 = vadd.f32 %v1697, %v1703
  %v1708 = vadd.f32 %v1698, %v1703
  %v1709 = vadd.f32 %v1705, %v1706
  %v1710 = vadd.f32 %v1709, %v1707
  %v1711 = vadd.f32 %v1710, %v1708
  %1712 = vadd.xlane.f32.xlu0 %v1711
  %v1713 = vpop.xlane.xlu0 %1712
  %v1714 = vmul.f32 %v1713, 0.001953125
  %v1715 = vsub.f32 %v1705, %v1714
  %v1716 = vsub.f32 %v1706, %v1714
  %v1717 = vsub.f32 %v1707, %v1714
  %v1718 = vsub.f32 %v1708, %v1714
  %v1719 = vmul.f32 %v1715, %v1715
  %v1720 = vmul.f32 %v1716, %v1716
  %v1721 = vmul.f32 %v1717, %v1717
  %v1722 = vmul.f32 %v1718, %v1718
  %v1723 = vadd.f32 %v1719, %v1720
  %v1724 = vadd.f32 %v1723, %v1721
  %v1725 = vadd.f32 %v1724, %v1722
  %1726 = vadd.xlane.f32.xlu0 %v1725
  %v1727 = vpop.xlane.xlu0 %1726
  %v1728 = vmul.f32 %v1727, 0.001953125
  %v1729 = vld [vmem:[%s17] sm:$0xff]
  %1731 = vset.pattern.permute.xlu0 0
  %1732 = vperm.xlu0 %1731, %v1729
  %v1733 = vpop.permute.xlu0 %1732
  %v1735 = vmul.f32 %v1733, %v1715
  %v1736 = vmul.f32 %v1733, %v1716
  %v1737 = vmul.f32 %v1733, %v1717
  %v1738 = vmul.f32 %v1733, %v1718
  %v1739 = vadd.f32 %v1728, 1e-05
  %v1740 = vrsqrt.pop %v1739
  %v1741 = vmul.f32 %v1735, %v1740
  %v1742 = vmul.f32 %v1736, %v1740
  %v1743 = vmul.f32 %v1737, %v1740
  %v1744 = vmul.f32 %v1738, %v1740
  %v1745 = vld [vmem:[%s19] sm:$0xff]
  %1747 = vset.pattern.permute.xlu0 0
  %1748 = vperm.xlu0 %1747, %v1745
  %v1749 = vpop.permute.xlu0 %1748
  %v1751 = vadd.f32 %v1741, %v1749
  %v1752 = vadd.f32 %v1742, %v1749
  %v1753 = vadd.f32 %v1743, %v1749
  %v1754 = vadd.f32 %v1744, %v1749
  %1755 = vrot.lane.b32.xlu0 %v1751, 2
  %v1756 = vpop.permute.xlu0 %1755
  %1757 = vrot.lane.b32.xlu0 %v1752, 2
  %v1758 = vpop.permute.xlu0 %1757
  %1759 = vrot.lane.b32.xlu0 %v1753, 2
  %v1760 = vpop.permute.xlu0 %1759
  %1761 = vrot.lane.b32.xlu0 %v1754, 2
  %v1762 = vpop.permute.xlu0 %1761
  %v1763 = vsel %vm182, %v1760, %v1762
  %v1764 = vsel %vm182, %v1758, %v1760
  %v1765 = vsel %vm182, %v1756, %v1758
  %v1766 = vsel %vm182, %v1762, %v1756
  %v1767 = vmul.f32 %v1766, %v197
  %v1768 = vmul.f32 %v1765, %v201
  %v1769 = vmul.f32 %v1764, %v205
  %v1770 = vmul.f32 %v1763, %v209
  %v1771 = vld [vmem:[%s23] sm:$0xff]
  %1773 = vset.pattern.permute.xlu0 0
  %1774 = vperm.xlu0 %1773, %v1771
  %v1775 = vpop.permute.xlu0 %1774
  %v1777 = vmul.f32 %v1767, %v1775
  %v1778 = vmul.f32 %v1768, %v1775
  %v1779 = vmul.f32 %v1769, %v1775
  %v1780 = vmul.f32 %v1770, %v1775
  %v1781 = vadd.f32 %v1777, 0.0
  %v1782 = vadd.f32 %v1778, 0.0
  %v1783 = vadd.f32 %v1779, 0.0
  %v1784 = vadd.f32 %v1780, 0.0
  %1785 = vrot.lane.b32.xlu0 %v1751, 1
  %v1786 = vpop.permute.xlu0 %1785
  %1787 = vrot.lane.b32.xlu0 %v1752, 1
  %v1788 = vpop.permute.xlu0 %1787
  %1789 = vrot.lane.b32.xlu0 %v1753, 1
  %v1790 = vpop.permute.xlu0 %1789
  %1791 = vrot.lane.b32.xlu0 %v1754, 1
  %v1792 = vpop.permute.xlu0 %1791
  %v1793 = vsel %vm240, %v1790, %v1792
  %v1794 = vsel %vm240, %v1788, %v1790
  %v1795 = vsel %vm240, %v1786, %v1788
  %v1796 = vsel %vm240, %v1792, %v1786
  %v1797 = vmul.f32 %v1796, %v255
  %v1798 = vmul.f32 %v1795, %v259
  %v1799 = vmul.f32 %v1794, %v263
  %v1800 = vmul.f32 %v1793, %v267
  %1801 = vset.pattern.permute.xlu0 1
  %1802 = vperm.xlu0 %1801, %v1771
  %v1803 = vpop.permute.xlu0 %1802
  %v1805 = vmul.f32 %v1797, %v1803
  %v1806 = vmul.f32 %v1798, %v1803
  %v1807 = vmul.f32 %v1799, %v1803
  %v1808 = vmul.f32 %v1800, %v1803
  %v1809 = vadd.f32 %v1781, %v1805
  %v1810 = vadd.f32 %v1782, %v1806
  %v1811 = vadd.f32 %v1783, %v1807
  %v1812 = vadd.f32 %v1784, %v1808
  %1813 = vset.pattern.permute.xlu0 2
  %1814 = vperm.xlu0 %1813, %v1771
  %v1815 = vpop.permute.xlu0 %1814
  %v1817 = vmul.f32 %v1751, %v1815
  %v1818 = vmul.f32 %v1752, %v1815
  %v1819 = vmul.f32 %v1753, %v1815
  %v1820 = vmul.f32 %v1754, %v1815
  %v1821 = vadd.f32 %v1809, %v1817
  %v1822 = vadd.f32 %v1810, %v1818
  %v1823 = vadd.f32 %v1811, %v1819
  %v1824 = vadd.f32 %v1812, %v1820
  %1825 = vrot.lane.b32.xlu0 %v1751, 127
  %v1826 = vpop.permute.xlu0 %1825
  %1827 = vrot.lane.b32.xlu0 %v1752, 127
  %v1828 = vpop.permute.xlu0 %1827
  %1829 = vrot.lane.b32.xlu0 %v1753, 127
  %v1830 = vpop.permute.xlu0 %1829
  %1831 = vrot.lane.b32.xlu0 %v1754, 127
  %v1832 = vpop.permute.xlu0 %1831
  %v1833 = vsel %vm321, %v1830, %v1832
  %v1834 = vsel %vm321, %v1828, %v1830
  %v1835 = vsel %vm321, %v1826, %v1828
  %v1836 = vsel %vm321, %v1832, %v1826
  %v1837 = vmul.f32 %v1835, %v336
  %v1838 = vmul.f32 %v1834, %v340
  %v1839 = vmul.f32 %v1833, %v344
  %v1840 = vmul.f32 %v1836, %v348
  %1841 = vset.pattern.permute.xlu0 3
  %1842 = vperm.xlu0 %1841, %v1771
  %v1843 = vpop.permute.xlu0 %1842
  %v1845 = vmul.f32 %v1837, %v1843
  %v1846 = vmul.f32 %v1838, %v1843
  %v1847 = vmul.f32 %v1839, %v1843
  %v1848 = vmul.f32 %v1840, %v1843
  %v1849 = vadd.f32 %v1821, %v1845
  %v1850 = vadd.f32 %v1822, %v1846
  %v1851 = vadd.f32 %v1823, %v1847
  %v1852 = vadd.f32 %v1824, %v1848
  %1853 = vrot.lane.b32.xlu0 %v1751, 126
  %v1854 = vpop.permute.xlu0 %1853
  %1855 = vrot.lane.b32.xlu0 %v1752, 126
  %v1856 = vpop.permute.xlu0 %1855
  %1857 = vrot.lane.b32.xlu0 %v1753, 126
  %v1858 = vpop.permute.xlu0 %1857
  %1859 = vrot.lane.b32.xlu0 %v1754, 126
  %v1860 = vpop.permute.xlu0 %1859
  %v1861 = vsel %vm379, %v1858, %v1860
  %v1862 = vsel %vm379, %v1856, %v1858
  %v1863 = vsel %vm379, %v1854, %v1856
  %v1864 = vsel %vm379, %v1860, %v1854
  %v1865 = vmul.f32 %v1863, %v394
  %v1866 = vmul.f32 %v1862, %v398
  %v1867 = vmul.f32 %v1861, %v402
  %v1868 = vmul.f32 %v1864, %v406
  %1869 = vset.pattern.permute.xlu0 4
  %1870 = vperm.xlu0 %1869, %v1771
  %v1871 = vpop.permute.xlu0 %1870
  %v1873 = vmul.f32 %v1865, %v1871
  %v1874 = vmul.f32 %v1866, %v1871
  %v1875 = vmul.f32 %v1867, %v1871
  %v1876 = vmul.f32 %v1868, %v1871
  %v1877 = vadd.f32 %v1849, %v1873
  %v1878 = vadd.f32 %v1850, %v1874
  %v1879 = vadd.f32 %v1851, %v1875
  %v1880 = vadd.f32 %v1852, %v1876
  %1881 = vrot.lane.b32.xlu0 %v1877, 32
  %v1882 = vpop.permute.xlu0 %1881
  %1883 = vrot.lane.b32.xlu0 %v1878, 32
  %v1884 = vpop.permute.xlu0 %1883
  %1885 = vrot.lane.b32.xlu0 %v1879, 32
  %v1886 = vpop.permute.xlu0 %1885
  %1887 = vrot.lane.b32.xlu0 %v1880, 32
  %v1888 = vpop.permute.xlu0 %1887
  %v1889 = vsel %vm437, %v1886, %v1888
  %v1890 = vsel %vm437, %v1884, %v1886
  %v1891 = vsel %vm437, %v1882, %v1884
  %v1892 = vsel %vm437, %v1888, %v1882
  %v1893 = vmul.f32 %v1892, %v452
  %v1894 = vmul.f32 %v1891, %v456
  %v1895 = vmul.f32 %v1890, %v460
  %v1896 = vmul.f32 %v1889, %v464
  %v1897 = vld [vmem:[%s21] sm:$0xff]
  %1899 = vset.pattern.permute.xlu0 0
  %1900 = vperm.xlu0 %1899, %v1897
  %v1901 = vpop.permute.xlu0 %1900
  %v1903 = vmul.f32 %v1893, %v1901
  %v1904 = vmul.f32 %v1894, %v1901
  %v1905 = vmul.f32 %v1895, %v1901
  %v1906 = vmul.f32 %v1896, %v1901
  %v1907 = vadd.f32 %v1903, 0.0
  %v1908 = vadd.f32 %v1904, 0.0
  %v1909 = vadd.f32 %v1905, 0.0
  %v1910 = vadd.f32 %v1906, 0.0
  %1911 = vrot.lane.b32.xlu0 %v1877, 16
  %v1912 = vpop.permute.xlu0 %1911
  %1913 = vrot.lane.b32.xlu0 %v1878, 16
  %v1914 = vpop.permute.xlu0 %1913
  %1915 = vrot.lane.b32.xlu0 %v1879, 16
  %v1916 = vpop.permute.xlu0 %1915
  %1917 = vrot.lane.b32.xlu0 %v1880, 16
  %v1918 = vpop.permute.xlu0 %1917
  %v1919 = vsel %vm495, %v1916, %v1918
  %v1920 = vsel %vm495, %v1914, %v1916
  %v1921 = vsel %vm495, %v1912, %v1914
  %v1922 = vsel %vm495, %v1918, %v1912
  %v1923 = vmul.f32 %v1922, %v510
  %v1924 = vmul.f32 %v1921, %v514
  %v1925 = vmul.f32 %v1920, %v518
  %v1926 = vmul.f32 %v1919, %v522
  %1927 = vset.pattern.permute.xlu0 1
  %1928 = vperm.xlu0 %1927, %v1897
  %v1929 = vpop.permute.xlu0 %1928
  %v1931 = vmul.f32 %v1923, %v1929
  %v1932 = vmul.f32 %v1924, %v1929
  %v1933 = vmul.f32 %v1925, %v1929
  %v1934 = vmul.f32 %v1926, %v1929
  %v1935 = vadd.f32 %v1907, %v1931
  %v1936 = vadd.f32 %v1908, %v1932
  %v1937 = vadd.f32 %v1909, %v1933
  %v1938 = vadd.f32 %v1910, %v1934
  %1939 = vset.pattern.permute.xlu0 2
  %1940 = vperm.xlu0 %1939, %v1897
  %v1941 = vpop.permute.xlu0 %1940
  %v1943 = vmul.f32 %v1877, %v1941
  %v1944 = vmul.f32 %v1878, %v1941
  %v1945 = vmul.f32 %v1879, %v1941
  %v1946 = vmul.f32 %v1880, %v1941
  %v1947 = vadd.f32 %v1935, %v1943
  %v1948 = vadd.f32 %v1936, %v1944
  %v1949 = vadd.f32 %v1937, %v1945
  %v1950 = vadd.f32 %v1938, %v1946
  %1951 = vrot.lane.b32.xlu0 %v1877, 112
  %v1952 = vpop.permute.xlu0 %1951
  %1953 = vrot.lane.b32.xlu0 %v1878, 112
  %v1954 = vpop.permute.xlu0 %1953
  %1955 = vrot.lane.b32.xlu0 %v1879, 112
  %v1956 = vpop.permute.xlu0 %1955
  %1957 = vrot.lane.b32.xlu0 %v1880, 112
  %v1958 = vpop.permute.xlu0 %1957
  %v1959 = vsel %vm563, %v1956, %v1958
  %v1960 = vsel %vm563, %v1954, %v1956
  %v1961 = vsel %vm563, %v1952, %v1954
  %v1962 = vsel %vm563, %v1958, %v1952
  %v1963 = vmul.f32 %v1961, %v578
  %v1964 = vmul.f32 %v1960, %v582
  %v1965 = vmul.f32 %v1959, %v586
  %v1966 = vmul.f32 %v1962, %v590
  %1967 = vset.pattern.permute.xlu0 3
  %1968 = vperm.xlu0 %1967, %v1897
  %v1969 = vpop.permute.xlu0 %1968
  %v1971 = vmul.f32 %v1963, %v1969
  %v1972 = vmul.f32 %v1964, %v1969
  %v1973 = vmul.f32 %v1965, %v1969
  %v1974 = vmul.f32 %v1966, %v1969
  %v1975 = vadd.f32 %v1947, %v1971
  %v1976 = vadd.f32 %v1948, %v1972
  %v1977 = vadd.f32 %v1949, %v1973
  %v1978 = vadd.f32 %v1950, %v1974
  %1979 = vrot.lane.b32.xlu0 %v1877, 96
  %v1980 = vpop.permute.xlu0 %1979
  %1981 = vrot.lane.b32.xlu0 %v1878, 96
  %v1982 = vpop.permute.xlu0 %1981
  %1983 = vrot.lane.b32.xlu0 %v1879, 96
  %v1984 = vpop.permute.xlu0 %1983
  %1985 = vrot.lane.b32.xlu0 %v1880, 96
  %v1986 = vpop.permute.xlu0 %1985
  %v1987 = vsel %vm619, %v1984, %v1986
  %v1988 = vsel %vm619, %v1982, %v1984
  %v1989 = vsel %vm619, %v1980, %v1982
  %v1990 = vsel %vm619, %v1986, %v1980
  %v1991 = vmul.f32 %v1989, %v634
  %v1992 = vmul.f32 %v1988, %v638
  %v1993 = vmul.f32 %v1987, %v642
  %v1994 = vmul.f32 %v1990, %v646
  %1995 = vset.pattern.permute.xlu0 4
  %1996 = vperm.xlu0 %1995, %v1897
  %v1997 = vpop.permute.xlu0 %1996
  %v1999 = vmul.f32 %v1991, %v1997
  %v2000 = vmul.f32 %v1992, %v1997
  %v2001 = vmul.f32 %v1993, %v1997
  %v2002 = vmul.f32 %v1994, %v1997
  %v2003 = vadd.f32 %v1975, %v1999
  %v2004 = vadd.f32 %v1976, %v2000
  %v2005 = vadd.f32 %v1977, %v2001
  %v2006 = vadd.f32 %v1978, %v2002
  %2007 = vrot.lane.b32.xlu0 %v2003, 34
  %v2008 = vpop.permute.xlu0 %2007
  %2009 = vrot.lane.b32.xlu0 %v2004, 34
  %v2010 = vpop.permute.xlu0 %2009
  %2011 = vrot.lane.b32.xlu0 %v2005, 34
  %v2012 = vpop.permute.xlu0 %2011
  %2013 = vrot.lane.b32.xlu0 %v2006, 34
  %v2014 = vpop.permute.xlu0 %2013
  %v2015 = vsel %vm679, %v2012, %v2014
  %v2016 = vsel %vm679, %v2010, %v2012
  %v2017 = vsel %vm679, %v2008, %v2010
  %v2018 = vsel %vm679, %v2014, %v2008
  %v2019 = vld [vmem:[%s25] sm:$0xff]
  %2021 = vset.pattern.permute.xlu0 0
  %2022 = vperm.xlu0 %2021, %v2019
  %v2023 = vpop.permute.xlu0 %2022
  %v2025 = vsub.f32 %v2018, %v2023
  %v2026 = vsub.f32 %v2017, %v2023
  %v2027 = vsub.f32 %v2016, %v2023
  %v2028 = vsub.f32 %v2015, %v2023
  %v2029 = vsub.f32 %v2025, %v698
  %v2030 = vsub.f32 %v2026, %v702
  %v2031 = vsub.f32 %v2027, %v706
  %v2032 = vsub.f32 %v2028, %v710
  %v2033 = vsub.f32 %v2029, %v723
  %v2034 = vsub.f32 %v2030, %v727
  %v2035 = vsub.f32 %v2031, %v731
  %v2036 = vsub.f32 %v2032, %v735
  %2037 = vrot.lane.b32.xlu0 %v2003, 33
  %v2038 = vpop.permute.xlu0 %2037
  %2039 = vrot.lane.b32.xlu0 %v2004, 33
  %v2040 = vpop.permute.xlu0 %2039
  %2041 = vrot.lane.b32.xlu0 %v2005, 33
  %v2042 = vpop.permute.xlu0 %2041
  %2043 = vrot.lane.b32.xlu0 %v2006, 33
  %v2044 = vpop.permute.xlu0 %2043
  %v2045 = vsel %vm754, %v2042, %v2044
  %v2046 = vsel %vm754, %v2040, %v2042
  %v2047 = vsel %vm754, %v2038, %v2040
  %v2048 = vsel %vm754, %v2044, %v2038
  %2049 = vset.pattern.permute.xlu0 1
  %2050 = vperm.xlu0 %2049, %v2019
  %v2051 = vpop.permute.xlu0 %2050
  %v2053 = vsub.f32 %v2048, %v2051
  %v2054 = vsub.f32 %v2047, %v2051
  %v2055 = vsub.f32 %v2046, %v2051
  %v2056 = vsub.f32 %v2045, %v2051
  %v2057 = vsub.f32 %v2053, %v698
  %v2058 = vsub.f32 %v2054, %v702
  %v2059 = vsub.f32 %v2055, %v706
  %v2060 = vsub.f32 %v2056, %v710
  %v2061 = vsub.f32 %v2057, %v775
  %v2062 = vsub.f32 %v2058, %v779
  %v2063 = vsub.f32 %v2059, %v783
  %v2064 = vsub.f32 %v2060, %v787
  %v2065 = vmax.f32 %v2033, %v2061
  %v2066 = vmax.f32 %v2034, %v2062
  %v2067 = vmax.f32 %v2035, %v2063
  %v2068 = vmax.f32 %v2036, %v2064
  %2069 = vrot.lane.b32.xlu0 %v2003, 32
  %v2070 = vpop.permute.xlu0 %2069
  %2071 = vrot.lane.b32.xlu0 %v2004, 32
  %v2072 = vpop.permute.xlu0 %2071
  %2073 = vrot.lane.b32.xlu0 %v2005, 32
  %v2074 = vpop.permute.xlu0 %2073
  %2075 = vrot.lane.b32.xlu0 %v2006, 32
  %v2076 = vpop.permute.xlu0 %2075
  %v2077 = vsel %vm437, %v2074, %v2076
  %v2078 = vsel %vm437, %v2072, %v2074
  %v2079 = vsel %vm437, %v2070, %v2072
  %v2080 = vsel %vm437, %v2076, %v2070
  %2081 = vset.pattern.permute.xlu0 2
  %2082 = vperm.xlu0 %2081, %v2019
  %v2083 = vpop.permute.xlu0 %2082
  %v2085 = vsub.f32 %v2080, %v2083
  %v2086 = vsub.f32 %v2079, %v2083
  %v2087 = vsub.f32 %v2078, %v2083
  %v2088 = vsub.f32 %v2077, %v2083
  %v2089 = vsub.f32 %v2085, %v698
  %v2090 = vsub.f32 %v2086, %v702
  %v2091 = vsub.f32 %v2087, %v706
  %v2092 = vsub.f32 %v2088, %v710
  %v2093 = vmax.f32 %v2065, %v2089
  %v2094 = vmax.f32 %v2066, %v2090
  %v2095 = vmax.f32 %v2067, %v2091
  %v2096 = vmax.f32 %v2068, %v2092
  %2097 = vrot.lane.b32.xlu0 %v2003, 31
  %v2098 = vpop.permute.xlu0 %2097
  %2099 = vrot.lane.b32.xlu0 %v2004, 31
  %v2100 = vpop.permute.xlu0 %2099
  %2101 = vrot.lane.b32.xlu0 %v2005, 31
  %v2102 = vpop.permute.xlu0 %2101
  %2103 = vrot.lane.b32.xlu0 %v2006, 31
  %v2104 = vpop.permute.xlu0 %2103
  %v2105 = vsel %vm838, %v2102, %v2104
  %v2106 = vsel %vm838, %v2100, %v2102
  %v2107 = vsel %vm838, %v2098, %v2100
  %v2108 = vsel %vm838, %v2104, %v2098
  %2109 = vset.pattern.permute.xlu0 3
  %2110 = vperm.xlu0 %2109, %v2019
  %v2111 = vpop.permute.xlu0 %2110
  %v2113 = vsub.f32 %v2108, %v2111
  %v2114 = vsub.f32 %v2107, %v2111
  %v2115 = vsub.f32 %v2106, %v2111
  %v2116 = vsub.f32 %v2105, %v2111
  %v2117 = vsub.f32 %v2113, %v698
  %v2118 = vsub.f32 %v2114, %v702
  %v2119 = vsub.f32 %v2115, %v706
  %v2120 = vsub.f32 %v2116, %v710
  %v2121 = vsub.f32 %v2117, %v859
  %v2122 = vsub.f32 %v2118, %v863
  %v2123 = vsub.f32 %v2119, %v867
  %v2124 = vsub.f32 %v2120, %v871
  %v2125 = vmax.f32 %v2093, %v2121
  %v2126 = vmax.f32 %v2094, %v2122
  %v2127 = vmax.f32 %v2095, %v2123
  %v2128 = vmax.f32 %v2096, %v2124
  %2129 = vrot.lane.b32.xlu0 %v2003, 30
  %v2130 = vpop.permute.xlu0 %2129
  %2131 = vrot.lane.b32.xlu0 %v2004, 30
  %v2132 = vpop.permute.xlu0 %2131
  %2133 = vrot.lane.b32.xlu0 %v2005, 30
  %v2134 = vpop.permute.xlu0 %2133
  %2135 = vrot.lane.b32.xlu0 %v2006, 30
  %v2136 = vpop.permute.xlu0 %2135
  %v2137 = vsel %vm894, %v2134, %v2136
  %v2138 = vsel %vm894, %v2132, %v2134
  %v2139 = vsel %vm894, %v2130, %v2132
  %v2140 = vsel %vm894, %v2136, %v2130
  %2141 = vset.pattern.permute.xlu0 4
  %2142 = vperm.xlu0 %2141, %v2019
  %v2143 = vpop.permute.xlu0 %2142
  %v2145 = vsub.f32 %v2140, %v2143
  %v2146 = vsub.f32 %v2139, %v2143
  %v2147 = vsub.f32 %v2138, %v2143
  %v2148 = vsub.f32 %v2137, %v2143
  %v2149 = vsub.f32 %v2145, %v698
  %v2150 = vsub.f32 %v2146, %v702
  %v2151 = vsub.f32 %v2147, %v706
  %v2152 = vsub.f32 %v2148, %v710
  %v2153 = vsub.f32 %v2149, %v915
  %v2154 = vsub.f32 %v2150, %v919
  %v2155 = vsub.f32 %v2151, %v923
  %v2156 = vsub.f32 %v2152, %v927
  %v2157 = vmax.f32 %v2125, %v2153
  %v2158 = vmax.f32 %v2126, %v2154
  %v2159 = vmax.f32 %v2127, %v2155
  %v2160 = vmax.f32 %v2128, %v2156
  %2161 = vrot.lane.b32.xlu0 %v2003, 18
  %v2162 = vpop.permute.xlu0 %2161
  %2163 = vrot.lane.b32.xlu0 %v2004, 18
  %v2164 = vpop.permute.xlu0 %2163
  %2165 = vrot.lane.b32.xlu0 %v2005, 18
  %v2166 = vpop.permute.xlu0 %2165
  %2167 = vrot.lane.b32.xlu0 %v2006, 18
  %v2168 = vpop.permute.xlu0 %2167
  %v2169 = vsel %vm950, %v2166, %v2168
  %v2170 = vsel %vm950, %v2164, %v2166
  %v2171 = vsel %vm950, %v2162, %v2164
  %v2172 = vsel %vm950, %v2168, %v2162
  %2173 = vset.pattern.permute.xlu0 5
  %2174 = vperm.xlu0 %2173, %v2019
  %v2175 = vpop.permute.xlu0 %2174
  %v2177 = vsub.f32 %v2172, %v2175
  %v2178 = vsub.f32 %v2171, %v2175
  %v2179 = vsub.f32 %v2170, %v2175
  %v2180 = vsub.f32 %v2169, %v2175
  %v2181 = vsub.f32 %v2177, %v967
  %v2182 = vsub.f32 %v2178, %v971
  %v2183 = vsub.f32 %v2179, %v975
  %v2184 = vsub.f32 %v2180, %v979
  %v2185 = vsub.f32 %v2181, %v723
  %v2186 = vsub.f32 %v2182, %v727
  %v2187 = vsub.f32 %v2183, %v731
  %v2188 = vsub.f32 %v2184, %v735
  %v2189 = vmax.f32 %v2157, %v2185
  %v2190 = vmax.f32 %v2158, %v2186
  %v2191 = vmax.f32 %v2159, %v2187
  %v2192 = vmax.f32 %v2160, %v2188
  %2193 = vrot.lane.b32.xlu0 %v2003, 17
  %v2194 = vpop.permute.xlu0 %2193
  %2195 = vrot.lane.b32.xlu0 %v2004, 17
  %v2196 = vpop.permute.xlu0 %2195
  %2197 = vrot.lane.b32.xlu0 %v2005, 17
  %v2198 = vpop.permute.xlu0 %2197
  %2199 = vrot.lane.b32.xlu0 %v2006, 17
  %v2200 = vpop.permute.xlu0 %2199
  %v2201 = vsel %vm1004, %v2198, %v2200
  %v2202 = vsel %vm1004, %v2196, %v2198
  %v2203 = vsel %vm1004, %v2194, %v2196
  %v2204 = vsel %vm1004, %v2200, %v2194
  %2205 = vset.pattern.permute.xlu0 6
  %2206 = vperm.xlu0 %2205, %v2019
  %v2207 = vpop.permute.xlu0 %2206
  %v2209 = vsub.f32 %v2204, %v2207
  %v2210 = vsub.f32 %v2203, %v2207
  %v2211 = vsub.f32 %v2202, %v2207
  %v2212 = vsub.f32 %v2201, %v2207
  %v2213 = vsub.f32 %v2209, %v967
  %v2214 = vsub.f32 %v2210, %v971
  %v2215 = vsub.f32 %v2211, %v975
  %v2216 = vsub.f32 %v2212, %v979
  %v2217 = vsub.f32 %v2213, %v775
  %v2218 = vsub.f32 %v2214, %v779
  %v2219 = vsub.f32 %v2215, %v783
  %v2220 = vsub.f32 %v2216, %v787
  %v2221 = vmax.f32 %v2189, %v2217
  %v2222 = vmax.f32 %v2190, %v2218
  %v2223 = vmax.f32 %v2191, %v2219
  %v2224 = vmax.f32 %v2192, %v2220
  %2225 = vrot.lane.b32.xlu0 %v2003, 16
  %v2226 = vpop.permute.xlu0 %2225
  %2227 = vrot.lane.b32.xlu0 %v2004, 16
  %v2228 = vpop.permute.xlu0 %2227
  %2229 = vrot.lane.b32.xlu0 %v2005, 16
  %v2230 = vpop.permute.xlu0 %2229
  %2231 = vrot.lane.b32.xlu0 %v2006, 16
  %v2232 = vpop.permute.xlu0 %2231
  %v2233 = vsel %vm495, %v2230, %v2232
  %v2234 = vsel %vm495, %v2228, %v2230
  %v2235 = vsel %vm495, %v2226, %v2228
  %v2236 = vsel %vm495, %v2232, %v2226
  %2237 = vset.pattern.permute.xlu0 7
  %2238 = vperm.xlu0 %2237, %v2019
  %v2239 = vpop.permute.xlu0 %2238
  %v2241 = vsub.f32 %v2236, %v2239
  %v2242 = vsub.f32 %v2235, %v2239
  %v2243 = vsub.f32 %v2234, %v2239
  %v2244 = vsub.f32 %v2233, %v2239
  %v2245 = vsub.f32 %v2241, %v967
  %v2246 = vsub.f32 %v2242, %v971
  %v2247 = vsub.f32 %v2243, %v975
  %v2248 = vsub.f32 %v2244, %v979
  %v2249 = vmax.f32 %v2221, %v2245
  %v2250 = vmax.f32 %v2222, %v2246
  %v2251 = vmax.f32 %v2223, %v2247
  %v2252 = vmax.f32 %v2224, %v2248
  %2253 = vrot.lane.b32.xlu0 %v2003, 15
  %v2254 = vpop.permute.xlu0 %2253
  %2255 = vrot.lane.b32.xlu0 %v2004, 15
  %v2256 = vpop.permute.xlu0 %2255
  %2257 = vrot.lane.b32.xlu0 %v2005, 15
  %v2258 = vpop.permute.xlu0 %2257
  %2259 = vrot.lane.b32.xlu0 %v2006, 15
  %v2260 = vpop.permute.xlu0 %2259
  %v2261 = vsel %vm1065, %v2258, %v2260
  %v2262 = vsel %vm1065, %v2256, %v2258
  %v2263 = vsel %vm1065, %v2254, %v2256
  %v2264 = vsel %vm1065, %v2260, %v2254
  %2265 = vset.pattern.permute.xlu0 8
  %2266 = vperm.xlu0 %2265, %v2019
  %v2267 = vpop.permute.xlu0 %2266
  %v2269 = vsub.f32 %v2264, %v2267
  %v2270 = vsub.f32 %v2263, %v2267
  %v2271 = vsub.f32 %v2262, %v2267
  %v2272 = vsub.f32 %v2261, %v2267
  %v2273 = vsub.f32 %v2269, %v967
  %v2274 = vsub.f32 %v2270, %v971
  %v2275 = vsub.f32 %v2271, %v975
  %v2276 = vsub.f32 %v2272, %v979
  %v2277 = vsub.f32 %v2273, %v859
  %v2278 = vsub.f32 %v2274, %v863
  %v2279 = vsub.f32 %v2275, %v867
  %v2280 = vsub.f32 %v2276, %v871
  %v2281 = vmax.f32 %v2249, %v2277
  %v2282 = vmax.f32 %v2250, %v2278
  %v2283 = vmax.f32 %v2251, %v2279
  %v2284 = vmax.f32 %v2252, %v2280
  %2285 = vrot.lane.b32.xlu0 %v2003, 14
  %v2286 = vpop.permute.xlu0 %2285
  %2287 = vrot.lane.b32.xlu0 %v2004, 14
  %v2288 = vpop.permute.xlu0 %2287
  %2289 = vrot.lane.b32.xlu0 %v2005, 14
  %v2290 = vpop.permute.xlu0 %2289
  %2291 = vrot.lane.b32.xlu0 %v2006, 14
  %v2292 = vpop.permute.xlu0 %2291
  %v2293 = vsel %vm1098, %v2290, %v2292
  %v2294 = vsel %vm1098, %v2288, %v2290
  %v2295 = vsel %vm1098, %v2286, %v2288
  %v2296 = vsel %vm1098, %v2292, %v2286
  %2297 = vset.pattern.permute.xlu0 9
  %2298 = vperm.xlu0 %2297, %v2019
  %v2299 = vpop.permute.xlu0 %2298
  %v2301 = vsub.f32 %v2296, %v2299
  %v2302 = vsub.f32 %v2295, %v2299
  %v2303 = vsub.f32 %v2294, %v2299
  %v2304 = vsub.f32 %v2293, %v2299
  %v2305 = vsub.f32 %v2301, %v967
  %v2306 = vsub.f32 %v2302, %v971
  %v2307 = vsub.f32 %v2303, %v975
  %v2308 = vsub.f32 %v2304, %v979
  %v2309 = vsub.f32 %v2305, %v915
  %v2310 = vsub.f32 %v2306, %v919
  %v2311 = vsub.f32 %v2307, %v923
  %v2312 = vsub.f32 %v2308, %v927
  %v2313 = vmax.f32 %v2281, %v2309
  %v2314 = vmax.f32 %v2282, %v2310
  %v2315 = vmax.f32 %v2283, %v2311
  %v2316 = vmax.f32 %v2284, %v2312
  %2317 = vrot.lane.b32.xlu0 %v2003, 2
  %v2318 = vpop.permute.xlu0 %2317
  %2319 = vrot.lane.b32.xlu0 %v2004, 2
  %v2320 = vpop.permute.xlu0 %2319
  %2321 = vrot.lane.b32.xlu0 %v2005, 2
  %v2322 = vpop.permute.xlu0 %2321
  %2323 = vrot.lane.b32.xlu0 %v2006, 2
  %v2324 = vpop.permute.xlu0 %2323
  %v2325 = vsel %vm182, %v2322, %v2324
  %v2326 = vsel %vm182, %v2320, %v2322
  %v2327 = vsel %vm182, %v2318, %v2320
  %v2328 = vsel %vm182, %v2324, %v2318
  %2329 = vset.pattern.permute.xlu0 10
  %2330 = vperm.xlu0 %2329, %v2019
  %v2331 = vpop.permute.xlu0 %2330
  %v2333 = vsub.f32 %v2328, %v2331
  %v2334 = vsub.f32 %v2327, %v2331
  %v2335 = vsub.f32 %v2326, %v2331
  %v2336 = vsub.f32 %v2325, %v2331
  %v2337 = vsub.f32 %v2333, %v723
  %v2338 = vsub.f32 %v2334, %v727
  %v2339 = vsub.f32 %v2335, %v731
  %v2340 = vsub.f32 %v2336, %v735
  %v2341 = vmax.f32 %v2313, %v2337
  %v2342 = vmax.f32 %v2314, %v2338
  %v2343 = vmax.f32 %v2315, %v2339
  %v2344 = vmax.f32 %v2316, %v2340
  %2345 = vrot.lane.b32.xlu0 %v2003, 1
  %v2346 = vpop.permute.xlu0 %2345
  %2347 = vrot.lane.b32.xlu0 %v2004, 1
  %v2348 = vpop.permute.xlu0 %2347
  %2349 = vrot.lane.b32.xlu0 %v2005, 1
  %v2350 = vpop.permute.xlu0 %2349
  %2351 = vrot.lane.b32.xlu0 %v2006, 1
  %v2352 = vpop.permute.xlu0 %2351
  %v2353 = vsel %vm240, %v2350, %v2352
  %v2354 = vsel %vm240, %v2348, %v2350
  %v2355 = vsel %vm240, %v2346, %v2348
  %v2356 = vsel %vm240, %v2352, %v2346
  %2357 = vset.pattern.permute.xlu0 11
  %2358 = vperm.xlu0 %2357, %v2019
  %v2359 = vpop.permute.xlu0 %2358
  %v2361 = vsub.f32 %v2356, %v2359
  %v2362 = vsub.f32 %v2355, %v2359
  %v2363 = vsub.f32 %v2354, %v2359
  %v2364 = vsub.f32 %v2353, %v2359
  %v2365 = vsub.f32 %v2361, %v775
  %v2366 = vsub.f32 %v2362, %v779
  %v2367 = vsub.f32 %v2363, %v783
  %v2368 = vsub.f32 %v2364, %v787
  %v2369 = vmax.f32 %v2341, %v2365
  %v2370 = vmax.f32 %v2342, %v2366
  %v2371 = vmax.f32 %v2343, %v2367
  %v2372 = vmax.f32 %v2344, %v2368
  %2373 = vset.pattern.permute.xlu0 12
  %2374 = vperm.xlu0 %2373, %v2019
  %v2375 = vpop.permute.xlu0 %2374
  %v2377 = vsub.f32 %v2003, %v2375
  %v2378 = vsub.f32 %v2004, %v2375
  %v2379 = vsub.f32 %v2005, %v2375
  %v2380 = vsub.f32 %v2006, %v2375
  %v2381 = vmax.f32 %v2369, %v2377
  %v2382 = vmax.f32 %v2370, %v2378
  %v2383 = vmax.f32 %v2371, %v2379
  %v2384 = vmax.f32 %v2372, %v2380
  %2385 = vrot.lane.b32.xlu0 %v2003, 127
  %v2386 = vpop.permute.xlu0 %2385
  %2387 = vrot.lane.b32.xlu0 %v2004, 127
  %v2388 = vpop.permute.xlu0 %2387
  %2389 = vrot.lane.b32.xlu0 %v2005, 127
  %v2390 = vpop.permute.xlu0 %2389
  %2391 = vrot.lane.b32.xlu0 %v2006, 127
  %v2392 = vpop.permute.xlu0 %2391
  %v2393 = vsel %vm321, %v2390, %v2392
  %v2394 = vsel %vm321, %v2388, %v2390
  %v2395 = vsel %vm321, %v2386, %v2388
  %v2396 = vsel %vm321, %v2392, %v2386
  %2397 = vset.pattern.permute.xlu0 13
  %2398 = vperm.xlu0 %2397, %v2019
  %v2399 = vpop.permute.xlu0 %2398
  %v2401 = vsub.f32 %v2395, %v2399
  %v2402 = vsub.f32 %v2394, %v2399
  %v2403 = vsub.f32 %v2393, %v2399
  %v2404 = vsub.f32 %v2396, %v2399
  %v2405 = vsub.f32 %v2401, %v859
  %v2406 = vsub.f32 %v2402, %v863
  %v2407 = vsub.f32 %v2403, %v867
  %v2408 = vsub.f32 %v2404, %v871
  %v2409 = vmax.f32 %v2381, %v2405
  %v2410 = vmax.f32 %v2382, %v2406
  %v2411 = vmax.f32 %v2383, %v2407
  %v2412 = vmax.f32 %v2384, %v2408
  %2413 = vrot.lane.b32.xlu0 %v2003, 126
  %v2414 = vpop.permute.xlu0 %2413
  %2415 = vrot.lane.b32.xlu0 %v2004, 126
  %v2416 = vpop.permute.xlu0 %2415
  %2417 = vrot.lane.b32.xlu0 %v2005, 126
  %v2418 = vpop.permute.xlu0 %2417
  %2419 = vrot.lane.b32.xlu0 %v2006, 126
  %v2420 = vpop.permute.xlu0 %2419
  %v2421 = vsel %vm379, %v2418, %v2420
  %v2422 = vsel %vm379, %v2416, %v2418
  %v2423 = vsel %vm379, %v2414, %v2416
  %v2424 = vsel %vm379, %v2420, %v2414
  %2425 = vset.pattern.permute.xlu0 14
  %2426 = vperm.xlu0 %2425, %v2019
  %v2427 = vpop.permute.xlu0 %2426
  %v2429 = vsub.f32 %v2423, %v2427
  %v2430 = vsub.f32 %v2422, %v2427
  %v2431 = vsub.f32 %v2421, %v2427
  %v2432 = vsub.f32 %v2424, %v2427
  %v2433 = vsub.f32 %v2429, %v915
  %v2434 = vsub.f32 %v2430, %v919
  %v2435 = vsub.f32 %v2431, %v923
  %v2436 = vsub.f32 %v2432, %v927
  %v2437 = vmax.f32 %v2409, %v2433
  %v2438 = vmax.f32 %v2410, %v2434
  %v2439 = vmax.f32 %v2411, %v2435
  %v2440 = vmax.f32 %v2412, %v2436
  %2441 = vrot.lane.b32.xlu0 %v2003, 114
  %v2442 = vpop.permute.xlu0 %2441
  %2443 = vrot.lane.b32.xlu0 %v2004, 114
  %v2444 = vpop.permute.xlu0 %2443
  %2445 = vrot.lane.b32.xlu0 %v2005, 114
  %v2446 = vpop.permute.xlu0 %2445
  %2447 = vrot.lane.b32.xlu0 %v2006, 114
  %v2448 = vpop.permute.xlu0 %2447
  %v2449 = vsel %vm1257, %v2446, %v2448
  %v2450 = vsel %vm1257, %v2444, %v2446
  %v2451 = vsel %vm1257, %v2442, %v2444
  %v2452 = vsel %vm1257, %v2448, %v2442
  %2453 = vset.pattern.permute.xlu0 15
  %2454 = vperm.xlu0 %2453, %v2019
  %v2455 = vpop.permute.xlu0 %2454
  %v2457 = vsub.f32 %v2451, %v2455
  %v2458 = vsub.f32 %v2450, %v2455
  %v2459 = vsub.f32 %v2449, %v2455
  %v2460 = vsub.f32 %v2452, %v2455
  %v2461 = vsub.f32 %v2457, %v1274
  %v2462 = vsub.f32 %v2458, %v1278
  %v2463 = vsub.f32 %v2459, %v1282
  %v2464 = vsub.f32 %v2460, %v1286
  %v2465 = vsub.f32 %v2461, %v723
  %v2466 = vsub.f32 %v2462, %v727
  %v2467 = vsub.f32 %v2463, %v731
  %v2468 = vsub.f32 %v2464, %v735
  %v2469 = vmax.f32 %v2437, %v2465
  %v2470 = vmax.f32 %v2438, %v2466
  %v2471 = vmax.f32 %v2439, %v2467
  %v2472 = vmax.f32 %v2440, %v2468
  %2473 = vrot.lane.b32.xlu0 %v2003, 113
  %v2474 = vpop.permute.xlu0 %2473
  %2475 = vrot.lane.b32.xlu0 %v2004, 113
  %v2476 = vpop.permute.xlu0 %2475
  %2477 = vrot.lane.b32.xlu0 %v2005, 113
  %v2478 = vpop.permute.xlu0 %2477
  %2479 = vrot.lane.b32.xlu0 %v2006, 113
  %v2480 = vpop.permute.xlu0 %2479
  %v2481 = vsel %vm1311, %v2478, %v2480
  %v2482 = vsel %vm1311, %v2476, %v2478
  %v2483 = vsel %vm1311, %v2474, %v2476
  %v2484 = vsel %vm1311, %v2480, %v2474
  %2485 = vset.pattern.permute.xlu0 16
  %2486 = vperm.xlu0 %2485, %v2019
  %v2487 = vpop.permute.xlu0 %2486
  %v2489 = vsub.f32 %v2483, %v2487
  %v2490 = vsub.f32 %v2482, %v2487
  %v2491 = vsub.f32 %v2481, %v2487
  %v2492 = vsub.f32 %v2484, %v2487
  %v2493 = vsub.f32 %v2489, %v1274
  %v2494 = vsub.f32 %v2490, %v1278
  %v2495 = vsub.f32 %v2491, %v1282
  %v2496 = vsub.f32 %v2492, %v1286
  %v2497 = vsub.f32 %v2493, %v775
  %v2498 = vsub.f32 %v2494, %v779
  %v2499 = vsub.f32 %v2495, %v783
  %v2500 = vsub.f32 %v2496, %v787
  %v2501 = vmax.f32 %v2469, %v2497
  %v2502 = vmax.f32 %v2470, %v2498
  %v2503 = vmax.f32 %v2471, %v2499
  %v2504 = vmax.f32 %v2472, %v2500
  %2505 = vrot.lane.b32.xlu0 %v2003, 112
  %v2506 = vpop.permute.xlu0 %2505
  %2507 = vrot.lane.b32.xlu0 %v2004, 112
  %v2508 = vpop.permute.xlu0 %2507
  %2509 = vrot.lane.b32.xlu0 %v2005, 112
  %v2510 = vpop.permute.xlu0 %2509
  %2511 = vrot.lane.b32.xlu0 %v2006, 112
  %v2512 = vpop.permute.xlu0 %2511
  %v2513 = vsel %vm563, %v2510, %v2512
  %v2514 = vsel %vm563, %v2508, %v2510
  %v2515 = vsel %vm563, %v2506, %v2508
  %v2516 = vsel %vm563, %v2512, %v2506
  %2517 = vset.pattern.permute.xlu0 17
  %2518 = vperm.xlu0 %2517, %v2019
  %v2519 = vpop.permute.xlu0 %2518
  %v2521 = vsub.f32 %v2515, %v2519
  %v2522 = vsub.f32 %v2514, %v2519
  %v2523 = vsub.f32 %v2513, %v2519
  %v2524 = vsub.f32 %v2516, %v2519
  %v2525 = vsub.f32 %v2521, %v1274
  %v2526 = vsub.f32 %v2522, %v1278
  %v2527 = vsub.f32 %v2523, %v1282
  %v2528 = vsub.f32 %v2524, %v1286
  %v2529 = vmax.f32 %v2501, %v2525
  %v2530 = vmax.f32 %v2502, %v2526
  %v2531 = vmax.f32 %v2503, %v2527
  %v2532 = vmax.f32 %v2504, %v2528
  %2533 = vrot.lane.b32.xlu0 %v2003, 111
  %v2534 = vpop.permute.xlu0 %2533
  %2535 = vrot.lane.b32.xlu0 %v2004, 111
  %v2536 = vpop.permute.xlu0 %2535
  %2537 = vrot.lane.b32.xlu0 %v2005, 111
  %v2538 = vpop.permute.xlu0 %2537
  %2539 = vrot.lane.b32.xlu0 %v2006, 111
  %v2540 = vpop.permute.xlu0 %2539
  %v2541 = vsel %vm1372, %v2538, %v2540
  %v2542 = vsel %vm1372, %v2536, %v2538
  %v2543 = vsel %vm1372, %v2534, %v2536
  %v2544 = vsel %vm1372, %v2540, %v2534
  %2545 = vset.pattern.permute.xlu0 18
  %2546 = vperm.xlu0 %2545, %v2019
  %v2547 = vpop.permute.xlu0 %2546
  %v2549 = vsub.f32 %v2543, %v2547
  %v2550 = vsub.f32 %v2542, %v2547
  %v2551 = vsub.f32 %v2541, %v2547
  %v2552 = vsub.f32 %v2544, %v2547
  %v2553 = vsub.f32 %v2549, %v1274
  %v2554 = vsub.f32 %v2550, %v1278
  %v2555 = vsub.f32 %v2551, %v1282
  %v2556 = vsub.f32 %v2552, %v1286
  %v2557 = vsub.f32 %v2553, %v859
  %v2558 = vsub.f32 %v2554, %v863
  %v2559 = vsub.f32 %v2555, %v867
  %v2560 = vsub.f32 %v2556, %v871
  %v2561 = vmax.f32 %v2529, %v2557
  %v2562 = vmax.f32 %v2530, %v2558
  %v2563 = vmax.f32 %v2531, %v2559
  %v2564 = vmax.f32 %v2532, %v2560
  %2565 = vrot.lane.b32.xlu0 %v2003, 110
  %v2566 = vpop.permute.xlu0 %2565
  %2567 = vrot.lane.b32.xlu0 %v2004, 110
  %v2568 = vpop.permute.xlu0 %2567
  %2569 = vrot.lane.b32.xlu0 %v2005, 110
  %v2570 = vpop.permute.xlu0 %2569
  %2571 = vrot.lane.b32.xlu0 %v2006, 110
  %v2572 = vpop.permute.xlu0 %2571
  %v2573 = vsel %vm1405, %v2570, %v2572
  %v2574 = vsel %vm1405, %v2568, %v2570
  %v2575 = vsel %vm1405, %v2566, %v2568
  %v2576 = vsel %vm1405, %v2572, %v2566
  %2577 = vset.pattern.permute.xlu0 19
  %2578 = vperm.xlu0 %2577, %v2019
  %v2579 = vpop.permute.xlu0 %2578
  %v2581 = vsub.f32 %v2575, %v2579
  %v2582 = vsub.f32 %v2574, %v2579
  %v2583 = vsub.f32 %v2573, %v2579
  %v2584 = vsub.f32 %v2576, %v2579
  %v2585 = vsub.f32 %v2581, %v1274
  %v2586 = vsub.f32 %v2582, %v1278
  %v2587 = vsub.f32 %v2583, %v1282
  %v2588 = vsub.f32 %v2584, %v1286
  %v2589 = vsub.f32 %v2585, %v915
  %v2590 = vsub.f32 %v2586, %v919
  %v2591 = vsub.f32 %v2587, %v923
  %v2592 = vsub.f32 %v2588, %v927
  %v2593 = vmax.f32 %v2561, %v2589
  %v2594 = vmax.f32 %v2562, %v2590
  %v2595 = vmax.f32 %v2563, %v2591
  %v2596 = vmax.f32 %v2564, %v2592
  %2597 = vrot.lane.b32.xlu0 %v2003, 98
  %v2598 = vpop.permute.xlu0 %2597
  %2599 = vrot.lane.b32.xlu0 %v2004, 98
  %v2600 = vpop.permute.xlu0 %2599
  %2601 = vrot.lane.b32.xlu0 %v2005, 98
  %v2602 = vpop.permute.xlu0 %2601
  %2603 = vrot.lane.b32.xlu0 %v2006, 98
  %v2604 = vpop.permute.xlu0 %2603
  %v2605 = vsel %vm1440, %v2602, %v2604
  %v2606 = vsel %vm1440, %v2600, %v2602
  %v2607 = vsel %vm1440, %v2598, %v2600
  %v2608 = vsel %vm1440, %v2604, %v2598
  %2609 = vset.pattern.permute.xlu0 20
  %2610 = vperm.xlu0 %2609, %v2019
  %v2611 = vpop.permute.xlu0 %2610
  %v2613 = vsub.f32 %v2607, %v2611
  %v2614 = vsub.f32 %v2606, %v2611
  %v2615 = vsub.f32 %v2605, %v2611
  %v2616 = vsub.f32 %v2608, %v2611
  %v2617 = vsub.f32 %v2613, %v1457
  %v2618 = vsub.f32 %v2614, %v1461
  %v2619 = vsub.f32 %v2615, %v1465
  %v2620 = vsub.f32 %v2616, %v1469
  %v2621 = vsub.f32 %v2617, %v723
  %v2622 = vsub.f32 %v2618, %v727
  %v2623 = vsub.f32 %v2619, %v731
  %v2624 = vsub.f32 %v2620, %v735
  %v2625 = vmax.f32 %v2593, %v2621
  %v2626 = vmax.f32 %v2594, %v2622
  %v2627 = vmax.f32 %v2595, %v2623
  %v2628 = vmax.f32 %v2596, %v2624
  %2629 = vrot.lane.b32.xlu0 %v2003, 97
  %v2630 = vpop.permute.xlu0 %2629
  %2631 = vrot.lane.b32.xlu0 %v2004, 97
  %v2632 = vpop.permute.xlu0 %2631
  %2633 = vrot.lane.b32.xlu0 %v2005, 97
  %v2634 = vpop.permute.xlu0 %2633
  %2635 = vrot.lane.b32.xlu0 %v2006, 97
  %v2636 = vpop.permute.xlu0 %2635
  %v2637 = vsel %vm1494, %v2634, %v2636
  %v2638 = vsel %vm1494, %v2632, %v2634
  %v2639 = vsel %vm1494, %v2630, %v2632
  %v2640 = vsel %vm1494, %v2636, %v2630
  %2641 = vset.pattern.permute.xlu0 21
  %2642 = vperm.xlu0 %2641, %v2019
  %v2643 = vpop.permute.xlu0 %2642
  %v2645 = vsub.f32 %v2639, %v2643
  %v2646 = vsub.f32 %v2638, %v2643
  %v2647 = vsub.f32 %v2637, %v2643
  %v2648 = vsub.f32 %v2640, %v2643
  %v2649 = vsub.f32 %v2645, %v1457
  %v2650 = vsub.f32 %v2646, %v1461
  %v2651 = vsub.f32 %v2647, %v1465
  %v2652 = vsub.f32 %v2648, %v1469
  %v2653 = vsub.f32 %v2649, %v775
  %v2654 = vsub.f32 %v2650, %v779
  %v2655 = vsub.f32 %v2651, %v783
  %v2656 = vsub.f32 %v2652, %v787
  %v2657 = vmax.f32 %v2625, %v2653
  %v2658 = vmax.f32 %v2626, %v2654
  %v2659 = vmax.f32 %v2627, %v2655
  %v2660 = vmax.f32 %v2628, %v2656
  %2661 = vrot.lane.b32.xlu0 %v2003, 96
  %v2662 = vpop.permute.xlu0 %2661
  %2663 = vrot.lane.b32.xlu0 %v2004, 96
  %v2664 = vpop.permute.xlu0 %2663
  %2665 = vrot.lane.b32.xlu0 %v2005, 96
  %v2666 = vpop.permute.xlu0 %2665
  %2667 = vrot.lane.b32.xlu0 %v2006, 96
  %v2668 = vpop.permute.xlu0 %2667
  %v2669 = vsel %vm619, %v2666, %v2668
  %v2670 = vsel %vm619, %v2664, %v2666
  %v2671 = vsel %vm619, %v2662, %v2664
  %v2672 = vsel %vm619, %v2668, %v2662
  %2673 = vset.pattern.permute.xlu0 22
  %2674 = vperm.xlu0 %2673, %v2019
  %v2675 = vpop.permute.xlu0 %2674
  %v2677 = vsub.f32 %v2671, %v2675
  %v2678 = vsub.f32 %v2670, %v2675
  %v2679 = vsub.f32 %v2669, %v2675
  %v2680 = vsub.f32 %v2672, %v2675
  %v2681 = vsub.f32 %v2677, %v1457
  %v2682 = vsub.f32 %v2678, %v1461
  %v2683 = vsub.f32 %v2679, %v1465
  %v2684 = vsub.f32 %v2680, %v1469
  %v2685 = vmax.f32 %v2657, %v2681
  %v2686 = vmax.f32 %v2658, %v2682
  %v2687 = vmax.f32 %v2659, %v2683
  %v2688 = vmax.f32 %v2660, %v2684
  %2689 = vrot.lane.b32.xlu0 %v2003, 95
  %v2690 = vpop.permute.xlu0 %2689
  %2691 = vrot.lane.b32.xlu0 %v2004, 95
  %v2692 = vpop.permute.xlu0 %2691
  %2693 = vrot.lane.b32.xlu0 %v2005, 95
  %v2694 = vpop.permute.xlu0 %2693
  %2695 = vrot.lane.b32.xlu0 %v2006, 95
  %v2696 = vpop.permute.xlu0 %2695
  %v2697 = vsel %vm1555, %v2694, %v2696
  %v2698 = vsel %vm1555, %v2692, %v2694
  %v2699 = vsel %vm1555, %v2690, %v2692
  %v2700 = vsel %vm1555, %v2696, %v2690
  %2701 = vset.pattern.permute.xlu0 23
  %2702 = vperm.xlu0 %2701, %v2019
  %v2703 = vpop.permute.xlu0 %2702
  %v2705 = vsub.f32 %v2699, %v2703
  %v2706 = vsub.f32 %v2698, %v2703
  %v2707 = vsub.f32 %v2697, %v2703
  %v2708 = vsub.f32 %v2700, %v2703
  %v2709 = vsub.f32 %v2705, %v1457
  %v2710 = vsub.f32 %v2706, %v1461
  %v2711 = vsub.f32 %v2707, %v1465
  %v2712 = vsub.f32 %v2708, %v1469
  %v2713 = vsub.f32 %v2709, %v859
  %v2714 = vsub.f32 %v2710, %v863
  %v2715 = vsub.f32 %v2711, %v867
  %v2716 = vsub.f32 %v2712, %v871
  %v2717 = vmax.f32 %v2685, %v2713
  %v2718 = vmax.f32 %v2686, %v2714
  %v2719 = vmax.f32 %v2687, %v2715
  %v2720 = vmax.f32 %v2688, %v2716
  %2721 = vrot.lane.b32.xlu0 %v2003, 94
  %v2722 = vpop.permute.xlu0 %2721
  %2723 = vrot.lane.b32.xlu0 %v2004, 94
  %v2724 = vpop.permute.xlu0 %2723
  %2725 = vrot.lane.b32.xlu0 %v2005, 94
  %v2726 = vpop.permute.xlu0 %2725
  %2727 = vrot.lane.b32.xlu0 %v2006, 94
  %v2728 = vpop.permute.xlu0 %2727
  %v2729 = vsel %vm1588, %v2726, %v2728
  %v2730 = vsel %vm1588, %v2724, %v2726
  %v2731 = vsel %vm1588, %v2722, %v2724
  %v2732 = vsel %vm1588, %v2728, %v2722
  %2733 = vset.pattern.permute.xlu0 24
  %2734 = vperm.xlu0 %2733, %v2019
  %v2735 = vpop.permute.xlu0 %2734
  %v2737 = vsub.f32 %v2731, %v2735
  %v2738 = vsub.f32 %v2730, %v2735
  %v2739 = vsub.f32 %v2729, %v2735
  %v2740 = vsub.f32 %v2732, %v2735
  %v2741 = vsub.f32 %v2737, %v1457
  %v2742 = vsub.f32 %v2738, %v1461
  %v2743 = vsub.f32 %v2739, %v1465
  %v2744 = vsub.f32 %v2740, %v1469
  %v2745 = vsub.f32 %v2741, %v915
  %v2746 = vsub.f32 %v2742, %v919
  %v2747 = vsub.f32 %v2743, %v923
  %v2748 = vsub.f32 %v2744, %v927
  %v2749 = vmax.f32 %v2717, %v2745
  %v2750 = vmax.f32 %v2718, %v2746
  %v2751 = vmax.f32 %v2719, %v2747
  %v2752 = vmax.f32 %v2720, %v2748
  %v2753 = vlaneseq
  %v2754 = vshrl.u32 %v2753, 7
  %v2755 = vsub.s32 0, %v2754
  %v2756 = vrot.slane %v2749, %v2755
  %v2757 = vlaneseq
  %v2758 = vshrl.u32 %v2757, 7
  %v2759 = vsub.s32 0, %v2758
  %v2760 = vrot.slane %v2750, %v2759
  %v2761 = vlaneseq
  %v2762 = vshrl.u32 %v2761, 7
  %v2763 = vsub.s32 0, %v2762
  %v2764 = vrot.slane %v2751, %v2763
  %v2765 = vlaneseq
  %v2766 = vshrl.u32 %v2765, 7
  %v2767 = vsub.s32 0, %v2766
  %v2768 = vrot.slane %v2752, %v2767
  %v2769 = vld [vmem:[%s27] sm:$0xff]
  %2771 = vset.pattern.permute.xlu0 0
  %2772 = vperm.xlu0 %2771, %v2769
  %v2773 = vpop.permute.xlu0 %2772
  %v2775 = vmul.f32 %v2756, %v2773
  %v2776 = vmul.f32 %v2760, %v2773
  %v2777 = vmul.f32 %v2764, %v2773
  %v2778 = vmul.f32 %v2768, %v2773
  %v2779 = vadd.f32 %v2775, 0.0
  %v2780 = vadd.f32 %v2776, 0.0
  %v2781 = vadd.f32 %v2777, 0.0
  %v2782 = vadd.f32 %v2778, 0.0
  %v2783 = vlaneseq
  %v2784 = vshrl.u32 %v2783, 7
  %v2785 = vsub.s32 1, %v2784
  %v2786 = vrot.slane %v2749, %v2785
  %v2787 = vlaneseq
  %v2788 = vshrl.u32 %v2787, 7
  %v2789 = vsub.s32 1, %v2788
  %v2790 = vrot.slane %v2750, %v2789
  %v2791 = vlaneseq
  %v2792 = vshrl.u32 %v2791, 7
  %v2793 = vsub.s32 1, %v2792
  %v2794 = vrot.slane %v2751, %v2793
  %v2795 = vlaneseq
  %v2796 = vshrl.u32 %v2795, 7
  %v2797 = vsub.s32 1, %v2796
  %v2798 = vrot.slane %v2752, %v2797
  %2799 = vset.pattern.permute.xlu0 1
  %2800 = vperm.xlu0 %2799, %v2769
  %v2801 = vpop.permute.xlu0 %2800
  %v2803 = vmul.f32 %v2786, %v2801
  %v2804 = vmul.f32 %v2790, %v2801
  %v2805 = vmul.f32 %v2794, %v2801
  %v2806 = vmul.f32 %v2798, %v2801
  %v2807 = vadd.f32 %v2779, %v2803
  %v2808 = vadd.f32 %v2780, %v2804
  %v2809 = vadd.f32 %v2781, %v2805
  %v2810 = vadd.f32 %v2782, %v2806
  %v2811 = vlaneseq
  %v2812 = vshrl.u32 %v2811, 7
  %v2813 = vsub.s32 2, %v2812
  %v2814 = vrot.slane %v2749, %v2813
  %v2815 = vlaneseq
  %v2816 = vshrl.u32 %v2815, 7
  %v2817 = vsub.s32 2, %v2816
  %v2818 = vrot.slane %v2750, %v2817
  %v2819 = vlaneseq
  %v2820 = vshrl.u32 %v2819, 7
  %v2821 = vsub.s32 2, %v2820
  %v2822 = vrot.slane %v2751, %v2821
  %v2823 = vlaneseq
  %v2824 = vshrl.u32 %v2823, 7
  %v2825 = vsub.s32 2, %v2824
  %v2826 = vrot.slane %v2752, %v2825
  %2827 = vset.pattern.permute.xlu0 2
  %2828 = vperm.xlu0 %2827, %v2769
  %v2829 = vpop.permute.xlu0 %2828
  %v2831 = vmul.f32 %v2814, %v2829
  %v2832 = vmul.f32 %v2818, %v2829
  %v2833 = vmul.f32 %v2822, %v2829
  %v2834 = vmul.f32 %v2826, %v2829
  %v2835 = vadd.f32 %v2807, %v2831
  %v2836 = vadd.f32 %v2808, %v2832
  %v2837 = vadd.f32 %v2809, %v2833
  %v2838 = vadd.f32 %v2810, %v2834
  %v2839 = vlaneseq
  %v2840 = vshrl.u32 %v2839, 7
  %v2841 = vsub.s32 3, %v2840
  %v2842 = vrot.slane %v2749, %v2841
  %v2843 = vlaneseq
  %v2844 = vshrl.u32 %v2843, 7
  %v2845 = vsub.s32 3, %v2844
  %v2846 = vrot.slane %v2750, %v2845
  %v2847 = vlaneseq
  %v2848 = vshrl.u32 %v2847, 7
  %v2849 = vsub.s32 3, %v2848
  %v2850 = vrot.slane %v2751, %v2849
  %v2851 = vlaneseq
  %v2852 = vshrl.u32 %v2851, 7
  %v2853 = vsub.s32 3, %v2852
  %v2854 = vrot.slane %v2752, %v2853
  %2855 = vset.pattern.permute.xlu0 3
  %2856 = vperm.xlu0 %2855, %v2769
  %v2857 = vpop.permute.xlu0 %2856
  %v2859 = vmul.f32 %v2842, %v2857
  %v2860 = vmul.f32 %v2846, %v2857
  %v2861 = vmul.f32 %v2850, %v2857
  %v2862 = vmul.f32 %v2854, %v2857
  %v2863 = vadd.f32 %v2835, %v2859
  %v2864 = vadd.f32 %v2836, %v2860
  %v2865 = vadd.f32 %v2837, %v2861
  %v2866 = vadd.f32 %v2838, %v2862
  %v2867 = vlaneseq
  %v2868 = vshrl.u32 %v2867, 7
  %v2869 = vsub.s32 4, %v2868
  %v2870 = vrot.slane %v2749, %v2869
  %v2871 = vlaneseq
  %v2872 = vshrl.u32 %v2871, 7
  %v2873 = vsub.s32 4, %v2872
  %v2874 = vrot.slane %v2750, %v2873
  %v2875 = vlaneseq
  %v2876 = vshrl.u32 %v2875, 7
  %v2877 = vsub.s32 4, %v2876
  %v2878 = vrot.slane %v2751, %v2877
  %v2879 = vlaneseq
  %v2880 = vshrl.u32 %v2879, 7
  %v2881 = vsub.s32 4, %v2880
  %v2882 = vrot.slane %v2752, %v2881
  %2883 = vset.pattern.permute.xlu0 4
  %2884 = vperm.xlu0 %2883, %v2769
  %v2885 = vpop.permute.xlu0 %2884
  %v2887 = vmul.f32 %v2870, %v2885
  %v2888 = vmul.f32 %v2874, %v2885
  %v2889 = vmul.f32 %v2878, %v2885
  %v2890 = vmul.f32 %v2882, %v2885
  %v2891 = vadd.f32 %v2863, %v2887
  %v2892 = vadd.f32 %v2864, %v2888
  %v2893 = vadd.f32 %v2865, %v2889
  %v2894 = vadd.f32 %v2866, %v2890
  %v2895 = vlaneseq
  %v2896 = vshrl.u32 %v2895, 7
  %v2897 = vsub.s32 5, %v2896
  %v2898 = vrot.slane %v2749, %v2897
  %v2899 = vlaneseq
  %v2900 = vshrl.u32 %v2899, 7
  %v2901 = vsub.s32 5, %v2900
  %v2902 = vrot.slane %v2750, %v2901
  %v2903 = vlaneseq
  %v2904 = vshrl.u32 %v2903, 7
  %v2905 = vsub.s32 5, %v2904
  %v2906 = vrot.slane %v2751, %v2905
  %v2907 = vlaneseq
  %v2908 = vshrl.u32 %v2907, 7
  %v2909 = vsub.s32 5, %v2908
  %v2910 = vrot.slane %v2752, %v2909
  %2911 = vset.pattern.permute.xlu0 5
  %2912 = vperm.xlu0 %2911, %v2769
  %v2913 = vpop.permute.xlu0 %2912
  %v2915 = vmul.f32 %v2898, %v2913
  %v2916 = vmul.f32 %v2902, %v2913
  %v2917 = vmul.f32 %v2906, %v2913
  %v2918 = vmul.f32 %v2910, %v2913
  %v2919 = vadd.f32 %v2891, %v2915
  %v2920 = vadd.f32 %v2892, %v2916
  %v2921 = vadd.f32 %v2893, %v2917
  %v2922 = vadd.f32 %v2894, %v2918
  %v2923 = vlaneseq
  %v2924 = vshrl.u32 %v2923, 7
  %v2925 = vsub.s32 6, %v2924
  %v2926 = vrot.slane %v2749, %v2925
  %v2927 = vlaneseq
  %v2928 = vshrl.u32 %v2927, 7
  %v2929 = vsub.s32 6, %v2928
  %v2930 = vrot.slane %v2750, %v2929
  %v2931 = vlaneseq
  %v2932 = vshrl.u32 %v2931, 7
  %v2933 = vsub.s32 6, %v2932
  %v2934 = vrot.slane %v2751, %v2933
  %v2935 = vlaneseq
  %v2936 = vshrl.u32 %v2935, 7
  %v2937 = vsub.s32 6, %v2936
  %v2938 = vrot.slane %v2752, %v2937
  %2939 = vset.pattern.permute.xlu0 6
  %2940 = vperm.xlu0 %2939, %v2769
  %v2941 = vpop.permute.xlu0 %2940
  %v2943 = vmul.f32 %v2926, %v2941
  %v2944 = vmul.f32 %v2930, %v2941
  %v2945 = vmul.f32 %v2934, %v2941
  %v2946 = vmul.f32 %v2938, %v2941
  %v2947 = vadd.f32 %v2919, %v2943
  %v2948 = vadd.f32 %v2920, %v2944
  %v2949 = vadd.f32 %v2921, %v2945
  %v2950 = vadd.f32 %v2922, %v2946
  %v2951 = vlaneseq
  %v2952 = vshrl.u32 %v2951, 7
  %v2953 = vsub.s32 7, %v2952
  %v2954 = vrot.slane %v2749, %v2953
  %v2955 = vlaneseq
  %v2956 = vshrl.u32 %v2955, 7
  %v2957 = vsub.s32 7, %v2956
  %v2958 = vrot.slane %v2750, %v2957
  %v2959 = vlaneseq
  %v2960 = vshrl.u32 %v2959, 7
  %v2961 = vsub.s32 7, %v2960
  %v2962 = vrot.slane %v2751, %v2961
  %v2963 = vlaneseq
  %v2964 = vshrl.u32 %v2963, 7
  %v2965 = vsub.s32 7, %v2964
  %v2966 = vrot.slane %v2752, %v2965
  %2967 = vset.pattern.permute.xlu0 7
  %2968 = vperm.xlu0 %2967, %v2769
  %v2969 = vpop.permute.xlu0 %2968
  %v2971 = vmul.f32 %v2954, %v2969
  %v2972 = vmul.f32 %v2958, %v2969
  %v2973 = vmul.f32 %v2962, %v2969
  %v2974 = vmul.f32 %v2966, %v2969
  %v2975 = vadd.f32 %v2947, %v2971
  %v2976 = vadd.f32 %v2948, %v2972
  %v2977 = vadd.f32 %v2949, %v2973
  %v2978 = vadd.f32 %v2950, %v2974
  %v2979 = vld [vmem:[%s29] sm:$0xff]
  %2981 = vset.pattern.permute.xlu0 0
  %2982 = vperm.xlu0 %2981, %v2979
  %v2983 = vpop.permute.xlu0 %2982
  %v2985 = vadd.f32 %v2975, %v2983
  %v2986 = vadd.f32 %v2976, %v2983
  %v2987 = vadd.f32 %v2977, %v2983
  %v2988 = vadd.f32 %v2978, %v2983
  %v2989 = vadd.f32 %v2985, %v2986
  %v2990 = vadd.f32 %v2989, %v2987
  %v2991 = vadd.f32 %v2990, %v2988
  %2992 = vadd.xlane.f32.xlu0 %v2991
  %v2993 = vpop.xlane.xlu0 %2992
  %v2994 = vmul.f32 %v2993, 0.001953125
  %v2995 = vsub.f32 %v2985, %v2994
  %v2996 = vsub.f32 %v2986, %v2994
  %v2997 = vsub.f32 %v2987, %v2994
  %v2998 = vsub.f32 %v2988, %v2994
  %v2999 = vmul.f32 %v2995, %v2995
  %v3000 = vmul.f32 %v2996, %v2996
  %v3001 = vmul.f32 %v2997, %v2997
  %v3002 = vmul.f32 %v2998, %v2998
  %v3003 = vadd.f32 %v2999, %v3000
  %v3004 = vadd.f32 %v3003, %v3001
  %v3005 = vadd.f32 %v3004, %v3002
  %3006 = vadd.xlane.f32.xlu0 %v3005
  %v3007 = vpop.xlane.xlu0 %3006
  %v3008 = vmul.f32 %v3007, 0.001953125
  %v3009 = vld [vmem:[%s31] sm:$0xff]
  %3011 = vset.pattern.permute.xlu0 0
  %3012 = vperm.xlu0 %3011, %v3009
  %v3013 = vpop.permute.xlu0 %3012
  %v3015 = vmul.f32 %v3013, %v2995
  %v3016 = vmul.f32 %v3013, %v2996
  %v3017 = vmul.f32 %v3013, %v2997
  %v3018 = vmul.f32 %v3013, %v2998
  %v3019 = vadd.f32 %v3008, 1e-05
  %v3020 = vrsqrt.pop %v3019
  %v3021 = vmul.f32 %v3015, %v3020
  %v3022 = vmul.f32 %v3016, %v3020
  %v3023 = vmul.f32 %v3017, %v3020
  %v3024 = vmul.f32 %v3018, %v3020
  %v3025 = vld [vmem:[%s33] sm:$0xff]
  %3027 = vset.pattern.permute.xlu0 0
  %3028 = vperm.xlu0 %3027, %v3025
  %v3029 = vpop.permute.xlu0 %3028
  %v3031 = vadd.f32 %v3021, %v3029
  %v3032 = vadd.f32 %v3022, %v3029
  %v3033 = vadd.f32 %v3023, %v3029
  %v3034 = vadd.f32 %v3024, %v3029
  %3035 = vrot.lane.b32.xlu0 %v3031, 2
  %v3036 = vpop.permute.xlu0 %3035
  %3037 = vrot.lane.b32.xlu0 %v3032, 2
  %v3038 = vpop.permute.xlu0 %3037
  %3039 = vrot.lane.b32.xlu0 %v3033, 2
  %v3040 = vpop.permute.xlu0 %3039
  %3041 = vrot.lane.b32.xlu0 %v3034, 2
  %v3042 = vpop.permute.xlu0 %3041
  %v3043 = vsel %vm182, %v3040, %v3042
  %v3044 = vsel %vm182, %v3038, %v3040
  %v3045 = vsel %vm182, %v3036, %v3038
  %v3046 = vsel %vm182, %v3042, %v3036
  %v3047 = vmul.f32 %v3046, %v197
  %v3048 = vmul.f32 %v3045, %v201
  %v3049 = vmul.f32 %v3044, %v205
  %v3050 = vmul.f32 %v3043, %v209
  %v3051 = vld [vmem:[%s37] sm:$0xff]
  %3053 = vset.pattern.permute.xlu0 0
  %3054 = vperm.xlu0 %3053, %v3051
  %v3055 = vpop.permute.xlu0 %3054
  %v3057 = vmul.f32 %v3047, %v3055
  %v3058 = vmul.f32 %v3048, %v3055
  %v3059 = vmul.f32 %v3049, %v3055
  %v3060 = vmul.f32 %v3050, %v3055
  %v3061 = vadd.f32 %v3057, 0.0
  %v3062 = vadd.f32 %v3058, 0.0
  %v3063 = vadd.f32 %v3059, 0.0
  %v3064 = vadd.f32 %v3060, 0.0
  %3065 = vrot.lane.b32.xlu0 %v3031, 1
  %v3066 = vpop.permute.xlu0 %3065
  %3067 = vrot.lane.b32.xlu0 %v3032, 1
  %v3068 = vpop.permute.xlu0 %3067
  %3069 = vrot.lane.b32.xlu0 %v3033, 1
  %v3070 = vpop.permute.xlu0 %3069
  %3071 = vrot.lane.b32.xlu0 %v3034, 1
  %v3072 = vpop.permute.xlu0 %3071
  %v3073 = vsel %vm240, %v3070, %v3072
  %v3074 = vsel %vm240, %v3068, %v3070
  %v3075 = vsel %vm240, %v3066, %v3068
  %v3076 = vsel %vm240, %v3072, %v3066
  %v3077 = vmul.f32 %v3076, %v255
  %v3078 = vmul.f32 %v3075, %v259
  %v3079 = vmul.f32 %v3074, %v263
  %v3080 = vmul.f32 %v3073, %v267
  %3081 = vset.pattern.permute.xlu0 1
  %3082 = vperm.xlu0 %3081, %v3051
  %v3083 = vpop.permute.xlu0 %3082
  %v3085 = vmul.f32 %v3077, %v3083
  %v3086 = vmul.f32 %v3078, %v3083
  %v3087 = vmul.f32 %v3079, %v3083
  %v3088 = vmul.f32 %v3080, %v3083
  %v3089 = vadd.f32 %v3061, %v3085
  %v3090 = vadd.f32 %v3062, %v3086
  %v3091 = vadd.f32 %v3063, %v3087
  %v3092 = vadd.f32 %v3064, %v3088
  %3093 = vset.pattern.permute.xlu0 2
  %3094 = vperm.xlu0 %3093, %v3051
  %v3095 = vpop.permute.xlu0 %3094
  %v3097 = vmul.f32 %v3031, %v3095
  %v3098 = vmul.f32 %v3032, %v3095
  %v3099 = vmul.f32 %v3033, %v3095
  %v3100 = vmul.f32 %v3034, %v3095
  %v3101 = vadd.f32 %v3089, %v3097
  %v3102 = vadd.f32 %v3090, %v3098
  %v3103 = vadd.f32 %v3091, %v3099
  %v3104 = vadd.f32 %v3092, %v3100
  %3105 = vrot.lane.b32.xlu0 %v3031, 127
  %v3106 = vpop.permute.xlu0 %3105
  %3107 = vrot.lane.b32.xlu0 %v3032, 127
  %v3108 = vpop.permute.xlu0 %3107
  %3109 = vrot.lane.b32.xlu0 %v3033, 127
  %v3110 = vpop.permute.xlu0 %3109
  %3111 = vrot.lane.b32.xlu0 %v3034, 127
  %v3112 = vpop.permute.xlu0 %3111
  %v3113 = vsel %vm321, %v3110, %v3112
  %v3114 = vsel %vm321, %v3108, %v3110
  %v3115 = vsel %vm321, %v3106, %v3108
  %v3116 = vsel %vm321, %v3112, %v3106
  %v3117 = vmul.f32 %v3115, %v336
  %v3118 = vmul.f32 %v3114, %v340
  %v3119 = vmul.f32 %v3113, %v344
  %v3120 = vmul.f32 %v3116, %v348
  %3121 = vset.pattern.permute.xlu0 3
  %3122 = vperm.xlu0 %3121, %v3051
  %v3123 = vpop.permute.xlu0 %3122
  %v3125 = vmul.f32 %v3117, %v3123
  %v3126 = vmul.f32 %v3118, %v3123
  %v3127 = vmul.f32 %v3119, %v3123
  %v3128 = vmul.f32 %v3120, %v3123
  %v3129 = vadd.f32 %v3101, %v3125
  %v3130 = vadd.f32 %v3102, %v3126
  %v3131 = vadd.f32 %v3103, %v3127
  %v3132 = vadd.f32 %v3104, %v3128
  %3133 = vrot.lane.b32.xlu0 %v3031, 126
  %v3134 = vpop.permute.xlu0 %3133
  %3135 = vrot.lane.b32.xlu0 %v3032, 126
  %v3136 = vpop.permute.xlu0 %3135
  %3137 = vrot.lane.b32.xlu0 %v3033, 126
  %v3138 = vpop.permute.xlu0 %3137
  %3139 = vrot.lane.b32.xlu0 %v3034, 126
  %v3140 = vpop.permute.xlu0 %3139
  %v3141 = vsel %vm379, %v3138, %v3140
  %v3142 = vsel %vm379, %v3136, %v3138
  %v3143 = vsel %vm379, %v3134, %v3136
  %v3144 = vsel %vm379, %v3140, %v3134
  %v3145 = vmul.f32 %v3143, %v394
  %v3146 = vmul.f32 %v3142, %v398
  %v3147 = vmul.f32 %v3141, %v402
  %v3148 = vmul.f32 %v3144, %v406
  %3149 = vset.pattern.permute.xlu0 4
  %3150 = vperm.xlu0 %3149, %v3051
  %v3151 = vpop.permute.xlu0 %3150
  %v3153 = vmul.f32 %v3145, %v3151
  %v3154 = vmul.f32 %v3146, %v3151
  %v3155 = vmul.f32 %v3147, %v3151
  %v3156 = vmul.f32 %v3148, %v3151
  %v3157 = vadd.f32 %v3129, %v3153
  %v3158 = vadd.f32 %v3130, %v3154
  %v3159 = vadd.f32 %v3131, %v3155
  %v3160 = vadd.f32 %v3132, %v3156
  %3161 = vrot.lane.b32.xlu0 %v3157, 32
  %v3162 = vpop.permute.xlu0 %3161
  %3163 = vrot.lane.b32.xlu0 %v3158, 32
  %v3164 = vpop.permute.xlu0 %3163
  %3165 = vrot.lane.b32.xlu0 %v3159, 32
  %v3166 = vpop.permute.xlu0 %3165
  %3167 = vrot.lane.b32.xlu0 %v3160, 32
  %v3168 = vpop.permute.xlu0 %3167
  %v3169 = vsel %vm437, %v3166, %v3168
  %v3170 = vsel %vm437, %v3164, %v3166
  %v3171 = vsel %vm437, %v3162, %v3164
  %v3172 = vsel %vm437, %v3168, %v3162
  %v3173 = vmul.f32 %v3172, %v452
  %v3174 = vmul.f32 %v3171, %v456
  %v3175 = vmul.f32 %v3170, %v460
  %v3176 = vmul.f32 %v3169, %v464
  %v3177 = vld [vmem:[%s35] sm:$0xff]
  %3179 = vset.pattern.permute.xlu0 0
  %3180 = vperm.xlu0 %3179, %v3177
  %v3181 = vpop.permute.xlu0 %3180
  %v3183 = vmul.f32 %v3173, %v3181
  %v3184 = vmul.f32 %v3174, %v3181
  %v3185 = vmul.f32 %v3175, %v3181
  %v3186 = vmul.f32 %v3176, %v3181
  %v3187 = vadd.f32 %v3183, 0.0
  %v3188 = vadd.f32 %v3184, 0.0
  %v3189 = vadd.f32 %v3185, 0.0
  %v3190 = vadd.f32 %v3186, 0.0
  %3191 = vrot.lane.b32.xlu0 %v3157, 16
  %v3192 = vpop.permute.xlu0 %3191
  %3193 = vrot.lane.b32.xlu0 %v3158, 16
  %v3194 = vpop.permute.xlu0 %3193
  %3195 = vrot.lane.b32.xlu0 %v3159, 16
  %v3196 = vpop.permute.xlu0 %3195
  %3197 = vrot.lane.b32.xlu0 %v3160, 16
  %v3198 = vpop.permute.xlu0 %3197
  %v3199 = vsel %vm495, %v3196, %v3198
  %v3200 = vsel %vm495, %v3194, %v3196
  %v3201 = vsel %vm495, %v3192, %v3194
  %v3202 = vsel %vm495, %v3198, %v3192
  %v3203 = vmul.f32 %v3202, %v510
  %v3204 = vmul.f32 %v3201, %v514
  %v3205 = vmul.f32 %v3200, %v518
  %v3206 = vmul.f32 %v3199, %v522
  %3207 = vset.pattern.permute.xlu0 1
  %3208 = vperm.xlu0 %3207, %v3177
  %v3209 = vpop.permute.xlu0 %3208
  %v3211 = vmul.f32 %v3203, %v3209
  %v3212 = vmul.f32 %v3204, %v3209
  %v3213 = vmul.f32 %v3205, %v3209
  %v3214 = vmul.f32 %v3206, %v3209
  %v3215 = vadd.f32 %v3187, %v3211
  %v3216 = vadd.f32 %v3188, %v3212
  %v3217 = vadd.f32 %v3189, %v3213
  %v3218 = vadd.f32 %v3190, %v3214
  %3219 = vset.pattern.permute.xlu0 2
  %3220 = vperm.xlu0 %3219, %v3177
  %v3221 = vpop.permute.xlu0 %3220
  %v3223 = vmul.f32 %v3157, %v3221
  %v3224 = vmul.f32 %v3158, %v3221
  %v3225 = vmul.f32 %v3159, %v3221
  %v3226 = vmul.f32 %v3160, %v3221
  %v3227 = vadd.f32 %v3215, %v3223
  %v3228 = vadd.f32 %v3216, %v3224
  %v3229 = vadd.f32 %v3217, %v3225
  %v3230 = vadd.f32 %v3218, %v3226
  %3231 = vrot.lane.b32.xlu0 %v3157, 112
  %v3232 = vpop.permute.xlu0 %3231
  %3233 = vrot.lane.b32.xlu0 %v3158, 112
  %v3234 = vpop.permute.xlu0 %3233
  %3235 = vrot.lane.b32.xlu0 %v3159, 112
  %v3236 = vpop.permute.xlu0 %3235
  %3237 = vrot.lane.b32.xlu0 %v3160, 112
  %v3238 = vpop.permute.xlu0 %3237
  %v3239 = vsel %vm563, %v3236, %v3238
  %v3240 = vsel %vm563, %v3234, %v3236
  %v3241 = vsel %vm563, %v3232, %v3234
  %v3242 = vsel %vm563, %v3238, %v3232
  %v3243 = vmul.f32 %v3241, %v578
  %v3244 = vmul.f32 %v3240, %v582
  %v3245 = vmul.f32 %v3239, %v586
  %v3246 = vmul.f32 %v3242, %v590
  %3247 = vset.pattern.permute.xlu0 3
  %3248 = vperm.xlu0 %3247, %v3177
  %v3249 = vpop.permute.xlu0 %3248
  %v3251 = vmul.f32 %v3243, %v3249
  %v3252 = vmul.f32 %v3244, %v3249
  %v3253 = vmul.f32 %v3245, %v3249
  %v3254 = vmul.f32 %v3246, %v3249
  %v3255 = vadd.f32 %v3227, %v3251
  %v3256 = vadd.f32 %v3228, %v3252
  %v3257 = vadd.f32 %v3229, %v3253
  %v3258 = vadd.f32 %v3230, %v3254
  %3259 = vrot.lane.b32.xlu0 %v3157, 96
  %v3260 = vpop.permute.xlu0 %3259
  %3261 = vrot.lane.b32.xlu0 %v3158, 96
  %v3262 = vpop.permute.xlu0 %3261
  %3263 = vrot.lane.b32.xlu0 %v3159, 96
  %v3264 = vpop.permute.xlu0 %3263
  %3265 = vrot.lane.b32.xlu0 %v3160, 96
  %v3266 = vpop.permute.xlu0 %3265
  %v3267 = vsel %vm619, %v3264, %v3266
  %v3268 = vsel %vm619, %v3262, %v3264
  %v3269 = vsel %vm619, %v3260, %v3262
  %v3270 = vsel %vm619, %v3266, %v3260
  %v3271 = vmul.f32 %v3269, %v634
  %v3272 = vmul.f32 %v3268, %v638
  %v3273 = vmul.f32 %v3267, %v642
  %v3274 = vmul.f32 %v3270, %v646
  %3275 = vset.pattern.permute.xlu0 4
  %3276 = vperm.xlu0 %3275, %v3177
  %v3277 = vpop.permute.xlu0 %3276
  %v3279 = vmul.f32 %v3271, %v3277
  %v3280 = vmul.f32 %v3272, %v3277
  %v3281 = vmul.f32 %v3273, %v3277
  %v3282 = vmul.f32 %v3274, %v3277
  %v3283 = vadd.f32 %v3255, %v3279
  %v3284 = vadd.f32 %v3256, %v3280
  %v3285 = vadd.f32 %v3257, %v3281
  %v3286 = vadd.f32 %v3258, %v3282
  %3287 = vrot.lane.b32.xlu0 %v3283, 34
  %v3288 = vpop.permute.xlu0 %3287
  %3289 = vrot.lane.b32.xlu0 %v3284, 34
  %v3290 = vpop.permute.xlu0 %3289
  %3291 = vrot.lane.b32.xlu0 %v3285, 34
  %v3292 = vpop.permute.xlu0 %3291
  %3293 = vrot.lane.b32.xlu0 %v3286, 34
  %v3294 = vpop.permute.xlu0 %3293
  %v3295 = vsel %vm679, %v3292, %v3294
  %v3296 = vsel %vm679, %v3290, %v3292
  %v3297 = vsel %vm679, %v3288, %v3290
  %v3298 = vsel %vm679, %v3294, %v3288
  %v3299 = vld [vmem:[%s39] sm:$0xff]
  %3301 = vset.pattern.permute.xlu0 0
  %3302 = vperm.xlu0 %3301, %v3299
  %v3303 = vpop.permute.xlu0 %3302
  %v3305 = vadd.f32 %v3298, %v3303
  %v3306 = vadd.f32 %v3297, %v3303
  %v3307 = vadd.f32 %v3296, %v3303
  %v3308 = vadd.f32 %v3295, %v3303
  %v3309 = vadd.f32 %v3305, %v698
  %v3310 = vadd.f32 %v3306, %v702
  %v3311 = vadd.f32 %v3307, %v706
  %v3312 = vadd.f32 %v3308, %v710
  %v3313 = vadd.f32 %v3309, %v723
  %v3314 = vadd.f32 %v3310, %v727
  %v3315 = vadd.f32 %v3311, %v731
  %v3316 = vadd.f32 %v3312, %v735
  %3317 = vrot.lane.b32.xlu0 %v3283, 33
  %v3318 = vpop.permute.xlu0 %3317
  %3319 = vrot.lane.b32.xlu0 %v3284, 33
  %v3320 = vpop.permute.xlu0 %3319
  %3321 = vrot.lane.b32.xlu0 %v3285, 33
  %v3322 = vpop.permute.xlu0 %3321
  %3323 = vrot.lane.b32.xlu0 %v3286, 33
  %v3324 = vpop.permute.xlu0 %3323
  %v3325 = vsel %vm754, %v3322, %v3324
  %v3326 = vsel %vm754, %v3320, %v3322
  %v3327 = vsel %vm754, %v3318, %v3320
  %v3328 = vsel %vm754, %v3324, %v3318
  %3329 = vset.pattern.permute.xlu0 1
  %3330 = vperm.xlu0 %3329, %v3299
  %v3331 = vpop.permute.xlu0 %3330
  %v3333 = vadd.f32 %v3328, %v3331
  %v3334 = vadd.f32 %v3327, %v3331
  %v3335 = vadd.f32 %v3326, %v3331
  %v3336 = vadd.f32 %v3325, %v3331
  %v3337 = vadd.f32 %v3333, %v698
  %v3338 = vadd.f32 %v3334, %v702
  %v3339 = vadd.f32 %v3335, %v706
  %v3340 = vadd.f32 %v3336, %v710
  %v3341 = vadd.f32 %v3337, %v775
  %v3342 = vadd.f32 %v3338, %v779
  %v3343 = vadd.f32 %v3339, %v783
  %v3344 = vadd.f32 %v3340, %v787
  %v3345 = vmin.f32 %v3313, %v3341
  %v3346 = vmin.f32 %v3314, %v3342
  %v3347 = vmin.f32 %v3315, %v3343
  %v3348 = vmin.f32 %v3316, %v3344
  %3349 = vrot.lane.b32.xlu0 %v3283, 32
  %v3350 = vpop.permute.xlu0 %3349
  %3351 = vrot.lane.b32.xlu0 %v3284, 32
  %v3352 = vpop.permute.xlu0 %3351
  %3353 = vrot.lane.b32.xlu0 %v3285, 32
  %v3354 = vpop.permute.xlu0 %3353
  %3355 = vrot.lane.b32.xlu0 %v3286, 32
  %v3356 = vpop.permute.xlu0 %3355
  %v3357 = vsel %vm437, %v3354, %v3356
  %v3358 = vsel %vm437, %v3352, %v3354
  %v3359 = vsel %vm437, %v3350, %v3352
  %v3360 = vsel %vm437, %v3356, %v3350
  %3361 = vset.pattern.permute.xlu0 2
  %3362 = vperm.xlu0 %3361, %v3299
  %v3363 = vpop.permute.xlu0 %3362
  %v3365 = vadd.f32 %v3360, %v3363
  %v3366 = vadd.f32 %v3359, %v3363
  %v3367 = vadd.f32 %v3358, %v3363
  %v3368 = vadd.f32 %v3357, %v3363
  %v3369 = vadd.f32 %v3365, %v698
  %v3370 = vadd.f32 %v3366, %v702
  %v3371 = vadd.f32 %v3367, %v706
  %v3372 = vadd.f32 %v3368, %v710
  %v3373 = vmin.f32 %v3345, %v3369
  %v3374 = vmin.f32 %v3346, %v3370
  %v3375 = vmin.f32 %v3347, %v3371
  %v3376 = vmin.f32 %v3348, %v3372
  %3377 = vrot.lane.b32.xlu0 %v3283, 31
  %v3378 = vpop.permute.xlu0 %3377
  %3379 = vrot.lane.b32.xlu0 %v3284, 31
  %v3380 = vpop.permute.xlu0 %3379
  %3381 = vrot.lane.b32.xlu0 %v3285, 31
  %v3382 = vpop.permute.xlu0 %3381
  %3383 = vrot.lane.b32.xlu0 %v3286, 31
  %v3384 = vpop.permute.xlu0 %3383
  %v3385 = vsel %vm838, %v3382, %v3384
  %v3386 = vsel %vm838, %v3380, %v3382
  %v3387 = vsel %vm838, %v3378, %v3380
  %v3388 = vsel %vm838, %v3384, %v3378
  %3389 = vset.pattern.permute.xlu0 3
  %3390 = vperm.xlu0 %3389, %v3299
  %v3391 = vpop.permute.xlu0 %3390
  %v3393 = vadd.f32 %v3388, %v3391
  %v3394 = vadd.f32 %v3387, %v3391
  %v3395 = vadd.f32 %v3386, %v3391
  %v3396 = vadd.f32 %v3385, %v3391
  %v3397 = vadd.f32 %v3393, %v698
  %v3398 = vadd.f32 %v3394, %v702
  %v3399 = vadd.f32 %v3395, %v706
  %v3400 = vadd.f32 %v3396, %v710
  %v3401 = vadd.f32 %v3397, %v859
  %v3402 = vadd.f32 %v3398, %v863
  %v3403 = vadd.f32 %v3399, %v867
  %v3404 = vadd.f32 %v3400, %v871
  %v3405 = vmin.f32 %v3373, %v3401
  %v3406 = vmin.f32 %v3374, %v3402
  %v3407 = vmin.f32 %v3375, %v3403
  %v3408 = vmin.f32 %v3376, %v3404
  %3409 = vrot.lane.b32.xlu0 %v3283, 30
  %v3410 = vpop.permute.xlu0 %3409
  %3411 = vrot.lane.b32.xlu0 %v3284, 30
  %v3412 = vpop.permute.xlu0 %3411
  %3413 = vrot.lane.b32.xlu0 %v3285, 30
  %v3414 = vpop.permute.xlu0 %3413
  %3415 = vrot.lane.b32.xlu0 %v3286, 30
  %v3416 = vpop.permute.xlu0 %3415
  %v3417 = vsel %vm894, %v3414, %v3416
  %v3418 = vsel %vm894, %v3412, %v3414
  %v3419 = vsel %vm894, %v3410, %v3412
  %v3420 = vsel %vm894, %v3416, %v3410
  %3421 = vset.pattern.permute.xlu0 4
  %3422 = vperm.xlu0 %3421, %v3299
  %v3423 = vpop.permute.xlu0 %3422
  %v3425 = vadd.f32 %v3420, %v3423
  %v3426 = vadd.f32 %v3419, %v3423
  %v3427 = vadd.f32 %v3418, %v3423
  %v3428 = vadd.f32 %v3417, %v3423
  %v3429 = vadd.f32 %v3425, %v698
  %v3430 = vadd.f32 %v3426, %v702
  %v3431 = vadd.f32 %v3427, %v706
  %v3432 = vadd.f32 %v3428, %v710
  %v3433 = vadd.f32 %v3429, %v915
  %v3434 = vadd.f32 %v3430, %v919
  %v3435 = vadd.f32 %v3431, %v923
  %v3436 = vadd.f32 %v3432, %v927
  %v3437 = vmin.f32 %v3405, %v3433
  %v3438 = vmin.f32 %v3406, %v3434
  %v3439 = vmin.f32 %v3407, %v3435
  %v3440 = vmin.f32 %v3408, %v3436
  %3441 = vrot.lane.b32.xlu0 %v3283, 18
  %v3442 = vpop.permute.xlu0 %3441
  %3443 = vrot.lane.b32.xlu0 %v3284, 18
  %v3444 = vpop.permute.xlu0 %3443
  %3445 = vrot.lane.b32.xlu0 %v3285, 18
  %v3446 = vpop.permute.xlu0 %3445
  %3447 = vrot.lane.b32.xlu0 %v3286, 18
  %v3448 = vpop.permute.xlu0 %3447
  %v3449 = vsel %vm950, %v3446, %v3448
  %v3450 = vsel %vm950, %v3444, %v3446
  %v3451 = vsel %vm950, %v3442, %v3444
  %v3452 = vsel %vm950, %v3448, %v3442
  %3453 = vset.pattern.permute.xlu0 5
  %3454 = vperm.xlu0 %3453, %v3299
  %v3455 = vpop.permute.xlu0 %3454
  %v3457 = vadd.f32 %v3452, %v3455
  %v3458 = vadd.f32 %v3451, %v3455
  %v3459 = vadd.f32 %v3450, %v3455
  %v3460 = vadd.f32 %v3449, %v3455
  %v3461 = vadd.f32 %v3457, %v967
  %v3462 = vadd.f32 %v3458, %v971
  %v3463 = vadd.f32 %v3459, %v975
  %v3464 = vadd.f32 %v3460, %v979
  %v3465 = vadd.f32 %v3461, %v723
  %v3466 = vadd.f32 %v3462, %v727
  %v3467 = vadd.f32 %v3463, %v731
  %v3468 = vadd.f32 %v3464, %v735
  %v3469 = vmin.f32 %v3437, %v3465
  %v3470 = vmin.f32 %v3438, %v3466
  %v3471 = vmin.f32 %v3439, %v3467
  %v3472 = vmin.f32 %v3440, %v3468
  %3473 = vrot.lane.b32.xlu0 %v3283, 17
  %v3474 = vpop.permute.xlu0 %3473
  %3475 = vrot.lane.b32.xlu0 %v3284, 17
  %v3476 = vpop.permute.xlu0 %3475
  %3477 = vrot.lane.b32.xlu0 %v3285, 17
  %v3478 = vpop.permute.xlu0 %3477
  %3479 = vrot.lane.b32.xlu0 %v3286, 17
  %v3480 = vpop.permute.xlu0 %3479
  %v3481 = vsel %vm1004, %v3478, %v3480
  %v3482 = vsel %vm1004, %v3476, %v3478
  %v3483 = vsel %vm1004, %v3474, %v3476
  %v3484 = vsel %vm1004, %v3480, %v3474
  %3485 = vset.pattern.permute.xlu0 6
  %3486 = vperm.xlu0 %3485, %v3299
  %v3487 = vpop.permute.xlu0 %3486
  %v3489 = vadd.f32 %v3484, %v3487
  %v3490 = vadd.f32 %v3483, %v3487
  %v3491 = vadd.f32 %v3482, %v3487
  %v3492 = vadd.f32 %v3481, %v3487
  %v3493 = vadd.f32 %v3489, %v967
  %v3494 = vadd.f32 %v3490, %v971
  %v3495 = vadd.f32 %v3491, %v975
  %v3496 = vadd.f32 %v3492, %v979
  %v3497 = vadd.f32 %v3493, %v775
  %v3498 = vadd.f32 %v3494, %v779
  %v3499 = vadd.f32 %v3495, %v783
  %v3500 = vadd.f32 %v3496, %v787
  %v3501 = vmin.f32 %v3469, %v3497
  %v3502 = vmin.f32 %v3470, %v3498
  %v3503 = vmin.f32 %v3471, %v3499
  %v3504 = vmin.f32 %v3472, %v3500
  %3505 = vrot.lane.b32.xlu0 %v3283, 16
  %v3506 = vpop.permute.xlu0 %3505
  %3507 = vrot.lane.b32.xlu0 %v3284, 16
  %v3508 = vpop.permute.xlu0 %3507
  %3509 = vrot.lane.b32.xlu0 %v3285, 16
  %v3510 = vpop.permute.xlu0 %3509
  %3511 = vrot.lane.b32.xlu0 %v3286, 16
  %v3512 = vpop.permute.xlu0 %3511
  %v3513 = vsel %vm495, %v3510, %v3512
  %v3514 = vsel %vm495, %v3508, %v3510
  %v3515 = vsel %vm495, %v3506, %v3508
  %v3516 = vsel %vm495, %v3512, %v3506
  %3517 = vset.pattern.permute.xlu0 7
  %3518 = vperm.xlu0 %3517, %v3299
  %v3519 = vpop.permute.xlu0 %3518
  %v3521 = vadd.f32 %v3516, %v3519
  %v3522 = vadd.f32 %v3515, %v3519
  %v3523 = vadd.f32 %v3514, %v3519
  %v3524 = vadd.f32 %v3513, %v3519
  %v3525 = vadd.f32 %v3521, %v967
  %v3526 = vadd.f32 %v3522, %v971
  %v3527 = vadd.f32 %v3523, %v975
  %v3528 = vadd.f32 %v3524, %v979
  %v3529 = vmin.f32 %v3501, %v3525
  %v3530 = vmin.f32 %v3502, %v3526
  %v3531 = vmin.f32 %v3503, %v3527
  %v3532 = vmin.f32 %v3504, %v3528
  %3533 = vrot.lane.b32.xlu0 %v3283, 15
  %v3534 = vpop.permute.xlu0 %3533
  %3535 = vrot.lane.b32.xlu0 %v3284, 15
  %v3536 = vpop.permute.xlu0 %3535
  %3537 = vrot.lane.b32.xlu0 %v3285, 15
  %v3538 = vpop.permute.xlu0 %3537
  %3539 = vrot.lane.b32.xlu0 %v3286, 15
  %v3540 = vpop.permute.xlu0 %3539
  %v3541 = vsel %vm1065, %v3538, %v3540
  %v3542 = vsel %vm1065, %v3536, %v3538
  %v3543 = vsel %vm1065, %v3534, %v3536
  %v3544 = vsel %vm1065, %v3540, %v3534
  %3545 = vset.pattern.permute.xlu0 8
  %3546 = vperm.xlu0 %3545, %v3299
  %v3547 = vpop.permute.xlu0 %3546
  %v3549 = vadd.f32 %v3544, %v3547
  %v3550 = vadd.f32 %v3543, %v3547
  %v3551 = vadd.f32 %v3542, %v3547
  %v3552 = vadd.f32 %v3541, %v3547
  %v3553 = vadd.f32 %v3549, %v967
  %v3554 = vadd.f32 %v3550, %v971
  %v3555 = vadd.f32 %v3551, %v975
  %v3556 = vadd.f32 %v3552, %v979
  %v3557 = vadd.f32 %v3553, %v859
  %v3558 = vadd.f32 %v3554, %v863
  %v3559 = vadd.f32 %v3555, %v867
  %v3560 = vadd.f32 %v3556, %v871
  %v3561 = vmin.f32 %v3529, %v3557
  %v3562 = vmin.f32 %v3530, %v3558
  %v3563 = vmin.f32 %v3531, %v3559
  %v3564 = vmin.f32 %v3532, %v3560
  %3565 = vrot.lane.b32.xlu0 %v3283, 14
  %v3566 = vpop.permute.xlu0 %3565
  %3567 = vrot.lane.b32.xlu0 %v3284, 14
  %v3568 = vpop.permute.xlu0 %3567
  %3569 = vrot.lane.b32.xlu0 %v3285, 14
  %v3570 = vpop.permute.xlu0 %3569
  %3571 = vrot.lane.b32.xlu0 %v3286, 14
  %v3572 = vpop.permute.xlu0 %3571
  %v3573 = vsel %vm1098, %v3570, %v3572
  %v3574 = vsel %vm1098, %v3568, %v3570
  %v3575 = vsel %vm1098, %v3566, %v3568
  %v3576 = vsel %vm1098, %v3572, %v3566
  %3577 = vset.pattern.permute.xlu0 9
  %3578 = vperm.xlu0 %3577, %v3299
  %v3579 = vpop.permute.xlu0 %3578
  %v3581 = vadd.f32 %v3576, %v3579
  %v3582 = vadd.f32 %v3575, %v3579
  %v3583 = vadd.f32 %v3574, %v3579
  %v3584 = vadd.f32 %v3573, %v3579
  %v3585 = vadd.f32 %v3581, %v967
  %v3586 = vadd.f32 %v3582, %v971
  %v3587 = vadd.f32 %v3583, %v975
  %v3588 = vadd.f32 %v3584, %v979
  %v3589 = vadd.f32 %v3585, %v915
  %v3590 = vadd.f32 %v3586, %v919
  %v3591 = vadd.f32 %v3587, %v923
  %v3592 = vadd.f32 %v3588, %v927
  %v3593 = vmin.f32 %v3561, %v3589
  %v3594 = vmin.f32 %v3562, %v3590
  %v3595 = vmin.f32 %v3563, %v3591
  %v3596 = vmin.f32 %v3564, %v3592
  %3597 = vrot.lane.b32.xlu0 %v3283, 2
  %v3598 = vpop.permute.xlu0 %3597
  %3599 = vrot.lane.b32.xlu0 %v3284, 2
  %v3600 = vpop.permute.xlu0 %3599
  %3601 = vrot.lane.b32.xlu0 %v3285, 2
  %v3602 = vpop.permute.xlu0 %3601
  %3603 = vrot.lane.b32.xlu0 %v3286, 2
  %v3604 = vpop.permute.xlu0 %3603
  %v3605 = vsel %vm182, %v3602, %v3604
  %v3606 = vsel %vm182, %v3600, %v3602
  %v3607 = vsel %vm182, %v3598, %v3600
  %v3608 = vsel %vm182, %v3604, %v3598
  %3609 = vset.pattern.permute.xlu0 10
  %3610 = vperm.xlu0 %3609, %v3299
  %v3611 = vpop.permute.xlu0 %3610
  %v3613 = vadd.f32 %v3608, %v3611
  %v3614 = vadd.f32 %v3607, %v3611
  %v3615 = vadd.f32 %v3606, %v3611
  %v3616 = vadd.f32 %v3605, %v3611
  %v3617 = vadd.f32 %v3613, %v723
  %v3618 = vadd.f32 %v3614, %v727
  %v3619 = vadd.f32 %v3615, %v731
  %v3620 = vadd.f32 %v3616, %v735
  %v3621 = vmin.f32 %v3593, %v3617
  %v3622 = vmin.f32 %v3594, %v3618
  %v3623 = vmin.f32 %v3595, %v3619
  %v3624 = vmin.f32 %v3596, %v3620
  %3625 = vrot.lane.b32.xlu0 %v3283, 1
  %v3626 = vpop.permute.xlu0 %3625
  %3627 = vrot.lane.b32.xlu0 %v3284, 1
  %v3628 = vpop.permute.xlu0 %3627
  %3629 = vrot.lane.b32.xlu0 %v3285, 1
  %v3630 = vpop.permute.xlu0 %3629
  %3631 = vrot.lane.b32.xlu0 %v3286, 1
  %v3632 = vpop.permute.xlu0 %3631
  %v3633 = vsel %vm240, %v3630, %v3632
  %v3634 = vsel %vm240, %v3628, %v3630
  %v3635 = vsel %vm240, %v3626, %v3628
  %v3636 = vsel %vm240, %v3632, %v3626
  %3637 = vset.pattern.permute.xlu0 11
  %3638 = vperm.xlu0 %3637, %v3299
  %v3639 = vpop.permute.xlu0 %3638
  %v3641 = vadd.f32 %v3636, %v3639
  %v3642 = vadd.f32 %v3635, %v3639
  %v3643 = vadd.f32 %v3634, %v3639
  %v3644 = vadd.f32 %v3633, %v3639
  %v3645 = vadd.f32 %v3641, %v775
  %v3646 = vadd.f32 %v3642, %v779
  %v3647 = vadd.f32 %v3643, %v783
  %v3648 = vadd.f32 %v3644, %v787
  %v3649 = vmin.f32 %v3621, %v3645
  %v3650 = vmin.f32 %v3622, %v3646
  %v3651 = vmin.f32 %v3623, %v3647
  %v3652 = vmin.f32 %v3624, %v3648
  %3653 = vset.pattern.permute.xlu0 12
  %3654 = vperm.xlu0 %3653, %v3299
  %v3655 = vpop.permute.xlu0 %3654
  %v3657 = vadd.f32 %v3283, %v3655
  %v3658 = vadd.f32 %v3284, %v3655
  %v3659 = vadd.f32 %v3285, %v3655
  %v3660 = vadd.f32 %v3286, %v3655
  %v3661 = vmin.f32 %v3649, %v3657
  %v3662 = vmin.f32 %v3650, %v3658
  %v3663 = vmin.f32 %v3651, %v3659
  %v3664 = vmin.f32 %v3652, %v3660
  %3665 = vrot.lane.b32.xlu0 %v3283, 127
  %v3666 = vpop.permute.xlu0 %3665
  %3667 = vrot.lane.b32.xlu0 %v3284, 127
  %v3668 = vpop.permute.xlu0 %3667
  %3669 = vrot.lane.b32.xlu0 %v3285, 127
  %v3670 = vpop.permute.xlu0 %3669
  %3671 = vrot.lane.b32.xlu0 %v3286, 127
  %v3672 = vpop.permute.xlu0 %3671
  %v3673 = vsel %vm321, %v3670, %v3672
  %v3674 = vsel %vm321, %v3668, %v3670
  %v3675 = vsel %vm321, %v3666, %v3668
  %v3676 = vsel %vm321, %v3672, %v3666
  %3677 = vset.pattern.permute.xlu0 13
  %3678 = vperm.xlu0 %3677, %v3299
  %v3679 = vpop.permute.xlu0 %3678
  %v3681 = vadd.f32 %v3675, %v3679
  %v3682 = vadd.f32 %v3674, %v3679
  %v3683 = vadd.f32 %v3673, %v3679
  %v3684 = vadd.f32 %v3676, %v3679
  %v3685 = vadd.f32 %v3681, %v859
  %v3686 = vadd.f32 %v3682, %v863
  %v3687 = vadd.f32 %v3683, %v867
  %v3688 = vadd.f32 %v3684, %v871
  %v3689 = vmin.f32 %v3661, %v3685
  %v3690 = vmin.f32 %v3662, %v3686
  %v3691 = vmin.f32 %v3663, %v3687
  %v3692 = vmin.f32 %v3664, %v3688
  %3693 = vrot.lane.b32.xlu0 %v3283, 126
  %v3694 = vpop.permute.xlu0 %3693
  %3695 = vrot.lane.b32.xlu0 %v3284, 126
  %v3696 = vpop.permute.xlu0 %3695
  %3697 = vrot.lane.b32.xlu0 %v3285, 126
  %v3698 = vpop.permute.xlu0 %3697
  %3699 = vrot.lane.b32.xlu0 %v3286, 126
  %v3700 = vpop.permute.xlu0 %3699
  %v3701 = vsel %vm379, %v3698, %v3700
  %v3702 = vsel %vm379, %v3696, %v3698
  %v3703 = vsel %vm379, %v3694, %v3696
  %v3704 = vsel %vm379, %v3700, %v3694
  %3705 = vset.pattern.permute.xlu0 14
  %3706 = vperm.xlu0 %3705, %v3299
  %v3707 = vpop.permute.xlu0 %3706
  %v3709 = vadd.f32 %v3703, %v3707
  %v3710 = vadd.f32 %v3702, %v3707
  %v3711 = vadd.f32 %v3701, %v3707
  %v3712 = vadd.f32 %v3704, %v3707
  %v3713 = vadd.f32 %v3709, %v915
  %v3714 = vadd.f32 %v3710, %v919
  %v3715 = vadd.f32 %v3711, %v923
  %v3716 = vadd.f32 %v3712, %v927
  %v3717 = vmin.f32 %v3689, %v3713
  %v3718 = vmin.f32 %v3690, %v3714
  %v3719 = vmin.f32 %v3691, %v3715
  %v3720 = vmin.f32 %v3692, %v3716
  %3721 = vrot.lane.b32.xlu0 %v3283, 114
  %v3722 = vpop.permute.xlu0 %3721
  %3723 = vrot.lane.b32.xlu0 %v3284, 114
  %v3724 = vpop.permute.xlu0 %3723
  %3725 = vrot.lane.b32.xlu0 %v3285, 114
  %v3726 = vpop.permute.xlu0 %3725
  %3727 = vrot.lane.b32.xlu0 %v3286, 114
  %v3728 = vpop.permute.xlu0 %3727
  %v3729 = vsel %vm1257, %v3726, %v3728
  %v3730 = vsel %vm1257, %v3724, %v3726
  %v3731 = vsel %vm1257, %v3722, %v3724
  %v3732 = vsel %vm1257, %v3728, %v3722
  %3733 = vset.pattern.permute.xlu0 15
  %3734 = vperm.xlu0 %3733, %v3299
  %v3735 = vpop.permute.xlu0 %3734
  %v3737 = vadd.f32 %v3731, %v3735
  %v3738 = vadd.f32 %v3730, %v3735
  %v3739 = vadd.f32 %v3729, %v3735
  %v3740 = vadd.f32 %v3732, %v3735
  %v3741 = vadd.f32 %v3737, %v1274
  %v3742 = vadd.f32 %v3738, %v1278
  %v3743 = vadd.f32 %v3739, %v1282
  %v3744 = vadd.f32 %v3740, %v1286
  %v3745 = vadd.f32 %v3741, %v723
  %v3746 = vadd.f32 %v3742, %v727
  %v3747 = vadd.f32 %v3743, %v731
  %v3748 = vadd.f32 %v3744, %v735
  %v3749 = vmin.f32 %v3717, %v3745
  %v3750 = vmin.f32 %v3718, %v3746
  %v3751 = vmin.f32 %v3719, %v3747
  %v3752 = vmin.f32 %v3720, %v3748
  %3753 = vrot.lane.b32.xlu0 %v3283, 113
  %v3754 = vpop.permute.xlu0 %3753
  %3755 = vrot.lane.b32.xlu0 %v3284, 113
  %v3756 = vpop.permute.xlu0 %3755
  %3757 = vrot.lane.b32.xlu0 %v3285, 113
  %v3758 = vpop.permute.xlu0 %3757
  %3759 = vrot.lane.b32.xlu0 %v3286, 113
  %v3760 = vpop.permute.xlu0 %3759
  %v3761 = vsel %vm1311, %v3758, %v3760
  %v3762 = vsel %vm1311, %v3756, %v3758
  %v3763 = vsel %vm1311, %v3754, %v3756
  %v3764 = vsel %vm1311, %v3760, %v3754
  %3765 = vset.pattern.permute.xlu0 16
  %3766 = vperm.xlu0 %3765, %v3299
  %v3767 = vpop.permute.xlu0 %3766
  %v3769 = vadd.f32 %v3763, %v3767
  %v3770 = vadd.f32 %v3762, %v3767
  %v3771 = vadd.f32 %v3761, %v3767
  %v3772 = vadd.f32 %v3764, %v3767
  %v3773 = vadd.f32 %v3769, %v1274
  %v3774 = vadd.f32 %v3770, %v1278
  %v3775 = vadd.f32 %v3771, %v1282
  %v3776 = vadd.f32 %v3772, %v1286
  %v3777 = vadd.f32 %v3773, %v775
  %v3778 = vadd.f32 %v3774, %v779
  %v3779 = vadd.f32 %v3775, %v783
  %v3780 = vadd.f32 %v3776, %v787
  %v3781 = vmin.f32 %v3749, %v3777
  %v3782 = vmin.f32 %v3750, %v3778
  %v3783 = vmin.f32 %v3751, %v3779
  %v3784 = vmin.f32 %v3752, %v3780
  %3785 = vrot.lane.b32.xlu0 %v3283, 112
  %v3786 = vpop.permute.xlu0 %3785
  %3787 = vrot.lane.b32.xlu0 %v3284, 112
  %v3788 = vpop.permute.xlu0 %3787
  %3789 = vrot.lane.b32.xlu0 %v3285, 112
  %v3790 = vpop.permute.xlu0 %3789
  %3791 = vrot.lane.b32.xlu0 %v3286, 112
  %v3792 = vpop.permute.xlu0 %3791
  %v3793 = vsel %vm563, %v3790, %v3792
  %v3794 = vsel %vm563, %v3788, %v3790
  %v3795 = vsel %vm563, %v3786, %v3788
  %v3796 = vsel %vm563, %v3792, %v3786
  %3797 = vset.pattern.permute.xlu0 17
  %3798 = vperm.xlu0 %3797, %v3299
  %v3799 = vpop.permute.xlu0 %3798
  %v3801 = vadd.f32 %v3795, %v3799
  %v3802 = vadd.f32 %v3794, %v3799
  %v3803 = vadd.f32 %v3793, %v3799
  %v3804 = vadd.f32 %v3796, %v3799
  %v3805 = vadd.f32 %v3801, %v1274
  %v3806 = vadd.f32 %v3802, %v1278
  %v3807 = vadd.f32 %v3803, %v1282
  %v3808 = vadd.f32 %v3804, %v1286
  %v3809 = vmin.f32 %v3781, %v3805
  %v3810 = vmin.f32 %v3782, %v3806
  %v3811 = vmin.f32 %v3783, %v3807
  %v3812 = vmin.f32 %v3784, %v3808
  %3813 = vrot.lane.b32.xlu0 %v3283, 111
  %v3814 = vpop.permute.xlu0 %3813
  %3815 = vrot.lane.b32.xlu0 %v3284, 111
  %v3816 = vpop.permute.xlu0 %3815
  %3817 = vrot.lane.b32.xlu0 %v3285, 111
  %v3818 = vpop.permute.xlu0 %3817
  %3819 = vrot.lane.b32.xlu0 %v3286, 111
  %v3820 = vpop.permute.xlu0 %3819
  %v3821 = vsel %vm1372, %v3818, %v3820
  %v3822 = vsel %vm1372, %v3816, %v3818
  %v3823 = vsel %vm1372, %v3814, %v3816
  %v3824 = vsel %vm1372, %v3820, %v3814
  %3825 = vset.pattern.permute.xlu0 18
  %3826 = vperm.xlu0 %3825, %v3299
  %v3827 = vpop.permute.xlu0 %3826
  %v3829 = vadd.f32 %v3823, %v3827
  %v3830 = vadd.f32 %v3822, %v3827
  %v3831 = vadd.f32 %v3821, %v3827
  %v3832 = vadd.f32 %v3824, %v3827
  %v3833 = vadd.f32 %v3829, %v1274
  %v3834 = vadd.f32 %v3830, %v1278
  %v3835 = vadd.f32 %v3831, %v1282
  %v3836 = vadd.f32 %v3832, %v1286
  %v3837 = vadd.f32 %v3833, %v859
  %v3838 = vadd.f32 %v3834, %v863
  %v3839 = vadd.f32 %v3835, %v867
  %v3840 = vadd.f32 %v3836, %v871
  %v3841 = vmin.f32 %v3809, %v3837
  %v3842 = vmin.f32 %v3810, %v3838
  %v3843 = vmin.f32 %v3811, %v3839
  %v3844 = vmin.f32 %v3812, %v3840
  %3845 = vrot.lane.b32.xlu0 %v3283, 110
  %v3846 = vpop.permute.xlu0 %3845
  %3847 = vrot.lane.b32.xlu0 %v3284, 110
  %v3848 = vpop.permute.xlu0 %3847
  %3849 = vrot.lane.b32.xlu0 %v3285, 110
  %v3850 = vpop.permute.xlu0 %3849
  %3851 = vrot.lane.b32.xlu0 %v3286, 110
  %v3852 = vpop.permute.xlu0 %3851
  %v3853 = vsel %vm1405, %v3850, %v3852
  %v3854 = vsel %vm1405, %v3848, %v3850
  %v3855 = vsel %vm1405, %v3846, %v3848
  %v3856 = vsel %vm1405, %v3852, %v3846
  %3857 = vset.pattern.permute.xlu0 19
  %3858 = vperm.xlu0 %3857, %v3299
  %v3859 = vpop.permute.xlu0 %3858
  %v3861 = vadd.f32 %v3855, %v3859
  %v3862 = vadd.f32 %v3854, %v3859
  %v3863 = vadd.f32 %v3853, %v3859
  %v3864 = vadd.f32 %v3856, %v3859
  %v3865 = vadd.f32 %v3861, %v1274
  %v3866 = vadd.f32 %v3862, %v1278
  %v3867 = vadd.f32 %v3863, %v1282
  %v3868 = vadd.f32 %v3864, %v1286
  %v3869 = vadd.f32 %v3865, %v915
  %v3870 = vadd.f32 %v3866, %v919
  %v3871 = vadd.f32 %v3867, %v923
  %v3872 = vadd.f32 %v3868, %v927
  %v3873 = vmin.f32 %v3841, %v3869
  %v3874 = vmin.f32 %v3842, %v3870
  %v3875 = vmin.f32 %v3843, %v3871
  %v3876 = vmin.f32 %v3844, %v3872
  %3877 = vrot.lane.b32.xlu0 %v3283, 98
  %v3878 = vpop.permute.xlu0 %3877
  %3879 = vrot.lane.b32.xlu0 %v3284, 98
  %v3880 = vpop.permute.xlu0 %3879
  %3881 = vrot.lane.b32.xlu0 %v3285, 98
  %v3882 = vpop.permute.xlu0 %3881
  %3883 = vrot.lane.b32.xlu0 %v3286, 98
  %v3884 = vpop.permute.xlu0 %3883
  %v3885 = vsel %vm1440, %v3882, %v3884
  %v3886 = vsel %vm1440, %v3880, %v3882
  %v3887 = vsel %vm1440, %v3878, %v3880
  %v3888 = vsel %vm1440, %v3884, %v3878
  %3889 = vset.pattern.permute.xlu0 20
  %3890 = vperm.xlu0 %3889, %v3299
  %v3891 = vpop.permute.xlu0 %3890
  %v3893 = vadd.f32 %v3887, %v3891
  %v3894 = vadd.f32 %v3886, %v3891
  %v3895 = vadd.f32 %v3885, %v3891
  %v3896 = vadd.f32 %v3888, %v3891
  %v3897 = vadd.f32 %v3893, %v1457
  %v3898 = vadd.f32 %v3894, %v1461
  %v3899 = vadd.f32 %v3895, %v1465
  %v3900 = vadd.f32 %v3896, %v1469
  %v3901 = vadd.f32 %v3897, %v723
  %v3902 = vadd.f32 %v3898, %v727
  %v3903 = vadd.f32 %v3899, %v731
  %v3904 = vadd.f32 %v3900, %v735
  %v3905 = vmin.f32 %v3873, %v3901
  %v3906 = vmin.f32 %v3874, %v3902
  %v3907 = vmin.f32 %v3875, %v3903
  %v3908 = vmin.f32 %v3876, %v3904
  %3909 = vrot.lane.b32.xlu0 %v3283, 97
  %v3910 = vpop.permute.xlu0 %3909
  %3911 = vrot.lane.b32.xlu0 %v3284, 97
  %v3912 = vpop.permute.xlu0 %3911
  %3913 = vrot.lane.b32.xlu0 %v3285, 97
  %v3914 = vpop.permute.xlu0 %3913
  %3915 = vrot.lane.b32.xlu0 %v3286, 97
  %v3916 = vpop.permute.xlu0 %3915
  %v3917 = vsel %vm1494, %v3914, %v3916
  %v3918 = vsel %vm1494, %v3912, %v3914
  %v3919 = vsel %vm1494, %v3910, %v3912
  %v3920 = vsel %vm1494, %v3916, %v3910
  %3921 = vset.pattern.permute.xlu0 21
  %3922 = vperm.xlu0 %3921, %v3299
  %v3923 = vpop.permute.xlu0 %3922
  %v3925 = vadd.f32 %v3919, %v3923
  %v3926 = vadd.f32 %v3918, %v3923
  %v3927 = vadd.f32 %v3917, %v3923
  %v3928 = vadd.f32 %v3920, %v3923
  %v3929 = vadd.f32 %v3925, %v1457
  %v3930 = vadd.f32 %v3926, %v1461
  %v3931 = vadd.f32 %v3927, %v1465
  %v3932 = vadd.f32 %v3928, %v1469
  %v3933 = vadd.f32 %v3929, %v775
  %v3934 = vadd.f32 %v3930, %v779
  %v3935 = vadd.f32 %v3931, %v783
  %v3936 = vadd.f32 %v3932, %v787
  %v3937 = vmin.f32 %v3905, %v3933
  %v3938 = vmin.f32 %v3906, %v3934
  %v3939 = vmin.f32 %v3907, %v3935
  %v3940 = vmin.f32 %v3908, %v3936
  %3941 = vrot.lane.b32.xlu0 %v3283, 96
  %v3942 = vpop.permute.xlu0 %3941
  %3943 = vrot.lane.b32.xlu0 %v3284, 96
  %v3944 = vpop.permute.xlu0 %3943
  %3945 = vrot.lane.b32.xlu0 %v3285, 96
  %v3946 = vpop.permute.xlu0 %3945
  %3947 = vrot.lane.b32.xlu0 %v3286, 96
  %v3948 = vpop.permute.xlu0 %3947
  %v3949 = vsel %vm619, %v3946, %v3948
  %v3950 = vsel %vm619, %v3944, %v3946
  %v3951 = vsel %vm619, %v3942, %v3944
  %v3952 = vsel %vm619, %v3948, %v3942
  %3953 = vset.pattern.permute.xlu0 22
  %3954 = vperm.xlu0 %3953, %v3299
  %v3955 = vpop.permute.xlu0 %3954
  %v3957 = vadd.f32 %v3951, %v3955
  %v3958 = vadd.f32 %v3950, %v3955
  %v3959 = vadd.f32 %v3949, %v3955
  %v3960 = vadd.f32 %v3952, %v3955
  %v3961 = vadd.f32 %v3957, %v1457
  %v3962 = vadd.f32 %v3958, %v1461
  %v3963 = vadd.f32 %v3959, %v1465
  %v3964 = vadd.f32 %v3960, %v1469
  %v3965 = vmin.f32 %v3937, %v3961
  %v3966 = vmin.f32 %v3938, %v3962
  %v3967 = vmin.f32 %v3939, %v3963
  %v3968 = vmin.f32 %v3940, %v3964
  %3969 = vrot.lane.b32.xlu0 %v3283, 95
  %v3970 = vpop.permute.xlu0 %3969
  %3971 = vrot.lane.b32.xlu0 %v3284, 95
  %v3972 = vpop.permute.xlu0 %3971
  %3973 = vrot.lane.b32.xlu0 %v3285, 95
  %v3974 = vpop.permute.xlu0 %3973
  %3975 = vrot.lane.b32.xlu0 %v3286, 95
  %v3976 = vpop.permute.xlu0 %3975
  %v3977 = vsel %vm1555, %v3974, %v3976
  %v3978 = vsel %vm1555, %v3972, %v3974
  %v3979 = vsel %vm1555, %v3970, %v3972
  %v3980 = vsel %vm1555, %v3976, %v3970
  %3981 = vset.pattern.permute.xlu0 23
  %3982 = vperm.xlu0 %3981, %v3299
  %v3983 = vpop.permute.xlu0 %3982
  %v3985 = vadd.f32 %v3979, %v3983
  %v3986 = vadd.f32 %v3978, %v3983
  %v3987 = vadd.f32 %v3977, %v3983
  %v3988 = vadd.f32 %v3980, %v3983
  %v3989 = vadd.f32 %v3985, %v1457
  %v3990 = vadd.f32 %v3986, %v1461
  %v3991 = vadd.f32 %v3987, %v1465
  %v3992 = vadd.f32 %v3988, %v1469
  %v3993 = vadd.f32 %v3989, %v859
  %v3994 = vadd.f32 %v3990, %v863
  %v3995 = vadd.f32 %v3991, %v867
  %v3996 = vadd.f32 %v3992, %v871
  %v3997 = vmin.f32 %v3965, %v3993
  %v3998 = vmin.f32 %v3966, %v3994
  %v3999 = vmin.f32 %v3967, %v3995
  %v4000 = vmin.f32 %v3968, %v3996
  %4001 = vrot.lane.b32.xlu0 %v3283, 94
  %v4002 = vpop.permute.xlu0 %4001
  %4003 = vrot.lane.b32.xlu0 %v3284, 94
  %v4004 = vpop.permute.xlu0 %4003
  %4005 = vrot.lane.b32.xlu0 %v3285, 94
  %v4006 = vpop.permute.xlu0 %4005
  %4007 = vrot.lane.b32.xlu0 %v3286, 94
  %v4008 = vpop.permute.xlu0 %4007
  %v4009 = vsel %vm1588, %v4006, %v4008
  %v4010 = vsel %vm1588, %v4004, %v4006
  %v4011 = vsel %vm1588, %v4002, %v4004
  %v4012 = vsel %vm1588, %v4008, %v4002
  %4013 = vset.pattern.permute.xlu0 24
  %4014 = vperm.xlu0 %4013, %v3299
  %v4015 = vpop.permute.xlu0 %4014
  %v4017 = vadd.f32 %v4011, %v4015
  %v4018 = vadd.f32 %v4010, %v4015
  %v4019 = vadd.f32 %v4009, %v4015
  %v4020 = vadd.f32 %v4012, %v4015
  %v4021 = vadd.f32 %v4017, %v1457
  %v4022 = vadd.f32 %v4018, %v1461
  %v4023 = vadd.f32 %v4019, %v1465
  %v4024 = vadd.f32 %v4020, %v1469
  %v4025 = vadd.f32 %v4021, %v915
  %v4026 = vadd.f32 %v4022, %v919
  %v4027 = vadd.f32 %v4023, %v923
  %v4028 = vadd.f32 %v4024, %v927
  %v4029 = vmin.f32 %v3997, %v4025
  %v4030 = vmin.f32 %v3998, %v4026
  %v4031 = vmin.f32 %v3999, %v4027
  %v4032 = vmin.f32 %v4000, %v4028
  %v4033 = vlaneseq
  %v4034 = vshrl.u32 %v4033, 7
  %v4035 = vsub.s32 0, %v4034
  %v4036 = vrot.slane %v4029, %v4035
  %v4037 = vlaneseq
  %v4038 = vshrl.u32 %v4037, 7
  %v4039 = vsub.s32 0, %v4038
  %v4040 = vrot.slane %v4030, %v4039
  %v4041 = vlaneseq
  %v4042 = vshrl.u32 %v4041, 7
  %v4043 = vsub.s32 0, %v4042
  %v4044 = vrot.slane %v4031, %v4043
  %v4045 = vlaneseq
  %v4046 = vshrl.u32 %v4045, 7
  %v4047 = vsub.s32 0, %v4046
  %v4048 = vrot.slane %v4032, %v4047
  %v4049 = vld [vmem:[%s41] sm:$0xff]
  %4051 = vset.pattern.permute.xlu0 0
  %4052 = vperm.xlu0 %4051, %v4049
  %v4053 = vpop.permute.xlu0 %4052
  %v4055 = vmul.f32 %v4036, %v4053
  %v4056 = vmul.f32 %v4040, %v4053
  %v4057 = vmul.f32 %v4044, %v4053
  %v4058 = vmul.f32 %v4048, %v4053
  %v4059 = vadd.f32 %v4055, 0.0
  %v4060 = vadd.f32 %v4056, 0.0
  %v4061 = vadd.f32 %v4057, 0.0
  %v4062 = vadd.f32 %v4058, 0.0
  %v4063 = vlaneseq
  %v4064 = vshrl.u32 %v4063, 7
  %v4065 = vsub.s32 1, %v4064
  %v4066 = vrot.slane %v4029, %v4065
  %v4067 = vlaneseq
  %v4068 = vshrl.u32 %v4067, 7
  %v4069 = vsub.s32 1, %v4068
  %v4070 = vrot.slane %v4030, %v4069
  %v4071 = vlaneseq
  %v4072 = vshrl.u32 %v4071, 7
  %v4073 = vsub.s32 1, %v4072
  %v4074 = vrot.slane %v4031, %v4073
  %v4075 = vlaneseq
  %v4076 = vshrl.u32 %v4075, 7
  %v4077 = vsub.s32 1, %v4076
  %v4078 = vrot.slane %v4032, %v4077
  %4079 = vset.pattern.permute.xlu0 1
  %4080 = vperm.xlu0 %4079, %v4049
  %v4081 = vpop.permute.xlu0 %4080
  %v4083 = vmul.f32 %v4066, %v4081
  %v4084 = vmul.f32 %v4070, %v4081
  %v4085 = vmul.f32 %v4074, %v4081
  %v4086 = vmul.f32 %v4078, %v4081
  %v4087 = vadd.f32 %v4059, %v4083
  %v4088 = vadd.f32 %v4060, %v4084
  %v4089 = vadd.f32 %v4061, %v4085
  %v4090 = vadd.f32 %v4062, %v4086
  %v4091 = vlaneseq
  %v4092 = vshrl.u32 %v4091, 7
  %v4093 = vsub.s32 2, %v4092
  %v4094 = vrot.slane %v4029, %v4093
  %v4095 = vlaneseq
  %v4096 = vshrl.u32 %v4095, 7
  %v4097 = vsub.s32 2, %v4096
  %v4098 = vrot.slane %v4030, %v4097
  %v4099 = vlaneseq
  %v4100 = vshrl.u32 %v4099, 7
  %v4101 = vsub.s32 2, %v4100
  %v4102 = vrot.slane %v4031, %v4101
  %v4103 = vlaneseq
  %v4104 = vshrl.u32 %v4103, 7
  %v4105 = vsub.s32 2, %v4104
  %v4106 = vrot.slane %v4032, %v4105
  %4107 = vset.pattern.permute.xlu0 2
  %4108 = vperm.xlu0 %4107, %v4049
  %v4109 = vpop.permute.xlu0 %4108
  %v4111 = vmul.f32 %v4094, %v4109
  %v4112 = vmul.f32 %v4098, %v4109
  %v4113 = vmul.f32 %v4102, %v4109
  %v4114 = vmul.f32 %v4106, %v4109
  %v4115 = vadd.f32 %v4087, %v4111
  %v4116 = vadd.f32 %v4088, %v4112
  %v4117 = vadd.f32 %v4089, %v4113
  %v4118 = vadd.f32 %v4090, %v4114
  %v4119 = vlaneseq
  %v4120 = vshrl.u32 %v4119, 7
  %v4121 = vsub.s32 3, %v4120
  %v4122 = vrot.slane %v4029, %v4121
  %v4123 = vlaneseq
  %v4124 = vshrl.u32 %v4123, 7
  %v4125 = vsub.s32 3, %v4124
  %v4126 = vrot.slane %v4030, %v4125
  %v4127 = vlaneseq
  %v4128 = vshrl.u32 %v4127, 7
  %v4129 = vsub.s32 3, %v4128
  %v4130 = vrot.slane %v4031, %v4129
  %v4131 = vlaneseq
  %v4132 = vshrl.u32 %v4131, 7
  %v4133 = vsub.s32 3, %v4132
  %v4134 = vrot.slane %v4032, %v4133
  %4135 = vset.pattern.permute.xlu0 3
  %4136 = vperm.xlu0 %4135, %v4049
  %v4137 = vpop.permute.xlu0 %4136
  %v4139 = vmul.f32 %v4122, %v4137
  %v4140 = vmul.f32 %v4126, %v4137
  %v4141 = vmul.f32 %v4130, %v4137
  %v4142 = vmul.f32 %v4134, %v4137
  %v4143 = vadd.f32 %v4115, %v4139
  %v4144 = vadd.f32 %v4116, %v4140
  %v4145 = vadd.f32 %v4117, %v4141
  %v4146 = vadd.f32 %v4118, %v4142
  %v4147 = vlaneseq
  %v4148 = vshrl.u32 %v4147, 7
  %v4149 = vsub.s32 4, %v4148
  %v4150 = vrot.slane %v4029, %v4149
  %v4151 = vlaneseq
  %v4152 = vshrl.u32 %v4151, 7
  %v4153 = vsub.s32 4, %v4152
  %v4154 = vrot.slane %v4030, %v4153
  %v4155 = vlaneseq
  %v4156 = vshrl.u32 %v4155, 7
  %v4157 = vsub.s32 4, %v4156
  %v4158 = vrot.slane %v4031, %v4157
  %v4159 = vlaneseq
  %v4160 = vshrl.u32 %v4159, 7
  %v4161 = vsub.s32 4, %v4160
  %v4162 = vrot.slane %v4032, %v4161
  %4163 = vset.pattern.permute.xlu0 4
  %4164 = vperm.xlu0 %4163, %v4049
  %v4165 = vpop.permute.xlu0 %4164
  %v4167 = vmul.f32 %v4150, %v4165
  %v4168 = vmul.f32 %v4154, %v4165
  %v4169 = vmul.f32 %v4158, %v4165
  %v4170 = vmul.f32 %v4162, %v4165
  %v4171 = vadd.f32 %v4143, %v4167
  %v4172 = vadd.f32 %v4144, %v4168
  %v4173 = vadd.f32 %v4145, %v4169
  %v4174 = vadd.f32 %v4146, %v4170
  %v4175 = vlaneseq
  %v4176 = vshrl.u32 %v4175, 7
  %v4177 = vsub.s32 5, %v4176
  %v4178 = vrot.slane %v4029, %v4177
  %v4179 = vlaneseq
  %v4180 = vshrl.u32 %v4179, 7
  %v4181 = vsub.s32 5, %v4180
  %v4182 = vrot.slane %v4030, %v4181
  %v4183 = vlaneseq
  %v4184 = vshrl.u32 %v4183, 7
  %v4185 = vsub.s32 5, %v4184
  %v4186 = vrot.slane %v4031, %v4185
  %v4187 = vlaneseq
  %v4188 = vshrl.u32 %v4187, 7
  %v4189 = vsub.s32 5, %v4188
  %v4190 = vrot.slane %v4032, %v4189
  %4191 = vset.pattern.permute.xlu0 5
  %4192 = vperm.xlu0 %4191, %v4049
  %v4193 = vpop.permute.xlu0 %4192
  %v4195 = vmul.f32 %v4178, %v4193
  %v4196 = vmul.f32 %v4182, %v4193
  %v4197 = vmul.f32 %v4186, %v4193
  %v4198 = vmul.f32 %v4190, %v4193
  %v4199 = vadd.f32 %v4171, %v4195
  %v4200 = vadd.f32 %v4172, %v4196
  %v4201 = vadd.f32 %v4173, %v4197
  %v4202 = vadd.f32 %v4174, %v4198
  %v4203 = vlaneseq
  %v4204 = vshrl.u32 %v4203, 7
  %v4205 = vsub.s32 6, %v4204
  %v4206 = vrot.slane %v4029, %v4205
  %v4207 = vlaneseq
  %v4208 = vshrl.u32 %v4207, 7
  %v4209 = vsub.s32 6, %v4208
  %v4210 = vrot.slane %v4030, %v4209
  %v4211 = vlaneseq
  %v4212 = vshrl.u32 %v4211, 7
  %v4213 = vsub.s32 6, %v4212
  %v4214 = vrot.slane %v4031, %v4213
  %v4215 = vlaneseq
  %v4216 = vshrl.u32 %v4215, 7
  %v4217 = vsub.s32 6, %v4216
  %v4218 = vrot.slane %v4032, %v4217
  %4219 = vset.pattern.permute.xlu0 6
  %4220 = vperm.xlu0 %4219, %v4049
  %v4221 = vpop.permute.xlu0 %4220
  %v4223 = vmul.f32 %v4206, %v4221
  %v4224 = vmul.f32 %v4210, %v4221
  %v4225 = vmul.f32 %v4214, %v4221
  %v4226 = vmul.f32 %v4218, %v4221
  %v4227 = vadd.f32 %v4199, %v4223
  %v4228 = vadd.f32 %v4200, %v4224
  %v4229 = vadd.f32 %v4201, %v4225
  %v4230 = vadd.f32 %v4202, %v4226
  %v4231 = vlaneseq
  %v4232 = vshrl.u32 %v4231, 7
  %v4233 = vsub.s32 7, %v4232
  %v4234 = vrot.slane %v4029, %v4233
  %v4235 = vlaneseq
  %v4236 = vshrl.u32 %v4235, 7
  %v4237 = vsub.s32 7, %v4236
  %v4238 = vrot.slane %v4030, %v4237
  %v4239 = vlaneseq
  %v4240 = vshrl.u32 %v4239, 7
  %v4241 = vsub.s32 7, %v4240
  %v4242 = vrot.slane %v4031, %v4241
  %v4243 = vlaneseq
  %v4244 = vshrl.u32 %v4243, 7
  %v4245 = vsub.s32 7, %v4244
  %v4246 = vrot.slane %v4032, %v4245
  %4247 = vset.pattern.permute.xlu0 7
  %4248 = vperm.xlu0 %4247, %v4049
  %v4249 = vpop.permute.xlu0 %4248
  %v4251 = vmul.f32 %v4234, %v4249
  %v4252 = vmul.f32 %v4238, %v4249
  %v4253 = vmul.f32 %v4242, %v4249
  %v4254 = vmul.f32 %v4246, %v4249
  %v4255 = vadd.f32 %v4227, %v4251
  %v4256 = vadd.f32 %v4228, %v4252
  %v4257 = vadd.f32 %v4229, %v4253
  %v4258 = vadd.f32 %v4230, %v4254
  %v4259 = vld [vmem:[%s43] sm:$0xff]
  %4261 = vset.pattern.permute.xlu0 0
  %4262 = vperm.xlu0 %4261, %v4259
  %v4263 = vpop.permute.xlu0 %4262
  %v4265 = vadd.f32 %v4255, %v4263
  %v4266 = vadd.f32 %v4256, %v4263
  %v4267 = vadd.f32 %v4257, %v4263
  %v4268 = vadd.f32 %v4258, %v4263
  %v4269 = vadd.f32 %v4265, %v4266
  %v4270 = vadd.f32 %v4269, %v4267
  %v4271 = vadd.f32 %v4270, %v4268
  %4272 = vadd.xlane.f32.xlu0 %v4271
  %v4273 = vpop.xlane.xlu0 %4272
  %v4274 = vmul.f32 %v4273, 0.001953125
  %v4275 = vsub.f32 %v4265, %v4274
  %v4276 = vsub.f32 %v4266, %v4274
  %v4277 = vsub.f32 %v4267, %v4274
  %v4278 = vsub.f32 %v4268, %v4274
  %v4279 = vmul.f32 %v4275, %v4275
  %v4280 = vmul.f32 %v4276, %v4276
  %v4281 = vmul.f32 %v4277, %v4277
  %v4282 = vmul.f32 %v4278, %v4278
  %v4283 = vadd.f32 %v4279, %v4280
  %v4284 = vadd.f32 %v4283, %v4281
  %v4285 = vadd.f32 %v4284, %v4282
  %4286 = vadd.xlane.f32.xlu0 %v4285
  %v4287 = vpop.xlane.xlu0 %4286
  %v4288 = vmul.f32 %v4287, 0.001953125
  %v4289 = vld [vmem:[%s45] sm:$0xff]
  %4291 = vset.pattern.permute.xlu0 0
  %4292 = vperm.xlu0 %4291, %v4289
  %v4293 = vpop.permute.xlu0 %4292
  %v4295 = vmul.f32 %v4293, %v4275
  %v4296 = vmul.f32 %v4293, %v4276
  %v4297 = vmul.f32 %v4293, %v4277
  %v4298 = vmul.f32 %v4293, %v4278
  %v4299 = vadd.f32 %v4288, 1e-05
  %v4300 = vrsqrt.pop %v4299
  %v4301 = vmul.f32 %v4295, %v4300
  %v4302 = vmul.f32 %v4296, %v4300
  %v4303 = vmul.f32 %v4297, %v4300
  %v4304 = vmul.f32 %v4298, %v4300
  %v4305 = vld [vmem:[%s47] sm:$0xff]
  %4307 = vset.pattern.permute.xlu0 0
  %4308 = vperm.xlu0 %4307, %v4305
  %v4309 = vpop.permute.xlu0 %4308
  %v4311 = vadd.f32 %v4301, %v4309
  %v4312 = vadd.f32 %v4302, %v4309
  %v4313 = vadd.f32 %v4303, %v4309
  %v4314 = vadd.f32 %v4304, %v4309
  %4315 = vrot.lane.b32.xlu0 %v4311, 2
  %v4316 = vpop.permute.xlu0 %4315
  %4317 = vrot.lane.b32.xlu0 %v4312, 2
  %v4318 = vpop.permute.xlu0 %4317
  %4319 = vrot.lane.b32.xlu0 %v4313, 2
  %v4320 = vpop.permute.xlu0 %4319
  %4321 = vrot.lane.b32.xlu0 %v4314, 2
  %v4322 = vpop.permute.xlu0 %4321
  %v4323 = vsel %vm182, %v4320, %v4322
  %v4324 = vsel %vm182, %v4318, %v4320
  %v4325 = vsel %vm182, %v4316, %v4318
  %v4326 = vsel %vm182, %v4322, %v4316
  %v4327 = vmul.f32 %v4326, %v197
  %v4328 = vmul.f32 %v4325, %v201
  %v4329 = vmul.f32 %v4324, %v205
  %v4330 = vmul.f32 %v4323, %v209
  %v4331 = vld [vmem:[%s51] sm:$0xff]
  %4333 = vset.pattern.permute.xlu0 0
  %4334 = vperm.xlu0 %4333, %v4331
  %v4335 = vpop.permute.xlu0 %4334
  %v4337 = vmul.f32 %v4327, %v4335
  %v4338 = vmul.f32 %v4328, %v4335
  %v4339 = vmul.f32 %v4329, %v4335
  %v4340 = vmul.f32 %v4330, %v4335
  %v4341 = vadd.f32 %v4337, 0.0
  %v4342 = vadd.f32 %v4338, 0.0
  %v4343 = vadd.f32 %v4339, 0.0
  %v4344 = vadd.f32 %v4340, 0.0
  %4345 = vrot.lane.b32.xlu0 %v4311, 1
  %v4346 = vpop.permute.xlu0 %4345
  %4347 = vrot.lane.b32.xlu0 %v4312, 1
  %v4348 = vpop.permute.xlu0 %4347
  %4349 = vrot.lane.b32.xlu0 %v4313, 1
  %v4350 = vpop.permute.xlu0 %4349
  %4351 = vrot.lane.b32.xlu0 %v4314, 1
  %v4352 = vpop.permute.xlu0 %4351
  %v4353 = vsel %vm240, %v4350, %v4352
  %v4354 = vsel %vm240, %v4348, %v4350
  %v4355 = vsel %vm240, %v4346, %v4348
  %v4356 = vsel %vm240, %v4352, %v4346
  %v4357 = vmul.f32 %v4356, %v255
  %v4358 = vmul.f32 %v4355, %v259
  %v4359 = vmul.f32 %v4354, %v263
  %v4360 = vmul.f32 %v4353, %v267
  %4361 = vset.pattern.permute.xlu0 1
  %4362 = vperm.xlu0 %4361, %v4331
  %v4363 = vpop.permute.xlu0 %4362
  %v4365 = vmul.f32 %v4357, %v4363
  %v4366 = vmul.f32 %v4358, %v4363
  %v4367 = vmul.f32 %v4359, %v4363
  %v4368 = vmul.f32 %v4360, %v4363
  %v4369 = vadd.f32 %v4341, %v4365
  %v4370 = vadd.f32 %v4342, %v4366
  %v4371 = vadd.f32 %v4343, %v4367
  %v4372 = vadd.f32 %v4344, %v4368
  %4373 = vset.pattern.permute.xlu0 2
  %4374 = vperm.xlu0 %4373, %v4331
  %v4375 = vpop.permute.xlu0 %4374
  %v4377 = vmul.f32 %v4311, %v4375
  %v4378 = vmul.f32 %v4312, %v4375
  %v4379 = vmul.f32 %v4313, %v4375
  %v4380 = vmul.f32 %v4314, %v4375
  %v4381 = vadd.f32 %v4369, %v4377
  %v4382 = vadd.f32 %v4370, %v4378
  %v4383 = vadd.f32 %v4371, %v4379
  %v4384 = vadd.f32 %v4372, %v4380
  %4385 = vrot.lane.b32.xlu0 %v4311, 127
  %v4386 = vpop.permute.xlu0 %4385
  %4387 = vrot.lane.b32.xlu0 %v4312, 127
  %v4388 = vpop.permute.xlu0 %4387
  %4389 = vrot.lane.b32.xlu0 %v4313, 127
  %v4390 = vpop.permute.xlu0 %4389
  %4391 = vrot.lane.b32.xlu0 %v4314, 127
  %v4392 = vpop.permute.xlu0 %4391
  %v4393 = vsel %vm321, %v4390, %v4392
  %v4394 = vsel %vm321, %v4388, %v4390
  %v4395 = vsel %vm321, %v4386, %v4388
  %v4396 = vsel %vm321, %v4392, %v4386
  %v4397 = vmul.f32 %v4395, %v336
  %v4398 = vmul.f32 %v4394, %v340
  %v4399 = vmul.f32 %v4393, %v344
  %v4400 = vmul.f32 %v4396, %v348
  %4401 = vset.pattern.permute.xlu0 3
  %4402 = vperm.xlu0 %4401, %v4331
  %v4403 = vpop.permute.xlu0 %4402
  %v4405 = vmul.f32 %v4397, %v4403
  %v4406 = vmul.f32 %v4398, %v4403
  %v4407 = vmul.f32 %v4399, %v4403
  %v4408 = vmul.f32 %v4400, %v4403
  %v4409 = vadd.f32 %v4381, %v4405
  %v4410 = vadd.f32 %v4382, %v4406
  %v4411 = vadd.f32 %v4383, %v4407
  %v4412 = vadd.f32 %v4384, %v4408
  %4413 = vrot.lane.b32.xlu0 %v4311, 126
  %v4414 = vpop.permute.xlu0 %4413
  %4415 = vrot.lane.b32.xlu0 %v4312, 126
  %v4416 = vpop.permute.xlu0 %4415
  %4417 = vrot.lane.b32.xlu0 %v4313, 126
  %v4418 = vpop.permute.xlu0 %4417
  %4419 = vrot.lane.b32.xlu0 %v4314, 126
  %v4420 = vpop.permute.xlu0 %4419
  %v4421 = vsel %vm379, %v4418, %v4420
  %v4422 = vsel %vm379, %v4416, %v4418
  %v4423 = vsel %vm379, %v4414, %v4416
  %v4424 = vsel %vm379, %v4420, %v4414
  %v4425 = vmul.f32 %v4423, %v394
  %v4426 = vmul.f32 %v4422, %v398
  %v4427 = vmul.f32 %v4421, %v402
  %v4428 = vmul.f32 %v4424, %v406
  %4429 = vset.pattern.permute.xlu0 4
  %4430 = vperm.xlu0 %4429, %v4331
  %v4431 = vpop.permute.xlu0 %4430
  %v4433 = vmul.f32 %v4425, %v4431
  %v4434 = vmul.f32 %v4426, %v4431
  %v4435 = vmul.f32 %v4427, %v4431
  %v4436 = vmul.f32 %v4428, %v4431
  %v4437 = vadd.f32 %v4409, %v4433
  %v4438 = vadd.f32 %v4410, %v4434
  %v4439 = vadd.f32 %v4411, %v4435
  %v4440 = vadd.f32 %v4412, %v4436
  %4441 = vrot.lane.b32.xlu0 %v4437, 32
  %v4442 = vpop.permute.xlu0 %4441
  %4443 = vrot.lane.b32.xlu0 %v4438, 32
  %v4444 = vpop.permute.xlu0 %4443
  %4445 = vrot.lane.b32.xlu0 %v4439, 32
  %v4446 = vpop.permute.xlu0 %4445
  %4447 = vrot.lane.b32.xlu0 %v4440, 32
  %v4448 = vpop.permute.xlu0 %4447
  %v4449 = vsel %vm437, %v4446, %v4448
  %v4450 = vsel %vm437, %v4444, %v4446
  %v4451 = vsel %vm437, %v4442, %v4444
  %v4452 = vsel %vm437, %v4448, %v4442
  %v4453 = vmul.f32 %v4452, %v452
  %v4454 = vmul.f32 %v4451, %v456
  %v4455 = vmul.f32 %v4450, %v460
  %v4456 = vmul.f32 %v4449, %v464
  %v4457 = vld [vmem:[%s49] sm:$0xff]
  %4459 = vset.pattern.permute.xlu0 0
  %4460 = vperm.xlu0 %4459, %v4457
  %v4461 = vpop.permute.xlu0 %4460
  %v4463 = vmul.f32 %v4453, %v4461
  %v4464 = vmul.f32 %v4454, %v4461
  %v4465 = vmul.f32 %v4455, %v4461
  %v4466 = vmul.f32 %v4456, %v4461
  %v4467 = vadd.f32 %v4463, 0.0
  %v4468 = vadd.f32 %v4464, 0.0
  %v4469 = vadd.f32 %v4465, 0.0
  %v4470 = vadd.f32 %v4466, 0.0
  %4471 = vrot.lane.b32.xlu0 %v4437, 16
  %v4472 = vpop.permute.xlu0 %4471
  %4473 = vrot.lane.b32.xlu0 %v4438, 16
  %v4474 = vpop.permute.xlu0 %4473
  %4475 = vrot.lane.b32.xlu0 %v4439, 16
  %v4476 = vpop.permute.xlu0 %4475
  %4477 = vrot.lane.b32.xlu0 %v4440, 16
  %v4478 = vpop.permute.xlu0 %4477
  %v4479 = vsel %vm495, %v4476, %v4478
  %v4480 = vsel %vm495, %v4474, %v4476
  %v4481 = vsel %vm495, %v4472, %v4474
  %v4482 = vsel %vm495, %v4478, %v4472
  %v4483 = vmul.f32 %v4482, %v510
  %v4484 = vmul.f32 %v4481, %v514
  %v4485 = vmul.f32 %v4480, %v518
  %v4486 = vmul.f32 %v4479, %v522
  %4487 = vset.pattern.permute.xlu0 1
  %4488 = vperm.xlu0 %4487, %v4457
  %v4489 = vpop.permute.xlu0 %4488
  %v4491 = vmul.f32 %v4483, %v4489
  %v4492 = vmul.f32 %v4484, %v4489
  %v4493 = vmul.f32 %v4485, %v4489
  %v4494 = vmul.f32 %v4486, %v4489
  %v4495 = vadd.f32 %v4467, %v4491
  %v4496 = vadd.f32 %v4468, %v4492
  %v4497 = vadd.f32 %v4469, %v4493
  %v4498 = vadd.f32 %v4470, %v4494
  %4499 = vset.pattern.permute.xlu0 2
  %4500 = vperm.xlu0 %4499, %v4457
  %v4501 = vpop.permute.xlu0 %4500
  %v4503 = vmul.f32 %v4437, %v4501
  %v4504 = vmul.f32 %v4438, %v4501
  %v4505 = vmul.f32 %v4439, %v4501
  %v4506 = vmul.f32 %v4440, %v4501
  %v4507 = vadd.f32 %v4495, %v4503
  %v4508 = vadd.f32 %v4496, %v4504
  %v4509 = vadd.f32 %v4497, %v4505
  %v4510 = vadd.f32 %v4498, %v4506
  %4511 = vrot.lane.b32.xlu0 %v4437, 112
  %v4512 = vpop.permute.xlu0 %4511
  %4513 = vrot.lane.b32.xlu0 %v4438, 112
  %v4514 = vpop.permute.xlu0 %4513
  %4515 = vrot.lane.b32.xlu0 %v4439, 112
  %v4516 = vpop.permute.xlu0 %4515
  %4517 = vrot.lane.b32.xlu0 %v4440, 112
  %v4518 = vpop.permute.xlu0 %4517
  %v4519 = vsel %vm563, %v4516, %v4518
  %v4520 = vsel %vm563, %v4514, %v4516
  %v4521 = vsel %vm563, %v4512, %v4514
  %v4522 = vsel %vm563, %v4518, %v4512
  %v4523 = vmul.f32 %v4521, %v578
  %v4524 = vmul.f32 %v4520, %v582
  %v4525 = vmul.f32 %v4519, %v586
  %v4526 = vmul.f32 %v4522, %v590
  %4527 = vset.pattern.permute.xlu0 3
  %4528 = vperm.xlu0 %4527, %v4457
  %v4529 = vpop.permute.xlu0 %4528
  %v4531 = vmul.f32 %v4523, %v4529
  %v4532 = vmul.f32 %v4524, %v4529
  %v4533 = vmul.f32 %v4525, %v4529
  %v4534 = vmul.f32 %v4526, %v4529
  %v4535 = vadd.f32 %v4507, %v4531
  %v4536 = vadd.f32 %v4508, %v4532
  %v4537 = vadd.f32 %v4509, %v4533
  %v4538 = vadd.f32 %v4510, %v4534
  %4539 = vrot.lane.b32.xlu0 %v4437, 96
  %v4540 = vpop.permute.xlu0 %4539
  %4541 = vrot.lane.b32.xlu0 %v4438, 96
  %v4542 = vpop.permute.xlu0 %4541
  %4543 = vrot.lane.b32.xlu0 %v4439, 96
  %v4544 = vpop.permute.xlu0 %4543
  %4545 = vrot.lane.b32.xlu0 %v4440, 96
  %v4546 = vpop.permute.xlu0 %4545
  %v4547 = vsel %vm619, %v4544, %v4546
  %v4548 = vsel %vm619, %v4542, %v4544
  %v4549 = vsel %vm619, %v4540, %v4542
  %v4550 = vsel %vm619, %v4546, %v4540
  %v4551 = vmul.f32 %v4549, %v634
  %v4552 = vmul.f32 %v4548, %v638
  %v4553 = vmul.f32 %v4547, %v642
  %v4554 = vmul.f32 %v4550, %v646
  %4555 = vset.pattern.permute.xlu0 4
  %4556 = vperm.xlu0 %4555, %v4457
  %v4557 = vpop.permute.xlu0 %4556
  %v4559 = vmul.f32 %v4551, %v4557
  %v4560 = vmul.f32 %v4552, %v4557
  %v4561 = vmul.f32 %v4553, %v4557
  %v4562 = vmul.f32 %v4554, %v4557
  %v4563 = vadd.f32 %v4535, %v4559
  %v4564 = vadd.f32 %v4536, %v4560
  %v4565 = vadd.f32 %v4537, %v4561
  %v4566 = vadd.f32 %v4538, %v4562
  %4567 = vrot.lane.b32.xlu0 %v4563, 34
  %v4568 = vpop.permute.xlu0 %4567
  %4569 = vrot.lane.b32.xlu0 %v4564, 34
  %v4570 = vpop.permute.xlu0 %4569
  %4571 = vrot.lane.b32.xlu0 %v4565, 34
  %v4572 = vpop.permute.xlu0 %4571
  %4573 = vrot.lane.b32.xlu0 %v4566, 34
  %v4574 = vpop.permute.xlu0 %4573
  %v4575 = vsel %vm679, %v4572, %v4574
  %v4576 = vsel %vm679, %v4570, %v4572
  %v4577 = vsel %vm679, %v4568, %v4570
  %v4578 = vsel %vm679, %v4574, %v4568
  %v4579 = vld [vmem:[%s53] sm:$0xff]
  %4581 = vset.pattern.permute.xlu0 0
  %4582 = vperm.xlu0 %4581, %v4579
  %v4583 = vpop.permute.xlu0 %4582
  %v4585 = vsub.f32 %v4578, %v4583
  %v4586 = vsub.f32 %v4577, %v4583
  %v4587 = vsub.f32 %v4576, %v4583
  %v4588 = vsub.f32 %v4575, %v4583
  %v4589 = vsub.f32 %v4585, %v698
  %v4590 = vsub.f32 %v4586, %v702
  %v4591 = vsub.f32 %v4587, %v706
  %v4592 = vsub.f32 %v4588, %v710
  %v4593 = vsub.f32 %v4589, %v723
  %v4594 = vsub.f32 %v4590, %v727
  %v4595 = vsub.f32 %v4591, %v731
  %v4596 = vsub.f32 %v4592, %v735
  %4597 = vrot.lane.b32.xlu0 %v4563, 33
  %v4598 = vpop.permute.xlu0 %4597
  %4599 = vrot.lane.b32.xlu0 %v4564, 33
  %v4600 = vpop.permute.xlu0 %4599
  %4601 = vrot.lane.b32.xlu0 %v4565, 33
  %v4602 = vpop.permute.xlu0 %4601
  %4603 = vrot.lane.b32.xlu0 %v4566, 33
  %v4604 = vpop.permute.xlu0 %4603
  %v4605 = vsel %vm754, %v4602, %v4604
  %v4606 = vsel %vm754, %v4600, %v4602
  %v4607 = vsel %vm754, %v4598, %v4600
  %v4608 = vsel %vm754, %v4604, %v4598
  %4609 = vset.pattern.permute.xlu0 1
  %4610 = vperm.xlu0 %4609, %v4579
  %v4611 = vpop.permute.xlu0 %4610
  %v4613 = vsub.f32 %v4608, %v4611
  %v4614 = vsub.f32 %v4607, %v4611
  %v4615 = vsub.f32 %v4606, %v4611
  %v4616 = vsub.f32 %v4605, %v4611
  %v4617 = vsub.f32 %v4613, %v698
  %v4618 = vsub.f32 %v4614, %v702
  %v4619 = vsub.f32 %v4615, %v706
  %v4620 = vsub.f32 %v4616, %v710
  %v4621 = vsub.f32 %v4617, %v775
  %v4622 = vsub.f32 %v4618, %v779
  %v4623 = vsub.f32 %v4619, %v783
  %v4624 = vsub.f32 %v4620, %v787
  %v4625 = vmax.f32 %v4593, %v4621
  %v4626 = vmax.f32 %v4594, %v4622
  %v4627 = vmax.f32 %v4595, %v4623
  %v4628 = vmax.f32 %v4596, %v4624
  %4629 = vrot.lane.b32.xlu0 %v4563, 32
  %v4630 = vpop.permute.xlu0 %4629
  %4631 = vrot.lane.b32.xlu0 %v4564, 32
  %v4632 = vpop.permute.xlu0 %4631
  %4633 = vrot.lane.b32.xlu0 %v4565, 32
  %v4634 = vpop.permute.xlu0 %4633
  %4635 = vrot.lane.b32.xlu0 %v4566, 32
  %v4636 = vpop.permute.xlu0 %4635
  %v4637 = vsel %vm437, %v4634, %v4636
  %v4638 = vsel %vm437, %v4632, %v4634
  %v4639 = vsel %vm437, %v4630, %v4632
  %v4640 = vsel %vm437, %v4636, %v4630
  %4641 = vset.pattern.permute.xlu0 2
  %4642 = vperm.xlu0 %4641, %v4579
  %v4643 = vpop.permute.xlu0 %4642
  %v4645 = vsub.f32 %v4640, %v4643
  %v4646 = vsub.f32 %v4639, %v4643
  %v4647 = vsub.f32 %v4638, %v4643
  %v4648 = vsub.f32 %v4637, %v4643
  %v4649 = vsub.f32 %v4645, %v698
  %v4650 = vsub.f32 %v4646, %v702
  %v4651 = vsub.f32 %v4647, %v706
  %v4652 = vsub.f32 %v4648, %v710
  %v4653 = vmax.f32 %v4625, %v4649
  %v4654 = vmax.f32 %v4626, %v4650
  %v4655 = vmax.f32 %v4627, %v4651
  %v4656 = vmax.f32 %v4628, %v4652
  %4657 = vrot.lane.b32.xlu0 %v4563, 31
  %v4658 = vpop.permute.xlu0 %4657
  %4659 = vrot.lane.b32.xlu0 %v4564, 31
  %v4660 = vpop.permute.xlu0 %4659
  %4661 = vrot.lane.b32.xlu0 %v4565, 31
  %v4662 = vpop.permute.xlu0 %4661
  %4663 = vrot.lane.b32.xlu0 %v4566, 31
  %v4664 = vpop.permute.xlu0 %4663
  %v4665 = vsel %vm838, %v4662, %v4664
  %v4666 = vsel %vm838, %v4660, %v4662
  %v4667 = vsel %vm838, %v4658, %v4660
  %v4668 = vsel %vm838, %v4664, %v4658
  %4669 = vset.pattern.permute.xlu0 3
  %4670 = vperm.xlu0 %4669, %v4579
  %v4671 = vpop.permute.xlu0 %4670
  %v4673 = vsub.f32 %v4668, %v4671
  %v4674 = vsub.f32 %v4667, %v4671
  %v4675 = vsub.f32 %v4666, %v4671
  %v4676 = vsub.f32 %v4665, %v4671
  %v4677 = vsub.f32 %v4673, %v698
  %v4678 = vsub.f32 %v4674, %v702
  %v4679 = vsub.f32 %v4675, %v706
  %v4680 = vsub.f32 %v4676, %v710
  %v4681 = vsub.f32 %v4677, %v859
  %v4682 = vsub.f32 %v4678, %v863
  %v4683 = vsub.f32 %v4679, %v867
  %v4684 = vsub.f32 %v4680, %v871
  %v4685 = vmax.f32 %v4653, %v4681
  %v4686 = vmax.f32 %v4654, %v4682
  %v4687 = vmax.f32 %v4655, %v4683
  %v4688 = vmax.f32 %v4656, %v4684
  %4689 = vrot.lane.b32.xlu0 %v4563, 30
  %v4690 = vpop.permute.xlu0 %4689
  %4691 = vrot.lane.b32.xlu0 %v4564, 30
  %v4692 = vpop.permute.xlu0 %4691
  %4693 = vrot.lane.b32.xlu0 %v4565, 30
  %v4694 = vpop.permute.xlu0 %4693
  %4695 = vrot.lane.b32.xlu0 %v4566, 30
  %v4696 = vpop.permute.xlu0 %4695
  %v4697 = vsel %vm894, %v4694, %v4696
  %v4698 = vsel %vm894, %v4692, %v4694
  %v4699 = vsel %vm894, %v4690, %v4692
  %v4700 = vsel %vm894, %v4696, %v4690
  %4701 = vset.pattern.permute.xlu0 4
  %4702 = vperm.xlu0 %4701, %v4579
  %v4703 = vpop.permute.xlu0 %4702
  %v4705 = vsub.f32 %v4700, %v4703
  %v4706 = vsub.f32 %v4699, %v4703
  %v4707 = vsub.f32 %v4698, %v4703
  %v4708 = vsub.f32 %v4697, %v4703
  %v4709 = vsub.f32 %v4705, %v698
  %v4710 = vsub.f32 %v4706, %v702
  %v4711 = vsub.f32 %v4707, %v706
  %v4712 = vsub.f32 %v4708, %v710
  %v4713 = vsub.f32 %v4709, %v915
  %v4714 = vsub.f32 %v4710, %v919
  %v4715 = vsub.f32 %v4711, %v923
  %v4716 = vsub.f32 %v4712, %v927
  %v4717 = vmax.f32 %v4685, %v4713
  %v4718 = vmax.f32 %v4686, %v4714
  %v4719 = vmax.f32 %v4687, %v4715
  %v4720 = vmax.f32 %v4688, %v4716
  %4721 = vrot.lane.b32.xlu0 %v4563, 18
  %v4722 = vpop.permute.xlu0 %4721
  %4723 = vrot.lane.b32.xlu0 %v4564, 18
  %v4724 = vpop.permute.xlu0 %4723
  %4725 = vrot.lane.b32.xlu0 %v4565, 18
  %v4726 = vpop.permute.xlu0 %4725
  %4727 = vrot.lane.b32.xlu0 %v4566, 18
  %v4728 = vpop.permute.xlu0 %4727
  %v4729 = vsel %vm950, %v4726, %v4728
  %v4730 = vsel %vm950, %v4724, %v4726
  %v4731 = vsel %vm950, %v4722, %v4724
  %v4732 = vsel %vm950, %v4728, %v4722
  %4733 = vset.pattern.permute.xlu0 5
  %4734 = vperm.xlu0 %4733, %v4579
  %v4735 = vpop.permute.xlu0 %4734
  %v4737 = vsub.f32 %v4732, %v4735
  %v4738 = vsub.f32 %v4731, %v4735
  %v4739 = vsub.f32 %v4730, %v4735
  %v4740 = vsub.f32 %v4729, %v4735
  %v4741 = vsub.f32 %v4737, %v967
  %v4742 = vsub.f32 %v4738, %v971
  %v4743 = vsub.f32 %v4739, %v975
  %v4744 = vsub.f32 %v4740, %v979
  %v4745 = vsub.f32 %v4741, %v723
  %v4746 = vsub.f32 %v4742, %v727
  %v4747 = vsub.f32 %v4743, %v731
  %v4748 = vsub.f32 %v4744, %v735
  %v4749 = vmax.f32 %v4717, %v4745
  %v4750 = vmax.f32 %v4718, %v4746
  %v4751 = vmax.f32 %v4719, %v4747
  %v4752 = vmax.f32 %v4720, %v4748
  %4753 = vrot.lane.b32.xlu0 %v4563, 17
  %v4754 = vpop.permute.xlu0 %4753
  %4755 = vrot.lane.b32.xlu0 %v4564, 17
  %v4756 = vpop.permute.xlu0 %4755
  %4757 = vrot.lane.b32.xlu0 %v4565, 17
  %v4758 = vpop.permute.xlu0 %4757
  %4759 = vrot.lane.b32.xlu0 %v4566, 17
  %v4760 = vpop.permute.xlu0 %4759
  %v4761 = vsel %vm1004, %v4758, %v4760
  %v4762 = vsel %vm1004, %v4756, %v4758
  %v4763 = vsel %vm1004, %v4754, %v4756
  %v4764 = vsel %vm1004, %v4760, %v4754
  %4765 = vset.pattern.permute.xlu0 6
  %4766 = vperm.xlu0 %4765, %v4579
  %v4767 = vpop.permute.xlu0 %4766
  %v4769 = vsub.f32 %v4764, %v4767
  %v4770 = vsub.f32 %v4763, %v4767
  %v4771 = vsub.f32 %v4762, %v4767
  %v4772 = vsub.f32 %v4761, %v4767
  %v4773 = vsub.f32 %v4769, %v967
  %v4774 = vsub.f32 %v4770, %v971
  %v4775 = vsub.f32 %v4771, %v975
  %v4776 = vsub.f32 %v4772, %v979
  %v4777 = vsub.f32 %v4773, %v775
  %v4778 = vsub.f32 %v4774, %v779
  %v4779 = vsub.f32 %v4775, %v783
  %v4780 = vsub.f32 %v4776, %v787
  %v4781 = vmax.f32 %v4749, %v4777
  %v4782 = vmax.f32 %v4750, %v4778
  %v4783 = vmax.f32 %v4751, %v4779
  %v4784 = vmax.f32 %v4752, %v4780
  %4785 = vrot.lane.b32.xlu0 %v4563, 16
  %v4786 = vpop.permute.xlu0 %4785
  %4787 = vrot.lane.b32.xlu0 %v4564, 16
  %v4788 = vpop.permute.xlu0 %4787
  %4789 = vrot.lane.b32.xlu0 %v4565, 16
  %v4790 = vpop.permute.xlu0 %4789
  %4791 = vrot.lane.b32.xlu0 %v4566, 16
  %v4792 = vpop.permute.xlu0 %4791
  %v4793 = vsel %vm495, %v4790, %v4792
  %v4794 = vsel %vm495, %v4788, %v4790
  %v4795 = vsel %vm495, %v4786, %v4788
  %v4796 = vsel %vm495, %v4792, %v4786
  %4797 = vset.pattern.permute.xlu0 7
  %4798 = vperm.xlu0 %4797, %v4579
  %v4799 = vpop.permute.xlu0 %4798
  %v4801 = vsub.f32 %v4796, %v4799
  %v4802 = vsub.f32 %v4795, %v4799
  %v4803 = vsub.f32 %v4794, %v4799
  %v4804 = vsub.f32 %v4793, %v4799
  %v4805 = vsub.f32 %v4801, %v967
  %v4806 = vsub.f32 %v4802, %v971
  %v4807 = vsub.f32 %v4803, %v975
  %v4808 = vsub.f32 %v4804, %v979
  %v4809 = vmax.f32 %v4781, %v4805
  %v4810 = vmax.f32 %v4782, %v4806
  %v4811 = vmax.f32 %v4783, %v4807
  %v4812 = vmax.f32 %v4784, %v4808
  %4813 = vrot.lane.b32.xlu0 %v4563, 15
  %v4814 = vpop.permute.xlu0 %4813
  %4815 = vrot.lane.b32.xlu0 %v4564, 15
  %v4816 = vpop.permute.xlu0 %4815
  %4817 = vrot.lane.b32.xlu0 %v4565, 15
  %v4818 = vpop.permute.xlu0 %4817
  %4819 = vrot.lane.b32.xlu0 %v4566, 15
  %v4820 = vpop.permute.xlu0 %4819
  %v4821 = vsel %vm1065, %v4818, %v4820
  %v4822 = vsel %vm1065, %v4816, %v4818
  %v4823 = vsel %vm1065, %v4814, %v4816
  %v4824 = vsel %vm1065, %v4820, %v4814
  %4825 = vset.pattern.permute.xlu0 8
  %4826 = vperm.xlu0 %4825, %v4579
  %v4827 = vpop.permute.xlu0 %4826
  %v4829 = vsub.f32 %v4824, %v4827
  %v4830 = vsub.f32 %v4823, %v4827
  %v4831 = vsub.f32 %v4822, %v4827
  %v4832 = vsub.f32 %v4821, %v4827
  %v4833 = vsub.f32 %v4829, %v967
  %v4834 = vsub.f32 %v4830, %v971
  %v4835 = vsub.f32 %v4831, %v975
  %v4836 = vsub.f32 %v4832, %v979
  %v4837 = vsub.f32 %v4833, %v859
  %v4838 = vsub.f32 %v4834, %v863
  %v4839 = vsub.f32 %v4835, %v867
  %v4840 = vsub.f32 %v4836, %v871
  %v4841 = vmax.f32 %v4809, %v4837
  %v4842 = vmax.f32 %v4810, %v4838
  %v4843 = vmax.f32 %v4811, %v4839
  %v4844 = vmax.f32 %v4812, %v4840
  %4845 = vrot.lane.b32.xlu0 %v4563, 14
  %v4846 = vpop.permute.xlu0 %4845
  %4847 = vrot.lane.b32.xlu0 %v4564, 14
  %v4848 = vpop.permute.xlu0 %4847
  %4849 = vrot.lane.b32.xlu0 %v4565, 14
  %v4850 = vpop.permute.xlu0 %4849
  %4851 = vrot.lane.b32.xlu0 %v4566, 14
  %v4852 = vpop.permute.xlu0 %4851
  %v4853 = vsel %vm1098, %v4850, %v4852
  %v4854 = vsel %vm1098, %v4848, %v4850
  %v4855 = vsel %vm1098, %v4846, %v4848
  %v4856 = vsel %vm1098, %v4852, %v4846
  %4857 = vset.pattern.permute.xlu0 9
  %4858 = vperm.xlu0 %4857, %v4579
  %v4859 = vpop.permute.xlu0 %4858
  %v4861 = vsub.f32 %v4856, %v4859
  %v4862 = vsub.f32 %v4855, %v4859
  %v4863 = vsub.f32 %v4854, %v4859
  %v4864 = vsub.f32 %v4853, %v4859
  %v4865 = vsub.f32 %v4861, %v967
  %v4866 = vsub.f32 %v4862, %v971
  %v4867 = vsub.f32 %v4863, %v975
  %v4868 = vsub.f32 %v4864, %v979
  %v4869 = vsub.f32 %v4865, %v915
  %v4870 = vsub.f32 %v4866, %v919
  %v4871 = vsub.f32 %v4867, %v923
  %v4872 = vsub.f32 %v4868, %v927
  %v4873 = vmax.f32 %v4841, %v4869
  %v4874 = vmax.f32 %v4842, %v4870
  %v4875 = vmax.f32 %v4843, %v4871
  %v4876 = vmax.f32 %v4844, %v4872
  %4877 = vrot.lane.b32.xlu0 %v4563, 2
  %v4878 = vpop.permute.xlu0 %4877
  %4879 = vrot.lane.b32.xlu0 %v4564, 2
  %v4880 = vpop.permute.xlu0 %4879
  %4881 = vrot.lane.b32.xlu0 %v4565, 2
  %v4882 = vpop.permute.xlu0 %4881
  %4883 = vrot.lane.b32.xlu0 %v4566, 2
  %v4884 = vpop.permute.xlu0 %4883
  %v4885 = vsel %vm182, %v4882, %v4884
  %v4886 = vsel %vm182, %v4880, %v4882
  %v4887 = vsel %vm182, %v4878, %v4880
  %v4888 = vsel %vm182, %v4884, %v4878
  %4889 = vset.pattern.permute.xlu0 10
  %4890 = vperm.xlu0 %4889, %v4579
  %v4891 = vpop.permute.xlu0 %4890
  %v4893 = vsub.f32 %v4888, %v4891
  %v4894 = vsub.f32 %v4887, %v4891
  %v4895 = vsub.f32 %v4886, %v4891
  %v4896 = vsub.f32 %v4885, %v4891
  %v4897 = vsub.f32 %v4893, %v723
  %v4898 = vsub.f32 %v4894, %v727
  %v4899 = vsub.f32 %v4895, %v731
  %v4900 = vsub.f32 %v4896, %v735
  %v4901 = vmax.f32 %v4873, %v4897
  %v4902 = vmax.f32 %v4874, %v4898
  %v4903 = vmax.f32 %v4875, %v4899
  %v4904 = vmax.f32 %v4876, %v4900
  %4905 = vrot.lane.b32.xlu0 %v4563, 1
  %v4906 = vpop.permute.xlu0 %4905
  %4907 = vrot.lane.b32.xlu0 %v4564, 1
  %v4908 = vpop.permute.xlu0 %4907
  %4909 = vrot.lane.b32.xlu0 %v4565, 1
  %v4910 = vpop.permute.xlu0 %4909
  %4911 = vrot.lane.b32.xlu0 %v4566, 1
  %v4912 = vpop.permute.xlu0 %4911
  %v4913 = vsel %vm240, %v4910, %v4912
  %v4914 = vsel %vm240, %v4908, %v4910
  %v4915 = vsel %vm240, %v4906, %v4908
  %v4916 = vsel %vm240, %v4912, %v4906
  %4917 = vset.pattern.permute.xlu0 11
  %4918 = vperm.xlu0 %4917, %v4579
  %v4919 = vpop.permute.xlu0 %4918
  %v4921 = vsub.f32 %v4916, %v4919
  %v4922 = vsub.f32 %v4915, %v4919
  %v4923 = vsub.f32 %v4914, %v4919
  %v4924 = vsub.f32 %v4913, %v4919
  %v4925 = vsub.f32 %v4921, %v775
  %v4926 = vsub.f32 %v4922, %v779
  %v4927 = vsub.f32 %v4923, %v783
  %v4928 = vsub.f32 %v4924, %v787
  %v4929 = vmax.f32 %v4901, %v4925
  %v4930 = vmax.f32 %v4902, %v4926
  %v4931 = vmax.f32 %v4903, %v4927
  %v4932 = vmax.f32 %v4904, %v4928
  %4933 = vset.pattern.permute.xlu0 12
  %4934 = vperm.xlu0 %4933, %v4579
  %v4935 = vpop.permute.xlu0 %4934
  %v4937 = vsub.f32 %v4563, %v4935
  %v4938 = vsub.f32 %v4564, %v4935
  %v4939 = vsub.f32 %v4565, %v4935
  %v4940 = vsub.f32 %v4566, %v4935
  %v4941 = vmax.f32 %v4929, %v4937
  %v4942 = vmax.f32 %v4930, %v4938
  %v4943 = vmax.f32 %v4931, %v4939
  %v4944 = vmax.f32 %v4932, %v4940
  %4945 = vrot.lane.b32.xlu0 %v4563, 127
  %v4946 = vpop.permute.xlu0 %4945
  %4947 = vrot.lane.b32.xlu0 %v4564, 127
  %v4948 = vpop.permute.xlu0 %4947
  %4949 = vrot.lane.b32.xlu0 %v4565, 127
  %v4950 = vpop.permute.xlu0 %4949
  %4951 = vrot.lane.b32.xlu0 %v4566, 127
  %v4952 = vpop.permute.xlu0 %4951
  %v4953 = vsel %vm321, %v4950, %v4952
  %v4954 = vsel %vm321, %v4948, %v4950
  %v4955 = vsel %vm321, %v4946, %v4948
  %v4956 = vsel %vm321, %v4952, %v4946
  %4957 = vset.pattern.permute.xlu0 13
  %4958 = vperm.xlu0 %4957, %v4579
  %v4959 = vpop.permute.xlu0 %4958
  %v4961 = vsub.f32 %v4955, %v4959
  %v4962 = vsub.f32 %v4954, %v4959
  %v4963 = vsub.f32 %v4953, %v4959
  %v4964 = vsub.f32 %v4956, %v4959
  %v4965 = vsub.f32 %v4961, %v859
  %v4966 = vsub.f32 %v4962, %v863
  %v4967 = vsub.f32 %v4963, %v867
  %v4968 = vsub.f32 %v4964, %v871
  %v4969 = vmax.f32 %v4941, %v4965
  %v4970 = vmax.f32 %v4942, %v4966
  %v4971 = vmax.f32 %v4943, %v4967
  %v4972 = vmax.f32 %v4944, %v4968
  %4973 = vrot.lane.b32.xlu0 %v4563, 126
  %v4974 = vpop.permute.xlu0 %4973
  %4975 = vrot.lane.b32.xlu0 %v4564, 126
  %v4976 = vpop.permute.xlu0 %4975
  %4977 = vrot.lane.b32.xlu0 %v4565, 126
  %v4978 = vpop.permute.xlu0 %4977
  %4979 = vrot.lane.b32.xlu0 %v4566, 126
  %v4980 = vpop.permute.xlu0 %4979
  %v4981 = vsel %vm379, %v4978, %v4980
  %v4982 = vsel %vm379, %v4976, %v4978
  %v4983 = vsel %vm379, %v4974, %v4976
  %v4984 = vsel %vm379, %v4980, %v4974
  %4985 = vset.pattern.permute.xlu0 14
  %4986 = vperm.xlu0 %4985, %v4579
  %v4987 = vpop.permute.xlu0 %4986
  %v4989 = vsub.f32 %v4983, %v4987
  %v4990 = vsub.f32 %v4982, %v4987
  %v4991 = vsub.f32 %v4981, %v4987
  %v4992 = vsub.f32 %v4984, %v4987
  %v4993 = vsub.f32 %v4989, %v915
  %v4994 = vsub.f32 %v4990, %v919
  %v4995 = vsub.f32 %v4991, %v923
  %v4996 = vsub.f32 %v4992, %v927
  %v4997 = vmax.f32 %v4969, %v4993
  %v4998 = vmax.f32 %v4970, %v4994
  %v4999 = vmax.f32 %v4971, %v4995
  %v5000 = vmax.f32 %v4972, %v4996
  %5001 = vrot.lane.b32.xlu0 %v4563, 114
  %v5002 = vpop.permute.xlu0 %5001
  %5003 = vrot.lane.b32.xlu0 %v4564, 114
  %v5004 = vpop.permute.xlu0 %5003
  %5005 = vrot.lane.b32.xlu0 %v4565, 114
  %v5006 = vpop.permute.xlu0 %5005
  %5007 = vrot.lane.b32.xlu0 %v4566, 114
  %v5008 = vpop.permute.xlu0 %5007
  %v5009 = vsel %vm1257, %v5006, %v5008
  %v5010 = vsel %vm1257, %v5004, %v5006
  %v5011 = vsel %vm1257, %v5002, %v5004
  %v5012 = vsel %vm1257, %v5008, %v5002
  %5013 = vset.pattern.permute.xlu0 15
  %5014 = vperm.xlu0 %5013, %v4579
  %v5015 = vpop.permute.xlu0 %5014
  %v5017 = vsub.f32 %v5011, %v5015
  %v5018 = vsub.f32 %v5010, %v5015
  %v5019 = vsub.f32 %v5009, %v5015
  %v5020 = vsub.f32 %v5012, %v5015
  %v5021 = vsub.f32 %v5017, %v1274
  %v5022 = vsub.f32 %v5018, %v1278
  %v5023 = vsub.f32 %v5019, %v1282
  %v5024 = vsub.f32 %v5020, %v1286
  %v5025 = vsub.f32 %v5021, %v723
  %v5026 = vsub.f32 %v5022, %v727
  %v5027 = vsub.f32 %v5023, %v731
  %v5028 = vsub.f32 %v5024, %v735
  %v5029 = vmax.f32 %v4997, %v5025
  %v5030 = vmax.f32 %v4998, %v5026
  %v5031 = vmax.f32 %v4999, %v5027
  %v5032 = vmax.f32 %v5000, %v5028
  %5033 = vrot.lane.b32.xlu0 %v4563, 113
  %v5034 = vpop.permute.xlu0 %5033
  %5035 = vrot.lane.b32.xlu0 %v4564, 113
  %v5036 = vpop.permute.xlu0 %5035
  %5037 = vrot.lane.b32.xlu0 %v4565, 113
  %v5038 = vpop.permute.xlu0 %5037
  %5039 = vrot.lane.b32.xlu0 %v4566, 113
  %v5040 = vpop.permute.xlu0 %5039
  %v5041 = vsel %vm1311, %v5038, %v5040
  %v5042 = vsel %vm1311, %v5036, %v5038
  %v5043 = vsel %vm1311, %v5034, %v5036
  %v5044 = vsel %vm1311, %v5040, %v5034
  %5045 = vset.pattern.permute.xlu0 16
  %5046 = vperm.xlu0 %5045, %v4579
  %v5047 = vpop.permute.xlu0 %5046
  %v5049 = vsub.f32 %v5043, %v5047
  %v5050 = vsub.f32 %v5042, %v5047
  %v5051 = vsub.f32 %v5041, %v5047
  %v5052 = vsub.f32 %v5044, %v5047
  %v5053 = vsub.f32 %v5049, %v1274
  %v5054 = vsub.f32 %v5050, %v1278
  %v5055 = vsub.f32 %v5051, %v1282
  %v5056 = vsub.f32 %v5052, %v1286
  %v5057 = vsub.f32 %v5053, %v775
  %v5058 = vsub.f32 %v5054, %v779
  %v5059 = vsub.f32 %v5055, %v783
  %v5060 = vsub.f32 %v5056, %v787
  %v5061 = vmax.f32 %v5029, %v5057
  %v5062 = vmax.f32 %v5030, %v5058
  %v5063 = vmax.f32 %v5031, %v5059
  %v5064 = vmax.f32 %v5032, %v5060
  %5065 = vrot.lane.b32.xlu0 %v4563, 112
  %v5066 = vpop.permute.xlu0 %5065
  %5067 = vrot.lane.b32.xlu0 %v4564, 112
  %v5068 = vpop.permute.xlu0 %5067
  %5069 = vrot.lane.b32.xlu0 %v4565, 112
  %v5070 = vpop.permute.xlu0 %5069
  %5071 = vrot.lane.b32.xlu0 %v4566, 112
  %v5072 = vpop.permute.xlu0 %5071
  %v5073 = vsel %vm563, %v5070, %v5072
  %v5074 = vsel %vm563, %v5068, %v5070
  %v5075 = vsel %vm563, %v5066, %v5068
  %v5076 = vsel %vm563, %v5072, %v5066
  %5077 = vset.pattern.permute.xlu0 17
  %5078 = vperm.xlu0 %5077, %v4579
  %v5079 = vpop.permute.xlu0 %5078
  %v5081 = vsub.f32 %v5075, %v5079
  %v5082 = vsub.f32 %v5074, %v5079
  %v5083 = vsub.f32 %v5073, %v5079
  %v5084 = vsub.f32 %v5076, %v5079
  %v5085 = vsub.f32 %v5081, %v1274
  %v5086 = vsub.f32 %v5082, %v1278
  %v5087 = vsub.f32 %v5083, %v1282
  %v5088 = vsub.f32 %v5084, %v1286
  %v5089 = vmax.f32 %v5061, %v5085
  %v5090 = vmax.f32 %v5062, %v5086
  %v5091 = vmax.f32 %v5063, %v5087
  %v5092 = vmax.f32 %v5064, %v5088
  %5093 = vrot.lane.b32.xlu0 %v4563, 111
  %v5094 = vpop.permute.xlu0 %5093
  %5095 = vrot.lane.b32.xlu0 %v4564, 111
  %v5096 = vpop.permute.xlu0 %5095
  %5097 = vrot.lane.b32.xlu0 %v4565, 111
  %v5098 = vpop.permute.xlu0 %5097
  %5099 = vrot.lane.b32.xlu0 %v4566, 111
  %v5100 = vpop.permute.xlu0 %5099
  %v5101 = vsel %vm1372, %v5098, %v5100
  %v5102 = vsel %vm1372, %v5096, %v5098
  %v5103 = vsel %vm1372, %v5094, %v5096
  %v5104 = vsel %vm1372, %v5100, %v5094
  %5105 = vset.pattern.permute.xlu0 18
  %5106 = vperm.xlu0 %5105, %v4579
  %v5107 = vpop.permute.xlu0 %5106
  %v5109 = vsub.f32 %v5103, %v5107
  %v5110 = vsub.f32 %v5102, %v5107
  %v5111 = vsub.f32 %v5101, %v5107
  %v5112 = vsub.f32 %v5104, %v5107
  %v5113 = vsub.f32 %v5109, %v1274
  %v5114 = vsub.f32 %v5110, %v1278
  %v5115 = vsub.f32 %v5111, %v1282
  %v5116 = vsub.f32 %v5112, %v1286
  %v5117 = vsub.f32 %v5113, %v859
  %v5118 = vsub.f32 %v5114, %v863
  %v5119 = vsub.f32 %v5115, %v867
  %v5120 = vsub.f32 %v5116, %v871
  %v5121 = vmax.f32 %v5089, %v5117
  %v5122 = vmax.f32 %v5090, %v5118
  %v5123 = vmax.f32 %v5091, %v5119
  %v5124 = vmax.f32 %v5092, %v5120
  %5125 = vrot.lane.b32.xlu0 %v4563, 110
  %v5126 = vpop.permute.xlu0 %5125
  %5127 = vrot.lane.b32.xlu0 %v4564, 110
  %v5128 = vpop.permute.xlu0 %5127
  %5129 = vrot.lane.b32.xlu0 %v4565, 110
  %v5130 = vpop.permute.xlu0 %5129
  %5131 = vrot.lane.b32.xlu0 %v4566, 110
  %v5132 = vpop.permute.xlu0 %5131
  %v5133 = vsel %vm1405, %v5130, %v5132
  %v5134 = vsel %vm1405, %v5128, %v5130
  %v5135 = vsel %vm1405, %v5126, %v5128
  %v5136 = vsel %vm1405, %v5132, %v5126
  %5137 = vset.pattern.permute.xlu0 19
  %5138 = vperm.xlu0 %5137, %v4579
  %v5139 = vpop.permute.xlu0 %5138
  %v5141 = vsub.f32 %v5135, %v5139
  %v5142 = vsub.f32 %v5134, %v5139
  %v5143 = vsub.f32 %v5133, %v5139
  %v5144 = vsub.f32 %v5136, %v5139
  %v5145 = vsub.f32 %v5141, %v1274
  %v5146 = vsub.f32 %v5142, %v1278
  %v5147 = vsub.f32 %v5143, %v1282
  %v5148 = vsub.f32 %v5144, %v1286
  %v5149 = vsub.f32 %v5145, %v915
  %v5150 = vsub.f32 %v5146, %v919
  %v5151 = vsub.f32 %v5147, %v923
  %v5152 = vsub.f32 %v5148, %v927
  %v5153 = vmax.f32 %v5121, %v5149
  %v5154 = vmax.f32 %v5122, %v5150
  %v5155 = vmax.f32 %v5123, %v5151
  %v5156 = vmax.f32 %v5124, %v5152
  %5157 = vrot.lane.b32.xlu0 %v4563, 98
  %v5158 = vpop.permute.xlu0 %5157
  %5159 = vrot.lane.b32.xlu0 %v4564, 98
  %v5160 = vpop.permute.xlu0 %5159
  %5161 = vrot.lane.b32.xlu0 %v4565, 98
  %v5162 = vpop.permute.xlu0 %5161
  %5163 = vrot.lane.b32.xlu0 %v4566, 98
  %v5164 = vpop.permute.xlu0 %5163
  %v5165 = vsel %vm1440, %v5162, %v5164
  %v5166 = vsel %vm1440, %v5160, %v5162
  %v5167 = vsel %vm1440, %v5158, %v5160
  %v5168 = vsel %vm1440, %v5164, %v5158
  %5169 = vset.pattern.permute.xlu0 20
  %5170 = vperm.xlu0 %5169, %v4579
  %v5171 = vpop.permute.xlu0 %5170
  %v5173 = vsub.f32 %v5167, %v5171
  %v5174 = vsub.f32 %v5166, %v5171
  %v5175 = vsub.f32 %v5165, %v5171
  %v5176 = vsub.f32 %v5168, %v5171
  %v5177 = vsub.f32 %v5173, %v1457
  %v5178 = vsub.f32 %v5174, %v1461
  %v5179 = vsub.f32 %v5175, %v1465
  %v5180 = vsub.f32 %v5176, %v1469
  %v5181 = vsub.f32 %v5177, %v723
  %v5182 = vsub.f32 %v5178, %v727
  %v5183 = vsub.f32 %v5179, %v731
  %v5184 = vsub.f32 %v5180, %v735
  %v5185 = vmax.f32 %v5153, %v5181
  %v5186 = vmax.f32 %v5154, %v5182
  %v5187 = vmax.f32 %v5155, %v5183
  %v5188 = vmax.f32 %v5156, %v5184
  %5189 = vrot.lane.b32.xlu0 %v4563, 97
  %v5190 = vpop.permute.xlu0 %5189
  %5191 = vrot.lane.b32.xlu0 %v4564, 97
  %v5192 = vpop.permute.xlu0 %5191
  %5193 = vrot.lane.b32.xlu0 %v4565, 97
  %v5194 = vpop.permute.xlu0 %5193
  %5195 = vrot.lane.b32.xlu0 %v4566, 97
  %v5196 = vpop.permute.xlu0 %5195
  %v5197 = vsel %vm1494, %v5194, %v5196
  %v5198 = vsel %vm1494, %v5192, %v5194
  %v5199 = vsel %vm1494, %v5190, %v5192
  %v5200 = vsel %vm1494, %v5196, %v5190
  %5201 = vset.pattern.permute.xlu0 21
  %5202 = vperm.xlu0 %5201, %v4579
  %v5203 = vpop.permute.xlu0 %5202
  %v5205 = vsub.f32 %v5199, %v5203
  %v5206 = vsub.f32 %v5198, %v5203
  %v5207 = vsub.f32 %v5197, %v5203
  %v5208 = vsub.f32 %v5200, %v5203
  %v5209 = vsub.f32 %v5205, %v1457
  %v5210 = vsub.f32 %v5206, %v1461
  %v5211 = vsub.f32 %v5207, %v1465
  %v5212 = vsub.f32 %v5208, %v1469
  %v5213 = vsub.f32 %v5209, %v775
  %v5214 = vsub.f32 %v5210, %v779
  %v5215 = vsub.f32 %v5211, %v783
  %v5216 = vsub.f32 %v5212, %v787
  %v5217 = vmax.f32 %v5185, %v5213
  %v5218 = vmax.f32 %v5186, %v5214
  %v5219 = vmax.f32 %v5187, %v5215
  %v5220 = vmax.f32 %v5188, %v5216
  %5221 = vrot.lane.b32.xlu0 %v4563, 96
  %v5222 = vpop.permute.xlu0 %5221
  %5223 = vrot.lane.b32.xlu0 %v4564, 96
  %v5224 = vpop.permute.xlu0 %5223
  %5225 = vrot.lane.b32.xlu0 %v4565, 96
  %v5226 = vpop.permute.xlu0 %5225
  %5227 = vrot.lane.b32.xlu0 %v4566, 96
  %v5228 = vpop.permute.xlu0 %5227
  %v5229 = vsel %vm619, %v5226, %v5228
  %v5230 = vsel %vm619, %v5224, %v5226
  %v5231 = vsel %vm619, %v5222, %v5224
  %v5232 = vsel %vm619, %v5228, %v5222
  %5233 = vset.pattern.permute.xlu0 22
  %5234 = vperm.xlu0 %5233, %v4579
  %v5235 = vpop.permute.xlu0 %5234
  %v5237 = vsub.f32 %v5231, %v5235
  %v5238 = vsub.f32 %v5230, %v5235
  %v5239 = vsub.f32 %v5229, %v5235
  %v5240 = vsub.f32 %v5232, %v5235
  %v5241 = vsub.f32 %v5237, %v1457
  %v5242 = vsub.f32 %v5238, %v1461
  %v5243 = vsub.f32 %v5239, %v1465
  %v5244 = vsub.f32 %v5240, %v1469
  %v5245 = vmax.f32 %v5217, %v5241
  %v5246 = vmax.f32 %v5218, %v5242
  %v5247 = vmax.f32 %v5219, %v5243
  %v5248 = vmax.f32 %v5220, %v5244
  %5249 = vrot.lane.b32.xlu0 %v4563, 95
  %v5250 = vpop.permute.xlu0 %5249
  %5251 = vrot.lane.b32.xlu0 %v4564, 95
  %v5252 = vpop.permute.xlu0 %5251
  %5253 = vrot.lane.b32.xlu0 %v4565, 95
  %v5254 = vpop.permute.xlu0 %5253
  %5255 = vrot.lane.b32.xlu0 %v4566, 95
  %v5256 = vpop.permute.xlu0 %5255
  %v5257 = vsel %vm1555, %v5254, %v5256
  %v5258 = vsel %vm1555, %v5252, %v5254
  %v5259 = vsel %vm1555, %v5250, %v5252
  %v5260 = vsel %vm1555, %v5256, %v5250
  %5261 = vset.pattern.permute.xlu0 23
  %5262 = vperm.xlu0 %5261, %v4579
  %v5263 = vpop.permute.xlu0 %5262
  %v5265 = vsub.f32 %v5259, %v5263
  %v5266 = vsub.f32 %v5258, %v5263
  %v5267 = vsub.f32 %v5257, %v5263
  %v5268 = vsub.f32 %v5260, %v5263
  %v5269 = vsub.f32 %v5265, %v1457
  %v5270 = vsub.f32 %v5266, %v1461
  %v5271 = vsub.f32 %v5267, %v1465
  %v5272 = vsub.f32 %v5268, %v1469
  %v5273 = vsub.f32 %v5269, %v859
  %v5274 = vsub.f32 %v5270, %v863
  %v5275 = vsub.f32 %v5271, %v867
  %v5276 = vsub.f32 %v5272, %v871
  %v5277 = vmax.f32 %v5245, %v5273
  %v5278 = vmax.f32 %v5246, %v5274
  %v5279 = vmax.f32 %v5247, %v5275
  %v5280 = vmax.f32 %v5248, %v5276
  %5281 = vrot.lane.b32.xlu0 %v4563, 94
  %v5282 = vpop.permute.xlu0 %5281
  %5283 = vrot.lane.b32.xlu0 %v4564, 94
  %v5284 = vpop.permute.xlu0 %5283
  %5285 = vrot.lane.b32.xlu0 %v4565, 94
  %v5286 = vpop.permute.xlu0 %5285
  %5287 = vrot.lane.b32.xlu0 %v4566, 94
  %v5288 = vpop.permute.xlu0 %5287
  %v5289 = vsel %vm1588, %v5286, %v5288
  %v5290 = vsel %vm1588, %v5284, %v5286
  %v5291 = vsel %vm1588, %v5282, %v5284
  %v5292 = vsel %vm1588, %v5288, %v5282
  %5293 = vset.pattern.permute.xlu0 24
  %5294 = vperm.xlu0 %5293, %v4579
  %v5295 = vpop.permute.xlu0 %5294
  %v5297 = vsub.f32 %v5291, %v5295
  %v5298 = vsub.f32 %v5290, %v5295
  %v5299 = vsub.f32 %v5289, %v5295
  %v5300 = vsub.f32 %v5292, %v5295
  %v5301 = vsub.f32 %v5297, %v1457
  %v5302 = vsub.f32 %v5298, %v1461
  %v5303 = vsub.f32 %v5299, %v1465
  %v5304 = vsub.f32 %v5300, %v1469
  %v5305 = vsub.f32 %v5301, %v915
  %v5306 = vsub.f32 %v5302, %v919
  %v5307 = vsub.f32 %v5303, %v923
  %v5308 = vsub.f32 %v5304, %v927
  %v5309 = vmax.f32 %v5277, %v5305
  %v5310 = vmax.f32 %v5278, %v5306
  %v5311 = vmax.f32 %v5279, %v5307
  %v5312 = vmax.f32 %v5280, %v5308
  %v5313 = vlaneseq
  %v5314 = vshrl.u32 %v5313, 7
  %v5315 = vsub.s32 0, %v5314
  %v5316 = vrot.slane %v5309, %v5315
  %v5317 = vlaneseq
  %v5318 = vshrl.u32 %v5317, 7
  %v5319 = vsub.s32 0, %v5318
  %v5320 = vrot.slane %v5310, %v5319
  %v5321 = vlaneseq
  %v5322 = vshrl.u32 %v5321, 7
  %v5323 = vsub.s32 0, %v5322
  %v5324 = vrot.slane %v5311, %v5323
  %v5325 = vlaneseq
  %v5326 = vshrl.u32 %v5325, 7
  %v5327 = vsub.s32 0, %v5326
  %v5328 = vrot.slane %v5312, %v5327
  %v5329 = vld [vmem:[%s55] sm:$0xff]
  %5331 = vset.pattern.permute.xlu0 0
  %5332 = vperm.xlu0 %5331, %v5329
  %v5333 = vpop.permute.xlu0 %5332
  %v5335 = vmul.f32 %v5316, %v5333
  %v5336 = vmul.f32 %v5320, %v5333
  %v5337 = vmul.f32 %v5324, %v5333
  %v5338 = vmul.f32 %v5328, %v5333
  %v5339 = vadd.f32 %v5335, 0.0
  %v5340 = vadd.f32 %v5336, 0.0
  %v5341 = vadd.f32 %v5337, 0.0
  %v5342 = vadd.f32 %v5338, 0.0
  %v5343 = vlaneseq
  %v5344 = vshrl.u32 %v5343, 7
  %v5345 = vsub.s32 1, %v5344
  %v5346 = vrot.slane %v5309, %v5345
  %v5347 = vlaneseq
  %v5348 = vshrl.u32 %v5347, 7
  %v5349 = vsub.s32 1, %v5348
  %v5350 = vrot.slane %v5310, %v5349
  %v5351 = vlaneseq
  %v5352 = vshrl.u32 %v5351, 7
  %v5353 = vsub.s32 1, %v5352
  %v5354 = vrot.slane %v5311, %v5353
  %v5355 = vlaneseq
  %v5356 = vshrl.u32 %v5355, 7
  %v5357 = vsub.s32 1, %v5356
  %v5358 = vrot.slane %v5312, %v5357
  %5359 = vset.pattern.permute.xlu0 1
  %5360 = vperm.xlu0 %5359, %v5329
  %v5361 = vpop.permute.xlu0 %5360
  %v5363 = vmul.f32 %v5346, %v5361
  %v5364 = vmul.f32 %v5350, %v5361
  %v5365 = vmul.f32 %v5354, %v5361
  %v5366 = vmul.f32 %v5358, %v5361
  %v5367 = vadd.f32 %v5339, %v5363
  %v5368 = vadd.f32 %v5340, %v5364
  %v5369 = vadd.f32 %v5341, %v5365
  %v5370 = vadd.f32 %v5342, %v5366
  %v5371 = vlaneseq
  %v5372 = vshrl.u32 %v5371, 7
  %v5373 = vsub.s32 2, %v5372
  %v5374 = vrot.slane %v5309, %v5373
  %v5375 = vlaneseq
  %v5376 = vshrl.u32 %v5375, 7
  %v5377 = vsub.s32 2, %v5376
  %v5378 = vrot.slane %v5310, %v5377
  %v5379 = vlaneseq
  %v5380 = vshrl.u32 %v5379, 7
  %v5381 = vsub.s32 2, %v5380
  %v5382 = vrot.slane %v5311, %v5381
  %v5383 = vlaneseq
  %v5384 = vshrl.u32 %v5383, 7
  %v5385 = vsub.s32 2, %v5384
  %v5386 = vrot.slane %v5312, %v5385
  %5387 = vset.pattern.permute.xlu0 2
  %5388 = vperm.xlu0 %5387, %v5329
  %v5389 = vpop.permute.xlu0 %5388
  %v5391 = vmul.f32 %v5374, %v5389
  %v5392 = vmul.f32 %v5378, %v5389
  %v5393 = vmul.f32 %v5382, %v5389
  %v5394 = vmul.f32 %v5386, %v5389
  %v5395 = vadd.f32 %v5367, %v5391
  %v5396 = vadd.f32 %v5368, %v5392
  %v5397 = vadd.f32 %v5369, %v5393
  %v5398 = vadd.f32 %v5370, %v5394
  %v5399 = vlaneseq
  %v5400 = vshrl.u32 %v5399, 7
  %v5401 = vsub.s32 3, %v5400
  %v5402 = vrot.slane %v5309, %v5401
  %v5403 = vlaneseq
  %v5404 = vshrl.u32 %v5403, 7
  %v5405 = vsub.s32 3, %v5404
  %v5406 = vrot.slane %v5310, %v5405
  %v5407 = vlaneseq
  %v5408 = vshrl.u32 %v5407, 7
  %v5409 = vsub.s32 3, %v5408
  %v5410 = vrot.slane %v5311, %v5409
  %v5411 = vlaneseq
  %v5412 = vshrl.u32 %v5411, 7
  %v5413 = vsub.s32 3, %v5412
  %v5414 = vrot.slane %v5312, %v5413
  %5415 = vset.pattern.permute.xlu0 3
  %5416 = vperm.xlu0 %5415, %v5329
  %v5417 = vpop.permute.xlu0 %5416
  %v5419 = vmul.f32 %v5402, %v5417
  %v5420 = vmul.f32 %v5406, %v5417
  %v5421 = vmul.f32 %v5410, %v5417
  %v5422 = vmul.f32 %v5414, %v5417
  %v5423 = vadd.f32 %v5395, %v5419
  %v5424 = vadd.f32 %v5396, %v5420
  %v5425 = vadd.f32 %v5397, %v5421
  %v5426 = vadd.f32 %v5398, %v5422
  %v5427 = vlaneseq
  %v5428 = vshrl.u32 %v5427, 7
  %v5429 = vsub.s32 4, %v5428
  %v5430 = vrot.slane %v5309, %v5429
  %v5431 = vlaneseq
  %v5432 = vshrl.u32 %v5431, 7
  %v5433 = vsub.s32 4, %v5432
  %v5434 = vrot.slane %v5310, %v5433
  %v5435 = vlaneseq
  %v5436 = vshrl.u32 %v5435, 7
  %v5437 = vsub.s32 4, %v5436
  %v5438 = vrot.slane %v5311, %v5437
  %v5439 = vlaneseq
  %v5440 = vshrl.u32 %v5439, 7
  %v5441 = vsub.s32 4, %v5440
  %v5442 = vrot.slane %v5312, %v5441
  %5443 = vset.pattern.permute.xlu0 4
  %5444 = vperm.xlu0 %5443, %v5329
  %v5445 = vpop.permute.xlu0 %5444
  %v5447 = vmul.f32 %v5430, %v5445
  %v5448 = vmul.f32 %v5434, %v5445
  %v5449 = vmul.f32 %v5438, %v5445
  %v5450 = vmul.f32 %v5442, %v5445
  %v5451 = vadd.f32 %v5423, %v5447
  %v5452 = vadd.f32 %v5424, %v5448
  %v5453 = vadd.f32 %v5425, %v5449
  %v5454 = vadd.f32 %v5426, %v5450
  %v5455 = vlaneseq
  %v5456 = vshrl.u32 %v5455, 7
  %v5457 = vsub.s32 5, %v5456
  %v5458 = vrot.slane %v5309, %v5457
  %v5459 = vlaneseq
  %v5460 = vshrl.u32 %v5459, 7
  %v5461 = vsub.s32 5, %v5460
  %v5462 = vrot.slane %v5310, %v5461
  %v5463 = vlaneseq
  %v5464 = vshrl.u32 %v5463, 7
  %v5465 = vsub.s32 5, %v5464
  %v5466 = vrot.slane %v5311, %v5465
  %v5467 = vlaneseq
  %v5468 = vshrl.u32 %v5467, 7
  %v5469 = vsub.s32 5, %v5468
  %v5470 = vrot.slane %v5312, %v5469
  %5471 = vset.pattern.permute.xlu0 5
  %5472 = vperm.xlu0 %5471, %v5329
  %v5473 = vpop.permute.xlu0 %5472
  %v5475 = vmul.f32 %v5458, %v5473
  %v5476 = vmul.f32 %v5462, %v5473
  %v5477 = vmul.f32 %v5466, %v5473
  %v5478 = vmul.f32 %v5470, %v5473
  %v5479 = vadd.f32 %v5451, %v5475
  %v5480 = vadd.f32 %v5452, %v5476
  %v5481 = vadd.f32 %v5453, %v5477
  %v5482 = vadd.f32 %v5454, %v5478
  %v5483 = vlaneseq
  %v5484 = vshrl.u32 %v5483, 7
  %v5485 = vsub.s32 6, %v5484
  %v5486 = vrot.slane %v5309, %v5485
  %v5487 = vlaneseq
  %v5488 = vshrl.u32 %v5487, 7
  %v5489 = vsub.s32 6, %v5488
  %v5490 = vrot.slane %v5310, %v5489
  %v5491 = vlaneseq
  %v5492 = vshrl.u32 %v5491, 7
  %v5493 = vsub.s32 6, %v5492
  %v5494 = vrot.slane %v5311, %v5493
  %v5495 = vlaneseq
  %v5496 = vshrl.u32 %v5495, 7
  %v5497 = vsub.s32 6, %v5496
  %v5498 = vrot.slane %v5312, %v5497
  %5499 = vset.pattern.permute.xlu0 6
  %5500 = vperm.xlu0 %5499, %v5329
  %v5501 = vpop.permute.xlu0 %5500
  %v5503 = vmul.f32 %v5486, %v5501
  %v5504 = vmul.f32 %v5490, %v5501
  %v5505 = vmul.f32 %v5494, %v5501
  %v5506 = vmul.f32 %v5498, %v5501
  %v5507 = vadd.f32 %v5479, %v5503
  %v5508 = vadd.f32 %v5480, %v5504
  %v5509 = vadd.f32 %v5481, %v5505
  %v5510 = vadd.f32 %v5482, %v5506
  %v5511 = vlaneseq
  %v5512 = vshrl.u32 %v5511, 7
  %v5513 = vsub.s32 7, %v5512
  %v5514 = vrot.slane %v5309, %v5513
  %v5515 = vlaneseq
  %v5516 = vshrl.u32 %v5515, 7
  %v5517 = vsub.s32 7, %v5516
  %v5518 = vrot.slane %v5310, %v5517
  %v5519 = vlaneseq
  %v5520 = vshrl.u32 %v5519, 7
  %v5521 = vsub.s32 7, %v5520
  %v5522 = vrot.slane %v5311, %v5521
  %v5523 = vlaneseq
  %v5524 = vshrl.u32 %v5523, 7
  %v5525 = vsub.s32 7, %v5524
  %v5526 = vrot.slane %v5312, %v5525
  %5527 = vset.pattern.permute.xlu0 7
  %5528 = vperm.xlu0 %5527, %v5329
  %v5529 = vpop.permute.xlu0 %5528
  %v5531 = vmul.f32 %v5514, %v5529
  %v5532 = vmul.f32 %v5518, %v5529
  %v5533 = vmul.f32 %v5522, %v5529
  %v5534 = vmul.f32 %v5526, %v5529
  %v5535 = vadd.f32 %v5507, %v5531
  %v5536 = vadd.f32 %v5508, %v5532
  %v5537 = vadd.f32 %v5509, %v5533
  %v5538 = vadd.f32 %v5510, %v5534
  %v5539 = vld [vmem:[%s57] sm:$0xff]
  %5541 = vset.pattern.permute.xlu0 0
  %5542 = vperm.xlu0 %5541, %v5539
  %v5543 = vpop.permute.xlu0 %5542
  %v5545 = vadd.f32 %v5535, %v5543
  %v5546 = vadd.f32 %v5536, %v5543
  %v5547 = vadd.f32 %v5537, %v5543
  %v5548 = vadd.f32 %v5538, %v5543
  %v5549 = vadd.f32 %v5545, %v5546
  %v5550 = vadd.f32 %v5549, %v5547
  %v5551 = vadd.f32 %v5550, %v5548
  %5552 = vadd.xlane.f32.xlu0 %v5551
  %v5553 = vpop.xlane.xlu0 %5552
  %v5554 = vmul.f32 %v5553, 0.001953125
  %v5555 = vsub.f32 %v5545, %v5554
  %v5556 = vsub.f32 %v5546, %v5554
  %v5557 = vsub.f32 %v5547, %v5554
  %v5558 = vsub.f32 %v5548, %v5554
  %v5559 = vmul.f32 %v5555, %v5555
  %v5560 = vmul.f32 %v5556, %v5556
  %v5561 = vmul.f32 %v5557, %v5557
  %v5562 = vmul.f32 %v5558, %v5558
  %v5563 = vadd.f32 %v5559, %v5560
  %v5564 = vadd.f32 %v5563, %v5561
  %v5565 = vadd.f32 %v5564, %v5562
  %5566 = vadd.xlane.f32.xlu0 %v5565
  %v5567 = vpop.xlane.xlu0 %5566
  %v5568 = vmul.f32 %v5567, 0.001953125
  %v5569 = vld [vmem:[%s59] sm:$0xff]
  %5571 = vset.pattern.permute.xlu0 0
  %5572 = vperm.xlu0 %5571, %v5569
  %v5573 = vpop.permute.xlu0 %5572
  %v5575 = vmul.f32 %v5573, %v5555
  %v5576 = vmul.f32 %v5573, %v5556
  %v5577 = vmul.f32 %v5573, %v5557
  %v5578 = vmul.f32 %v5573, %v5558
  %v5579 = vadd.f32 %v5568, 1e-05
  %v5580 = vrsqrt.pop %v5579
  %v5581 = vmul.f32 %v5575, %v5580
  %v5582 = vmul.f32 %v5576, %v5580
  %v5583 = vmul.f32 %v5577, %v5580
  %v5584 = vmul.f32 %v5578, %v5580
  %v5585 = vld [vmem:[%s61] sm:$0xff]
  %5587 = vset.pattern.permute.xlu0 0
  %5588 = vperm.xlu0 %5587, %v5585
  %v5589 = vpop.permute.xlu0 %5588
  %v5591 = vadd.f32 %v5581, %v5589
  %v5592 = vadd.f32 %v5582, %v5589
  %v5593 = vadd.f32 %v5583, %v5589
  %v5594 = vadd.f32 %v5584, %v5589
  %5595 = vrot.lane.b32.xlu0 %v5591, 2
  %v5596 = vpop.permute.xlu0 %5595
  %5597 = vrot.lane.b32.xlu0 %v5592, 2
  %v5598 = vpop.permute.xlu0 %5597
  %5599 = vrot.lane.b32.xlu0 %v5593, 2
  %v5600 = vpop.permute.xlu0 %5599
  %5601 = vrot.lane.b32.xlu0 %v5594, 2
  %v5602 = vpop.permute.xlu0 %5601
  %v5603 = vsel %vm182, %v5600, %v5602
  %v5604 = vsel %vm182, %v5598, %v5600
  %v5605 = vsel %vm182, %v5596, %v5598
  %v5606 = vsel %vm182, %v5602, %v5596
  %v5607 = vmul.f32 %v5606, %v197
  %v5608 = vmul.f32 %v5605, %v201
  %v5609 = vmul.f32 %v5604, %v205
  %v5610 = vmul.f32 %v5603, %v209
  %v5611 = vld [vmem:[%s65] sm:$0xff]
  %5613 = vset.pattern.permute.xlu0 0
  %5614 = vperm.xlu0 %5613, %v5611
  %v5615 = vpop.permute.xlu0 %5614
  %v5617 = vmul.f32 %v5607, %v5615
  %v5618 = vmul.f32 %v5608, %v5615
  %v5619 = vmul.f32 %v5609, %v5615
  %v5620 = vmul.f32 %v5610, %v5615
  %v5621 = vadd.f32 %v5617, 0.0
  %v5622 = vadd.f32 %v5618, 0.0
  %v5623 = vadd.f32 %v5619, 0.0
  %v5624 = vadd.f32 %v5620, 0.0
  %5625 = vrot.lane.b32.xlu0 %v5591, 1
  %v5626 = vpop.permute.xlu0 %5625
  %5627 = vrot.lane.b32.xlu0 %v5592, 1
  %v5628 = vpop.permute.xlu0 %5627
  %5629 = vrot.lane.b32.xlu0 %v5593, 1
  %v5630 = vpop.permute.xlu0 %5629
  %5631 = vrot.lane.b32.xlu0 %v5594, 1
  %v5632 = vpop.permute.xlu0 %5631
  %v5633 = vsel %vm240, %v5630, %v5632
  %v5634 = vsel %vm240, %v5628, %v5630
  %v5635 = vsel %vm240, %v5626, %v5628
  %v5636 = vsel %vm240, %v5632, %v5626
  %v5637 = vmul.f32 %v5636, %v255
  %v5638 = vmul.f32 %v5635, %v259
  %v5639 = vmul.f32 %v5634, %v263
  %v5640 = vmul.f32 %v5633, %v267
  %5641 = vset.pattern.permute.xlu0 1
  %5642 = vperm.xlu0 %5641, %v5611
  %v5643 = vpop.permute.xlu0 %5642
  %v5645 = vmul.f32 %v5637, %v5643
  %v5646 = vmul.f32 %v5638, %v5643
  %v5647 = vmul.f32 %v5639, %v5643
  %v5648 = vmul.f32 %v5640, %v5643
  %v5649 = vadd.f32 %v5621, %v5645
  %v5650 = vadd.f32 %v5622, %v5646
  %v5651 = vadd.f32 %v5623, %v5647
  %v5652 = vadd.f32 %v5624, %v5648
  %5653 = vset.pattern.permute.xlu0 2
  %5654 = vperm.xlu0 %5653, %v5611
  %v5655 = vpop.permute.xlu0 %5654
  %v5657 = vmul.f32 %v5591, %v5655
  %v5658 = vmul.f32 %v5592, %v5655
  %v5659 = vmul.f32 %v5593, %v5655
  %v5660 = vmul.f32 %v5594, %v5655
  %v5661 = vadd.f32 %v5649, %v5657
  %v5662 = vadd.f32 %v5650, %v5658
  %v5663 = vadd.f32 %v5651, %v5659
  %v5664 = vadd.f32 %v5652, %v5660
  %5665 = vrot.lane.b32.xlu0 %v5591, 127
  %v5666 = vpop.permute.xlu0 %5665
  %5667 = vrot.lane.b32.xlu0 %v5592, 127
  %v5668 = vpop.permute.xlu0 %5667
  %5669 = vrot.lane.b32.xlu0 %v5593, 127
  %v5670 = vpop.permute.xlu0 %5669
  %5671 = vrot.lane.b32.xlu0 %v5594, 127
  %v5672 = vpop.permute.xlu0 %5671
  %v5673 = vsel %vm321, %v5670, %v5672
  %v5674 = vsel %vm321, %v5668, %v5670
  %v5675 = vsel %vm321, %v5666, %v5668
  %v5676 = vsel %vm321, %v5672, %v5666
  %v5677 = vmul.f32 %v5675, %v336
  %v5678 = vmul.f32 %v5674, %v340
  %v5679 = vmul.f32 %v5673, %v344
  %v5680 = vmul.f32 %v5676, %v348
  %5681 = vset.pattern.permute.xlu0 3
  %5682 = vperm.xlu0 %5681, %v5611
  %v5683 = vpop.permute.xlu0 %5682
  %v5685 = vmul.f32 %v5677, %v5683
  %v5686 = vmul.f32 %v5678, %v5683
  %v5687 = vmul.f32 %v5679, %v5683
  %v5688 = vmul.f32 %v5680, %v5683
  %v5689 = vadd.f32 %v5661, %v5685
  %v5690 = vadd.f32 %v5662, %v5686
  %v5691 = vadd.f32 %v5663, %v5687
  %v5692 = vadd.f32 %v5664, %v5688
  %5693 = vrot.lane.b32.xlu0 %v5591, 126
  %v5694 = vpop.permute.xlu0 %5693
  %5695 = vrot.lane.b32.xlu0 %v5592, 126
  %v5696 = vpop.permute.xlu0 %5695
  %5697 = vrot.lane.b32.xlu0 %v5593, 126
  %v5698 = vpop.permute.xlu0 %5697
  %5699 = vrot.lane.b32.xlu0 %v5594, 126
  %v5700 = vpop.permute.xlu0 %5699
  %v5701 = vsel %vm379, %v5698, %v5700
  %v5702 = vsel %vm379, %v5696, %v5698
  %v5703 = vsel %vm379, %v5694, %v5696
  %v5704 = vsel %vm379, %v5700, %v5694
  %v5705 = vmul.f32 %v5703, %v394
  %v5706 = vmul.f32 %v5702, %v398
  %v5707 = vmul.f32 %v5701, %v402
  %v5708 = vmul.f32 %v5704, %v406
  %5709 = vset.pattern.permute.xlu0 4
  %5710 = vperm.xlu0 %5709, %v5611
  %v5711 = vpop.permute.xlu0 %5710
  %v5713 = vmul.f32 %v5705, %v5711
  %v5714 = vmul.f32 %v5706, %v5711
  %v5715 = vmul.f32 %v5707, %v5711
  %v5716 = vmul.f32 %v5708, %v5711
  %v5717 = vadd.f32 %v5689, %v5713
  %v5718 = vadd.f32 %v5690, %v5714
  %v5719 = vadd.f32 %v5691, %v5715
  %v5720 = vadd.f32 %v5692, %v5716
  %5721 = vrot.lane.b32.xlu0 %v5717, 32
  %v5722 = vpop.permute.xlu0 %5721
  %5723 = vrot.lane.b32.xlu0 %v5718, 32
  %v5724 = vpop.permute.xlu0 %5723
  %5725 = vrot.lane.b32.xlu0 %v5719, 32
  %v5726 = vpop.permute.xlu0 %5725
  %5727 = vrot.lane.b32.xlu0 %v5720, 32
  %v5728 = vpop.permute.xlu0 %5727
  %v5729 = vsel %vm437, %v5726, %v5728
  %v5730 = vsel %vm437, %v5724, %v5726
  %v5731 = vsel %vm437, %v5722, %v5724
  %v5732 = vsel %vm437, %v5728, %v5722
  %v5733 = vmul.f32 %v5732, %v452
  %v5734 = vmul.f32 %v5731, %v456
  %v5735 = vmul.f32 %v5730, %v460
  %v5736 = vmul.f32 %v5729, %v464
  %v5737 = vld [vmem:[%s63] sm:$0xff]
  %5739 = vset.pattern.permute.xlu0 0
  %5740 = vperm.xlu0 %5739, %v5737
  %v5741 = vpop.permute.xlu0 %5740
  %v5743 = vmul.f32 %v5733, %v5741
  %v5744 = vmul.f32 %v5734, %v5741
  %v5745 = vmul.f32 %v5735, %v5741
  %v5746 = vmul.f32 %v5736, %v5741
  %v5747 = vadd.f32 %v5743, 0.0
  %v5748 = vadd.f32 %v5744, 0.0
  %v5749 = vadd.f32 %v5745, 0.0
  %v5750 = vadd.f32 %v5746, 0.0
  %5751 = vrot.lane.b32.xlu0 %v5717, 16
  %v5752 = vpop.permute.xlu0 %5751
  %5753 = vrot.lane.b32.xlu0 %v5718, 16
  %v5754 = vpop.permute.xlu0 %5753
  %5755 = vrot.lane.b32.xlu0 %v5719, 16
  %v5756 = vpop.permute.xlu0 %5755
  %5757 = vrot.lane.b32.xlu0 %v5720, 16
  %v5758 = vpop.permute.xlu0 %5757
  %v5759 = vsel %vm495, %v5756, %v5758
  %v5760 = vsel %vm495, %v5754, %v5756
  %v5761 = vsel %vm495, %v5752, %v5754
  %v5762 = vsel %vm495, %v5758, %v5752
  %v5763 = vmul.f32 %v5762, %v510
  %v5764 = vmul.f32 %v5761, %v514
  %v5765 = vmul.f32 %v5760, %v518
  %v5766 = vmul.f32 %v5759, %v522
  %5767 = vset.pattern.permute.xlu0 1
  %5768 = vperm.xlu0 %5767, %v5737
  %v5769 = vpop.permute.xlu0 %5768
  %v5771 = vmul.f32 %v5763, %v5769
  %v5772 = vmul.f32 %v5764, %v5769
  %v5773 = vmul.f32 %v5765, %v5769
  %v5774 = vmul.f32 %v5766, %v5769
  %v5775 = vadd.f32 %v5747, %v5771
  %v5776 = vadd.f32 %v5748, %v5772
  %v5777 = vadd.f32 %v5749, %v5773
  %v5778 = vadd.f32 %v5750, %v5774
  %5779 = vset.pattern.permute.xlu0 2
  %5780 = vperm.xlu0 %5779, %v5737
  %v5781 = vpop.permute.xlu0 %5780
  %v5783 = vmul.f32 %v5717, %v5781
  %v5784 = vmul.f32 %v5718, %v5781
  %v5785 = vmul.f32 %v5719, %v5781
  %v5786 = vmul.f32 %v5720, %v5781
  %v5787 = vadd.f32 %v5775, %v5783
  %v5788 = vadd.f32 %v5776, %v5784
  %v5789 = vadd.f32 %v5777, %v5785
  %v5790 = vadd.f32 %v5778, %v5786
  %5791 = vrot.lane.b32.xlu0 %v5717, 112
  %v5792 = vpop.permute.xlu0 %5791
  %5793 = vrot.lane.b32.xlu0 %v5718, 112
  %v5794 = vpop.permute.xlu0 %5793
  %5795 = vrot.lane.b32.xlu0 %v5719, 112
  %v5796 = vpop.permute.xlu0 %5795
  %5797 = vrot.lane.b32.xlu0 %v5720, 112
  %v5798 = vpop.permute.xlu0 %5797
  %v5799 = vsel %vm563, %v5796, %v5798
  %v5800 = vsel %vm563, %v5794, %v5796
  %v5801 = vsel %vm563, %v5792, %v5794
  %v5802 = vsel %vm563, %v5798, %v5792
  %v5803 = vmul.f32 %v5801, %v578
  %v5804 = vmul.f32 %v5800, %v582
  %v5805 = vmul.f32 %v5799, %v586
  %v5806 = vmul.f32 %v5802, %v590
  %5807 = vset.pattern.permute.xlu0 3
  %5808 = vperm.xlu0 %5807, %v5737
  %v5809 = vpop.permute.xlu0 %5808
  %v5811 = vmul.f32 %v5803, %v5809
  %v5812 = vmul.f32 %v5804, %v5809
  %v5813 = vmul.f32 %v5805, %v5809
  %v5814 = vmul.f32 %v5806, %v5809
  %v5815 = vadd.f32 %v5787, %v5811
  %v5816 = vadd.f32 %v5788, %v5812
  %v5817 = vadd.f32 %v5789, %v5813
  %v5818 = vadd.f32 %v5790, %v5814
  %5819 = vrot.lane.b32.xlu0 %v5717, 96
  %v5820 = vpop.permute.xlu0 %5819
  %5821 = vrot.lane.b32.xlu0 %v5718, 96
  %v5822 = vpop.permute.xlu0 %5821
  %5823 = vrot.lane.b32.xlu0 %v5719, 96
  %v5824 = vpop.permute.xlu0 %5823
  %5825 = vrot.lane.b32.xlu0 %v5720, 96
  %v5826 = vpop.permute.xlu0 %5825
  %v5827 = vsel %vm619, %v5824, %v5826
  %v5828 = vsel %vm619, %v5822, %v5824
  %v5829 = vsel %vm619, %v5820, %v5822
  %v5830 = vsel %vm619, %v5826, %v5820
  %v5831 = vmul.f32 %v5829, %v634
  %v5832 = vmul.f32 %v5828, %v638
  %v5833 = vmul.f32 %v5827, %v642
  %v5834 = vmul.f32 %v5830, %v646
  %5835 = vset.pattern.permute.xlu0 4
  %5836 = vperm.xlu0 %5835, %v5737
  %v5837 = vpop.permute.xlu0 %5836
  %v5839 = vmul.f32 %v5831, %v5837
  %v5840 = vmul.f32 %v5832, %v5837
  %v5841 = vmul.f32 %v5833, %v5837
  %v5842 = vmul.f32 %v5834, %v5837
  %v5843 = vadd.f32 %v5815, %v5839
  %v5844 = vadd.f32 %v5816, %v5840
  %v5845 = vadd.f32 %v5817, %v5841
  %v5846 = vadd.f32 %v5818, %v5842
  %5847 = vrot.lane.b32.xlu0 %v5843, 34
  %v5848 = vpop.permute.xlu0 %5847
  %5849 = vrot.lane.b32.xlu0 %v5844, 34
  %v5850 = vpop.permute.xlu0 %5849
  %5851 = vrot.lane.b32.xlu0 %v5845, 34
  %v5852 = vpop.permute.xlu0 %5851
  %5853 = vrot.lane.b32.xlu0 %v5846, 34
  %v5854 = vpop.permute.xlu0 %5853
  %v5855 = vsel %vm679, %v5852, %v5854
  %v5856 = vsel %vm679, %v5850, %v5852
  %v5857 = vsel %vm679, %v5848, %v5850
  %v5858 = vsel %vm679, %v5854, %v5848
  %v5859 = vld [vmem:[%s67] sm:$0xff]
  %5861 = vset.pattern.permute.xlu0 0
  %5862 = vperm.xlu0 %5861, %v5859
  %v5863 = vpop.permute.xlu0 %5862
  %v5865 = vadd.f32 %v5858, %v5863
  %v5866 = vadd.f32 %v5857, %v5863
  %v5867 = vadd.f32 %v5856, %v5863
  %v5868 = vadd.f32 %v5855, %v5863
  %v5869 = vadd.f32 %v5865, %v698
  %v5870 = vadd.f32 %v5866, %v702
  %v5871 = vadd.f32 %v5867, %v706
  %v5872 = vadd.f32 %v5868, %v710
  %v5873 = vadd.f32 %v5869, %v723
  %v5874 = vadd.f32 %v5870, %v727
  %v5875 = vadd.f32 %v5871, %v731
  %v5876 = vadd.f32 %v5872, %v735
  %5877 = vrot.lane.b32.xlu0 %v5843, 33
  %v5878 = vpop.permute.xlu0 %5877
  %5879 = vrot.lane.b32.xlu0 %v5844, 33
  %v5880 = vpop.permute.xlu0 %5879
  %5881 = vrot.lane.b32.xlu0 %v5845, 33
  %v5882 = vpop.permute.xlu0 %5881
  %5883 = vrot.lane.b32.xlu0 %v5846, 33
  %v5884 = vpop.permute.xlu0 %5883
  %v5885 = vsel %vm754, %v5882, %v5884
  %v5886 = vsel %vm754, %v5880, %v5882
  %v5887 = vsel %vm754, %v5878, %v5880
  %v5888 = vsel %vm754, %v5884, %v5878
  %5889 = vset.pattern.permute.xlu0 1
  %5890 = vperm.xlu0 %5889, %v5859
  %v5891 = vpop.permute.xlu0 %5890
  %v5893 = vadd.f32 %v5888, %v5891
  %v5894 = vadd.f32 %v5887, %v5891
  %v5895 = vadd.f32 %v5886, %v5891
  %v5896 = vadd.f32 %v5885, %v5891
  %v5897 = vadd.f32 %v5893, %v698
  %v5898 = vadd.f32 %v5894, %v702
  %v5899 = vadd.f32 %v5895, %v706
  %v5900 = vadd.f32 %v5896, %v710
  %v5901 = vadd.f32 %v5897, %v775
  %v5902 = vadd.f32 %v5898, %v779
  %v5903 = vadd.f32 %v5899, %v783
  %v5904 = vadd.f32 %v5900, %v787
  %v5905 = vmin.f32 %v5873, %v5901
  %v5906 = vmin.f32 %v5874, %v5902
  %v5907 = vmin.f32 %v5875, %v5903
  %v5908 = vmin.f32 %v5876, %v5904
  %5909 = vrot.lane.b32.xlu0 %v5843, 32
  %v5910 = vpop.permute.xlu0 %5909
  %5911 = vrot.lane.b32.xlu0 %v5844, 32
  %v5912 = vpop.permute.xlu0 %5911
  %5913 = vrot.lane.b32.xlu0 %v5845, 32
  %v5914 = vpop.permute.xlu0 %5913
  %5915 = vrot.lane.b32.xlu0 %v5846, 32
  %v5916 = vpop.permute.xlu0 %5915
  %v5917 = vsel %vm437, %v5914, %v5916
  %v5918 = vsel %vm437, %v5912, %v5914
  %v5919 = vsel %vm437, %v5910, %v5912
  %v5920 = vsel %vm437, %v5916, %v5910
  %5921 = vset.pattern.permute.xlu0 2
  %5922 = vperm.xlu0 %5921, %v5859
  %v5923 = vpop.permute.xlu0 %5922
  %v5925 = vadd.f32 %v5920, %v5923
  %v5926 = vadd.f32 %v5919, %v5923
  %v5927 = vadd.f32 %v5918, %v5923
  %v5928 = vadd.f32 %v5917, %v5923
  %v5929 = vadd.f32 %v5925, %v698
  %v5930 = vadd.f32 %v5926, %v702
  %v5931 = vadd.f32 %v5927, %v706
  %v5932 = vadd.f32 %v5928, %v710
  %v5933 = vmin.f32 %v5905, %v5929
  %v5934 = vmin.f32 %v5906, %v5930
  %v5935 = vmin.f32 %v5907, %v5931
  %v5936 = vmin.f32 %v5908, %v5932
  %5937 = vrot.lane.b32.xlu0 %v5843, 31
  %v5938 = vpop.permute.xlu0 %5937
  %5939 = vrot.lane.b32.xlu0 %v5844, 31
  %v5940 = vpop.permute.xlu0 %5939
  %5941 = vrot.lane.b32.xlu0 %v5845, 31
  %v5942 = vpop.permute.xlu0 %5941
  %5943 = vrot.lane.b32.xlu0 %v5846, 31
  %v5944 = vpop.permute.xlu0 %5943
  %v5945 = vsel %vm838, %v5942, %v5944
  %v5946 = vsel %vm838, %v5940, %v5942
  %v5947 = vsel %vm838, %v5938, %v5940
  %v5948 = vsel %vm838, %v5944, %v5938
  %5949 = vset.pattern.permute.xlu0 3
  %5950 = vperm.xlu0 %5949, %v5859
  %v5951 = vpop.permute.xlu0 %5950
  %v5953 = vadd.f32 %v5948, %v5951
  %v5954 = vadd.f32 %v5947, %v5951
  %v5955 = vadd.f32 %v5946, %v5951
  %v5956 = vadd.f32 %v5945, %v5951
  %v5957 = vadd.f32 %v5953, %v698
  %v5958 = vadd.f32 %v5954, %v702
  %v5959 = vadd.f32 %v5955, %v706
  %v5960 = vadd.f32 %v5956, %v710
  %v5961 = vadd.f32 %v5957, %v859
  %v5962 = vadd.f32 %v5958, %v863
  %v5963 = vadd.f32 %v5959, %v867
  %v5964 = vadd.f32 %v5960, %v871
  %v5965 = vmin.f32 %v5933, %v5961
  %v5966 = vmin.f32 %v5934, %v5962
  %v5967 = vmin.f32 %v5935, %v5963
  %v5968 = vmin.f32 %v5936, %v5964
  %5969 = vrot.lane.b32.xlu0 %v5843, 30
  %v5970 = vpop.permute.xlu0 %5969
  %5971 = vrot.lane.b32.xlu0 %v5844, 30
  %v5972 = vpop.permute.xlu0 %5971
  %5973 = vrot.lane.b32.xlu0 %v5845, 30
  %v5974 = vpop.permute.xlu0 %5973
  %5975 = vrot.lane.b32.xlu0 %v5846, 30
  %v5976 = vpop.permute.xlu0 %5975
  %v5977 = vsel %vm894, %v5974, %v5976
  %v5978 = vsel %vm894, %v5972, %v5974
  %v5979 = vsel %vm894, %v5970, %v5972
  %v5980 = vsel %vm894, %v5976, %v5970
  %5981 = vset.pattern.permute.xlu0 4
  %5982 = vperm.xlu0 %5981, %v5859
  %v5983 = vpop.permute.xlu0 %5982
  %v5985 = vadd.f32 %v5980, %v5983
  %v5986 = vadd.f32 %v5979, %v5983
  %v5987 = vadd.f32 %v5978, %v5983
  %v5988 = vadd.f32 %v5977, %v5983
  %v5989 = vadd.f32 %v5985, %v698
  %v5990 = vadd.f32 %v5986, %v702
  %v5991 = vadd.f32 %v5987, %v706
  %v5992 = vadd.f32 %v5988, %v710
  %v5993 = vadd.f32 %v5989, %v915
  %v5994 = vadd.f32 %v5990, %v919
  %v5995 = vadd.f32 %v5991, %v923
  %v5996 = vadd.f32 %v5992, %v927
  %v5997 = vmin.f32 %v5965, %v5993
  %v5998 = vmin.f32 %v5966, %v5994
  %v5999 = vmin.f32 %v5967, %v5995
  %v6000 = vmin.f32 %v5968, %v5996
  %6001 = vrot.lane.b32.xlu0 %v5843, 18
  %v6002 = vpop.permute.xlu0 %6001
  %6003 = vrot.lane.b32.xlu0 %v5844, 18
  %v6004 = vpop.permute.xlu0 %6003
  %6005 = vrot.lane.b32.xlu0 %v5845, 18
  %v6006 = vpop.permute.xlu0 %6005
  %6007 = vrot.lane.b32.xlu0 %v5846, 18
  %v6008 = vpop.permute.xlu0 %6007
  %v6009 = vsel %vm950, %v6006, %v6008
  %v6010 = vsel %vm950, %v6004, %v6006
  %v6011 = vsel %vm950, %v6002, %v6004
  %v6012 = vsel %vm950, %v6008, %v6002
  %6013 = vset.pattern.permute.xlu0 5
  %6014 = vperm.xlu0 %6013, %v5859
  %v6015 = vpop.permute.xlu0 %6014
  %v6017 = vadd.f32 %v6012, %v6015
  %v6018 = vadd.f32 %v6011, %v6015
  %v6019 = vadd.f32 %v6010, %v6015
  %v6020 = vadd.f32 %v6009, %v6015
  %v6021 = vadd.f32 %v6017, %v967
  %v6022 = vadd.f32 %v6018, %v971
  %v6023 = vadd.f32 %v6019, %v975
  %v6024 = vadd.f32 %v6020, %v979
  %v6025 = vadd.f32 %v6021, %v723
  %v6026 = vadd.f32 %v6022, %v727
  %v6027 = vadd.f32 %v6023, %v731
  %v6028 = vadd.f32 %v6024, %v735
  %v6029 = vmin.f32 %v5997, %v6025
  %v6030 = vmin.f32 %v5998, %v6026
  %v6031 = vmin.f32 %v5999, %v6027
  %v6032 = vmin.f32 %v6000, %v6028
  %6033 = vrot.lane.b32.xlu0 %v5843, 17
  %v6034 = vpop.permute.xlu0 %6033
  %6035 = vrot.lane.b32.xlu0 %v5844, 17
  %v6036 = vpop.permute.xlu0 %6035
  %6037 = vrot.lane.b32.xlu0 %v5845, 17
  %v6038 = vpop.permute.xlu0 %6037
  %6039 = vrot.lane.b32.xlu0 %v5846, 17
  %v6040 = vpop.permute.xlu0 %6039
  %v6041 = vsel %vm1004, %v6038, %v6040
  %v6042 = vsel %vm1004, %v6036, %v6038
  %v6043 = vsel %vm1004, %v6034, %v6036
  %v6044 = vsel %vm1004, %v6040, %v6034
  %6045 = vset.pattern.permute.xlu0 6
  %6046 = vperm.xlu0 %6045, %v5859
  %v6047 = vpop.permute.xlu0 %6046
  %v6049 = vadd.f32 %v6044, %v6047
  %v6050 = vadd.f32 %v6043, %v6047
  %v6051 = vadd.f32 %v6042, %v6047
  %v6052 = vadd.f32 %v6041, %v6047
  %v6053 = vadd.f32 %v6049, %v967
  %v6054 = vadd.f32 %v6050, %v971
  %v6055 = vadd.f32 %v6051, %v975
  %v6056 = vadd.f32 %v6052, %v979
  %v6057 = vadd.f32 %v6053, %v775
  %v6058 = vadd.f32 %v6054, %v779
  %v6059 = vadd.f32 %v6055, %v783
  %v6060 = vadd.f32 %v6056, %v787
  %v6061 = vmin.f32 %v6029, %v6057
  %v6062 = vmin.f32 %v6030, %v6058
  %v6063 = vmin.f32 %v6031, %v6059
  %v6064 = vmin.f32 %v6032, %v6060
  %6065 = vrot.lane.b32.xlu0 %v5843, 16
  %v6066 = vpop.permute.xlu0 %6065
  %6067 = vrot.lane.b32.xlu0 %v5844, 16
  %v6068 = vpop.permute.xlu0 %6067
  %6069 = vrot.lane.b32.xlu0 %v5845, 16
  %v6070 = vpop.permute.xlu0 %6069
  %6071 = vrot.lane.b32.xlu0 %v5846, 16
  %v6072 = vpop.permute.xlu0 %6071
  %v6073 = vsel %vm495, %v6070, %v6072
  %v6074 = vsel %vm495, %v6068, %v6070
  %v6075 = vsel %vm495, %v6066, %v6068
  %v6076 = vsel %vm495, %v6072, %v6066
  %6077 = vset.pattern.permute.xlu0 7
  %6078 = vperm.xlu0 %6077, %v5859
  %v6079 = vpop.permute.xlu0 %6078
  %v6081 = vadd.f32 %v6076, %v6079
  %v6082 = vadd.f32 %v6075, %v6079
  %v6083 = vadd.f32 %v6074, %v6079
  %v6084 = vadd.f32 %v6073, %v6079
  %v6085 = vadd.f32 %v6081, %v967
  %v6086 = vadd.f32 %v6082, %v971
  %v6087 = vadd.f32 %v6083, %v975
  %v6088 = vadd.f32 %v6084, %v979
  %v6089 = vmin.f32 %v6061, %v6085
  %v6090 = vmin.f32 %v6062, %v6086
  %v6091 = vmin.f32 %v6063, %v6087
  %v6092 = vmin.f32 %v6064, %v6088
  %6093 = vrot.lane.b32.xlu0 %v5843, 15
  %v6094 = vpop.permute.xlu0 %6093
  %6095 = vrot.lane.b32.xlu0 %v5844, 15
  %v6096 = vpop.permute.xlu0 %6095
  %6097 = vrot.lane.b32.xlu0 %v5845, 15
  %v6098 = vpop.permute.xlu0 %6097
  %6099 = vrot.lane.b32.xlu0 %v5846, 15
  %v6100 = vpop.permute.xlu0 %6099
  %v6101 = vsel %vm1065, %v6098, %v6100
  %v6102 = vsel %vm1065, %v6096, %v6098
  %v6103 = vsel %vm1065, %v6094, %v6096
  %v6104 = vsel %vm1065, %v6100, %v6094
  %6105 = vset.pattern.permute.xlu0 8
  %6106 = vperm.xlu0 %6105, %v5859
  %v6107 = vpop.permute.xlu0 %6106
  %v6109 = vadd.f32 %v6104, %v6107
  %v6110 = vadd.f32 %v6103, %v6107
  %v6111 = vadd.f32 %v6102, %v6107
  %v6112 = vadd.f32 %v6101, %v6107
  %v6113 = vadd.f32 %v6109, %v967
  %v6114 = vadd.f32 %v6110, %v971
  %v6115 = vadd.f32 %v6111, %v975
  %v6116 = vadd.f32 %v6112, %v979
  %v6117 = vadd.f32 %v6113, %v859
  %v6118 = vadd.f32 %v6114, %v863
  %v6119 = vadd.f32 %v6115, %v867
  %v6120 = vadd.f32 %v6116, %v871
  %v6121 = vmin.f32 %v6089, %v6117
  %v6122 = vmin.f32 %v6090, %v6118
  %v6123 = vmin.f32 %v6091, %v6119
  %v6124 = vmin.f32 %v6092, %v6120
  %6125 = vrot.lane.b32.xlu0 %v5843, 14
  %v6126 = vpop.permute.xlu0 %6125
  %6127 = vrot.lane.b32.xlu0 %v5844, 14
  %v6128 = vpop.permute.xlu0 %6127
  %6129 = vrot.lane.b32.xlu0 %v5845, 14
  %v6130 = vpop.permute.xlu0 %6129
  %6131 = vrot.lane.b32.xlu0 %v5846, 14
  %v6132 = vpop.permute.xlu0 %6131
  %v6133 = vsel %vm1098, %v6130, %v6132
  %v6134 = vsel %vm1098, %v6128, %v6130
  %v6135 = vsel %vm1098, %v6126, %v6128
  %v6136 = vsel %vm1098, %v6132, %v6126
  %6137 = vset.pattern.permute.xlu0 9
  %6138 = vperm.xlu0 %6137, %v5859
  %v6139 = vpop.permute.xlu0 %6138
  %v6141 = vadd.f32 %v6136, %v6139
  %v6142 = vadd.f32 %v6135, %v6139
  %v6143 = vadd.f32 %v6134, %v6139
  %v6144 = vadd.f32 %v6133, %v6139
  %v6145 = vadd.f32 %v6141, %v967
  %v6146 = vadd.f32 %v6142, %v971
  %v6147 = vadd.f32 %v6143, %v975
  %v6148 = vadd.f32 %v6144, %v979
  %v6149 = vadd.f32 %v6145, %v915
  %v6150 = vadd.f32 %v6146, %v919
  %v6151 = vadd.f32 %v6147, %v923
  %v6152 = vadd.f32 %v6148, %v927
  %v6153 = vmin.f32 %v6121, %v6149
  %v6154 = vmin.f32 %v6122, %v6150
  %v6155 = vmin.f32 %v6123, %v6151
  %v6156 = vmin.f32 %v6124, %v6152
  %6157 = vrot.lane.b32.xlu0 %v5843, 2
  %v6158 = vpop.permute.xlu0 %6157
  %6159 = vrot.lane.b32.xlu0 %v5844, 2
  %v6160 = vpop.permute.xlu0 %6159
  %6161 = vrot.lane.b32.xlu0 %v5845, 2
  %v6162 = vpop.permute.xlu0 %6161
  %6163 = vrot.lane.b32.xlu0 %v5846, 2
  %v6164 = vpop.permute.xlu0 %6163
  %v6165 = vsel %vm182, %v6162, %v6164
  %v6166 = vsel %vm182, %v6160, %v6162
  %v6167 = vsel %vm182, %v6158, %v6160
  %v6168 = vsel %vm182, %v6164, %v6158
  %6169 = vset.pattern.permute.xlu0 10
  %6170 = vperm.xlu0 %6169, %v5859
  %v6171 = vpop.permute.xlu0 %6170
  %v6173 = vadd.f32 %v6168, %v6171
  %v6174 = vadd.f32 %v6167, %v6171
  %v6175 = vadd.f32 %v6166, %v6171
  %v6176 = vadd.f32 %v6165, %v6171
  %v6177 = vadd.f32 %v6173, %v723
  %v6178 = vadd.f32 %v6174, %v727
  %v6179 = vadd.f32 %v6175, %v731
  %v6180 = vadd.f32 %v6176, %v735
  %v6181 = vmin.f32 %v6153, %v6177
  %v6182 = vmin.f32 %v6154, %v6178
  %v6183 = vmin.f32 %v6155, %v6179
  %v6184 = vmin.f32 %v6156, %v6180
  %6185 = vrot.lane.b32.xlu0 %v5843, 1
  %v6186 = vpop.permute.xlu0 %6185
  %6187 = vrot.lane.b32.xlu0 %v5844, 1
  %v6188 = vpop.permute.xlu0 %6187
  %6189 = vrot.lane.b32.xlu0 %v5845, 1
  %v6190 = vpop.permute.xlu0 %6189
  %6191 = vrot.lane.b32.xlu0 %v5846, 1
  %v6192 = vpop.permute.xlu0 %6191
  %v6193 = vsel %vm240, %v6190, %v6192
  %v6194 = vsel %vm240, %v6188, %v6190
  %v6195 = vsel %vm240, %v6186, %v6188
  %v6196 = vsel %vm240, %v6192, %v6186
  %6197 = vset.pattern.permute.xlu0 11
  %6198 = vperm.xlu0 %6197, %v5859
  %v6199 = vpop.permute.xlu0 %6198
  %v6201 = vadd.f32 %v6196, %v6199
  %v6202 = vadd.f32 %v6195, %v6199
  %v6203 = vadd.f32 %v6194, %v6199
  %v6204 = vadd.f32 %v6193, %v6199
  %v6205 = vadd.f32 %v6201, %v775
  %v6206 = vadd.f32 %v6202, %v779
  %v6207 = vadd.f32 %v6203, %v783
  %v6208 = vadd.f32 %v6204, %v787
  %v6209 = vmin.f32 %v6181, %v6205
  %v6210 = vmin.f32 %v6182, %v6206
  %v6211 = vmin.f32 %v6183, %v6207
  %v6212 = vmin.f32 %v6184, %v6208
  %6213 = vset.pattern.permute.xlu0 12
  %6214 = vperm.xlu0 %6213, %v5859
  %v6215 = vpop.permute.xlu0 %6214
  %v6217 = vadd.f32 %v5843, %v6215
  %v6218 = vadd.f32 %v5844, %v6215
  %v6219 = vadd.f32 %v5845, %v6215
  %v6220 = vadd.f32 %v5846, %v6215
  %v6221 = vmin.f32 %v6209, %v6217
  %v6222 = vmin.f32 %v6210, %v6218
  %v6223 = vmin.f32 %v6211, %v6219
  %v6224 = vmin.f32 %v6212, %v6220
  %6225 = vrot.lane.b32.xlu0 %v5843, 127
  %v6226 = vpop.permute.xlu0 %6225
  %6227 = vrot.lane.b32.xlu0 %v5844, 127
  %v6228 = vpop.permute.xlu0 %6227
  %6229 = vrot.lane.b32.xlu0 %v5845, 127
  %v6230 = vpop.permute.xlu0 %6229
  %6231 = vrot.lane.b32.xlu0 %v5846, 127
  %v6232 = vpop.permute.xlu0 %6231
  %v6233 = vsel %vm321, %v6230, %v6232
  %v6234 = vsel %vm321, %v6228, %v6230
  %v6235 = vsel %vm321, %v6226, %v6228
  %v6236 = vsel %vm321, %v6232, %v6226
  %6237 = vset.pattern.permute.xlu0 13
  %6238 = vperm.xlu0 %6237, %v5859
  %v6239 = vpop.permute.xlu0 %6238
  %v6241 = vadd.f32 %v6235, %v6239
  %v6242 = vadd.f32 %v6234, %v6239
  %v6243 = vadd.f32 %v6233, %v6239
  %v6244 = vadd.f32 %v6236, %v6239
  %v6245 = vadd.f32 %v6241, %v859
  %v6246 = vadd.f32 %v6242, %v863
  %v6247 = vadd.f32 %v6243, %v867
  %v6248 = vadd.f32 %v6244, %v871
  %v6249 = vmin.f32 %v6221, %v6245
  %v6250 = vmin.f32 %v6222, %v6246
  %v6251 = vmin.f32 %v6223, %v6247
  %v6252 = vmin.f32 %v6224, %v6248
  %6253 = vrot.lane.b32.xlu0 %v5843, 126
  %v6254 = vpop.permute.xlu0 %6253
  %6255 = vrot.lane.b32.xlu0 %v5844, 126
  %v6256 = vpop.permute.xlu0 %6255
  %6257 = vrot.lane.b32.xlu0 %v5845, 126
  %v6258 = vpop.permute.xlu0 %6257
  %6259 = vrot.lane.b32.xlu0 %v5846, 126
  %v6260 = vpop.permute.xlu0 %6259
  %v6261 = vsel %vm379, %v6258, %v6260
  %v6262 = vsel %vm379, %v6256, %v6258
  %v6263 = vsel %vm379, %v6254, %v6256
  %v6264 = vsel %vm379, %v6260, %v6254
  %6265 = vset.pattern.permute.xlu0 14
  %6266 = vperm.xlu0 %6265, %v5859
  %v6267 = vpop.permute.xlu0 %6266
  %v6269 = vadd.f32 %v6263, %v6267
  %v6270 = vadd.f32 %v6262, %v6267
  %v6271 = vadd.f32 %v6261, %v6267
  %v6272 = vadd.f32 %v6264, %v6267
  %v6273 = vadd.f32 %v6269, %v915
  %v6274 = vadd.f32 %v6270, %v919
  %v6275 = vadd.f32 %v6271, %v923
  %v6276 = vadd.f32 %v6272, %v927
  %v6277 = vmin.f32 %v6249, %v6273
  %v6278 = vmin.f32 %v6250, %v6274
  %v6279 = vmin.f32 %v6251, %v6275
  %v6280 = vmin.f32 %v6252, %v6276
  %6281 = vrot.lane.b32.xlu0 %v5843, 114
  %v6282 = vpop.permute.xlu0 %6281
  %6283 = vrot.lane.b32.xlu0 %v5844, 114
  %v6284 = vpop.permute.xlu0 %6283
  %6285 = vrot.lane.b32.xlu0 %v5845, 114
  %v6286 = vpop.permute.xlu0 %6285
  %6287 = vrot.lane.b32.xlu0 %v5846, 114
  %v6288 = vpop.permute.xlu0 %6287
  %v6289 = vsel %vm1257, %v6286, %v6288
  %v6290 = vsel %vm1257, %v6284, %v6286
  %v6291 = vsel %vm1257, %v6282, %v6284
  %v6292 = vsel %vm1257, %v6288, %v6282
  %6293 = vset.pattern.permute.xlu0 15
  %6294 = vperm.xlu0 %6293, %v5859
  %v6295 = vpop.permute.xlu0 %6294
  %v6297 = vadd.f32 %v6291, %v6295
  %v6298 = vadd.f32 %v6290, %v6295
  %v6299 = vadd.f32 %v6289, %v6295
  %v6300 = vadd.f32 %v6292, %v6295
  %v6301 = vadd.f32 %v6297, %v1274
  %v6302 = vadd.f32 %v6298, %v1278
  %v6303 = vadd.f32 %v6299, %v1282
  %v6304 = vadd.f32 %v6300, %v1286
  %v6305 = vadd.f32 %v6301, %v723
  %v6306 = vadd.f32 %v6302, %v727
  %v6307 = vadd.f32 %v6303, %v731
  %v6308 = vadd.f32 %v6304, %v735
  %v6309 = vmin.f32 %v6277, %v6305
  %v6310 = vmin.f32 %v6278, %v6306
  %v6311 = vmin.f32 %v6279, %v6307
  %v6312 = vmin.f32 %v6280, %v6308
  %6313 = vrot.lane.b32.xlu0 %v5843, 113
  %v6314 = vpop.permute.xlu0 %6313
  %6315 = vrot.lane.b32.xlu0 %v5844, 113
  %v6316 = vpop.permute.xlu0 %6315
  %6317 = vrot.lane.b32.xlu0 %v5845, 113
  %v6318 = vpop.permute.xlu0 %6317
  %6319 = vrot.lane.b32.xlu0 %v5846, 113
  %v6320 = vpop.permute.xlu0 %6319
  %v6321 = vsel %vm1311, %v6318, %v6320
  %v6322 = vsel %vm1311, %v6316, %v6318
  %v6323 = vsel %vm1311, %v6314, %v6316
  %v6324 = vsel %vm1311, %v6320, %v6314
  %6325 = vset.pattern.permute.xlu0 16
  %6326 = vperm.xlu0 %6325, %v5859
  %v6327 = vpop.permute.xlu0 %6326
  %v6329 = vadd.f32 %v6323, %v6327
  %v6330 = vadd.f32 %v6322, %v6327
  %v6331 = vadd.f32 %v6321, %v6327
  %v6332 = vadd.f32 %v6324, %v6327
  %v6333 = vadd.f32 %v6329, %v1274
  %v6334 = vadd.f32 %v6330, %v1278
  %v6335 = vadd.f32 %v6331, %v1282
  %v6336 = vadd.f32 %v6332, %v1286
  %v6337 = vadd.f32 %v6333, %v775
  %v6338 = vadd.f32 %v6334, %v779
  %v6339 = vadd.f32 %v6335, %v783
  %v6340 = vadd.f32 %v6336, %v787
  %v6341 = vmin.f32 %v6309, %v6337
  %v6342 = vmin.f32 %v6310, %v6338
  %v6343 = vmin.f32 %v6311, %v6339
  %v6344 = vmin.f32 %v6312, %v6340
  %6345 = vrot.lane.b32.xlu0 %v5843, 112
  %v6346 = vpop.permute.xlu0 %6345
  %6347 = vrot.lane.b32.xlu0 %v5844, 112
  %v6348 = vpop.permute.xlu0 %6347
  %6349 = vrot.lane.b32.xlu0 %v5845, 112
  %v6350 = vpop.permute.xlu0 %6349
  %6351 = vrot.lane.b32.xlu0 %v5846, 112
  %v6352 = vpop.permute.xlu0 %6351
  %v6353 = vsel %vm563, %v6350, %v6352
  %v6354 = vsel %vm563, %v6348, %v6350
  %v6355 = vsel %vm563, %v6346, %v6348
  %v6356 = vsel %vm563, %v6352, %v6346
  %6357 = vset.pattern.permute.xlu0 17
  %6358 = vperm.xlu0 %6357, %v5859
  %v6359 = vpop.permute.xlu0 %6358
  %v6361 = vadd.f32 %v6355, %v6359
  %v6362 = vadd.f32 %v6354, %v6359
  %v6363 = vadd.f32 %v6353, %v6359
  %v6364 = vadd.f32 %v6356, %v6359
  %v6365 = vadd.f32 %v6361, %v1274
  %v6366 = vadd.f32 %v6362, %v1278
  %v6367 = vadd.f32 %v6363, %v1282
  %v6368 = vadd.f32 %v6364, %v1286
  %v6369 = vmin.f32 %v6341, %v6365
  %v6370 = vmin.f32 %v6342, %v6366
  %v6371 = vmin.f32 %v6343, %v6367
  %v6372 = vmin.f32 %v6344, %v6368
  %6373 = vrot.lane.b32.xlu0 %v5843, 111
  %v6374 = vpop.permute.xlu0 %6373
  %6375 = vrot.lane.b32.xlu0 %v5844, 111
  %v6376 = vpop.permute.xlu0 %6375
  %6377 = vrot.lane.b32.xlu0 %v5845, 111
  %v6378 = vpop.permute.xlu0 %6377
  %6379 = vrot.lane.b32.xlu0 %v5846, 111
  %v6380 = vpop.permute.xlu0 %6379
  %v6381 = vsel %vm1372, %v6378, %v6380
  %v6382 = vsel %vm1372, %v6376, %v6378
  %v6383 = vsel %vm1372, %v6374, %v6376
  %v6384 = vsel %vm1372, %v6380, %v6374
  %6385 = vset.pattern.permute.xlu0 18
  %6386 = vperm.xlu0 %6385, %v5859
  %v6387 = vpop.permute.xlu0 %6386
  %v6389 = vadd.f32 %v6383, %v6387
  %v6390 = vadd.f32 %v6382, %v6387
  %v6391 = vadd.f32 %v6381, %v6387
  %v6392 = vadd.f32 %v6384, %v6387
  %v6393 = vadd.f32 %v6389, %v1274
  %v6394 = vadd.f32 %v6390, %v1278
  %v6395 = vadd.f32 %v6391, %v1282
  %v6396 = vadd.f32 %v6392, %v1286
  %v6397 = vadd.f32 %v6393, %v859
  %v6398 = vadd.f32 %v6394, %v863
  %v6399 = vadd.f32 %v6395, %v867
  %v6400 = vadd.f32 %v6396, %v871
  %v6401 = vmin.f32 %v6369, %v6397
  %v6402 = vmin.f32 %v6370, %v6398
  %v6403 = vmin.f32 %v6371, %v6399
  %v6404 = vmin.f32 %v6372, %v6400
  %6405 = vrot.lane.b32.xlu0 %v5843, 110
  %v6406 = vpop.permute.xlu0 %6405
  %6407 = vrot.lane.b32.xlu0 %v5844, 110
  %v6408 = vpop.permute.xlu0 %6407
  %6409 = vrot.lane.b32.xlu0 %v5845, 110
  %v6410 = vpop.permute.xlu0 %6409
  %6411 = vrot.lane.b32.xlu0 %v5846, 110
  %v6412 = vpop.permute.xlu0 %6411
  %v6413 = vsel %vm1405, %v6410, %v6412
  %v6414 = vsel %vm1405, %v6408, %v6410
  %v6415 = vsel %vm1405, %v6406, %v6408
  %v6416 = vsel %vm1405, %v6412, %v6406
  %6417 = vset.pattern.permute.xlu0 19
  %6418 = vperm.xlu0 %6417, %v5859
  %v6419 = vpop.permute.xlu0 %6418
  %v6421 = vadd.f32 %v6415, %v6419
  %v6422 = vadd.f32 %v6414, %v6419
  %v6423 = vadd.f32 %v6413, %v6419
  %v6424 = vadd.f32 %v6416, %v6419
  %v6425 = vadd.f32 %v6421, %v1274
  %v6426 = vadd.f32 %v6422, %v1278
  %v6427 = vadd.f32 %v6423, %v1282
  %v6428 = vadd.f32 %v6424, %v1286
  %v6429 = vadd.f32 %v6425, %v915
  %v6430 = vadd.f32 %v6426, %v919
  %v6431 = vadd.f32 %v6427, %v923
  %v6432 = vadd.f32 %v6428, %v927
  %v6433 = vmin.f32 %v6401, %v6429
  %v6434 = vmin.f32 %v6402, %v6430
  %v6435 = vmin.f32 %v6403, %v6431
  %v6436 = vmin.f32 %v6404, %v6432
  %6437 = vrot.lane.b32.xlu0 %v5843, 98
  %v6438 = vpop.permute.xlu0 %6437
  %6439 = vrot.lane.b32.xlu0 %v5844, 98
  %v6440 = vpop.permute.xlu0 %6439
  %6441 = vrot.lane.b32.xlu0 %v5845, 98
  %v6442 = vpop.permute.xlu0 %6441
  %6443 = vrot.lane.b32.xlu0 %v5846, 98
  %v6444 = vpop.permute.xlu0 %6443
  %v6445 = vsel %vm1440, %v6442, %v6444
  %v6446 = vsel %vm1440, %v6440, %v6442
  %v6447 = vsel %vm1440, %v6438, %v6440
  %v6448 = vsel %vm1440, %v6444, %v6438
  %6449 = vset.pattern.permute.xlu0 20
  %6450 = vperm.xlu0 %6449, %v5859
  %v6451 = vpop.permute.xlu0 %6450
  %v6453 = vadd.f32 %v6447, %v6451
  %v6454 = vadd.f32 %v6446, %v6451
  %v6455 = vadd.f32 %v6445, %v6451
  %v6456 = vadd.f32 %v6448, %v6451
  %v6457 = vadd.f32 %v6453, %v1457
  %v6458 = vadd.f32 %v6454, %v1461
  %v6459 = vadd.f32 %v6455, %v1465
  %v6460 = vadd.f32 %v6456, %v1469
  %v6461 = vadd.f32 %v6457, %v723
  %v6462 = vadd.f32 %v6458, %v727
  %v6463 = vadd.f32 %v6459, %v731
  %v6464 = vadd.f32 %v6460, %v735
  %v6465 = vmin.f32 %v6433, %v6461
  %v6466 = vmin.f32 %v6434, %v6462
  %v6467 = vmin.f32 %v6435, %v6463
  %v6468 = vmin.f32 %v6436, %v6464
  %6469 = vrot.lane.b32.xlu0 %v5843, 97
  %v6470 = vpop.permute.xlu0 %6469
  %6471 = vrot.lane.b32.xlu0 %v5844, 97
  %v6472 = vpop.permute.xlu0 %6471
  %6473 = vrot.lane.b32.xlu0 %v5845, 97
  %v6474 = vpop.permute.xlu0 %6473
  %6475 = vrot.lane.b32.xlu0 %v5846, 97
  %v6476 = vpop.permute.xlu0 %6475
  %v6477 = vsel %vm1494, %v6474, %v6476
  %v6478 = vsel %vm1494, %v6472, %v6474
  %v6479 = vsel %vm1494, %v6470, %v6472
  %v6480 = vsel %vm1494, %v6476, %v6470
  %6481 = vset.pattern.permute.xlu0 21
  %6482 = vperm.xlu0 %6481, %v5859
  %v6483 = vpop.permute.xlu0 %6482
  %v6485 = vadd.f32 %v6479, %v6483
  %v6486 = vadd.f32 %v6478, %v6483
  %v6487 = vadd.f32 %v6477, %v6483
  %v6488 = vadd.f32 %v6480, %v6483
  %v6489 = vadd.f32 %v6485, %v1457
  %v6490 = vadd.f32 %v6486, %v1461
  %v6491 = vadd.f32 %v6487, %v1465
  %v6492 = vadd.f32 %v6488, %v1469
  %v6493 = vadd.f32 %v6489, %v775
  %v6494 = vadd.f32 %v6490, %v779
  %v6495 = vadd.f32 %v6491, %v783
  %v6496 = vadd.f32 %v6492, %v787
  %v6497 = vmin.f32 %v6465, %v6493
  %v6498 = vmin.f32 %v6466, %v6494
  %v6499 = vmin.f32 %v6467, %v6495
  %v6500 = vmin.f32 %v6468, %v6496
  %6501 = vrot.lane.b32.xlu0 %v5843, 96
  %v6502 = vpop.permute.xlu0 %6501
  %6503 = vrot.lane.b32.xlu0 %v5844, 96
  %v6504 = vpop.permute.xlu0 %6503
  %6505 = vrot.lane.b32.xlu0 %v5845, 96
  %v6506 = vpop.permute.xlu0 %6505
  %6507 = vrot.lane.b32.xlu0 %v5846, 96
  %v6508 = vpop.permute.xlu0 %6507
  %v6509 = vsel %vm619, %v6506, %v6508
  %v6510 = vsel %vm619, %v6504, %v6506
  %v6511 = vsel %vm619, %v6502, %v6504
  %v6512 = vsel %vm619, %v6508, %v6502
  %6513 = vset.pattern.permute.xlu0 22
  %6514 = vperm.xlu0 %6513, %v5859
  %v6515 = vpop.permute.xlu0 %6514
  %v6517 = vadd.f32 %v6511, %v6515
  %v6518 = vadd.f32 %v6510, %v6515
  %v6519 = vadd.f32 %v6509, %v6515
  %v6520 = vadd.f32 %v6512, %v6515
  %v6521 = vadd.f32 %v6517, %v1457
  %v6522 = vadd.f32 %v6518, %v1461
  %v6523 = vadd.f32 %v6519, %v1465
  %v6524 = vadd.f32 %v6520, %v1469
  %v6525 = vmin.f32 %v6497, %v6521
  %v6526 = vmin.f32 %v6498, %v6522
  %v6527 = vmin.f32 %v6499, %v6523
  %v6528 = vmin.f32 %v6500, %v6524
  %6529 = vrot.lane.b32.xlu0 %v5843, 95
  %v6530 = vpop.permute.xlu0 %6529
  %6531 = vrot.lane.b32.xlu0 %v5844, 95
  %v6532 = vpop.permute.xlu0 %6531
  %6533 = vrot.lane.b32.xlu0 %v5845, 95
  %v6534 = vpop.permute.xlu0 %6533
  %6535 = vrot.lane.b32.xlu0 %v5846, 95
  %v6536 = vpop.permute.xlu0 %6535
  %v6537 = vsel %vm1555, %v6534, %v6536
  %v6538 = vsel %vm1555, %v6532, %v6534
  %v6539 = vsel %vm1555, %v6530, %v6532
  %v6540 = vsel %vm1555, %v6536, %v6530
  %6541 = vset.pattern.permute.xlu0 23
  %6542 = vperm.xlu0 %6541, %v5859
  %v6543 = vpop.permute.xlu0 %6542
  %v6545 = vadd.f32 %v6539, %v6543
  %v6546 = vadd.f32 %v6538, %v6543
  %v6547 = vadd.f32 %v6537, %v6543
  %v6548 = vadd.f32 %v6540, %v6543
  %v6549 = vadd.f32 %v6545, %v1457
  %v6550 = vadd.f32 %v6546, %v1461
  %v6551 = vadd.f32 %v6547, %v1465
  %v6552 = vadd.f32 %v6548, %v1469
  %v6553 = vadd.f32 %v6549, %v859
  %v6554 = vadd.f32 %v6550, %v863
  %v6555 = vadd.f32 %v6551, %v867
  %v6556 = vadd.f32 %v6552, %v871
  %v6557 = vmin.f32 %v6525, %v6553
  %v6558 = vmin.f32 %v6526, %v6554
  %v6559 = vmin.f32 %v6527, %v6555
  %v6560 = vmin.f32 %v6528, %v6556
  %6561 = vrot.lane.b32.xlu0 %v5843, 94
  %v6562 = vpop.permute.xlu0 %6561
  %6563 = vrot.lane.b32.xlu0 %v5844, 94
  %v6564 = vpop.permute.xlu0 %6563
  %6565 = vrot.lane.b32.xlu0 %v5845, 94
  %v6566 = vpop.permute.xlu0 %6565
  %6567 = vrot.lane.b32.xlu0 %v5846, 94
  %v6568 = vpop.permute.xlu0 %6567
  %v6569 = vsel %vm1588, %v6566, %v6568
  %v6570 = vsel %vm1588, %v6564, %v6566
  %v6571 = vsel %vm1588, %v6562, %v6564
  %v6572 = vsel %vm1588, %v6568, %v6562
  %6573 = vset.pattern.permute.xlu0 24
  %6574 = vperm.xlu0 %6573, %v5859
  %v6575 = vpop.permute.xlu0 %6574
  %v6577 = vadd.f32 %v6571, %v6575
  %v6578 = vadd.f32 %v6570, %v6575
  %v6579 = vadd.f32 %v6569, %v6575
  %v6580 = vadd.f32 %v6572, %v6575
  %v6581 = vadd.f32 %v6577, %v1457
  %v6582 = vadd.f32 %v6578, %v1461
  %v6583 = vadd.f32 %v6579, %v1465
  %v6584 = vadd.f32 %v6580, %v1469
  %v6585 = vadd.f32 %v6581, %v915
  %v6586 = vadd.f32 %v6582, %v919
  %v6587 = vadd.f32 %v6583, %v923
  %v6588 = vadd.f32 %v6584, %v927
  %v6589 = vmin.f32 %v6557, %v6585
  %v6590 = vmin.f32 %v6558, %v6586
  %v6591 = vmin.f32 %v6559, %v6587
  %v6592 = vmin.f32 %v6560, %v6588
  %v6593 = vlaneseq
  %v6594 = vshrl.u32 %v6593, 7
  %v6595 = vsub.s32 0, %v6594
  %v6596 = vrot.slane %v6589, %v6595
  %v6597 = vlaneseq
  %v6598 = vshrl.u32 %v6597, 7
  %v6599 = vsub.s32 0, %v6598
  %v6600 = vrot.slane %v6590, %v6599
  %v6601 = vlaneseq
  %v6602 = vshrl.u32 %v6601, 7
  %v6603 = vsub.s32 0, %v6602
  %v6604 = vrot.slane %v6591, %v6603
  %v6605 = vlaneseq
  %v6606 = vshrl.u32 %v6605, 7
  %v6607 = vsub.s32 0, %v6606
  %v6608 = vrot.slane %v6592, %v6607
  %v6609 = vld [vmem:[%s69] sm:$0xff]
  %6611 = vset.pattern.permute.xlu0 0
  %6612 = vperm.xlu0 %6611, %v6609
  %v6613 = vpop.permute.xlu0 %6612
  %v6615 = vmul.f32 %v6596, %v6613
  %v6616 = vmul.f32 %v6600, %v6613
  %v6617 = vmul.f32 %v6604, %v6613
  %v6618 = vmul.f32 %v6608, %v6613
  %v6619 = vadd.f32 %v6615, 0.0
  %v6620 = vadd.f32 %v6616, 0.0
  %v6621 = vadd.f32 %v6617, 0.0
  %v6622 = vadd.f32 %v6618, 0.0
  %v6623 = vlaneseq
  %v6624 = vshrl.u32 %v6623, 7
  %v6625 = vsub.s32 1, %v6624
  %v6626 = vrot.slane %v6589, %v6625
  %v6627 = vlaneseq
  %v6628 = vshrl.u32 %v6627, 7
  %v6629 = vsub.s32 1, %v6628
  %v6630 = vrot.slane %v6590, %v6629
  %v6631 = vlaneseq
  %v6632 = vshrl.u32 %v6631, 7
  %v6633 = vsub.s32 1, %v6632
  %v6634 = vrot.slane %v6591, %v6633
  %v6635 = vlaneseq
  %v6636 = vshrl.u32 %v6635, 7
  %v6637 = vsub.s32 1, %v6636
  %v6638 = vrot.slane %v6592, %v6637
  %6639 = vset.pattern.permute.xlu0 1
  %6640 = vperm.xlu0 %6639, %v6609
  %v6641 = vpop.permute.xlu0 %6640
  %v6643 = vmul.f32 %v6626, %v6641
  %v6644 = vmul.f32 %v6630, %v6641
  %v6645 = vmul.f32 %v6634, %v6641
  %v6646 = vmul.f32 %v6638, %v6641
  %v6647 = vadd.f32 %v6619, %v6643
  %v6648 = vadd.f32 %v6620, %v6644
  %v6649 = vadd.f32 %v6621, %v6645
  %v6650 = vadd.f32 %v6622, %v6646
  %v6651 = vlaneseq
  %v6652 = vshrl.u32 %v6651, 7
  %v6653 = vsub.s32 2, %v6652
  %v6654 = vrot.slane %v6589, %v6653
  %v6655 = vlaneseq
  %v6656 = vshrl.u32 %v6655, 7
  %v6657 = vsub.s32 2, %v6656
  %v6658 = vrot.slane %v6590, %v6657
  %v6659 = vlaneseq
  %v6660 = vshrl.u32 %v6659, 7
  %v6661 = vsub.s32 2, %v6660
  %v6662 = vrot.slane %v6591, %v6661
  %v6663 = vlaneseq
  %v6664 = vshrl.u32 %v6663, 7
  %v6665 = vsub.s32 2, %v6664
  %v6666 = vrot.slane %v6592, %v6665
  %6667 = vset.pattern.permute.xlu0 2
  %6668 = vperm.xlu0 %6667, %v6609
  %v6669 = vpop.permute.xlu0 %6668
  %v6671 = vmul.f32 %v6654, %v6669
  %v6672 = vmul.f32 %v6658, %v6669
  %v6673 = vmul.f32 %v6662, %v6669
  %v6674 = vmul.f32 %v6666, %v6669
  %v6675 = vadd.f32 %v6647, %v6671
  %v6676 = vadd.f32 %v6648, %v6672
  %v6677 = vadd.f32 %v6649, %v6673
  %v6678 = vadd.f32 %v6650, %v6674
  %v6679 = vlaneseq
  %v6680 = vshrl.u32 %v6679, 7
  %v6681 = vsub.s32 3, %v6680
  %v6682 = vrot.slane %v6589, %v6681
  %v6683 = vlaneseq
  %v6684 = vshrl.u32 %v6683, 7
  %v6685 = vsub.s32 3, %v6684
  %v6686 = vrot.slane %v6590, %v6685
  %v6687 = vlaneseq
  %v6688 = vshrl.u32 %v6687, 7
  %v6689 = vsub.s32 3, %v6688
  %v6690 = vrot.slane %v6591, %v6689
  %v6691 = vlaneseq
  %v6692 = vshrl.u32 %v6691, 7
  %v6693 = vsub.s32 3, %v6692
  %v6694 = vrot.slane %v6592, %v6693
  %6695 = vset.pattern.permute.xlu0 3
  %6696 = vperm.xlu0 %6695, %v6609
  %v6697 = vpop.permute.xlu0 %6696
  %v6699 = vmul.f32 %v6682, %v6697
  %v6700 = vmul.f32 %v6686, %v6697
  %v6701 = vmul.f32 %v6690, %v6697
  %v6702 = vmul.f32 %v6694, %v6697
  %v6703 = vadd.f32 %v6675, %v6699
  %v6704 = vadd.f32 %v6676, %v6700
  %v6705 = vadd.f32 %v6677, %v6701
  %v6706 = vadd.f32 %v6678, %v6702
  %v6707 = vlaneseq
  %v6708 = vshrl.u32 %v6707, 7
  %v6709 = vsub.s32 4, %v6708
  %v6710 = vrot.slane %v6589, %v6709
  %v6711 = vlaneseq
  %v6712 = vshrl.u32 %v6711, 7
  %v6713 = vsub.s32 4, %v6712
  %v6714 = vrot.slane %v6590, %v6713
  %v6715 = vlaneseq
  %v6716 = vshrl.u32 %v6715, 7
  %v6717 = vsub.s32 4, %v6716
  %v6718 = vrot.slane %v6591, %v6717
  %v6719 = vlaneseq
  %v6720 = vshrl.u32 %v6719, 7
  %v6721 = vsub.s32 4, %v6720
  %v6722 = vrot.slane %v6592, %v6721
  %6723 = vset.pattern.permute.xlu0 4
  %6724 = vperm.xlu0 %6723, %v6609
  %v6725 = vpop.permute.xlu0 %6724
  %v6727 = vmul.f32 %v6710, %v6725
  %v6728 = vmul.f32 %v6714, %v6725
  %v6729 = vmul.f32 %v6718, %v6725
  %v6730 = vmul.f32 %v6722, %v6725
  %v6731 = vadd.f32 %v6703, %v6727
  %v6732 = vadd.f32 %v6704, %v6728
  %v6733 = vadd.f32 %v6705, %v6729
  %v6734 = vadd.f32 %v6706, %v6730
  %v6735 = vlaneseq
  %v6736 = vshrl.u32 %v6735, 7
  %v6737 = vsub.s32 5, %v6736
  %v6738 = vrot.slane %v6589, %v6737
  %v6739 = vlaneseq
  %v6740 = vshrl.u32 %v6739, 7
  %v6741 = vsub.s32 5, %v6740
  %v6742 = vrot.slane %v6590, %v6741
  %v6743 = vlaneseq
  %v6744 = vshrl.u32 %v6743, 7
  %v6745 = vsub.s32 5, %v6744
  %v6746 = vrot.slane %v6591, %v6745
  %v6747 = vlaneseq
  %v6748 = vshrl.u32 %v6747, 7
  %v6749 = vsub.s32 5, %v6748
  %v6750 = vrot.slane %v6592, %v6749
  %6751 = vset.pattern.permute.xlu0 5
  %6752 = vperm.xlu0 %6751, %v6609
  %v6753 = vpop.permute.xlu0 %6752
  %v6755 = vmul.f32 %v6738, %v6753
  %v6756 = vmul.f32 %v6742, %v6753
  %v6757 = vmul.f32 %v6746, %v6753
  %v6758 = vmul.f32 %v6750, %v6753
  %v6759 = vadd.f32 %v6731, %v6755
  %v6760 = vadd.f32 %v6732, %v6756
  %v6761 = vadd.f32 %v6733, %v6757
  %v6762 = vadd.f32 %v6734, %v6758
  %v6763 = vlaneseq
  %v6764 = vshrl.u32 %v6763, 7
  %v6765 = vsub.s32 6, %v6764
  %v6766 = vrot.slane %v6589, %v6765
  %v6767 = vlaneseq
  %v6768 = vshrl.u32 %v6767, 7
  %v6769 = vsub.s32 6, %v6768
  %v6770 = vrot.slane %v6590, %v6769
  %v6771 = vlaneseq
  %v6772 = vshrl.u32 %v6771, 7
  %v6773 = vsub.s32 6, %v6772
  %v6774 = vrot.slane %v6591, %v6773
  %v6775 = vlaneseq
  %v6776 = vshrl.u32 %v6775, 7
  %v6777 = vsub.s32 6, %v6776
  %v6778 = vrot.slane %v6592, %v6777
  %6779 = vset.pattern.permute.xlu0 6
  %6780 = vperm.xlu0 %6779, %v6609
  %v6781 = vpop.permute.xlu0 %6780
  %v6783 = vmul.f32 %v6766, %v6781
  %v6784 = vmul.f32 %v6770, %v6781
  %v6785 = vmul.f32 %v6774, %v6781
  %v6786 = vmul.f32 %v6778, %v6781
  %v6787 = vadd.f32 %v6759, %v6783
  %v6788 = vadd.f32 %v6760, %v6784
  %v6789 = vadd.f32 %v6761, %v6785
  %v6790 = vadd.f32 %v6762, %v6786
  %v6791 = vlaneseq
  %v6792 = vshrl.u32 %v6791, 7
  %v6793 = vsub.s32 7, %v6792
  %v6794 = vrot.slane %v6589, %v6793
  %v6795 = vlaneseq
  %v6796 = vshrl.u32 %v6795, 7
  %v6797 = vsub.s32 7, %v6796
  %v6798 = vrot.slane %v6590, %v6797
  %v6799 = vlaneseq
  %v6800 = vshrl.u32 %v6799, 7
  %v6801 = vsub.s32 7, %v6800
  %v6802 = vrot.slane %v6591, %v6801
  %v6803 = vlaneseq
  %v6804 = vshrl.u32 %v6803, 7
  %v6805 = vsub.s32 7, %v6804
  %v6806 = vrot.slane %v6592, %v6805
  %6807 = vset.pattern.permute.xlu0 7
  %6808 = vperm.xlu0 %6807, %v6609
  %v6809 = vpop.permute.xlu0 %6808
  %v6811 = vmul.f32 %v6794, %v6809
  %v6812 = vmul.f32 %v6798, %v6809
  %v6813 = vmul.f32 %v6802, %v6809
  %v6814 = vmul.f32 %v6806, %v6809
  %v6815 = vadd.f32 %v6787, %v6811
  %v6816 = vadd.f32 %v6788, %v6812
  %v6817 = vadd.f32 %v6789, %v6813
  %v6818 = vadd.f32 %v6790, %v6814
  %v6819 = vld [vmem:[%s71] sm:$0xff]
  %6821 = vset.pattern.permute.xlu0 0
  %6822 = vperm.xlu0 %6821, %v6819
  %v6823 = vpop.permute.xlu0 %6822
  %v6825 = vadd.f32 %v6815, %v6823
  %v6826 = vadd.f32 %v6816, %v6823
  %v6827 = vadd.f32 %v6817, %v6823
  %v6828 = vadd.f32 %v6818, %v6823
  %v6829 = vadd.f32 %v6825, %v6826
  %v6830 = vadd.f32 %v6829, %v6827
  %v6831 = vadd.f32 %v6830, %v6828
  %6832 = vadd.xlane.f32.xlu0 %v6831
  %v6833 = vpop.xlane.xlu0 %6832
  %v6834 = vmul.f32 %v6833, 0.001953125
  %v6835 = vsub.f32 %v6825, %v6834
  %v6836 = vsub.f32 %v6826, %v6834
  %v6837 = vsub.f32 %v6827, %v6834
  %v6838 = vsub.f32 %v6828, %v6834
  %v6839 = vmul.f32 %v6835, %v6835
  %v6840 = vmul.f32 %v6836, %v6836
  %v6841 = vmul.f32 %v6837, %v6837
  %v6842 = vmul.f32 %v6838, %v6838
  %v6843 = vadd.f32 %v6839, %v6840
  %v6844 = vadd.f32 %v6843, %v6841
  %v6845 = vadd.f32 %v6844, %v6842
  %6846 = vadd.xlane.f32.xlu0 %v6845
  %v6847 = vpop.xlane.xlu0 %6846
  %v6848 = vmul.f32 %v6847, 0.001953125
  %v6849 = vld [vmem:[%s73] sm:$0xff]
  %6851 = vset.pattern.permute.xlu0 0
  %6852 = vperm.xlu0 %6851, %v6849
  %v6853 = vpop.permute.xlu0 %6852
  %v6855 = vmul.f32 %v6853, %v6835
  %v6856 = vmul.f32 %v6853, %v6836
  %v6857 = vmul.f32 %v6853, %v6837
  %v6858 = vmul.f32 %v6853, %v6838
  %v6859 = vadd.f32 %v6848, 1e-05
  %v6860 = vrsqrt.pop %v6859
  %v6861 = vmul.f32 %v6855, %v6860
  %v6862 = vmul.f32 %v6856, %v6860
  %v6863 = vmul.f32 %v6857, %v6860
  %v6864 = vmul.f32 %v6858, %v6860
  %v6865 = vld [vmem:[%s75] sm:$0xff]
  %6867 = vset.pattern.permute.xlu0 0
  %6868 = vperm.xlu0 %6867, %v6865
  %v6869 = vpop.permute.xlu0 %6868
  %v6871 = vadd.f32 %v6861, %v6869
  %v6872 = vadd.f32 %v6862, %v6869
  %v6873 = vadd.f32 %v6863, %v6869
  %v6874 = vadd.f32 %v6864, %v6869
  %v6875 = vld [vmem:[%s77] sm:$0xff]
  %6877 = vset.pattern.permute.xlu0 0
  %6878 = vperm.xlu0 %6877, %v6875
  %v6879 = vpop.permute.xlu0 %6878
  %v6881 = vmul.f32 %v6871, %v6879
  %v6882 = vmul.f32 %v6872, %v6879
  %v6883 = vmul.f32 %v6873, %v6879
  %v6884 = vmul.f32 %v6874, %v6879
  %v6885 = vrot.slane %v6881, 4
  %v6886 = vadd.f32 %v6881, %v6885
  %v6887 = vrot.slane %v6886, 2
  %v6888 = vadd.f32 %v6886, %v6887
  %v6889 = vrot.slane %v6888, 1
  %v6890 = vadd.f32 %v6888, %v6889
  %v6891 = vrot.slane %v6882, 4
  %v6892 = vadd.f32 %v6882, %v6891
  %v6893 = vrot.slane %v6892, 2
  %v6894 = vadd.f32 %v6892, %v6893
  %v6895 = vrot.slane %v6894, 1
  %v6896 = vadd.f32 %v6894, %v6895
  %v6897 = vrot.slane %v6883, 4
  %v6898 = vadd.f32 %v6883, %v6897
  %v6899 = vrot.slane %v6898, 2
  %v6900 = vadd.f32 %v6898, %v6899
  %v6901 = vrot.slane %v6900, 1
  %v6902 = vadd.f32 %v6900, %v6901
  %v6903 = vrot.slane %v6884, 4
  %v6904 = vadd.f32 %v6884, %v6903
  %v6905 = vrot.slane %v6904, 2
  %v6906 = vadd.f32 %v6904, %v6905
  %v6907 = vrot.slane %v6906, 1
  %v6908 = vadd.f32 %v6906, %v6907
  %v6909 = vxor.u32 %v6890, 2147483648
  %v6910 = vxor.u32 %v6896, 2147483648
  %v6911 = vxor.u32 %v6902, 2147483648
  %v6912 = vxor.u32 %v6908, 2147483648
  %v6913 = vmul.f32 %v6909, 1.442695
  %v6914 = vpow.pop %v6913
  %v6915 = vmul.f32 %v6910, 1.442695
  %v6916 = vpow.pop %v6915
  %v6917 = vmul.f32 %v6911, 1.442695
  %v6918 = vpow.pop %v6917
  %v6919 = vmul.f32 %v6912, 1.442695
  %v6920 = vpow.pop %v6919
  %v6921 = vadd.f32 %v6914, 1.0
  %v6922 = vadd.f32 %v6916, 1.0
  %v6923 = vadd.f32 %v6918, 1.0
  %v6924 = vadd.f32 %v6920, 1.0
  %v6925 = vrcp.pop %v6921
  %v6926 = vmul.f32 1.0, %v6925
  %v6927 = vrcp.pop %v6922
  %v6928 = vmul.f32 1.0, %v6927
  %v6929 = vrcp.pop %v6923
  %v6930 = vmul.f32 1.0, %v6929
  %v6931 = vrcp.pop %v6924
  %v6932 = vmul.f32 1.0, %v6931
  %v6937 = vcombine.low %v6926, %v6928
  %v6938 = vcombine.low %v6930, %v6932
  %v6940 = vunpack.c.l.s4 1966171168
  %v6941 = vunpack.c.0.s8 %v6940
  %v6942 = vlaneseq
  %v6943 = vshrl.u32 %v6942, 7
  %v6944 = vsub.s32 %v6941, %v6943
  %v6945 = vrot.slane %v6937, %v6944
  %v6947 = vunpack.c.l.s4 1966171168
  %v6948 = vunpack.c.0.s8 %v6947
  %v6949 = vlaneseq
  %v6950 = vshrl.u32 %v6949, 7
  %v6951 = vsub.s32 %v6948, %v6950
  %v6952 = vrot.slane %v6938, %v6951
  %v6953 = vcombine.low %v6945, %v6952
  %v6955 = vunpack.c.l.s4 1966171168
  %v6956 = vunpack.c.0.s8 %v6955
  %v6957 = vlaneseq
  %v6958 = vshrl.u32 %v6957, 7
  %v6959 = vsub.s32 %v6956, %v6958
  %v6960 = vrot.slane %v6953, %v6959
  %v6962 = vlaneseq
  %vm6963 = vcmp.ge.s32.totalorder %v6962, 0
  %vm6964 = vcmp.lt.s32.totalorder %v6962, 512
  %vm6965 = vmand %vm6963, %vm6964
  %6966 = vst.msk [vmem:[%s79] sm:$0xf] %vm6965, %v6960
  // Predicated region
  $region158: #{cde_pde_cnn_forward.1} parent=0 // pred_check
    _
  $region159: #{cde_pde_cnn_forward.1} parent=0 // pred_check_branch
    %6968 = sbr.rel (0) target = $region161
  $region160: #{cde_pde_cnn_forward.1} parent=0 // pred_region
    _
  $region161: #{cde_pde_cnn_forward.1} parent=0 // pred_fallthru
    _
  // Predicated region
  $region162: #{cde_pde_cnn_forward.1} parent=0 // pred_check
    _
  $region163: #{cde_pde_cnn_forward.1} parent=0 // pred_check_branch
    %6970 = sbr.rel (0) target = $region165
  $region164: #{cde_pde_cnn_forward.1} parent=0 // pred_region
    _
  $region165: #{cde_pde_cnn_forward.1} parent=0 // pred_fallthru
    _

</llo_original>
